<compile_context>
chip_gen: v5e
topology: v5e:2x2
jax: 0.10.0
libtpu: 0.0.40
codegen_flags: <defaults>
</compile_context>

<pallas_src>
import jax
import jax.numpy as jnp
import numpy as np
from jax import lax
from jax.experimental import pallas as pl
from jax.experimental.pallas import tpu as pltpu

K = 4          # ConvTranspose3d kernel size
EPS = 1e-5     # InstanceNorm3d default eps
N_PHASE = 8    # 2x2x2 output parities of the stride-2 transposed conv
N_TAP = 27     # 3x3x3 dense-input offsets feeding all 8 phases


def upblock_kernel(x_ref, w_ref, o_ref):
    """One batch element.

    x_ref : (D+2, H+2, W+2, Cin)   halo-padded input, f32        (VMEM)
    w_ref : (27*Cin, 8*Cout)       folded phase/tap weight, bf16 (VMEM)
    o_ref : (D*H*W, 8*Cout)        phase-major output, f32       (VMEM)
    """
    Dp2, Hp2, Wp2, Cin = x_ref.shape
    D, H, W = Dp2 - 2, Hp2 - 2, Wp2 - 2
    Cout = w_ref.shape[1] // N_PHASE
    M = D * H * W

    # im2col: 27 shifted views of the dense input, folded into the contraction.
    pieces = []
    for od in range(3):
        for oh in range(3):
            for ow in range(3):
                p = x_ref[od:od + D, oh:oh + H, ow:ow + W, :]
                pieces.append(p.reshape(M, Cin))
    patch = jnp.concatenate(pieces, axis=1).astype(jnp.bfloat16)    # (M, 27*Cin)

    # One MXU matmul: taps in the contraction, phases*Cout as output columns,
    # f32 accumulation.  y[m, p*Cout + c]  with m = jd*H*W + jh*W + jw.
    y = jnp.dot(patch, w_ref[...], preferred_element_type=jnp.float32)

    # InstanceNorm3d (no affine, biased variance) + ReLU: per-channel stats over
    # every spatial position of every phase, single sum / sum-of-squares pass.
    s1 = jnp.sum(y, axis=0, keepdims=True)         # (1, 8*Cout)
    s2 = jnp.sum(y * y, axis=0, keepdims=True)     # (1, 8*Cout)
    s_c, ss_c = s1[:, 0:Cout], s2[:, 0:Cout]
    for p in range(1, N_PHASE):                    # fold the 8 phases per channel
        s_c = s_c + s1[:, p * Cout:(p + 1) * Cout]
        ss_c = ss_c + s2[:, p * Cout:(p + 1) * Cout]
    inv_n = 1.0 / float(M * N_PHASE)
    mean_c = s_c * inv_n                                       # (1, Cout)
    var_c = ss_c * inv_n - mean_c * mean_c
    scale_c = lax.rsqrt(var_c + EPS)
    shift = jnp.concatenate([mean_c] * N_PHASE, axis=1)        # (1, 8*Cout)
    scale = jnp.concatenate([scale_c] * N_PHASE, axis=1)

    o_ref[...] = jnp.maximum((y - shift) * scale, 0.0).astype(o_ref.dtype)


def _folded_weight(w_pt):
    """(Cin, Cout, 4, 4, 4) ConvTranspose3d weight -> (27*Cin, 8*Cout) bf16.

    Row block (od*9 + oh*3 + ow) holds the Cin coefficients of the dense-input
    tap at padded offset (od, oh, ow); column block (pd*4 + ph*2 + pw) is the
    output parity phase.  Per spatial dim, offset o feeds phase p iff
    k = p - 2*o + 3 is a valid kernel index; otherwise the block is zero.
    """
    Cin, Cout = w_pt.shape[0], w_pt.shape[1]
    zeros = jnp.zeros((Cin, Cout), w_pt.dtype)
    cols = []
    for pd in range(2):
        for ph in range(2):
            for pw in range(2):
                rows = []
                for od in range(3):
                    kd = pd - 2 * od + 3
                    for oh in range(3):
                        kh = ph - 2 * oh + 3
                        for ow in range(3):
                            kw = pw - 2 * ow + 3
                            ok = (0 <= kd < K) and (0 <= kh < K) and (0 <= kw < K)
                            rows.append(w_pt[:, :, kd, kh, kw] if ok else zeros)
                cols.append(jnp.concatenate(rows, axis=0))        # (27*Cin, Cout)
    return jnp.concatenate(cols, axis=1).astype(jnp.bfloat16)     # (27*Cin, 8*Cout)


@jax.jit
def unet_up_block(x_ncdhw, w_pt):
    """x: (N, Cin, D, H, W) f32, w: (Cin, Cout, 4, 4, 4) f32 -> (N, Cout, 2D, 2H, 2W)."""
    N, Cin, D, H, W = x_ncdhw.shape
    Cout = w_pt.shape[1]

    # layout glue: channels-last + 1-voxel zero halo (replaces v1's 8x dilated input)
    x = jnp.transpose(x_ncdhw, (0, 2, 3, 4, 1))                       # NDHWC
    x_pad = jnp.pad(x, ((0, 0), (1, 1), (1, 1), (1, 1), (0, 0)))

    w_big = _folded_weight(w_pt)                                      # (27*Cin, 8*Cout)

    out_flat = pl.pallas_call(
        upblock_kernel,
        out_shape=jax.ShapeDtypeStruct((N, D * H * W, N_PHASE * Cout), jnp.float32),
        grid_spec=pltpu.PrefetchScalarGridSpec(
            num_scalar_prefetch=0,
            grid=(N,),
            in_specs=[
                pl.BlockSpec((None, D + 2, H + 2, W + 2, Cin),
                             lambda n: (n, 0, 0, 0, 0)),
                pl.BlockSpec((N_TAP * Cin, N_PHASE * Cout),
                             lambda n: (0, 0)),
            ],
            out_specs=pl.BlockSpec((None, D * H * W, N_PHASE * Cout),
                                   lambda n: (n, 0, 0)),
        ),
        compiler_params=pltpu.CompilerParams(
            dimension_semantics=("parallel",)),
    )(x_pad, w_big)

    # layout glue: un-interleave the 8 output phases -> (N, Cout, 2D, 2H, 2W)
    y = out_flat.reshape(N, D, H, W, 2, 2, 2, Cout)      # [n, jd, jh, jw, pd, ph, pw, c]
    y = jnp.transpose(y, (0, 1, 4, 2, 5, 3, 6, 7))       # [n, jd, pd, jh, ph, jw, pw, c]
    y = y.reshape(N, 2 * D, 2 * H, 2 * W, Cout)
    return jnp.transpose(y, (0, 4, 1, 2, 3))             # NCDHW


def ref_forward(x_ncdhw, w_pt):
    """Pure-JAX f32 reference: ConvTranspose3d(4,2,p=1) -> InstanceNorm3d -> ReLU."""
    w_conv = jnp.transpose(w_pt[:, :, ::-1, ::-1, ::-1], (1, 0, 2, 3, 4))  # (Cout,Cin,K,K,K)
    y = lax.conv_general_dilated(
        x_ncdhw, w_conv, window_strides=(1, 1, 1),
        padding=[(2, 2)] * 3, lhs_dilation=(2, 2, 2),
        dimension_numbers=('NCDHW', 'OIDHW', 'NCDHW'))
    mean = y.mean(axis=(2, 3, 4), keepdims=True)
    var = ((y - mean) ** 2).mean(axis=(2, 3, 4), keepdims=True)
    return jnp.maximum((y - mean) * lax.rsqrt(var + EPS), 0.0)


if __name__ == "__main__":
    # Small shapes consistent with the module: N=2, in_size=4, out_size=8, D=H=W=8
    N, Cin, Cout, D = 2, 4, 8, 8

    key = jax.random.PRNGKey(0)
    kx, kw = jax.random.split(key)

    x = jax.random.normal(kx, (N, Cin, D, D, D), dtype=jnp.float32)

    # Deterministic Kaiming-uniform-style init for the ConvTranspose3d weight
    # (PyTorch weight layout (in, out, kD, kH, kW)).
    fan_in = Cout * K * K * K
    bound = float(np.sqrt(6.0 / fan_in))
    w = jax.random.uniform(kw, (Cin, Cout, K, K, K),
                           minval=-bound, maxval=bound, dtype=jnp.float32)

    out = jax.block_until_ready(unet_up_block(x, w))
    ref = jax.block_until_ready(ref_forward(x, w))

    assert out.shape == (N, Cout, 2 * D, 2 * D, 2 * D), out.shape
    # Matmul operands are bf16 (f32 accumulation, per the perf review); compare
    # against the exact-f32 reference with a bf16-appropriate tolerance.
    assert np.allclose(np.asarray(out), np.asarray(ref), atol=2e-2, rtol=2e-2), \
        "Pallas kernel does not match reference"

    print("KERNEL_OK")
</pallas_src>

<mosaic_0001>
module attributes {stable_mosaic.version = 11 : i64} {
  func.func @upblock_kernel(%arg0: i32, %arg1: memref<1x10x10x10x4xf32, #tpu.memory_space<vmem>>, %arg2: memref<108x64xbf16, #tpu.memory_space<vmem>>, %arg3: memref<1x512x64xf32, #tpu.memory_space<vmem>>) attributes {dimension_semantics = [#tpu.dimension_semantics<parallel>], iteration_bounds = array<i64: 2>, scalar_prefetch = 0 : i64, scratch_operands = 0 : i64, tpu.core_type = #tpu.core_type<tc>, window_params = [{transform_indices = @transform_0, window_bounds = array<i64: 1, 10, 10, 10, 4>}, {pipeline_mode = #tpu.pipeline_mode<synchronous>, transform_indices = @transform_1, window_bounds = array<i64: 108, 64>}, {transform_indices = @transform_2, window_bounds = array<i64: 1, 512, 64>}]} {
    %c0 = arith.constant 0 : index
    %c0_0 = arith.constant 0 : index
    %c0_1 = arith.constant 0 : index
    %c0_2 = arith.constant 0 : index
    %c0_3 = arith.constant 0 : index
    %0 = vector.load %arg1[%c0, %c0_0, %c0_1, %c0_2, %c0_3] : memref<1x10x10x10x4xf32, #tpu.memory_space<vmem>>, vector<1x8x8x8x4xf32>
    %1 = vector.shape_cast %0 : vector<1x8x8x8x4xf32> to vector<8x8x8x4xf32>
    %2 = vector.shape_cast %1 : vector<8x8x8x4xf32> to vector<512x4xf32>
    %c0_4 = arith.constant 0 : index
    %c0_5 = arith.constant 0 : index
    %c0_6 = arith.constant 0 : index
    %c1 = arith.constant 1 : index
    %c0_7 = arith.constant 0 : index
    %3 = vector.load %arg1[%c0_4, %c0_5, %c0_6, %c1, %c0_7] : memref<1x10x10x10x4xf32, #tpu.memory_space<vmem>>, vector<1x8x8x8x4xf32>
    %4 = vector.shape_cast %3 : vector<1x8x8x8x4xf32> to vector<8x8x8x4xf32>
    %5 = vector.shape_cast %4 : vector<8x8x8x4xf32> to vector<512x4xf32>
    %c0_8 = arith.constant 0 : index
    %c0_9 = arith.constant 0 : index
    %c0_10 = arith.constant 0 : index
    %c2 = arith.constant 2 : index
    %c0_11 = arith.constant 0 : index
    %6 = vector.load %arg1[%c0_8, %c0_9, %c0_10, %c2, %c0_11] : memref<1x10x10x10x4xf32, #tpu.memory_space<vmem>>, vector<1x8x8x8x4xf32>
    %7 = vector.shape_cast %6 : vector<1x8x8x8x4xf32> to vector<8x8x8x4xf32>
    %8 = vector.shape_cast %7 : vector<8x8x8x4xf32> to vector<512x4xf32>
    %c0_12 = arith.constant 0 : index
    %c0_13 = arith.constant 0 : index
    %c1_14 = arith.constant 1 : index
    %c0_15 = arith.constant 0 : index
    %c0_16 = arith.constant 0 : index
    %9 = vector.load %arg1[%c0_12, %c0_13, %c1_14, %c0_15, %c0_16] : memref<1x10x10x10x4xf32, #tpu.memory_space<vmem>>, vector<1x8x8x8x4xf32>
    %10 = vector.shape_cast %9 : vector<1x8x8x8x4xf32> to vector<8x8x8x4xf32>
    %11 = vector.shape_cast %10 : vector<8x8x8x4xf32> to vector<512x4xf32>
    %c0_17 = arith.constant 0 : index
    %c0_18 = arith.constant 0 : index
    %c1_19 = arith.constant 1 : index
    %c1_20 = arith.constant 1 : index
    %c0_21 = arith.constant 0 : index
    %12 = vector.load %arg1[%c0_17, %c0_18, %c1_19, %c1_20, %c0_21] : memref<1x10x10x10x4xf32, #tpu.memory_space<vmem>>, vector<1x8x8x8x4xf32>
    %13 = vector.shape_cast %12 : vector<1x8x8x8x4xf32> to vector<8x8x8x4xf32>
    %14 = vector.shape_cast %13 : vector<8x8x8x4xf32> to vector<512x4xf32>
    %c0_22 = arith.constant 0 : index
    %c0_23 = arith.constant 0 : index
    %c1_24 = arith.constant 1 : index
    %c2_25 = arith.constant 2 : index
    %c0_26 = arith.constant 0 : index
    %15 = vector.load %arg1[%c0_22, %c0_23, %c1_24, %c2_25, %c0_26] : memref<1x10x10x10x4xf32, #tpu.memory_space<vmem>>, vector<1x8x8x8x4xf32>
    %16 = vector.shape_cast %15 : vector<1x8x8x8x4xf32> to vector<8x8x8x4xf32>
    %17 = vector.shape_cast %16 : vector<8x8x8x4xf32> to vector<512x4xf32>
    %c0_27 = arith.constant 0 : index
    %c0_28 = arith.constant 0 : index
    %c2_29 = arith.constant 2 : index
    %c0_30 = arith.constant 0 : index
    %c0_31 = arith.constant 0 : index
    %18 = vector.load %arg1[%c0_27, %c0_28, %c2_29, %c0_30, %c0_31] : memref<1x10x10x10x4xf32, #tpu.memory_space<vmem>>, vector<1x8x8x8x4xf32>
    %19 = vector.shape_cast %18 : vector<1x8x8x8x4xf32> to vector<8x8x8x4xf32>
    %20 = vector.shape_cast %19 : vector<8x8x8x4xf32> to vector<512x4xf32>
    %c0_32 = arith.constant 0 : index
    %c0_33 = arith.constant 0 : index
    %c2_34 = arith.constant 2 : index
    %c1_35 = arith.constant 1 : index
    %c0_36 = arith.constant 0 : index
    %21 = vector.load %arg1[%c0_32, %c0_33, %c2_34, %c1_35, %c0_36] : memref<1x10x10x10x4xf32, #tpu.memory_space<vmem>>, vector<1x8x8x8x4xf32>
    %22 = vector.shape_cast %21 : vector<1x8x8x8x4xf32> to vector<8x8x8x4xf32>
    %23 = vector.shape_cast %22 : vector<8x8x8x4xf32> to vector<512x4xf32>
    %c0_37 = arith.constant 0 : index
    %c0_38 = arith.constant 0 : index
    %c2_39 = arith.constant 2 : index
    %c2_40 = arith.constant 2 : index
    %c0_41 = arith.constant 0 : index
    %24 = vector.load %arg1[%c0_37, %c0_38, %c2_39, %c2_40, %c0_41] : memref<1x10x10x10x4xf32, #tpu.memory_space<vmem>>, vector<1x8x8x8x4xf32>
    %25 = vector.shape_cast %24 : vector<1x8x8x8x4xf32> to vector<8x8x8x4xf32>
    %26 = vector.shape_cast %25 : vector<8x8x8x4xf32> to vector<512x4xf32>
    %c0_42 = arith.constant 0 : index
    %c1_43 = arith.constant 1 : index
    %c0_44 = arith.constant 0 : index
    %c0_45 = arith.constant 0 : index
    %c0_46 = arith.constant 0 : index
    %27 = vector.load %arg1[%c0_42, %c1_43, %c0_44, %c0_45, %c0_46] : memref<1x10x10x10x4xf32, #tpu.memory_space<vmem>>, vector<1x8x8x8x4xf32>
    %28 = vector.shape_cast %27 : vector<1x8x8x8x4xf32> to vector<8x8x8x4xf32>
    %29 = vector.shape_cast %28 : vector<8x8x8x4xf32> to vector<512x4xf32>
    %c0_47 = arith.constant 0 : index
    %c1_48 = arith.constant 1 : index
    %c0_49 = arith.constant 0 : index
    %c1_50 = arith.constant 1 : index
    %c0_51 = arith.constant 0 : index
    %30 = vector.load %arg1[%c0_47, %c1_48, %c0_49, %c1_50, %c0_51] : memref<1x10x10x10x4xf32, #tpu.memory_space<vmem>>, vector<1x8x8x8x4xf32>
    %31 = vector.shape_cast %30 : vector<1x8x8x8x4xf32> to vector<8x8x8x4xf32>
    %32 = vector.shape_cast %31 : vector<8x8x8x4xf32> to vector<512x4xf32>
    %c0_52 = arith.constant 0 : index
    %c1_53 = arith.constant 1 : index
    %c0_54 = arith.constant 0 : index
    %c2_55 = arith.constant 2 : index
    %c0_56 = arith.constant 0 : index
    %33 = vector.load %arg1[%c0_52, %c1_53, %c0_54, %c2_55, %c0_56] : memref<1x10x10x10x4xf32, #tpu.memory_space<vmem>>, vector<1x8x8x8x4xf32>
    %34 = vector.shape_cast %33 : vector<1x8x8x8x4xf32> to vector<8x8x8x4xf32>
    %35 = vector.shape_cast %34 : vector<8x8x8x4xf32> to vector<512x4xf32>
    %c0_57 = arith.constant 0 : index
    %c1_58 = arith.constant 1 : index
    %c1_59 = arith.constant 1 : index
    %c0_60 = arith.constant 0 : index
    %c0_61 = arith.constant 0 : index
    %36 = vector.load %arg1[%c0_57, %c1_58, %c1_59, %c0_60, %c0_61] : memref<1x10x10x10x4xf32, #tpu.memory_space<vmem>>, vector<1x8x8x8x4xf32>
    %37 = vector.shape_cast %36 : vector<1x8x8x8x4xf32> to vector<8x8x8x4xf32>
    %38 = vector.shape_cast %37 : vector<8x8x8x4xf32> to vector<512x4xf32>
    %c0_62 = arith.constant 0 : index
    %c1_63 = arith.constant 1 : index
    %c1_64 = arith.constant 1 : index
    %c1_65 = arith.constant 1 : index
    %c0_66 = arith.constant 0 : index
    %39 = vector.load %arg1[%c0_62, %c1_63, %c1_64, %c1_65, %c0_66] : memref<1x10x10x10x4xf32, #tpu.memory_space<vmem>>, vector<1x8x8x8x4xf32>
    %40 = vector.shape_cast %39 : vector<1x8x8x8x4xf32> to vector<8x8x8x4xf32>
    %41 = vector.shape_cast %40 : vector<8x8x8x4xf32> to vector<512x4xf32>
    %c0_67 = arith.constant 0 : index
    %c1_68 = arith.constant 1 : index
    %c1_69 = arith.constant 1 : index
    %c2_70 = arith.constant 2 : index
    %c0_71 = arith.constant 0 : index
    %42 = vector.load %arg1[%c0_67, %c1_68, %c1_69, %c2_70, %c0_71] : memref<1x10x10x10x4xf32, #tpu.memory_space<vmem>>, vector<1x8x8x8x4xf32>
    %43 = vector.shape_cast %42 : vector<1x8x8x8x4xf32> to vector<8x8x8x4xf32>
    %44 = vector.shape_cast %43 : vector<8x8x8x4xf32> to vector<512x4xf32>
    %c0_72 = arith.constant 0 : index
    %c1_73 = arith.constant 1 : index
    %c2_74 = arith.constant 2 : index
    %c0_75 = arith.constant 0 : index
    %c0_76 = arith.constant 0 : index
    %45 = vector.load %arg1[%c0_72, %c1_73, %c2_74, %c0_75, %c0_76] : memref<1x10x10x10x4xf32, #tpu.memory_space<vmem>>, vector<1x8x8x8x4xf32>
    %46 = vector.shape_cast %45 : vector<1x8x8x8x4xf32> to vector<8x8x8x4xf32>
    %47 = vector.shape_cast %46 : vector<8x8x8x4xf32> to vector<512x4xf32>
    %c0_77 = arith.constant 0 : index
    %c1_78 = arith.constant 1 : index
    %c2_79 = arith.constant 2 : index
    %c1_80 = arith.constant 1 : index
    %c0_81 = arith.constant 0 : index
    %48 = vector.load %arg1[%c0_77, %c1_78, %c2_79, %c1_80, %c0_81] : memref<1x10x10x10x4xf32, #tpu.memory_space<vmem>>, vector<1x8x8x8x4xf32>
    %49 = vector.shape_cast %48 : vector<1x8x8x8x4xf32> to vector<8x8x8x4xf32>
    %50 = vector.shape_cast %49 : vector<8x8x8x4xf32> to vector<512x4xf32>
    %c0_82 = arith.constant 0 : index
    %c1_83 = arith.constant 1 : index
    %c2_84 = arith.constant 2 : index
    %c2_85 = arith.constant 2 : index
    %c0_86 = arith.constant 0 : index
    %51 = vector.load %arg1[%c0_82, %c1_83, %c2_84, %c2_85, %c0_86] : memref<1x10x10x10x4xf32, #tpu.memory_space<vmem>>, vector<1x8x8x8x4xf32>
    %52 = vector.shape_cast %51 : vector<1x8x8x8x4xf32> to vector<8x8x8x4xf32>
    %53 = vector.shape_cast %52 : vector<8x8x8x4xf32> to vector<512x4xf32>
    %c0_87 = arith.constant 0 : index
    %c2_88 = arith.constant 2 : index
    %c0_89 = arith.constant 0 : index
    %c0_90 = arith.constant 0 : index
    %c0_91 = arith.constant 0 : index
    %54 = vector.load %arg1[%c0_87, %c2_88, %c0_89, %c0_90, %c0_91] : memref<1x10x10x10x4xf32, #tpu.memory_space<vmem>>, vector<1x8x8x8x4xf32>
    %55 = vector.shape_cast %54 : vector<1x8x8x8x4xf32> to vector<8x8x8x4xf32>
    %56 = vector.shape_cast %55 : vector<8x8x8x4xf32> to vector<512x4xf32>
    %c0_92 = arith.constant 0 : index
    %c2_93 = arith.constant 2 : index
    %c0_94 = arith.constant 0 : index
    %c1_95 = arith.constant 1 : index
    %c0_96 = arith.constant 0 : index
    %57 = vector.load %arg1[%c0_92, %c2_93, %c0_94, %c1_95, %c0_96] : memref<1x10x10x10x4xf32, #tpu.memory_space<vmem>>, vector<1x8x8x8x4xf32>
    %58 = vector.shape_cast %57 : vector<1x8x8x8x4xf32> to vector<8x8x8x4xf32>
    %59 = vector.shape_cast %58 : vector<8x8x8x4xf32> to vector<512x4xf32>
    %c0_97 = arith.constant 0 : index
    %c2_98 = arith.constant 2 : index
    %c0_99 = arith.constant 0 : index
    %c2_100 = arith.constant 2 : index
    %c0_101 = arith.constant 0 : index
    %60 = vector.load %arg1[%c0_97, %c2_98, %c0_99, %c2_100, %c0_101] : memref<1x10x10x10x4xf32, #tpu.memory_space<vmem>>, vector<1x8x8x8x4xf32>
    %61 = vector.shape_cast %60 : vector<1x8x8x8x4xf32> to vector<8x8x8x4xf32>
    %62 = vector.shape_cast %61 : vector<8x8x8x4xf32> to vector<512x4xf32>
    %c0_102 = arith.constant 0 : index
    %c2_103 = arith.constant 2 : index
    %c1_104 = arith.constant 1 : index
    %c0_105 = arith.constant 0 : index
    %c0_106 = arith.constant 0 : index
    %63 = vector.load %arg1[%c0_102, %c2_103, %c1_104, %c0_105, %c0_106] : memref<1x10x10x10x4xf32, #tpu.memory_space<vmem>>, vector<1x8x8x8x4xf32>
    %64 = vector.shape_cast %63 : vector<1x8x8x8x4xf32> to vector<8x8x8x4xf32>
    %65 = vector.shape_cast %64 : vector<8x8x8x4xf32> to vector<512x4xf32>
    %c0_107 = arith.constant 0 : index
    %c2_108 = arith.constant 2 : index
    %c1_109 = arith.constant 1 : index
    %c1_110 = arith.constant 1 : index
    %c0_111 = arith.constant 0 : index
    %66 = vector.load %arg1[%c0_107, %c2_108, %c1_109, %c1_110, %c0_111] : memref<1x10x10x10x4xf32, #tpu.memory_space<vmem>>, vector<1x8x8x8x4xf32>
    %67 = vector.shape_cast %66 : vector<1x8x8x8x4xf32> to vector<8x8x8x4xf32>
    %68 = vector.shape_cast %67 : vector<8x8x8x4xf32> to vector<512x4xf32>
    %c0_112 = arith.constant 0 : index
    %c2_113 = arith.constant 2 : index
    %c1_114 = arith.constant 1 : index
    %c2_115 = arith.constant 2 : index
    %c0_116 = arith.constant 0 : index
    %69 = vector.load %arg1[%c0_112, %c2_113, %c1_114, %c2_115, %c0_116] : memref<1x10x10x10x4xf32, #tpu.memory_space<vmem>>, vector<1x8x8x8x4xf32>
    %70 = vector.shape_cast %69 : vector<1x8x8x8x4xf32> to vector<8x8x8x4xf32>
    %71 = vector.shape_cast %70 : vector<8x8x8x4xf32> to vector<512x4xf32>
    %c0_117 = arith.constant 0 : index
    %c2_118 = arith.constant 2 : index
    %c2_119 = arith.constant 2 : index
    %c0_120 = arith.constant 0 : index
    %c0_121 = arith.constant 0 : index
    %72 = vector.load %arg1[%c0_117, %c2_118, %c2_119, %c0_120, %c0_121] : memref<1x10x10x10x4xf32, #tpu.memory_space<vmem>>, vector<1x8x8x8x4xf32>
    %73 = vector.shape_cast %72 : vector<1x8x8x8x4xf32> to vector<8x8x8x4xf32>
    %74 = vector.shape_cast %73 : vector<8x8x8x4xf32> to vector<512x4xf32>
    %c0_122 = arith.constant 0 : index
    %c2_123 = arith.constant 2 : index
    %c2_124 = arith.constant 2 : index
    %c1_125 = arith.constant 1 : index
    %c0_126 = arith.constant 0 : index
    %75 = vector.load %arg1[%c0_122, %c2_123, %c2_124, %c1_125, %c0_126] : memref<1x10x10x10x4xf32, #tpu.memory_space<vmem>>, vector<1x8x8x8x4xf32>
    %76 = vector.shape_cast %75 : vector<1x8x8x8x4xf32> to vector<8x8x8x4xf32>
    %77 = vector.shape_cast %76 : vector<8x8x8x4xf32> to vector<512x4xf32>
    %c0_127 = arith.constant 0 : index
    %c2_128 = arith.constant 2 : index
    %c2_129 = arith.constant 2 : index
    %c2_130 = arith.constant 2 : index
    %c0_131 = arith.constant 0 : index
    %78 = vector.load %arg1[%c0_127, %c2_128, %c2_129, %c2_130, %c0_131] : memref<1x10x10x10x4xf32, #tpu.memory_space<vmem>>, vector<1x8x8x8x4xf32>
    %79 = vector.shape_cast %78 : vector<1x8x8x8x4xf32> to vector<8x8x8x4xf32>
    %80 = vector.shape_cast %79 : vector<8x8x8x4xf32> to vector<512x4xf32>
    %81 = tpu.concatenate %2, %5, %8, %11, %14, %17, %20, %23, %26, %29, %32, %35, %38, %41, %44, %47 in 1 : vector<512x4xf32>, vector<512x4xf32>, vector<512x4xf32>, vector<512x4xf32>, vector<512x4xf32>, vector<512x4xf32>, vector<512x4xf32>, vector<512x4xf32>, vector<512x4xf32>, vector<512x4xf32>, vector<512x4xf32>, vector<512x4xf32>, vector<512x4xf32>, vector<512x4xf32>, vector<512x4xf32>, vector<512x4xf32> -> vector<512x64xf32>
    %82 = tpu.concatenate %50, %53, %56, %59, %62, %65, %68, %71, %74, %77, %80 in 1 : vector<512x4xf32>, vector<512x4xf32>, vector<512x4xf32>, vector<512x4xf32>, vector<512x4xf32>, vector<512x4xf32>, vector<512x4xf32>, vector<512x4xf32>, vector<512x4xf32>, vector<512x4xf32>, vector<512x4xf32> -> vector<512x44xf32>
    %83 = tpu.concatenate %81, %82 in 1 : vector<512x64xf32>, vector<512x44xf32> -> vector<512x108xf32>
    %84 = arith.truncf %83 : vector<512x108xf32> to vector<512x108xbf16>
    %c0_132 = arith.constant 0 : index
    %c0_133 = arith.constant 0 : index
    %85 = vector.load %arg2[%c0_132, %c0_133] : memref<108x64xbf16, #tpu.memory_space<vmem>>, vector<108x64xbf16>
    %cst = arith.constant dense<0.000000e+00> : vector<512x64xf32>
    %86 = tpu.matmul %84, %85, %cst {dimension_numbers = #tpu.dot_dimension_numbers<[1], [0], [0], [1], [0, 0, 1, 1], [], []>} : vector<512x108xbf16>, vector<108x64xbf16>, vector<512x64xf32> -> vector<512x64xf32>
    %cst_134 = arith.constant dense<0.000000e+00> : vector<64xf32>
    %87 = vector.multi_reduction <add>, %86, %cst_134 [0] : vector<512x64xf32> to vector<64xf32>
    %88 = vector.shape_cast %87 : vector<64xf32> to vector<1x64xf32>
    %89 = arith.mulf %86, %86 : vector<512x64xf32>
    %cst_135 = arith.constant dense<0.000000e+00> : vector<64xf32>
    %90 = vector.multi_reduction <add>, %89, %cst_135 [0] : vector<512x64xf32> to vector<64xf32>
    %91 = vector.shape_cast %90 : vector<64xf32> to vector<1x64xf32>
    %92 = vector.extract_strided_slice %88 {offsets = [0, 0], sizes = [1, 8], strides = [1, 1]} : vector<1x64xf32> to vector<1x8xf32>
    %93 = vector.extract_strided_slice %91 {offsets = [0, 0], sizes = [1, 8], strides = [1, 1]} : vector<1x64xf32> to vector<1x8xf32>
    %94 = vector.extract_strided_slice %88 {offsets = [0, 8], sizes = [1, 8], strides = [1, 1]} : vector<1x64xf32> to vector<1x8xf32>
    %95 = arith.addf %92, %94 : vector<1x8xf32>
    %96 = vector.extract_strided_slice %91 {offsets = [0, 8], sizes = [1, 8], strides = [1, 1]} : vector<1x64xf32> to vector<1x8xf32>
    %97 = arith.addf %93, %96 : vector<1x8xf32>
    %98 = vector.extract_strided_slice %88 {offsets = [0, 16], sizes = [1, 8], strides = [1, 1]} : vector<1x64xf32> to vector<1x8xf32>
    %99 = arith.addf %95, %98 : vector<1x8xf32>
    %100 = vector.extract_strided_slice %91 {offsets = [0, 16], sizes = [1, 8], strides = [1, 1]} : vector<1x64xf32> to vector<1x8xf32>
    %101 = arith.addf %97, %100 : vector<1x8xf32>
    %102 = vector.extract_strided_slice %88 {offsets = [0, 24], sizes = [1, 8], strides = [1, 1]} : vector<1x64xf32> to vector<1x8xf32>
    %103 = arith.addf %99, %102 : vector<1x8xf32>
    %104 = vector.extract_strided_slice %91 {offsets = [0, 24], sizes = [1, 8], strides = [1, 1]} : vector<1x64xf32> to vector<1x8xf32>
    %105 = arith.addf %101, %104 : vector<1x8xf32>
    %106 = vector.extract_strided_slice %88 {offsets = [0, 32], sizes = [1, 8], strides = [1, 1]} : vector<1x64xf32> to vector<1x8xf32>
    %107 = arith.addf %103, %106 : vector<1x8xf32>
    %108 = vector.extract_strided_slice %91 {offsets = [0, 32], sizes = [1, 8], strides = [1, 1]} : vector<1x64xf32> to vector<1x8xf32>
    %109 = arith.addf %105, %108 : vector<1x8xf32>
    %110 = vector.extract_strided_slice %88 {offsets = [0, 40], sizes = [1, 8], strides = [1, 1]} : vector<1x64xf32> to vector<1x8xf32>
    %111 = arith.addf %107, %110 : vector<1x8xf32>
    %112 = vector.extract_strided_slice %91 {offsets = [0, 40], sizes = [1, 8], strides = [1, 1]} : vector<1x64xf32> to vector<1x8xf32>
    %113 = arith.addf %109, %112 : vector<1x8xf32>
    %114 = vector.extract_strided_slice %88 {offsets = [0, 48], sizes = [1, 8], strides = [1, 1]} : vector<1x64xf32> to vector<1x8xf32>
    %115 = arith.addf %111, %114 : vector<1x8xf32>
    %116 = vector.extract_strided_slice %91 {offsets = [0, 48], sizes = [1, 8], strides = [1, 1]} : vector<1x64xf32> to vector<1x8xf32>
    %117 = arith.addf %113, %116 : vector<1x8xf32>
    %118 = vector.extract_strided_slice %88 {offsets = [0, 56], sizes = [1, 8], strides = [1, 1]} : vector<1x64xf32> to vector<1x8xf32>
    %119 = arith.addf %115, %118 : vector<1x8xf32>
    %120 = vector.extract_strided_slice %91 {offsets = [0, 56], sizes = [1, 8], strides = [1, 1]} : vector<1x64xf32> to vector<1x8xf32>
    %121 = arith.addf %117, %120 : vector<1x8xf32>
    %cst_136 = arith.constant 2.44140625E-4 : f32
    %122 = vector.broadcast %cst_136 : f32 to vector<1x8xf32>
    %123 = arith.mulf %119, %122 : vector<1x8xf32>
    %cst_137 = arith.constant 2.44140625E-4 : f32
    %124 = vector.broadcast %cst_137 : f32 to vector<1x8xf32>
    %125 = arith.mulf %121, %124 : vector<1x8xf32>
    %126 = arith.mulf %123, %123 : vector<1x8xf32>
    %127 = arith.subf %125, %126 : vector<1x8xf32>
    %cst_138 = arith.constant 9.99999974E-6 : f32
    %128 = vector.broadcast %cst_138 : f32 to vector<1x8xf32>
    %129 = arith.addf %127, %128 : vector<1x8xf32>
    %130 = math.rsqrt %129 : vector<1x8xf32>
    %131 = tpu.concatenate %123, %123, %123, %123, %123, %123, %123, %123 in 1 : vector<1x8xf32>, vector<1x8xf32>, vector<1x8xf32>, vector<1x8xf32>, vector<1x8xf32>, vector<1x8xf32>, vector<1x8xf32>, vector<1x8xf32> -> vector<1x64xf32>
    %132 = tpu.concatenate %130, %130, %130, %130, %130, %130, %130, %130 in 1 : vector<1x8xf32>, vector<1x8xf32>, vector<1x8xf32>, vector<1x8xf32>, vector<1x8xf32>, vector<1x8xf32>, vector<1x8xf32>, vector<1x8xf32> -> vector<1x64xf32>
    %133 = vector.broadcast %131 : vector<1x64xf32> to vector<512x64xf32>
    %134 = arith.subf %86, %133 : vector<512x64xf32>
    %135 = vector.broadcast %132 : vector<1x64xf32> to vector<512x64xf32>
    %136 = arith.mulf %134, %135 : vector<512x64xf32>
    %cst_139 = arith.constant 0.000000e+00 : f32
    %137 = vector.broadcast %cst_139 : f32 to vector<512x64xf32>
    %138 = arith.maximumf %136, %137 : vector<512x64xf32>
    %c0_140 = arith.constant 0 : index
    %c0_141 = arith.constant 0 : index
    %c0_142 = arith.constant 0 : index
    %139 = vector.load %arg3[%c0_140, %c0_141, %c0_142] : memref<1x512x64xf32, #tpu.memory_space<vmem>>, vector<1x512x64xf32>
    %140 = vector.shape_cast %139 : vector<1x512x64xf32> to vector<512x64xf32>
    %141 = vector.shape_cast %138 : vector<512x64xf32> to vector<1x512x64xf32>
    tpu.vector_store %arg3[%c0_140, %c0_141, %c0_142], %141 {strides = array<i32>} : memref<1x512x64xf32, #tpu.memory_space<vmem>>, vector<1x512x64xf32>,
    return
  }
  func.func @transform_0(%arg0: i32) -> (i32, i32, i32, i32, i32) {
    %c0_i32 = arith.constant 0 : i32
    %c0_i32_0 = arith.constant 0 : i32
    %c0_i32_1 = arith.constant 0 : i32
    %c0_i32_2 = arith.constant 0 : i32
    %c0_i32_3 = arith.constant 0 : i32
    return %arg0, %c0_i32, %c0_i32_0, %c0_i32_1, %c0_i32_2 : i32, i32, i32, i32, i32
  }
  func.func @transform_1(%arg0: i32) -> (i32, i32) {
    %c0_i32 = arith.constant 0 : i32
    %c0_i32_0 = arith.constant 0 : i32
    %c0_i32_1 = arith.constant 0 : i32
    return %c0_i32, %c0_i32_0 : i32, i32
  }
  func.func @transform_2(%arg0: i32) -> (i32, i32, i32) {
    %c0_i32 = arith.constant 0 : i32
    %c0_i32_0 = arith.constant 0 : i32
    %c0_i32_1 = arith.constant 0 : i32
    return %arg0, %c0_i32, %c0_i32_0 : i32, i32, i32
  }
}

</mosaic_0001>

<llo_original>
// kernel: unet_up_block.1
$region0: #{unet_up_block.1}
  #allocation0 [shape = 'u32[]', space=smem, size = 0x4, offset = 0x4, fixed_abs, tag = 'smem constant byte address 0x4 - core index']
  #allocation1 [shape = 'u32[72,128]{1,0:T(1,128)}', space=vmem, size = 0x9000, scoped, tag = 'internal scratch']
  %s0 = inlined_call_operand.vmem [shape: f32[2,10,10,10,4], index: 0, kind: input, shape index: {}]
  %s1 = inlined_call_operand.vmem [shape: bf16[108,64], index: 1, kind: input, shape index: {}]
  %s2 = inlined_call_operand.vmem [shape: f32[2,512,64], index: 2, kind: output, shape index: {}]
  %s3 = sld [smem:[#allocation0]]
  $region41: #{unet_up_block.1} parent=0
    _
  %s5 = ssub.s32 1, %s3
  %s6 = scalar_select 0, %s5, %s3
  loop: start=0, step=1, limit=4
  $region2: #{unet_up_block.1} parent=0 // loop_pre_header
    _
  $region3: #{unet_up_block.1} parent=0 // loop_header
    %s8 = sphi 0, %s12
    %p9 = scmp.ge.s32.totalorder %s8, 4
    %s18 = sphi 0, %s20
    %s21 = sphi 0, %s18
    %s22 = sphi 0, %s21
    %s38 = sphi 0, %s22
    %s42 = sphi 0, %s42
    %s44 = sphi 0, %s42
    %s45 = sphi 0, %s44
    %s59 = sphi 0, %s45
    %s65 = sphi 0, %s67
    %s68 = sphi 0, %s65
    %s69 = sphi 0, %s68
    %s85 = sphi 0, %s69
  $region4: #{unet_up_block.1} parent=0 // loop_header_branch
    %11 = sbr.rel (%p9) target = $region8
  $region5: #{unet_up_block.1} parent=0 // loop_body
    %s13 = ssub.s32 %s8, 1
    %s14 = ssub.s32 %s8, 2
    %s15 = sadd.s32 %s8, 1
    %s16 = ssub.s32 %s8, %s15
    %p17 = scmp.eq.s32.totalorder %s16, 0
    %s19 = sadd.s32 %s18, 1
    %s20 = scalar_select %p17, %s18, %s19
    %p23 = pneg %p17
    %p24 = scmp.eq.s32.totalorder %s8, 1
    %p25 = por %p23, %p24
    %p26 = scmp.ne.s32.totalorder %s18, %s21
    %p27 = scmp.eq.s32.totalorder %s8, 0
    %p28 = por %p26, %p27
    %p29 = scmp.ne.s32.totalorder %s18, %s21
    %p30 = scmp.eq.s32.totalorder %s13, 1
    %p31 = por %p29, %p30
    %p32 = scmp.ne.s32.totalorder %s21, %s22
    %p33 = scmp.eq.s32.totalorder %s13, 0
    %p34 = por %p32, %p33
    %p35 = scmp.ne.s32.totalorder %s21, %s22
    %p36 = scmp.eq.s32.totalorder %s14, 1
    %p37 = por %p35, %p36
    %p39 = scmp.ne.s32.totalorder %s22, %s38
    %p40 = scmp.eq.s32.totalorder %s14, 0
    %p41 = por %p39, %p40
    %s43 = sadd.s32 %s42, 1
    %p46 = scmp.eq.s32.totalorder %s8, 1
    %p47 = scmp.ne.s32.totalorder %s42, %s44
    %p48 = scmp.eq.s32.totalorder %s8, 0
    %p49 = por %p47, %p48
    %p50 = scmp.ne.s32.totalorder %s42, %s44
    %p51 = scmp.eq.s32.totalorder %s13, 1
    %p52 = por %p50, %p51
    %p53 = scmp.ne.s32.totalorder %s44, %s45
    %p54 = scmp.eq.s32.totalorder %s13, 0
    %p55 = por %p53, %p54
    %p56 = scmp.ne.s32.totalorder %s44, %s45
    %p57 = scmp.eq.s32.totalorder %s14, 1
    %p58 = por %p56, %p57
    %p60 = scmp.ne.s32.totalorder %s45, %s59
    %p61 = scmp.eq.s32.totalorder %s14, 0
    %p62 = por %p60, %p61
    %s63 = ssub.s32 %s8, %s15
    %p64 = scmp.eq.s32.totalorder %s63, 0
    %s66 = sadd.s32 %s65, 1
    %s67 = scalar_select %p64, %s65, %s66
    %p70 = pneg %p64
    %p71 = scmp.eq.s32.totalorder %s8, 1
    %p72 = por %p70, %p71
    %p73 = scmp.ne.s32.totalorder %s65, %s68
    %p74 = scmp.eq.s32.totalorder %s8, 0
    %p75 = por %p73, %p74
    %p76 = scmp.ne.s32.totalorder %s65, %s68
    %p77 = scmp.eq.s32.totalorder %s13, 1
    %p78 = por %p76, %p77
    %p79 = scmp.ne.s32.totalorder %s68, %s69
    %p80 = scmp.eq.s32.totalorder %s13, 0
    %p81 = por %p79, %p80
    %p82 = scmp.ne.s32.totalorder %s68, %s69
    %p83 = scmp.eq.s32.totalorder %s14, 1
    %p84 = por %p82, %p83
    %p86 = scmp.ne.s32.totalorder %s69, %s85
    %p87 = scmp.eq.s32.totalorder %s14, 0
    %p88 = por %p86, %p87
    %p89 = scmp.le.s32.totalorder 1, %s8
    %p90 = scmp.lt.s32.totalorder %s8, 3
    %p91 = pnand %p89, %p90
    %p92 = pneg %p91
    // Predicated region
    $region9: #{unet_up_block.1} parent=5 // pred_check
      _
    $region10: #{unet_up_block.1} parent=5 // pred_check_branch
      %94 = sbr.rel (%p91) target = $region12
    $region11: #{unet_up_block.1} parent=5 // pred_region
      %s95 = ssub.s32 %s8, 1
      // Predicated region
      $region13: #{unet_up_block.1} parent=11 // pred_check
        %p96 = pneg %p55
      $region14: #{unet_up_block.1} parent=11 // pred_check_branch
        %98 = sbr.rel (%p96) target = $region16
      $region15: #{unet_up_block.1} parent=11 // pred_region
        _
      $region16: #{unet_up_block.1} parent=11 // pred_fallthru
        _
    $region12: #{unet_up_block.1} parent=5 // pred_fallthru
      _
    %p99 = scmp.lt.s32.totalorder %s8, 2
    // Predicated region
    $region17: #{unet_up_block.1} parent=5 // pred_check
      %p100 = pneg %p99
    $region18: #{unet_up_block.1} parent=5 // pred_check_branch
      %102 = sbr.rel (%p100) target = $region20
    $region19: #{unet_up_block.1} parent=5 // pred_region
      // Predicated region
      $region21: #{unet_up_block.1} parent=19 // pred_check
        %p103 = pneg %p28
      $region22: #{unet_up_block.1} parent=19 // pred_check_branch
        %105 = sbr.rel (%p103) target = $region24
      $region23: #{unet_up_block.1} parent=19 // pred_region
        %p106 = scmp.lt.s32.totalorder %s8, 1
        %s107 = scalar_select %p106, %s8, 1
        %s108 = smul.addr %s107, 200
        %s109 = smul.addr %s108, 8
        %s110 = scalar_lea.vmem %s0, %s109
      $region24: #{unet_up_block.1} parent=19 // pred_fallthru
        _
    $region20: #{unet_up_block.1} parent=5 // pred_fallthru
      _
    %p111 = scmp.le.s32.totalorder 1, %s8
    %p112 = scmp.lt.s32.totalorder %s8, 3
    %p113 = pnand %p111, %p112
    %p114 = pneg %p113
    // Predicated region
    $region25: #{unet_up_block.1} parent=5 // pred_check
      _
    $region26: #{unet_up_block.1} parent=5 // pred_check_branch
      %116 = sbr.rel (%p113) target = $region28
    $region27: #{unet_up_block.1} parent=5 // pred_region
      %s117 = ssub.s32 %s8, 1
      %p118 = scmp.lt.s32.totalorder %s13, 1
      %s119 = scalar_select %p118, %s13, 1
      %s120 = smul.addr %s119, 200
      %s121 = smul.addr %s120, 8
      %s122 = scalar_lea.vmem %s0, %s121
      %p123 = pneg %p34
      %p124 = pneg %p31
      %p125 = pneg %p55
      %p126 = pneg %p52
      %p127 = pneg %p81
      %p128 = pneg %p78
      %p129 = scmp.lt.s32.totalorder %s13, 1
      %s130 = scalar_select %p129, %s13, 1
      %s131 = smul.addr %s130, 64
      %s132 = smul.addr %s131, 8
      %s133 = scalar_lea.vmem %s2, %s132
      %p134 = scmp.lt.s32.totalorder %s13, 1
      %s135 = scalar_select %p134, %s13, 1
      %s136 = smul.addr %s135, 200
      %s137 = smul.addr %s136, 8
      %s138 = scalar_lea.vmem %s0, %s137
      %p139 = scmp.lt.s32.totalorder %s13, 1
      %s140 = scalar_select %p139, %s13, 1
      %s141 = smul.addr %s140, 64
      %s142 = smul.addr %s141, 8
      %s143 = scalar_lea.vmem %s2, %s142
      %v145 = vld [vmem:[%s138] sm:$0xff]
      %v146 = vld [vmem:[%s138 + $0x10] sm:$0xff]
      %v147 = vld [vmem:[%s138 + $0x20] sm:$0xff]
      %v148 = vld [vmem:[%s138 + $0x30] sm:$0xff]
      %v149 = vld [vmem:[%s138 + $0x40] sm:$0xff]
      %v150 = vld [vmem:[%s138 + $0x50] sm:$0xff]
      %v151 = vld [vmem:[%s138 + $0x60] sm:$0xff]
      %v152 = vld [vmem:[%s138 + $0x70] sm:$0xff]
      %v153 = vld [vmem:[%s138 + $0xa0] sm:$0xff]
      %v154 = vld [vmem:[%s138 + $0xb0] sm:$0xff]
      %v155 = vld [vmem:[%s138 + $0xc0] sm:$0xff]
      %v156 = vld [vmem:[%s138 + $0xd0] sm:$0xff]
      %v157 = vld [vmem:[%s138 + $0xe0] sm:$0xff]
      %v158 = vld [vmem:[%s138 + $0xf0] sm:$0xff]
      %v159 = vld [vmem:[%s138 + $0x100] sm:$0xff]
      %v160 = vld [vmem:[%s138 + $0x110] sm:$0xff]
      %v161 = vld [vmem:[%s138 + $0x140] sm:$0xff]
      %v162 = vld [vmem:[%s138 + $0x150] sm:$0xff]
      %v163 = vld [vmem:[%s138 + $0x160] sm:$0xff]
      %v164 = vld [vmem:[%s138 + $0x170] sm:$0xff]
      %v165 = vld [vmem:[%s138 + $0x180] sm:$0xff]
      %v166 = vld [vmem:[%s138 + $0x190] sm:$0xff]
      %v167 = vld [vmem:[%s138 + $0x1a0] sm:$0xff]
      %v168 = vld [vmem:[%s138 + $0x1b0] sm:$0xff]
      %v169 = vld [vmem:[%s138 + $0x1e0] sm:$0xff]
      %v170 = vld [vmem:[%s138 + $0x1f0] sm:$0xff]
      %v171 = vld [vmem:[%s138 + $0x200] sm:$0xff]
      %v172 = vld [vmem:[%s138 + $0x210] sm:$0xff]
      %v173 = vld [vmem:[%s138 + $0x220] sm:$0xff]
      %v174 = vld [vmem:[%s138 + $0x230] sm:$0xff]
      %v175 = vld [vmem:[%s138 + $0x240] sm:$0xff]
      %v176 = vld [vmem:[%s138 + $0x250] sm:$0xff]
      %v177 = vld [vmem:[%s138 + $0x280] sm:$0xff]
      %v178 = vld [vmem:[%s138 + $0x290] sm:$0xff]
      %v179 = vld [vmem:[%s138 + $0x2a0] sm:$0xff]
      %v180 = vld [vmem:[%s138 + $0x2b0] sm:$0xff]
      %v181 = vld [vmem:[%s138 + $0x2c0] sm:$0xff]
      %v182 = vld [vmem:[%s138 + $0x2d0] sm:$0xff]
      %v183 = vld [vmem:[%s138 + $0x2e0] sm:$0xff]
      %v184 = vld [vmem:[%s138 + $0x2f0] sm:$0xff]
      %v185 = vld [vmem:[%s138 + $0x320] sm:$0xff]
      %v186 = vld [vmem:[%s138 + $0x330] sm:$0xff]
      %v187 = vld [vmem:[%s138 + $0x340] sm:$0xff]
      %v188 = vld [vmem:[%s138 + $0x350] sm:$0xff]
      %v189 = vld [vmem:[%s138 + $0x360] sm:$0xff]
      %v190 = vld [vmem:[%s138 + $0x370] sm:$0xff]
      %v191 = vld [vmem:[%s138 + $0x380] sm:$0xff]
      %v192 = vld [vmem:[%s138 + $0x390] sm:$0xff]
      %v193 = vld [vmem:[%s138 + $0x3c0] sm:$0xff]
      %v194 = vld [vmem:[%s138 + $0x3d0] sm:$0xff]
      %v195 = vld [vmem:[%s138 + $0x3e0] sm:$0xff]
      %v196 = vld [vmem:[%s138 + $0x3f0] sm:$0xff]
      %v197 = vld [vmem:[%s138 + $0x400] sm:$0xff]
      %v198 = vld [vmem:[%s138 + $0x410] sm:$0xff]
      %v199 = vld [vmem:[%s138 + $0x420] sm:$0xff]
      %v200 = vld [vmem:[%s138 + $0x430] sm:$0xff]
      %v201 = vld [vmem:[%s138 + $0x460] sm:$0xff]
      %v202 = vld [vmem:[%s138 + $0x470] sm:$0xff]
      %v203 = vld [vmem:[%s138 + $0x480] sm:$0xff]
      %v204 = vld [vmem:[%s138 + $0x490] sm:$0xff]
      %v205 = vld [vmem:[%s138 + $0x4a0] sm:$0xff]
      %v206 = vld [vmem:[%s138 + $0x4b0] sm:$0xff]
      %v207 = vld [vmem:[%s138 + $0x4c0] sm:$0xff]
      %v208 = vld [vmem:[%s138 + $0x4d0] sm:$0xff]
      %v209 = vld [vmem:[%s138 + $0x1] sm:$0xff]
      %v210 = vld [vmem:[%s138 + $0x11] sm:$0xff]
      %v211 = vld [vmem:[%s138 + $0x21] sm:$0xff]
      %v212 = vld [vmem:[%s138 + $0x31] sm:$0xff]
      %v213 = vld [vmem:[%s138 + $0x41] sm:$0xff]
      %v214 = vld [vmem:[%s138 + $0x51] sm:$0xff]
      %v215 = vld [vmem:[%s138 + $0x61] sm:$0xff]
      %v216 = vld [vmem:[%s138 + $0x71] sm:$0xff]
      %v217 = vld [vmem:[%s138 + $0xa1] sm:$0xff]
      %v218 = vld [vmem:[%s138 + $0xb1] sm:$0xff]
      %v219 = vld [vmem:[%s138 + $0xc1] sm:$0xff]
      %v220 = vld [vmem:[%s138 + $0xd1] sm:$0xff]
      %v221 = vld [vmem:[%s138 + $0xe1] sm:$0xff]
      %v222 = vld [vmem:[%s138 + $0xf1] sm:$0xff]
      %v223 = vld [vmem:[%s138 + $0x101] sm:$0xff]
      %v224 = vld [vmem:[%s138 + $0x111] sm:$0xff]
      %v225 = vld [vmem:[%s138 + $0x141] sm:$0xff]
      %v226 = vld [vmem:[%s138 + $0x151] sm:$0xff]
      %v227 = vld [vmem:[%s138 + $0x161] sm:$0xff]
      %v228 = vld [vmem:[%s138 + $0x171] sm:$0xff]
      %v229 = vld [vmem:[%s138 + $0x181] sm:$0xff]
      %v230 = vld [vmem:[%s138 + $0x191] sm:$0xff]
      %v231 = vld [vmem:[%s138 + $0x1a1] sm:$0xff]
      %v232 = vld [vmem:[%s138 + $0x1b1] sm:$0xff]
      %v233 = vld [vmem:[%s138 + $0x1e1] sm:$0xff]
      %v234 = vld [vmem:[%s138 + $0x1f1] sm:$0xff]
      %v235 = vld [vmem:[%s138 + $0x201] sm:$0xff]
      %v236 = vld [vmem:[%s138 + $0x211] sm:$0xff]
      %v237 = vld [vmem:[%s138 + $0x221] sm:$0xff]
      %v238 = vld [vmem:[%s138 + $0x231] sm:$0xff]
      %v239 = vld [vmem:[%s138 + $0x241] sm:$0xff]
      %v240 = vld [vmem:[%s138 + $0x251] sm:$0xff]
      %v241 = vld [vmem:[%s138 + $0x281] sm:$0xff]
      %v242 = vld [vmem:[%s138 + $0x291] sm:$0xff]
      %v243 = vld [vmem:[%s138 + $0x2a1] sm:$0xff]
      %v244 = vld [vmem:[%s138 + $0x2b1] sm:$0xff]
      %v245 = vld [vmem:[%s138 + $0x2c1] sm:$0xff]
      %v246 = vld [vmem:[%s138 + $0x2d1] sm:$0xff]
      %v247 = vld [vmem:[%s138 + $0x2e1] sm:$0xff]
      %v248 = vld [vmem:[%s138 + $0x2f1] sm:$0xff]
      %v249 = vld [vmem:[%s138 + $0x321] sm:$0xff]
      %v250 = vld [vmem:[%s138 + $0x331] sm:$0xff]
      %v251 = vld [vmem:[%s138 + $0x341] sm:$0xff]
      %v252 = vld [vmem:[%s138 + $0x351] sm:$0xff]
      %v253 = vld [vmem:[%s138 + $0x361] sm:$0xff]
      %v254 = vld [vmem:[%s138 + $0x371] sm:$0xff]
      %v255 = vld [vmem:[%s138 + $0x381] sm:$0xff]
      %v256 = vld [vmem:[%s138 + $0x391] sm:$0xff]
      %v257 = vld [vmem:[%s138 + $0x3c1] sm:$0xff]
      %v258 = vld [vmem:[%s138 + $0x3d1] sm:$0xff]
      %v259 = vld [vmem:[%s138 + $0x3e1] sm:$0xff]
      %v260 = vld [vmem:[%s138 + $0x3f1] sm:$0xff]
      %v261 = vld [vmem:[%s138 + $0x401] sm:$0xff]
      %v262 = vld [vmem:[%s138 + $0x411] sm:$0xff]
      %v263 = vld [vmem:[%s138 + $0x421] sm:$0xff]
      %v264 = vld [vmem:[%s138 + $0x431] sm:$0xff]
      %v265 = vld [vmem:[%s138 + $0x461] sm:$0xff]
      %v266 = vld [vmem:[%s138 + $0x471] sm:$0xff]
      %v267 = vld [vmem:[%s138 + $0x481] sm:$0xff]
      %v268 = vld [vmem:[%s138 + $0x491] sm:$0xff]
      %v269 = vld [vmem:[%s138 + $0x4a1] sm:$0xff]
      %v270 = vld [vmem:[%s138 + $0x4b1] sm:$0xff]
      %v271 = vld [vmem:[%s138 + $0x4c1] sm:$0xff]
      %v272 = vld [vmem:[%s138 + $0x4d1] sm:$0xff]
      %v273 = vld [vmem:[%s138 + $0x2] sm:$0xff]
      %v274 = vld [vmem:[%s138 + $0x12] sm:$0xff]
      %v275 = vld [vmem:[%s138 + $0x22] sm:$0xff]
      %v276 = vld [vmem:[%s138 + $0x32] sm:$0xff]
      %v277 = vld [vmem:[%s138 + $0x42] sm:$0xff]
      %v278 = vld [vmem:[%s138 + $0x52] sm:$0xff]
      %v279 = vld [vmem:[%s138 + $0x62] sm:$0xff]
      %v280 = vld [vmem:[%s138 + $0x72] sm:$0xff]
      %v281 = vld [vmem:[%s138 + $0xa2] sm:$0xff]
      %v282 = vld [vmem:[%s138 + $0xb2] sm:$0xff]
      %v283 = vld [vmem:[%s138 + $0xc2] sm:$0xff]
      %v284 = vld [vmem:[%s138 + $0xd2] sm:$0xff]
      %v285 = vld [vmem:[%s138 + $0xe2] sm:$0xff]
      %v286 = vld [vmem:[%s138 + $0xf2] sm:$0xff]
      %v287 = vld [vmem:[%s138 + $0x102] sm:$0xff]
      %v288 = vld [vmem:[%s138 + $0x112] sm:$0xff]
      %v289 = vld [vmem:[%s138 + $0x142] sm:$0xff]
      %v290 = vld [vmem:[%s138 + $0x152] sm:$0xff]
      %v291 = vld [vmem:[%s138 + $0x162] sm:$0xff]
      %v292 = vld [vmem:[%s138 + $0x172] sm:$0xff]
      %v293 = vld [vmem:[%s138 + $0x182] sm:$0xff]
      %v294 = vld [vmem:[%s138 + $0x192] sm:$0xff]
      %v295 = vld [vmem:[%s138 + $0x1a2] sm:$0xff]
      %v296 = vld [vmem:[%s138 + $0x1b2] sm:$0xff]
      %v297 = vld [vmem:[%s138 + $0x1e2] sm:$0xff]
      %v298 = vld [vmem:[%s138 + $0x1f2] sm:$0xff]
      %v299 = vld [vmem:[%s138 + $0x202] sm:$0xff]
      %v300 = vld [vmem:[%s138 + $0x212] sm:$0xff]
      %v301 = vld [vmem:[%s138 + $0x222] sm:$0xff]
      %v302 = vld [vmem:[%s138 + $0x232] sm:$0xff]
      %v303 = vld [vmem:[%s138 + $0x242] sm:$0xff]
      %v304 = vld [vmem:[%s138 + $0x252] sm:$0xff]
      %v305 = vld [vmem:[%s138 + $0x282] sm:$0xff]
      %v306 = vld [vmem:[%s138 + $0x292] sm:$0xff]
      %v307 = vld [vmem:[%s138 + $0x2a2] sm:$0xff]
      %v308 = vld [vmem:[%s138 + $0x2b2] sm:$0xff]
      %v309 = vld [vmem:[%s138 + $0x2c2] sm:$0xff]
      %v310 = vld [vmem:[%s138 + $0x2d2] sm:$0xff]
      %v311 = vld [vmem:[%s138 + $0x2e2] sm:$0xff]
      %v312 = vld [vmem:[%s138 + $0x2f2] sm:$0xff]
      %v313 = vld [vmem:[%s138 + $0x322] sm:$0xff]
      %v314 = vld [vmem:[%s138 + $0x332] sm:$0xff]
      %v315 = vld [vmem:[%s138 + $0x342] sm:$0xff]
      %v316 = vld [vmem:[%s138 + $0x352] sm:$0xff]
      %v317 = vld [vmem:[%s138 + $0x362] sm:$0xff]
      %v318 = vld [vmem:[%s138 + $0x372] sm:$0xff]
      %v319 = vld [vmem:[%s138 + $0x382] sm:$0xff]
      %v320 = vld [vmem:[%s138 + $0x392] sm:$0xff]
      %v321 = vld [vmem:[%s138 + $0x3c2] sm:$0xff]
      %v322 = vld [vmem:[%s138 + $0x3d2] sm:$0xff]
      %v323 = vld [vmem:[%s138 + $0x3e2] sm:$0xff]
      %v324 = vld [vmem:[%s138 + $0x3f2] sm:$0xff]
      %v325 = vld [vmem:[%s138 + $0x402] sm:$0xff]
      %v326 = vld [vmem:[%s138 + $0x412] sm:$0xff]
      %v327 = vld [vmem:[%s138 + $0x422] sm:$0xff]
      %v328 = vld [vmem:[%s138 + $0x432] sm:$0xff]
      %v329 = vld [vmem:[%s138 + $0x462] sm:$0xff]
      %v330 = vld [vmem:[%s138 + $0x472] sm:$0xff]
      %v331 = vld [vmem:[%s138 + $0x482] sm:$0xff]
      %v332 = vld [vmem:[%s138 + $0x492] sm:$0xff]
      %v333 = vld [vmem:[%s138 + $0x4a2] sm:$0xff]
      %v334 = vld [vmem:[%s138 + $0x4b2] sm:$0xff]
      %v335 = vld [vmem:[%s138 + $0x4c2] sm:$0xff]
      %v336 = vld [vmem:[%s138 + $0x4d2] sm:$0xff]
      %s337 = scalar_lea.vmem %s138, 16
      %v338 = vld [vmem:[%s337] sm:$0xff]
      %v339 = vld [vmem:[%s337 + $0x10] sm:$0xff]
      %v340 = vld [vmem:[%s337 + $0x20] sm:$0xff]
      %v341 = vld [vmem:[%s337 + $0x30] sm:$0xff]
      %v342 = vld [vmem:[%s337 + $0x40] sm:$0xff]
      %v343 = vld [vmem:[%s337 + $0x50] sm:$0xff]
      %v344 = vld [vmem:[%s337 + $0x60] sm:$0xff]
      %v345 = vld [vmem:[%s337 + $0x70] sm:$0xff]
      %v346 = vld [vmem:[%s337 + $0xa0] sm:$0xff]
      %v347 = vld [vmem:[%s337 + $0xb0] sm:$0xff]
      %v348 = vld [vmem:[%s337 + $0xc0] sm:$0xff]
      %v349 = vld [vmem:[%s337 + $0xd0] sm:$0xff]
      %v350 = vld [vmem:[%s337 + $0xe0] sm:$0xff]
      %v351 = vld [vmem:[%s337 + $0xf0] sm:$0xff]
      %v352 = vld [vmem:[%s337 + $0x100] sm:$0xff]
      %v353 = vld [vmem:[%s337 + $0x110] sm:$0xff]
      %v354 = vld [vmem:[%s337 + $0x140] sm:$0xff]
      %v355 = vld [vmem:[%s337 + $0x150] sm:$0xff]
      %v356 = vld [vmem:[%s337 + $0x160] sm:$0xff]
      %v357 = vld [vmem:[%s337 + $0x170] sm:$0xff]
      %v358 = vld [vmem:[%s337 + $0x180] sm:$0xff]
      %v359 = vld [vmem:[%s337 + $0x190] sm:$0xff]
      %v360 = vld [vmem:[%s337 + $0x1a0] sm:$0xff]
      %v361 = vld [vmem:[%s337 + $0x1b0] sm:$0xff]
      %v362 = vld [vmem:[%s337 + $0x1e0] sm:$0xff]
      %v363 = vld [vmem:[%s337 + $0x1f0] sm:$0xff]
      %v364 = vld [vmem:[%s337 + $0x200] sm:$0xff]
      %v365 = vld [vmem:[%s337 + $0x210] sm:$0xff]
      %v366 = vld [vmem:[%s337 + $0x220] sm:$0xff]
      %v367 = vld [vmem:[%s337 + $0x230] sm:$0xff]
      %v368 = vld [vmem:[%s337 + $0x240] sm:$0xff]
      %v369 = vld [vmem:[%s337 + $0x250] sm:$0xff]
      %v370 = vld [vmem:[%s337 + $0x280] sm:$0xff]
      %v371 = vld [vmem:[%s337 + $0x290] sm:$0xff]
      %v372 = vld [vmem:[%s337 + $0x2a0] sm:$0xff]
      %v373 = vld [vmem:[%s337 + $0x2b0] sm:$0xff]
      %v374 = vld [vmem:[%s337 + $0x2c0] sm:$0xff]
      %v375 = vld [vmem:[%s337 + $0x2d0] sm:$0xff]
      %v376 = vld [vmem:[%s337 + $0x2e0] sm:$0xff]
      %v377 = vld [vmem:[%s337 + $0x2f0] sm:$0xff]
      %v378 = vld [vmem:[%s337 + $0x320] sm:$0xff]
      %v379 = vld [vmem:[%s337 + $0x330] sm:$0xff]
      %v380 = vld [vmem:[%s337 + $0x340] sm:$0xff]
      %v381 = vld [vmem:[%s337 + $0x350] sm:$0xff]
      %v382 = vld [vmem:[%s337 + $0x360] sm:$0xff]
      %v383 = vld [vmem:[%s337 + $0x370] sm:$0xff]
      %v384 = vld [vmem:[%s337 + $0x380] sm:$0xff]
      %v385 = vld [vmem:[%s337 + $0x390] sm:$0xff]
      %v386 = vld [vmem:[%s337 + $0x3c0] sm:$0xff]
      %v387 = vld [vmem:[%s337 + $0x3d0] sm:$0xff]
      %v388 = vld [vmem:[%s337 + $0x3e0] sm:$0xff]
      %v389 = vld [vmem:[%s337 + $0x3f0] sm:$0xff]
      %v390 = vld [vmem:[%s337 + $0x400] sm:$0xff]
      %v391 = vld [vmem:[%s337 + $0x410] sm:$0xff]
      %v392 = vld [vmem:[%s337 + $0x420] sm:$0xff]
      %v393 = vld [vmem:[%s337 + $0x430] sm:$0xff]
      %v394 = vld [vmem:[%s337 + $0x460] sm:$0xff]
      %v395 = vld [vmem:[%s337 + $0x470] sm:$0xff]
      %v396 = vld [vmem:[%s337 + $0x480] sm:$0xff]
      %v397 = vld [vmem:[%s337 + $0x490] sm:$0xff]
      %v398 = vld [vmem:[%s337 + $0x4a0] sm:$0xff]
      %v399 = vld [vmem:[%s337 + $0x4b0] sm:$0xff]
      %v400 = vld [vmem:[%s337 + $0x4c0] sm:$0xff]
      %v401 = vld [vmem:[%s337 + $0x4d0] sm:$0xff]
      %v402 = vld [vmem:[%s337 + $0x1] sm:$0xff]
      %v403 = vld [vmem:[%s337 + $0x11] sm:$0xff]
      %v404 = vld [vmem:[%s337 + $0x21] sm:$0xff]
      %v405 = vld [vmem:[%s337 + $0x31] sm:$0xff]
      %v406 = vld [vmem:[%s337 + $0x41] sm:$0xff]
      %v407 = vld [vmem:[%s337 + $0x51] sm:$0xff]
      %v408 = vld [vmem:[%s337 + $0x61] sm:$0xff]
      %v409 = vld [vmem:[%s337 + $0x71] sm:$0xff]
      %v410 = vld [vmem:[%s337 + $0xa1] sm:$0xff]
      %v411 = vld [vmem:[%s337 + $0xb1] sm:$0xff]
      %v412 = vld [vmem:[%s337 + $0xc1] sm:$0xff]
      %v413 = vld [vmem:[%s337 + $0xd1] sm:$0xff]
      %v414 = vld [vmem:[%s337 + $0xe1] sm:$0xff]
      %v415 = vld [vmem:[%s337 + $0xf1] sm:$0xff]
      %v416 = vld [vmem:[%s337 + $0x101] sm:$0xff]
      %v417 = vld [vmem:[%s337 + $0x111] sm:$0xff]
      %v418 = vld [vmem:[%s337 + $0x141] sm:$0xff]
      %v419 = vld [vmem:[%s337 + $0x151] sm:$0xff]
      %v420 = vld [vmem:[%s337 + $0x161] sm:$0xff]
      %v421 = vld [vmem:[%s337 + $0x171] sm:$0xff]
      %v422 = vld [vmem:[%s337 + $0x181] sm:$0xff]
      %v423 = vld [vmem:[%s337 + $0x191] sm:$0xff]
      %v424 = vld [vmem:[%s337 + $0x1a1] sm:$0xff]
      %v425 = vld [vmem:[%s337 + $0x1b1] sm:$0xff]
      %v426 = vld [vmem:[%s337 + $0x1e1] sm:$0xff]
      %v427 = vld [vmem:[%s337 + $0x1f1] sm:$0xff]
      %v428 = vld [vmem:[%s337 + $0x201] sm:$0xff]
      %v429 = vld [vmem:[%s337 + $0x211] sm:$0xff]
      %v430 = vld [vmem:[%s337 + $0x221] sm:$0xff]
      %v431 = vld [vmem:[%s337 + $0x231] sm:$0xff]
      %v432 = vld [vmem:[%s337 + $0x241] sm:$0xff]
      %v433 = vld [vmem:[%s337 + $0x251] sm:$0xff]
      %v434 = vld [vmem:[%s337 + $0x281] sm:$0xff]
      %v435 = vld [vmem:[%s337 + $0x291] sm:$0xff]
      %v436 = vld [vmem:[%s337 + $0x2a1] sm:$0xff]
      %v437 = vld [vmem:[%s337 + $0x2b1] sm:$0xff]
      %v438 = vld [vmem:[%s337 + $0x2c1] sm:$0xff]
      %v439 = vld [vmem:[%s337 + $0x2d1] sm:$0xff]
      %v440 = vld [vmem:[%s337 + $0x2e1] sm:$0xff]
      %v441 = vld [vmem:[%s337 + $0x2f1] sm:$0xff]
      %v442 = vld [vmem:[%s337 + $0x321] sm:$0xff]
      %v443 = vld [vmem:[%s337 + $0x331] sm:$0xff]
      %v444 = vld [vmem:[%s337 + $0x341] sm:$0xff]
      %v445 = vld [vmem:[%s337 + $0x351] sm:$0xff]
      %v446 = vld [vmem:[%s337 + $0x361] sm:$0xff]
      %v447 = vld [vmem:[%s337 + $0x371] sm:$0xff]
      %v448 = vld [vmem:[%s337 + $0x381] sm:$0xff]
      %v449 = vld [vmem:[%s337 + $0x391] sm:$0xff]
      %v450 = vld [vmem:[%s337 + $0x3c1] sm:$0xff]
      %v451 = vld [vmem:[%s337 + $0x3d1] sm:$0xff]
      %v452 = vld [vmem:[%s337 + $0x3e1] sm:$0xff]
      %v453 = vld [vmem:[%s337 + $0x3f1] sm:$0xff]
      %v454 = vld [vmem:[%s337 + $0x401] sm:$0xff]
      %v455 = vld [vmem:[%s337 + $0x411] sm:$0xff]
      %v456 = vld [vmem:[%s337 + $0x421] sm:$0xff]
      %v457 = vld [vmem:[%s337 + $0x431] sm:$0xff]
      %v458 = vld [vmem:[%s337 + $0x461] sm:$0xff]
      %v459 = vld [vmem:[%s337 + $0x471] sm:$0xff]
      %v460 = vld [vmem:[%s337 + $0x481] sm:$0xff]
      %v461 = vld [vmem:[%s337 + $0x491] sm:$0xff]
      %v462 = vld [vmem:[%s337 + $0x4a1] sm:$0xff]
      %v463 = vld [vmem:[%s337 + $0x4b1] sm:$0xff]
      %v464 = vld [vmem:[%s337 + $0x4c1] sm:$0xff]
      %v465 = vld [vmem:[%s337 + $0x4d1] sm:$0xff]
      %v466 = vld [vmem:[%s337 + $0x2] sm:$0xff]
      %v467 = vld [vmem:[%s337 + $0x12] sm:$0xff]
      %v468 = vld [vmem:[%s337 + $0x22] sm:$0xff]
      %v469 = vld [vmem:[%s337 + $0x32] sm:$0xff]
      %v470 = vld [vmem:[%s337 + $0x42] sm:$0xff]
      %v471 = vld [vmem:[%s337 + $0x52] sm:$0xff]
      %v472 = vld [vmem:[%s337 + $0x62] sm:$0xff]
      %v473 = vld [vmem:[%s337 + $0x72] sm:$0xff]
      %v474 = vld [vmem:[%s337 + $0xa2] sm:$0xff]
      %v475 = vld [vmem:[%s337 + $0xb2] sm:$0xff]
      %v476 = vld [vmem:[%s337 + $0xc2] sm:$0xff]
      %v477 = vld [vmem:[%s337 + $0xd2] sm:$0xff]
      %v478 = vld [vmem:[%s337 + $0xe2] sm:$0xff]
      %v479 = vld [vmem:[%s337 + $0xf2] sm:$0xff]
      %v480 = vld [vmem:[%s337 + $0x102] sm:$0xff]
      %v481 = vld [vmem:[%s337 + $0x112] sm:$0xff]
      %v482 = vld [vmem:[%s337 + $0x142] sm:$0xff]
      %v483 = vld [vmem:[%s337 + $0x152] sm:$0xff]
      %v484 = vld [vmem:[%s337 + $0x162] sm:$0xff]
      %v485 = vld [vmem:[%s337 + $0x172] sm:$0xff]
      %v486 = vld [vmem:[%s337 + $0x182] sm:$0xff]
      %v487 = vld [vmem:[%s337 + $0x192] sm:$0xff]
      %v488 = vld [vmem:[%s337 + $0x1a2] sm:$0xff]
      %v489 = vld [vmem:[%s337 + $0x1b2] sm:$0xff]
      %v490 = vld [vmem:[%s337 + $0x1e2] sm:$0xff]
      %v491 = vld [vmem:[%s337 + $0x1f2] sm:$0xff]
      %v492 = vld [vmem:[%s337 + $0x202] sm:$0xff]
      %v493 = vld [vmem:[%s337 + $0x212] sm:$0xff]
      %v494 = vld [vmem:[%s337 + $0x222] sm:$0xff]
      %v495 = vld [vmem:[%s337 + $0x232] sm:$0xff]
      %v496 = vld [vmem:[%s337 + $0x242] sm:$0xff]
      %v497 = vld [vmem:[%s337 + $0x252] sm:$0xff]
      %v498 = vld [vmem:[%s337 + $0x282] sm:$0xff]
      %v499 = vld [vmem:[%s337 + $0x292] sm:$0xff]
      %v500 = vld [vmem:[%s337 + $0x2a2] sm:$0xff]
      %v501 = vld [vmem:[%s337 + $0x2b2] sm:$0xff]
      %v502 = vld [vmem:[%s337 + $0x2c2] sm:$0xff]
      %v503 = vld [vmem:[%s337 + $0x2d2] sm:$0xff]
      %v504 = vld [vmem:[%s337 + $0x2e2] sm:$0xff]
      %v505 = vld [vmem:[%s337 + $0x2f2] sm:$0xff]
      %v506 = vld [vmem:[%s337 + $0x322] sm:$0xff]
      %v507 = vld [vmem:[%s337 + $0x332] sm:$0xff]
      %v508 = vld [vmem:[%s337 + $0x342] sm:$0xff]
      %v509 = vld [vmem:[%s337 + $0x352] sm:$0xff]
      %v510 = vld [vmem:[%s337 + $0x362] sm:$0xff]
      %v511 = vld [vmem:[%s337 + $0x372] sm:$0xff]
      %v512 = vld [vmem:[%s337 + $0x382] sm:$0xff]
      %v513 = vld [vmem:[%s337 + $0x392] sm:$0xff]
      %v514 = vld [vmem:[%s337 + $0x3c2] sm:$0xff]
      %v515 = vld [vmem:[%s337 + $0x3d2] sm:$0xff]
      %v516 = vld [vmem:[%s337 + $0x3e2] sm:$0xff]
      %v517 = vld [vmem:[%s337 + $0x3f2] sm:$0xff]
      %v518 = vld [vmem:[%s337 + $0x402] sm:$0xff]
      %v519 = vld [vmem:[%s337 + $0x412] sm:$0xff]
      %v520 = vld [vmem:[%s337 + $0x422] sm:$0xff]
      %v521 = vld [vmem:[%s337 + $0x432] sm:$0xff]
      %v522 = vld [vmem:[%s337 + $0x462] sm:$0xff]
      %v523 = vld [vmem:[%s337 + $0x472] sm:$0xff]
      %v524 = vld [vmem:[%s337 + $0x482] sm:$0xff]
      %v525 = vld [vmem:[%s337 + $0x492] sm:$0xff]
      %v526 = vld [vmem:[%s337 + $0x4a2] sm:$0xff]
      %v527 = vld [vmem:[%s337 + $0x4b2] sm:$0xff]
      %v528 = vld [vmem:[%s337 + $0x4c2] sm:$0xff]
      %v529 = vld [vmem:[%s337 + $0x4d2] sm:$0xff]
      %s530 = scalar_lea.vmem %s138, 32
      %v531 = vld [vmem:[%s530] sm:$0xff]
      %v532 = vld [vmem:[%s530 + $0x10] sm:$0xff]
      %v533 = vld [vmem:[%s530 + $0x20] sm:$0xff]
      %v534 = vld [vmem:[%s530 + $0x30] sm:$0xff]
      %v535 = vld [vmem:[%s530 + $0x40] sm:$0xff]
      %v536 = vld [vmem:[%s530 + $0x50] sm:$0xff]
      %v537 = vld [vmem:[%s530 + $0x60] sm:$0xff]
      %v538 = vld [vmem:[%s530 + $0x70] sm:$0xff]
      %v539 = vld [vmem:[%s530 + $0xa0] sm:$0xff]
      %v540 = vld [vmem:[%s530 + $0xb0] sm:$0xff]
      %v541 = vld [vmem:[%s530 + $0xc0] sm:$0xff]
      %v542 = vld [vmem:[%s530 + $0xd0] sm:$0xff]
      %v543 = vld [vmem:[%s530 + $0xe0] sm:$0xff]
      %v544 = vld [vmem:[%s530 + $0xf0] sm:$0xff]
      %v545 = vld [vmem:[%s530 + $0x100] sm:$0xff]
      %v546 = vld [vmem:[%s530 + $0x110] sm:$0xff]
      %v547 = vld [vmem:[%s530 + $0x140] sm:$0xff]
      %v548 = vld [vmem:[%s530 + $0x150] sm:$0xff]
      %v549 = vld [vmem:[%s530 + $0x160] sm:$0xff]
      %v550 = vld [vmem:[%s530 + $0x170] sm:$0xff]
      %v551 = vld [vmem:[%s530 + $0x180] sm:$0xff]
      %v552 = vld [vmem:[%s530 + $0x190] sm:$0xff]
      %v553 = vld [vmem:[%s530 + $0x1a0] sm:$0xff]
      %v554 = vld [vmem:[%s530 + $0x1b0] sm:$0xff]
      %v555 = vld [vmem:[%s530 + $0x1e0] sm:$0xff]
      %v556 = vld [vmem:[%s530 + $0x1f0] sm:$0xff]
      %v557 = vld [vmem:[%s530 + $0x200] sm:$0xff]
      %v558 = vld [vmem:[%s530 + $0x210] sm:$0xff]
      %v559 = vld [vmem:[%s530 + $0x220] sm:$0xff]
      %v560 = vld [vmem:[%s530 + $0x230] sm:$0xff]
      %v561 = vld [vmem:[%s530 + $0x240] sm:$0xff]
      %v562 = vld [vmem:[%s530 + $0x250] sm:$0xff]
      %v563 = vld [vmem:[%s530 + $0x280] sm:$0xff]
      %v564 = vld [vmem:[%s530 + $0x290] sm:$0xff]
      %v565 = vld [vmem:[%s530 + $0x2a0] sm:$0xff]
      %v566 = vld [vmem:[%s530 + $0x2b0] sm:$0xff]
      %v567 = vld [vmem:[%s530 + $0x2c0] sm:$0xff]
      %v568 = vld [vmem:[%s530 + $0x2d0] sm:$0xff]
      %v569 = vld [vmem:[%s530 + $0x2e0] sm:$0xff]
      %v570 = vld [vmem:[%s530 + $0x2f0] sm:$0xff]
      %v571 = vld [vmem:[%s530 + $0x320] sm:$0xff]
      %v572 = vld [vmem:[%s530 + $0x330] sm:$0xff]
      %v573 = vld [vmem:[%s530 + $0x340] sm:$0xff]
      %v574 = vld [vmem:[%s530 + $0x350] sm:$0xff]
      %v575 = vld [vmem:[%s530 + $0x360] sm:$0xff]
      %v576 = vld [vmem:[%s530 + $0x370] sm:$0xff]
      %v577 = vld [vmem:[%s530 + $0x380] sm:$0xff]
      %v578 = vld [vmem:[%s530 + $0x390] sm:$0xff]
      %v579 = vld [vmem:[%s530 + $0x3c0] sm:$0xff]
      %v580 = vld [vmem:[%s530 + $0x3d0] sm:$0xff]
      %v581 = vld [vmem:[%s530 + $0x3e0] sm:$0xff]
      %v582 = vld [vmem:[%s530 + $0x3f0] sm:$0xff]
      %v583 = vld [vmem:[%s530 + $0x400] sm:$0xff]
      %v584 = vld [vmem:[%s530 + $0x410] sm:$0xff]
      %v585 = vld [vmem:[%s530 + $0x420] sm:$0xff]
      %v586 = vld [vmem:[%s530 + $0x430] sm:$0xff]
      %v587 = vld [vmem:[%s530 + $0x460] sm:$0xff]
      %v588 = vld [vmem:[%s530 + $0x470] sm:$0xff]
      %v589 = vld [vmem:[%s530 + $0x480] sm:$0xff]
      %v590 = vld [vmem:[%s530 + $0x490] sm:$0xff]
      %v591 = vld [vmem:[%s530 + $0x4a0] sm:$0xff]
      %v592 = vld [vmem:[%s530 + $0x4b0] sm:$0xff]
      %v593 = vld [vmem:[%s530 + $0x4c0] sm:$0xff]
      %v594 = vld [vmem:[%s530 + $0x4d0] sm:$0xff]
      %v595 = vld [vmem:[%s530 + $0x1] sm:$0xff]
      %v596 = vld [vmem:[%s530 + $0x11] sm:$0xff]
      %v597 = vld [vmem:[%s530 + $0x21] sm:$0xff]
      %v598 = vld [vmem:[%s530 + $0x31] sm:$0xff]
      %v599 = vld [vmem:[%s530 + $0x41] sm:$0xff]
      %v600 = vld [vmem:[%s530 + $0x51] sm:$0xff]
      %v601 = vld [vmem:[%s530 + $0x61] sm:$0xff]
      %v602 = vld [vmem:[%s530 + $0x71] sm:$0xff]
      %v603 = vld [vmem:[%s530 + $0xa1] sm:$0xff]
      %v604 = vld [vmem:[%s530 + $0xb1] sm:$0xff]
      %v605 = vld [vmem:[%s530 + $0xc1] sm:$0xff]
      %v606 = vld [vmem:[%s530 + $0xd1] sm:$0xff]
      %v607 = vld [vmem:[%s530 + $0xe1] sm:$0xff]
      %v608 = vld [vmem:[%s530 + $0xf1] sm:$0xff]
      %v609 = vld [vmem:[%s530 + $0x101] sm:$0xff]
      %v610 = vld [vmem:[%s530 + $0x111] sm:$0xff]
      %v611 = vld [vmem:[%s530 + $0x141] sm:$0xff]
      %v612 = vld [vmem:[%s530 + $0x151] sm:$0xff]
      %v613 = vld [vmem:[%s530 + $0x161] sm:$0xff]
      %v614 = vld [vmem:[%s530 + $0x171] sm:$0xff]
      %v615 = vld [vmem:[%s530 + $0x181] sm:$0xff]
      %v616 = vld [vmem:[%s530 + $0x191] sm:$0xff]
      %v617 = vld [vmem:[%s530 + $0x1a1] sm:$0xff]
      %v618 = vld [vmem:[%s530 + $0x1b1] sm:$0xff]
      %v619 = vld [vmem:[%s530 + $0x1e1] sm:$0xff]
      %v620 = vld [vmem:[%s530 + $0x1f1] sm:$0xff]
      %v621 = vld [vmem:[%s530 + $0x201] sm:$0xff]
      %v622 = vld [vmem:[%s530 + $0x211] sm:$0xff]
      %v623 = vld [vmem:[%s530 + $0x221] sm:$0xff]
      %v624 = vld [vmem:[%s530 + $0x231] sm:$0xff]
      %v625 = vld [vmem:[%s530 + $0x241] sm:$0xff]
      %v626 = vld [vmem:[%s530 + $0x251] sm:$0xff]
      %v627 = vld [vmem:[%s530 + $0x281] sm:$0xff]
      %v628 = vld [vmem:[%s530 + $0x291] sm:$0xff]
      %v629 = vld [vmem:[%s530 + $0x2a1] sm:$0xff]
      %v630 = vld [vmem:[%s530 + $0x2b1] sm:$0xff]
      %v631 = vld [vmem:[%s530 + $0x2c1] sm:$0xff]
      %v632 = vld [vmem:[%s530 + $0x2d1] sm:$0xff]
      %v633 = vld [vmem:[%s530 + $0x2e1] sm:$0xff]
      %v634 = vld [vmem:[%s530 + $0x2f1] sm:$0xff]
      %v635 = vld [vmem:[%s530 + $0x321] sm:$0xff]
      %v636 = vld [vmem:[%s530 + $0x331] sm:$0xff]
      %v637 = vld [vmem:[%s530 + $0x341] sm:$0xff]
      %v638 = vld [vmem:[%s530 + $0x351] sm:$0xff]
      %v639 = vld [vmem:[%s530 + $0x361] sm:$0xff]
      %v640 = vld [vmem:[%s530 + $0x371] sm:$0xff]
      %v641 = vld [vmem:[%s530 + $0x381] sm:$0xff]
      %v642 = vld [vmem:[%s530 + $0x391] sm:$0xff]
      %v643 = vld [vmem:[%s530 + $0x3c1] sm:$0xff]
      %v644 = vld [vmem:[%s530 + $0x3d1] sm:$0xff]
      %v645 = vld [vmem:[%s530 + $0x3e1] sm:$0xff]
      %v646 = vld [vmem:[%s530 + $0x3f1] sm:$0xff]
      %v647 = vld [vmem:[%s530 + $0x401] sm:$0xff]
      %v648 = vld [vmem:[%s530 + $0x411] sm:$0xff]
      %v649 = vld [vmem:[%s530 + $0x421] sm:$0xff]
      %v650 = vld [vmem:[%s530 + $0x431] sm:$0xff]
      %v651 = vld [vmem:[%s530 + $0x461] sm:$0xff]
      %v652 = vld [vmem:[%s530 + $0x471] sm:$0xff]
      %v653 = vld [vmem:[%s530 + $0x481] sm:$0xff]
      %v654 = vld [vmem:[%s530 + $0x491] sm:$0xff]
      %v655 = vld [vmem:[%s530 + $0x4a1] sm:$0xff]
      %v656 = vld [vmem:[%s530 + $0x4b1] sm:$0xff]
      %v657 = vld [vmem:[%s530 + $0x4c1] sm:$0xff]
      %v658 = vld [vmem:[%s530 + $0x4d1] sm:$0xff]
      %v659 = vld [vmem:[%s530 + $0x2] sm:$0xff]
      %v660 = vld [vmem:[%s530 + $0x12] sm:$0xff]
      %v661 = vld [vmem:[%s530 + $0x22] sm:$0xff]
      %v662 = vld [vmem:[%s530 + $0x32] sm:$0xff]
      %v663 = vld [vmem:[%s530 + $0x42] sm:$0xff]
      %v664 = vld [vmem:[%s530 + $0x52] sm:$0xff]
      %v665 = vld [vmem:[%s530 + $0x62] sm:$0xff]
      %v666 = vld [vmem:[%s530 + $0x72] sm:$0xff]
      %v667 = vld [vmem:[%s530 + $0xa2] sm:$0xff]
      %v668 = vld [vmem:[%s530 + $0xb2] sm:$0xff]
      %v669 = vld [vmem:[%s530 + $0xc2] sm:$0xff]
      %v670 = vld [vmem:[%s530 + $0xd2] sm:$0xff]
      %v671 = vld [vmem:[%s530 + $0xe2] sm:$0xff]
      %v672 = vld [vmem:[%s530 + $0xf2] sm:$0xff]
      %v673 = vld [vmem:[%s530 + $0x102] sm:$0xff]
      %v674 = vld [vmem:[%s530 + $0x112] sm:$0xff]
      %v675 = vld [vmem:[%s530 + $0x142] sm:$0xff]
      %v676 = vld [vmem:[%s530 + $0x152] sm:$0xff]
      %v677 = vld [vmem:[%s530 + $0x162] sm:$0xff]
      %v678 = vld [vmem:[%s530 + $0x172] sm:$0xff]
      %v679 = vld [vmem:[%s530 + $0x182] sm:$0xff]
      %v680 = vld [vmem:[%s530 + $0x192] sm:$0xff]
      %v681 = vld [vmem:[%s530 + $0x1a2] sm:$0xff]
      %v682 = vld [vmem:[%s530 + $0x1b2] sm:$0xff]
      %v683 = vld [vmem:[%s530 + $0x1e2] sm:$0xff]
      %v684 = vld [vmem:[%s530 + $0x1f2] sm:$0xff]
      %v685 = vld [vmem:[%s530 + $0x202] sm:$0xff]
      %v686 = vld [vmem:[%s530 + $0x212] sm:$0xff]
      %v687 = vld [vmem:[%s530 + $0x222] sm:$0xff]
      %v688 = vld [vmem:[%s530 + $0x232] sm:$0xff]
      %v689 = vld [vmem:[%s530 + $0x242] sm:$0xff]
      %v690 = vld [vmem:[%s530 + $0x252] sm:$0xff]
      %v691 = vld [vmem:[%s530 + $0x282] sm:$0xff]
      %v692 = vld [vmem:[%s530 + $0x292] sm:$0xff]
      %v693 = vld [vmem:[%s530 + $0x2a2] sm:$0xff]
      %v694 = vld [vmem:[%s530 + $0x2b2] sm:$0xff]
      %v695 = vld [vmem:[%s530 + $0x2c2] sm:$0xff]
      %v696 = vld [vmem:[%s530 + $0x2d2] sm:$0xff]
      %v697 = vld [vmem:[%s530 + $0x2e2] sm:$0xff]
      %v698 = vld [vmem:[%s530 + $0x2f2] sm:$0xff]
      %v699 = vld [vmem:[%s530 + $0x322] sm:$0xff]
      %v700 = vld [vmem:[%s530 + $0x332] sm:$0xff]
      %v701 = vld [vmem:[%s530 + $0x342] sm:$0xff]
      %v702 = vld [vmem:[%s530 + $0x352] sm:$0xff]
      %v703 = vld [vmem:[%s530 + $0x362] sm:$0xff]
      %v704 = vld [vmem:[%s530 + $0x372] sm:$0xff]
      %v705 = vld [vmem:[%s530 + $0x382] sm:$0xff]
      %v706 = vld [vmem:[%s530 + $0x392] sm:$0xff]
      %v707 = vld [vmem:[%s530 + $0x3c2] sm:$0xff]
      %v708 = vld [vmem:[%s530 + $0x3d2] sm:$0xff]
      %v709 = vld [vmem:[%s530 + $0x3e2] sm:$0xff]
      %v710 = vld [vmem:[%s530 + $0x3f2] sm:$0xff]
      %v711 = vld [vmem:[%s530 + $0x402] sm:$0xff]
      %v712 = vld [vmem:[%s530 + $0x412] sm:$0xff]
      %v713 = vld [vmem:[%s530 + $0x422] sm:$0xff]
      %v714 = vld [vmem:[%s530 + $0x432] sm:$0xff]
      %v715 = vld [vmem:[%s530 + $0x462] sm:$0xff]
      %v716 = vld [vmem:[%s530 + $0x472] sm:$0xff]
      %v717 = vld [vmem:[%s530 + $0x482] sm:$0xff]
      %v718 = vld [vmem:[%s530 + $0x492] sm:$0xff]
      %v719 = vld [vmem:[%s530 + $0x4a2] sm:$0xff]
      %v720 = vld [vmem:[%s530 + $0x4b2] sm:$0xff]
      %v721 = vld [vmem:[%s530 + $0x4c2] sm:$0xff]
      %v722 = vld [vmem:[%s530 + $0x4d2] sm:$0xff]
      %s723 = scalar_lea.vmem %s138, 160
      %v724 = vld [vmem:[%s723] sm:$0xff]
      %v725 = vld [vmem:[%s723 + $0x10] sm:$0xff]
      %v726 = vld [vmem:[%s723 + $0x20] sm:$0xff]
      %v727 = vld [vmem:[%s723 + $0x30] sm:$0xff]
      %v728 = vld [vmem:[%s723 + $0x40] sm:$0xff]
      %v729 = vld [vmem:[%s723 + $0x50] sm:$0xff]
      %v730 = vld [vmem:[%s723 + $0x60] sm:$0xff]
      %v731 = vld [vmem:[%s723 + $0x70] sm:$0xff]
      %v732 = vld [vmem:[%s723 + $0xa0] sm:$0xff]
      %v733 = vld [vmem:[%s723 + $0xb0] sm:$0xff]
      %v734 = vld [vmem:[%s723 + $0xc0] sm:$0xff]
      %v735 = vld [vmem:[%s723 + $0xd0] sm:$0xff]
      %v736 = vld [vmem:[%s723 + $0xe0] sm:$0xff]
      %v737 = vld [vmem:[%s723 + $0xf0] sm:$0xff]
      %v738 = vld [vmem:[%s723 + $0x100] sm:$0xff]
      %v739 = vld [vmem:[%s723 + $0x110] sm:$0xff]
      %v740 = vld [vmem:[%s723 + $0x140] sm:$0xff]
      %v741 = vld [vmem:[%s723 + $0x150] sm:$0xff]
      %v742 = vld [vmem:[%s723 + $0x160] sm:$0xff]
      %v743 = vld [vmem:[%s723 + $0x170] sm:$0xff]
      %v744 = vld [vmem:[%s723 + $0x180] sm:$0xff]
      %v745 = vld [vmem:[%s723 + $0x190] sm:$0xff]
      %v746 = vld [vmem:[%s723 + $0x1a0] sm:$0xff]
      %v747 = vld [vmem:[%s723 + $0x1b0] sm:$0xff]
      %v748 = vld [vmem:[%s723 + $0x1e0] sm:$0xff]
      %v749 = vld [vmem:[%s723 + $0x1f0] sm:$0xff]
      %v750 = vld [vmem:[%s723 + $0x200] sm:$0xff]
      %v751 = vld [vmem:[%s723 + $0x210] sm:$0xff]
      %v752 = vld [vmem:[%s723 + $0x220] sm:$0xff]
      %v753 = vld [vmem:[%s723 + $0x230] sm:$0xff]
      %v754 = vld [vmem:[%s723 + $0x240] sm:$0xff]
      %v755 = vld [vmem:[%s723 + $0x250] sm:$0xff]
      %v756 = vld [vmem:[%s723 + $0x280] sm:$0xff]
      %v757 = vld [vmem:[%s723 + $0x290] sm:$0xff]
      %v758 = vld [vmem:[%s723 + $0x2a0] sm:$0xff]
      %v759 = vld [vmem:[%s723 + $0x2b0] sm:$0xff]
      %v760 = vld [vmem:[%s723 + $0x2c0] sm:$0xff]
      %v761 = vld [vmem:[%s723 + $0x2d0] sm:$0xff]
      %v762 = vld [vmem:[%s723 + $0x2e0] sm:$0xff]
      %v763 = vld [vmem:[%s723 + $0x2f0] sm:$0xff]
      %v764 = vld [vmem:[%s723 + $0x320] sm:$0xff]
      %v765 = vld [vmem:[%s723 + $0x330] sm:$0xff]
      %v766 = vld [vmem:[%s723 + $0x340] sm:$0xff]
      %v767 = vld [vmem:[%s723 + $0x350] sm:$0xff]
      %v768 = vld [vmem:[%s723 + $0x360] sm:$0xff]
      %v769 = vld [vmem:[%s723 + $0x370] sm:$0xff]
      %v770 = vld [vmem:[%s723 + $0x380] sm:$0xff]
      %v771 = vld [vmem:[%s723 + $0x390] sm:$0xff]
      %v772 = vld [vmem:[%s723 + $0x3c0] sm:$0xff]
      %v773 = vld [vmem:[%s723 + $0x3d0] sm:$0xff]
      %v774 = vld [vmem:[%s723 + $0x3e0] sm:$0xff]
      %v775 = vld [vmem:[%s723 + $0x3f0] sm:$0xff]
      %v776 = vld [vmem:[%s723 + $0x400] sm:$0xff]
      %v777 = vld [vmem:[%s723 + $0x410] sm:$0xff]
      %v778 = vld [vmem:[%s723 + $0x420] sm:$0xff]
      %v779 = vld [vmem:[%s723 + $0x430] sm:$0xff]
      %v780 = vld [vmem:[%s723 + $0x460] sm:$0xff]
      %v781 = vld [vmem:[%s723 + $0x470] sm:$0xff]
      %v782 = vld [vmem:[%s723 + $0x480] sm:$0xff]
      %v783 = vld [vmem:[%s723 + $0x490] sm:$0xff]
      %v784 = vld [vmem:[%s723 + $0x4a0] sm:$0xff]
      %v785 = vld [vmem:[%s723 + $0x4b0] sm:$0xff]
      %v786 = vld [vmem:[%s723 + $0x4c0] sm:$0xff]
      %v787 = vld [vmem:[%s723 + $0x4d0] sm:$0xff]
      %v788 = vld [vmem:[%s723 + $0x1] sm:$0xff]
      %v789 = vld [vmem:[%s723 + $0x11] sm:$0xff]
      %v790 = vld [vmem:[%s723 + $0x21] sm:$0xff]
      %v791 = vld [vmem:[%s723 + $0x31] sm:$0xff]
      %v792 = vld [vmem:[%s723 + $0x41] sm:$0xff]
      %v793 = vld [vmem:[%s723 + $0x51] sm:$0xff]
      %v794 = vld [vmem:[%s723 + $0x61] sm:$0xff]
      %v795 = vld [vmem:[%s723 + $0x71] sm:$0xff]
      %v796 = vld [vmem:[%s723 + $0xa1] sm:$0xff]
      %v797 = vld [vmem:[%s723 + $0xb1] sm:$0xff]
      %v798 = vld [vmem:[%s723 + $0xc1] sm:$0xff]
      %v799 = vld [vmem:[%s723 + $0xd1] sm:$0xff]
      %v800 = vld [vmem:[%s723 + $0xe1] sm:$0xff]
      %v801 = vld [vmem:[%s723 + $0xf1] sm:$0xff]
      %v802 = vld [vmem:[%s723 + $0x101] sm:$0xff]
      %v803 = vld [vmem:[%s723 + $0x111] sm:$0xff]
      %v804 = vld [vmem:[%s723 + $0x141] sm:$0xff]
      %v805 = vld [vmem:[%s723 + $0x151] sm:$0xff]
      %v806 = vld [vmem:[%s723 + $0x161] sm:$0xff]
      %v807 = vld [vmem:[%s723 + $0x171] sm:$0xff]
      %v808 = vld [vmem:[%s723 + $0x181] sm:$0xff]
      %v809 = vld [vmem:[%s723 + $0x191] sm:$0xff]
      %v810 = vld [vmem:[%s723 + $0x1a1] sm:$0xff]
      %v811 = vld [vmem:[%s723 + $0x1b1] sm:$0xff]
      %v812 = vld [vmem:[%s723 + $0x1e1] sm:$0xff]
      %v813 = vld [vmem:[%s723 + $0x1f1] sm:$0xff]
      %v814 = vld [vmem:[%s723 + $0x201] sm:$0xff]
      %v815 = vld [vmem:[%s723 + $0x211] sm:$0xff]
      %v816 = vld [vmem:[%s723 + $0x221] sm:$0xff]
      %v817 = vld [vmem:[%s723 + $0x231] sm:$0xff]
      %v818 = vld [vmem:[%s723 + $0x241] sm:$0xff]
      %v819 = vld [vmem:[%s723 + $0x251] sm:$0xff]
      %v820 = vld [vmem:[%s723 + $0x281] sm:$0xff]
      %v821 = vld [vmem:[%s723 + $0x291] sm:$0xff]
      %v822 = vld [vmem:[%s723 + $0x2a1] sm:$0xff]
      %v823 = vld [vmem:[%s723 + $0x2b1] sm:$0xff]
      %v824 = vld [vmem:[%s723 + $0x2c1] sm:$0xff]
      %v825 = vld [vmem:[%s723 + $0x2d1] sm:$0xff]
      %v826 = vld [vmem:[%s723 + $0x2e1] sm:$0xff]
      %v827 = vld [vmem:[%s723 + $0x2f1] sm:$0xff]
      %v828 = vld [vmem:[%s723 + $0x321] sm:$0xff]
      %v829 = vld [vmem:[%s723 + $0x331] sm:$0xff]
      %v830 = vld [vmem:[%s723 + $0x341] sm:$0xff]
      %v831 = vld [vmem:[%s723 + $0x351] sm:$0xff]
      %v832 = vld [vmem:[%s723 + $0x361] sm:$0xff]
      %v833 = vld [vmem:[%s723 + $0x371] sm:$0xff]
      %v834 = vld [vmem:[%s723 + $0x381] sm:$0xff]
      %v835 = vld [vmem:[%s723 + $0x391] sm:$0xff]
      %v836 = vld [vmem:[%s723 + $0x3c1] sm:$0xff]
      %v837 = vld [vmem:[%s723 + $0x3d1] sm:$0xff]
      %v838 = vld [vmem:[%s723 + $0x3e1] sm:$0xff]
      %v839 = vld [vmem:[%s723 + $0x3f1] sm:$0xff]
      %v840 = vld [vmem:[%s723 + $0x401] sm:$0xff]
      %v841 = vld [vmem:[%s723 + $0x411] sm:$0xff]
      %v842 = vld [vmem:[%s723 + $0x421] sm:$0xff]
      %v843 = vld [vmem:[%s723 + $0x431] sm:$0xff]
      %v844 = vld [vmem:[%s723 + $0x461] sm:$0xff]
      %v845 = vld [vmem:[%s723 + $0x471] sm:$0xff]
      %v846 = vld [vmem:[%s723 + $0x481] sm:$0xff]
      %v847 = vld [vmem:[%s723 + $0x491] sm:$0xff]
      %v848 = vld [vmem:[%s723 + $0x4a1] sm:$0xff]
      %v849 = vld [vmem:[%s723 + $0x4b1] sm:$0xff]
      %v850 = vld [vmem:[%s723 + $0x4c1] sm:$0xff]
      %v851 = vld [vmem:[%s723 + $0x4d1] sm:$0xff]
      %v852 = vld [vmem:[%s723 + $0x2] sm:$0xff]
      %v853 = vld [vmem:[%s723 + $0x12] sm:$0xff]
      %v854 = vld [vmem:[%s723 + $0x22] sm:$0xff]
      %v855 = vld [vmem:[%s723 + $0x32] sm:$0xff]
      %v856 = vld [vmem:[%s723 + $0x42] sm:$0xff]
      %v857 = vld [vmem:[%s723 + $0x52] sm:$0xff]
      %v858 = vld [vmem:[%s723 + $0x62] sm:$0xff]
      %v859 = vld [vmem:[%s723 + $0x72] sm:$0xff]
      %v860 = vld [vmem:[%s723 + $0xa2] sm:$0xff]
      %v861 = vld [vmem:[%s723 + $0xb2] sm:$0xff]
      %v862 = vld [vmem:[%s723 + $0xc2] sm:$0xff]
      %v863 = vld [vmem:[%s723 + $0xd2] sm:$0xff]
      %v864 = vld [vmem:[%s723 + $0xe2] sm:$0xff]
      %v865 = vld [vmem:[%s723 + $0xf2] sm:$0xff]
      %v866 = vld [vmem:[%s723 + $0x102] sm:$0xff]
      %v867 = vld [vmem:[%s723 + $0x112] sm:$0xff]
      %v868 = vld [vmem:[%s723 + $0x142] sm:$0xff]
      %v869 = vld [vmem:[%s723 + $0x152] sm:$0xff]
      %v870 = vld [vmem:[%s723 + $0x162] sm:$0xff]
      %v871 = vld [vmem:[%s723 + $0x172] sm:$0xff]
      %v872 = vld [vmem:[%s723 + $0x182] sm:$0xff]
      %v873 = vld [vmem:[%s723 + $0x192] sm:$0xff]
      %v874 = vld [vmem:[%s723 + $0x1a2] sm:$0xff]
      %v875 = vld [vmem:[%s723 + $0x1b2] sm:$0xff]
      %v876 = vld [vmem:[%s723 + $0x1e2] sm:$0xff]
      %v877 = vld [vmem:[%s723 + $0x1f2] sm:$0xff]
      %v878 = vld [vmem:[%s723 + $0x202] sm:$0xff]
      %v879 = vld [vmem:[%s723 + $0x212] sm:$0xff]
      %v880 = vld [vmem:[%s723 + $0x222] sm:$0xff]
      %v881 = vld [vmem:[%s723 + $0x232] sm:$0xff]
      %v882 = vld [vmem:[%s723 + $0x242] sm:$0xff]
      %v883 = vld [vmem:[%s723 + $0x252] sm:$0xff]
      %v884 = vld [vmem:[%s723 + $0x282] sm:$0xff]
      %v885 = vld [vmem:[%s723 + $0x292] sm:$0xff]
      %v886 = vld [vmem:[%s723 + $0x2a2] sm:$0xff]
      %v887 = vld [vmem:[%s723 + $0x2b2] sm:$0xff]
      %v888 = vld [vmem:[%s723 + $0x2c2] sm:$0xff]
      %v889 = vld [vmem:[%s723 + $0x2d2] sm:$0xff]
      %v890 = vld [vmem:[%s723 + $0x2e2] sm:$0xff]
      %v891 = vld [vmem:[%s723 + $0x2f2] sm:$0xff]
      %v892 = vld [vmem:[%s723 + $0x322] sm:$0xff]
      %v893 = vld [vmem:[%s723 + $0x332] sm:$0xff]
      %v894 = vld [vmem:[%s723 + $0x342] sm:$0xff]
      %v895 = vld [vmem:[%s723 + $0x352] sm:$0xff]
      %v896 = vld [vmem:[%s723 + $0x362] sm:$0xff]
      %v897 = vld [vmem:[%s723 + $0x372] sm:$0xff]
      %v898 = vld [vmem:[%s723 + $0x382] sm:$0xff]
      %v899 = vld [vmem:[%s723 + $0x392] sm:$0xff]
      %v900 = vld [vmem:[%s723 + $0x3c2] sm:$0xff]
      %v901 = vld [vmem:[%s723 + $0x3d2] sm:$0xff]
      %v902 = vld [vmem:[%s723 + $0x3e2] sm:$0xff]
      %v903 = vld [vmem:[%s723 + $0x3f2] sm:$0xff]
      %v904 = vld [vmem:[%s723 + $0x402] sm:$0xff]
      %v905 = vld [vmem:[%s723 + $0x412] sm:$0xff]
      %v906 = vld [vmem:[%s723 + $0x422] sm:$0xff]
      %v907 = vld [vmem:[%s723 + $0x432] sm:$0xff]
      %v908 = vld [vmem:[%s723 + $0x462] sm:$0xff]
      %v909 = vld [vmem:[%s723 + $0x472] sm:$0xff]
      %v910 = vld [vmem:[%s723 + $0x482] sm:$0xff]
      %v911 = vld [vmem:[%s723 + $0x492] sm:$0xff]
      %v912 = vld [vmem:[%s723 + $0x4a2] sm:$0xff]
      %v913 = vld [vmem:[%s723 + $0x4b2] sm:$0xff]
      %v914 = vld [vmem:[%s723 + $0x4c2] sm:$0xff]
      %v915 = vld [vmem:[%s723 + $0x4d2] sm:$0xff]
      %s916 = scalar_lea.vmem %s138, 176
      %v917 = vld [vmem:[%s916] sm:$0xff]
      %v918 = vld [vmem:[%s916 + $0x10] sm:$0xff]
      %v919 = vld [vmem:[%s916 + $0x20] sm:$0xff]
      %v920 = vld [vmem:[%s916 + $0x30] sm:$0xff]
      %v921 = vld [vmem:[%s916 + $0x40] sm:$0xff]
      %v922 = vld [vmem:[%s916 + $0x50] sm:$0xff]
      %v923 = vld [vmem:[%s916 + $0x60] sm:$0xff]
      %v924 = vld [vmem:[%s916 + $0x70] sm:$0xff]
      %v925 = vld [vmem:[%s916 + $0xa0] sm:$0xff]
      %v926 = vld [vmem:[%s916 + $0xb0] sm:$0xff]
      %v927 = vld [vmem:[%s916 + $0xc0] sm:$0xff]
      %v928 = vld [vmem:[%s916 + $0xd0] sm:$0xff]
      %v929 = vld [vmem:[%s916 + $0xe0] sm:$0xff]
      %v930 = vld [vmem:[%s916 + $0xf0] sm:$0xff]
      %v931 = vld [vmem:[%s916 + $0x100] sm:$0xff]
      %v932 = vld [vmem:[%s916 + $0x110] sm:$0xff]
      %v933 = vld [vmem:[%s916 + $0x140] sm:$0xff]
      %v934 = vld [vmem:[%s916 + $0x150] sm:$0xff]
      %v935 = vld [vmem:[%s916 + $0x160] sm:$0xff]
      %v936 = vld [vmem:[%s916 + $0x170] sm:$0xff]
      %v937 = vld [vmem:[%s916 + $0x180] sm:$0xff]
      %v938 = vld [vmem:[%s916 + $0x190] sm:$0xff]
      %v939 = vld [vmem:[%s916 + $0x1a0] sm:$0xff]
      %v940 = vld [vmem:[%s916 + $0x1b0] sm:$0xff]
      %v941 = vld [vmem:[%s916 + $0x1e0] sm:$0xff]
      %v942 = vld [vmem:[%s916 + $0x1f0] sm:$0xff]
      %v943 = vld [vmem:[%s916 + $0x200] sm:$0xff]
      %v944 = vld [vmem:[%s916 + $0x210] sm:$0xff]
      %v945 = vld [vmem:[%s916 + $0x220] sm:$0xff]
      %v946 = vld [vmem:[%s916 + $0x230] sm:$0xff]
      %v947 = vld [vmem:[%s916 + $0x240] sm:$0xff]
      %v948 = vld [vmem:[%s916 + $0x250] sm:$0xff]
      %v949 = vld [vmem:[%s916 + $0x280] sm:$0xff]
      %v950 = vld [vmem:[%s916 + $0x290] sm:$0xff]
      %v951 = vld [vmem:[%s916 + $0x2a0] sm:$0xff]
      %v952 = vld [vmem:[%s916 + $0x2b0] sm:$0xff]
      %v953 = vld [vmem:[%s916 + $0x2c0] sm:$0xff]
      %v954 = vld [vmem:[%s916 + $0x2d0] sm:$0xff]
      %v955 = vld [vmem:[%s916 + $0x2e0] sm:$0xff]
      %v956 = vld [vmem:[%s916 + $0x2f0] sm:$0xff]
      %v957 = vld [vmem:[%s916 + $0x320] sm:$0xff]
      %v958 = vld [vmem:[%s916 + $0x330] sm:$0xff]
      %v959 = vld [vmem:[%s916 + $0x340] sm:$0xff]
      %v960 = vld [vmem:[%s916 + $0x350] sm:$0xff]
      %v961 = vld [vmem:[%s916 + $0x360] sm:$0xff]
      %v962 = vld [vmem:[%s916 + $0x370] sm:$0xff]
      %v963 = vld [vmem:[%s916 + $0x380] sm:$0xff]
      %v964 = vld [vmem:[%s916 + $0x390] sm:$0xff]
      %v965 = vld [vmem:[%s916 + $0x3c0] sm:$0xff]
      %v966 = vld [vmem:[%s916 + $0x3d0] sm:$0xff]
      %v967 = vld [vmem:[%s916 + $0x3e0] sm:$0xff]
      %v968 = vld [vmem:[%s916 + $0x3f0] sm:$0xff]
      %v969 = vld [vmem:[%s916 + $0x400] sm:$0xff]
      %v970 = vld [vmem:[%s916 + $0x410] sm:$0xff]
      %v971 = vld [vmem:[%s916 + $0x420] sm:$0xff]
      %v972 = vld [vmem:[%s916 + $0x430] sm:$0xff]
      %v973 = vld [vmem:[%s916 + $0x460] sm:$0xff]
      %v974 = vld [vmem:[%s916 + $0x470] sm:$0xff]
      %v975 = vld [vmem:[%s916 + $0x480] sm:$0xff]
      %v976 = vld [vmem:[%s916 + $0x490] sm:$0xff]
      %v977 = vld [vmem:[%s916 + $0x4a0] sm:$0xff]
      %v978 = vld [vmem:[%s916 + $0x4b0] sm:$0xff]
      %v979 = vld [vmem:[%s916 + $0x4c0] sm:$0xff]
      %v980 = vld [vmem:[%s916 + $0x4d0] sm:$0xff]
      %v981 = vld [vmem:[%s916 + $0x1] sm:$0xff]
      %v982 = vld [vmem:[%s916 + $0x11] sm:$0xff]
      %v983 = vld [vmem:[%s916 + $0x21] sm:$0xff]
      %v984 = vld [vmem:[%s916 + $0x31] sm:$0xff]
      %v985 = vld [vmem:[%s916 + $0x41] sm:$0xff]
      %v986 = vld [vmem:[%s916 + $0x51] sm:$0xff]
      %v987 = vld [vmem:[%s916 + $0x61] sm:$0xff]
      %v988 = vld [vmem:[%s916 + $0x71] sm:$0xff]
      %v989 = vld [vmem:[%s916 + $0xa1] sm:$0xff]
      %v990 = vld [vmem:[%s916 + $0xb1] sm:$0xff]
      %v991 = vld [vmem:[%s916 + $0xc1] sm:$0xff]
      %v992 = vld [vmem:[%s916 + $0xd1] sm:$0xff]
      %v993 = vld [vmem:[%s916 + $0xe1] sm:$0xff]
      %v994 = vld [vmem:[%s916 + $0xf1] sm:$0xff]
      %v995 = vld [vmem:[%s916 + $0x101] sm:$0xff]
      %v996 = vld [vmem:[%s916 + $0x111] sm:$0xff]
      %v997 = vld [vmem:[%s916 + $0x141] sm:$0xff]
      %v998 = vld [vmem:[%s916 + $0x151] sm:$0xff]
      %v999 = vld [vmem:[%s916 + $0x161] sm:$0xff]
      %v1000 = vld [vmem:[%s916 + $0x171] sm:$0xff]
      %v1001 = vld [vmem:[%s916 + $0x181] sm:$0xff]
      %v1002 = vld [vmem:[%s916 + $0x191] sm:$0xff]
      %v1003 = vld [vmem:[%s916 + $0x1a1] sm:$0xff]
      %v1004 = vld [vmem:[%s916 + $0x1b1] sm:$0xff]
      %v1005 = vld [vmem:[%s916 + $0x1e1] sm:$0xff]
      %v1006 = vld [vmem:[%s916 + $0x1f1] sm:$0xff]
      %v1007 = vld [vmem:[%s916 + $0x201] sm:$0xff]
      %v1008 = vld [vmem:[%s916 + $0x211] sm:$0xff]
      %v1009 = vld [vmem:[%s916 + $0x221] sm:$0xff]
      %v1010 = vld [vmem:[%s916 + $0x231] sm:$0xff]
      %v1011 = vld [vmem:[%s916 + $0x241] sm:$0xff]
      %v1012 = vld [vmem:[%s916 + $0x251] sm:$0xff]
      %v1013 = vld [vmem:[%s916 + $0x281] sm:$0xff]
      %v1014 = vld [vmem:[%s916 + $0x291] sm:$0xff]
      %v1015 = vld [vmem:[%s916 + $0x2a1] sm:$0xff]
      %v1016 = vld [vmem:[%s916 + $0x2b1] sm:$0xff]
      %v1017 = vld [vmem:[%s916 + $0x2c1] sm:$0xff]
      %v1018 = vld [vmem:[%s916 + $0x2d1] sm:$0xff]
      %v1019 = vld [vmem:[%s916 + $0x2e1] sm:$0xff]
      %v1020 = vld [vmem:[%s916 + $0x2f1] sm:$0xff]
      %v1021 = vld [vmem:[%s916 + $0x321] sm:$0xff]
      %v1022 = vld [vmem:[%s916 + $0x331] sm:$0xff]
      %v1023 = vld [vmem:[%s916 + $0x341] sm:$0xff]
      %v1024 = vld [vmem:[%s916 + $0x351] sm:$0xff]
      %v1025 = vld [vmem:[%s916 + $0x361] sm:$0xff]
      %v1026 = vld [vmem:[%s916 + $0x371] sm:$0xff]
      %v1027 = vld [vmem:[%s916 + $0x381] sm:$0xff]
      %v1028 = vld [vmem:[%s916 + $0x391] sm:$0xff]
      %v1029 = vld [vmem:[%s916 + $0x3c1] sm:$0xff]
      %v1030 = vld [vmem:[%s916 + $0x3d1] sm:$0xff]
      %v1031 = vld [vmem:[%s916 + $0x3e1] sm:$0xff]
      %v1032 = vld [vmem:[%s916 + $0x3f1] sm:$0xff]
      %v1033 = vld [vmem:[%s916 + $0x401] sm:$0xff]
      %v1034 = vld [vmem:[%s916 + $0x411] sm:$0xff]
      %v1035 = vld [vmem:[%s916 + $0x421] sm:$0xff]
      %v1036 = vld [vmem:[%s916 + $0x431] sm:$0xff]
      %v1037 = vld [vmem:[%s916 + $0x461] sm:$0xff]
      %v1038 = vld [vmem:[%s916 + $0x471] sm:$0xff]
      %v1039 = vld [vmem:[%s916 + $0x481] sm:$0xff]
      %v1040 = vld [vmem:[%s916 + $0x491] sm:$0xff]
      %v1041 = vld [vmem:[%s916 + $0x4a1] sm:$0xff]
      %v1042 = vld [vmem:[%s916 + $0x4b1] sm:$0xff]
      %v1043 = vld [vmem:[%s916 + $0x4c1] sm:$0xff]
      %v1044 = vld [vmem:[%s916 + $0x4d1] sm:$0xff]
      %v1045 = vld [vmem:[%s916 + $0x2] sm:$0xff]
      %v1046 = vld [vmem:[%s916 + $0x12] sm:$0xff]
      %v1047 = vld [vmem:[%s916 + $0x22] sm:$0xff]
      %v1048 = vld [vmem:[%s916 + $0x32] sm:$0xff]
      %v1049 = vld [vmem:[%s916 + $0x42] sm:$0xff]
      %v1050 = vld [vmem:[%s916 + $0x52] sm:$0xff]
      %v1051 = vld [vmem:[%s916 + $0x62] sm:$0xff]
      %v1052 = vld [vmem:[%s916 + $0x72] sm:$0xff]
      %v1053 = vld [vmem:[%s916 + $0xa2] sm:$0xff]
      %v1054 = vld [vmem:[%s916 + $0xb2] sm:$0xff]
      %v1055 = vld [vmem:[%s916 + $0xc2] sm:$0xff]
      %v1056 = vld [vmem:[%s916 + $0xd2] sm:$0xff]
      %v1057 = vld [vmem:[%s916 + $0xe2] sm:$0xff]
      %v1058 = vld [vmem:[%s916 + $0xf2] sm:$0xff]
      %v1059 = vld [vmem:[%s916 + $0x102] sm:$0xff]
      %v1060 = vld [vmem:[%s916 + $0x112] sm:$0xff]
      %v1061 = vld [vmem:[%s916 + $0x142] sm:$0xff]
      %v1062 = vld [vmem:[%s916 + $0x152] sm:$0xff]
      %v1063 = vld [vmem:[%s916 + $0x162] sm:$0xff]
      %v1064 = vld [vmem:[%s916 + $0x172] sm:$0xff]
      %v1065 = vld [vmem:[%s916 + $0x182] sm:$0xff]
      %v1066 = vld [vmem:[%s916 + $0x192] sm:$0xff]
      %v1067 = vld [vmem:[%s916 + $0x1a2] sm:$0xff]
      %v1068 = vld [vmem:[%s916 + $0x1b2] sm:$0xff]
      %v1069 = vld [vmem:[%s916 + $0x1e2] sm:$0xff]
      %v1070 = vld [vmem:[%s916 + $0x1f2] sm:$0xff]
      %v1071 = vld [vmem:[%s916 + $0x202] sm:$0xff]
      %v1072 = vld [vmem:[%s916 + $0x212] sm:$0xff]
      %v1073 = vld [vmem:[%s916 + $0x222] sm:$0xff]
      %v1074 = vld [vmem:[%s916 + $0x232] sm:$0xff]
      %v1075 = vld [vmem:[%s916 + $0x242] sm:$0xff]
      %v1076 = vld [vmem:[%s916 + $0x252] sm:$0xff]
      %v1077 = vld [vmem:[%s916 + $0x282] sm:$0xff]
      %v1078 = vld [vmem:[%s916 + $0x292] sm:$0xff]
      %v1079 = vld [vmem:[%s916 + $0x2a2] sm:$0xff]
      %v1080 = vld [vmem:[%s916 + $0x2b2] sm:$0xff]
      %v1081 = vld [vmem:[%s916 + $0x2c2] sm:$0xff]
      %v1082 = vld [vmem:[%s916 + $0x2d2] sm:$0xff]
      %v1083 = vld [vmem:[%s916 + $0x2e2] sm:$0xff]
      %v1084 = vld [vmem:[%s916 + $0x2f2] sm:$0xff]
      %v1085 = vld [vmem:[%s916 + $0x322] sm:$0xff]
      %v1086 = vld [vmem:[%s916 + $0x332] sm:$0xff]
      %v1087 = vld [vmem:[%s916 + $0x342] sm:$0xff]
      %v1088 = vld [vmem:[%s916 + $0x352] sm:$0xff]
      %v1089 = vld [vmem:[%s916 + $0x362] sm:$0xff]
      %v1090 = vld [vmem:[%s916 + $0x372] sm:$0xff]
      %v1091 = vld [vmem:[%s916 + $0x382] sm:$0xff]
      %v1092 = vld [vmem:[%s916 + $0x392] sm:$0xff]
      %v1093 = vld [vmem:[%s916 + $0x3c2] sm:$0xff]
      %v1094 = vld [vmem:[%s916 + $0x3d2] sm:$0xff]
      %v1095 = vld [vmem:[%s916 + $0x3e2] sm:$0xff]
      %v1096 = vld [vmem:[%s916 + $0x3f2] sm:$0xff]
      %v1097 = vld [vmem:[%s916 + $0x402] sm:$0xff]
      %v1098 = vld [vmem:[%s916 + $0x412] sm:$0xff]
      %v1099 = vld [vmem:[%s916 + $0x422] sm:$0xff]
      %v1100 = vld [vmem:[%s916 + $0x432] sm:$0xff]
      %v1101 = vld [vmem:[%s916 + $0x462] sm:$0xff]
      %v1102 = vld [vmem:[%s916 + $0x472] sm:$0xff]
      %v1103 = vld [vmem:[%s916 + $0x482] sm:$0xff]
      %v1104 = vld [vmem:[%s916 + $0x492] sm:$0xff]
      %v1105 = vld [vmem:[%s916 + $0x4a2] sm:$0xff]
      %v1106 = vld [vmem:[%s916 + $0x4b2] sm:$0xff]
      %v1107 = vld [vmem:[%s916 + $0x4c2] sm:$0xff]
      %v1108 = vld [vmem:[%s916 + $0x4d2] sm:$0xff]
      %s1109 = scalar_lea.vmem %s138, 192
      %v1110 = vld [vmem:[%s1109] sm:$0xff]
      %v1111 = vld [vmem:[%s1109 + $0x10] sm:$0xff]
      %v1112 = vld [vmem:[%s1109 + $0x20] sm:$0xff]
      %v1113 = vld [vmem:[%s1109 + $0x30] sm:$0xff]
      %v1114 = vld [vmem:[%s1109 + $0x40] sm:$0xff]
      %v1115 = vld [vmem:[%s1109 + $0x50] sm:$0xff]
      %v1116 = vld [vmem:[%s1109 + $0x60] sm:$0xff]
      %v1117 = vld [vmem:[%s1109 + $0x70] sm:$0xff]
      %v1118 = vld [vmem:[%s1109 + $0xa0] sm:$0xff]
      %v1119 = vld [vmem:[%s1109 + $0xb0] sm:$0xff]
      %v1120 = vld [vmem:[%s1109 + $0xc0] sm:$0xff]
      %v1121 = vld [vmem:[%s1109 + $0xd0] sm:$0xff]
      %v1122 = vld [vmem:[%s1109 + $0xe0] sm:$0xff]
      %v1123 = vld [vmem:[%s1109 + $0xf0] sm:$0xff]
      %v1124 = vld [vmem:[%s1109 + $0x100] sm:$0xff]
      %v1125 = vld [vmem:[%s1109 + $0x110] sm:$0xff]
      %v1126 = vld [vmem:[%s1109 + $0x140] sm:$0xff]
      %v1127 = vld [vmem:[%s1109 + $0x150] sm:$0xff]
      %v1128 = vld [vmem:[%s1109 + $0x160] sm:$0xff]
      %v1129 = vld [vmem:[%s1109 + $0x170] sm:$0xff]
      %v1130 = vld [vmem:[%s1109 + $0x180] sm:$0xff]
      %v1131 = vld [vmem:[%s1109 + $0x190] sm:$0xff]
      %v1132 = vld [vmem:[%s1109 + $0x1a0] sm:$0xff]
      %v1133 = vld [vmem:[%s1109 + $0x1b0] sm:$0xff]
      %v1134 = vld [vmem:[%s1109 + $0x1e0] sm:$0xff]
      %v1135 = vld [vmem:[%s1109 + $0x1f0] sm:$0xff]
      %v1136 = vld [vmem:[%s1109 + $0x200] sm:$0xff]
      %v1137 = vld [vmem:[%s1109 + $0x210] sm:$0xff]
      %v1138 = vld [vmem:[%s1109 + $0x220] sm:$0xff]
      %v1139 = vld [vmem:[%s1109 + $0x230] sm:$0xff]
      %v1140 = vld [vmem:[%s1109 + $0x240] sm:$0xff]
      %v1141 = vld [vmem:[%s1109 + $0x250] sm:$0xff]
      %v1142 = vld [vmem:[%s1109 + $0x280] sm:$0xff]
      %v1143 = vld [vmem:[%s1109 + $0x290] sm:$0xff]
      %v1144 = vld [vmem:[%s1109 + $0x2a0] sm:$0xff]
      %v1145 = vld [vmem:[%s1109 + $0x2b0] sm:$0xff]
      %v1146 = vld [vmem:[%s1109 + $0x2c0] sm:$0xff]
      %v1147 = vld [vmem:[%s1109 + $0x2d0] sm:$0xff]
      %v1148 = vld [vmem:[%s1109 + $0x2e0] sm:$0xff]
      %v1149 = vld [vmem:[%s1109 + $0x2f0] sm:$0xff]
      %v1150 = vld [vmem:[%s1109 + $0x320] sm:$0xff]
      %v1151 = vld [vmem:[%s1109 + $0x330] sm:$0xff]
      %v1152 = vld [vmem:[%s1109 + $0x340] sm:$0xff]
      %v1153 = vld [vmem:[%s1109 + $0x350] sm:$0xff]
      %v1154 = vld [vmem:[%s1109 + $0x360] sm:$0xff]
      %v1155 = vld [vmem:[%s1109 + $0x370] sm:$0xff]
      %v1156 = vld [vmem:[%s1109 + $0x380] sm:$0xff]
      %v1157 = vld [vmem:[%s1109 + $0x390] sm:$0xff]
      %v1158 = vld [vmem:[%s1109 + $0x3c0] sm:$0xff]
      %v1159 = vld [vmem:[%s1109 + $0x3d0] sm:$0xff]
      %v1160 = vld [vmem:[%s1109 + $0x3e0] sm:$0xff]
      %v1161 = vld [vmem:[%s1109 + $0x3f0] sm:$0xff]
      %v1162 = vld [vmem:[%s1109 + $0x400] sm:$0xff]
      %v1163 = vld [vmem:[%s1109 + $0x410] sm:$0xff]
      %v1164 = vld [vmem:[%s1109 + $0x420] sm:$0xff]
      %v1165 = vld [vmem:[%s1109 + $0x430] sm:$0xff]
      %v1166 = vld [vmem:[%s1109 + $0x460] sm:$0xff]
      %v1167 = vld [vmem:[%s1109 + $0x470] sm:$0xff]
      %v1168 = vld [vmem:[%s1109 + $0x480] sm:$0xff]
      %v1169 = vld [vmem:[%s1109 + $0x490] sm:$0xff]
      %v1170 = vld [vmem:[%s1109 + $0x4a0] sm:$0xff]
      %v1171 = vld [vmem:[%s1109 + $0x4b0] sm:$0xff]
      %v1172 = vld [vmem:[%s1109 + $0x4c0] sm:$0xff]
      %v1173 = vld [vmem:[%s1109 + $0x4d0] sm:$0xff]
      %v1174 = vld [vmem:[%s1109 + $0x1] sm:$0xff]
      %v1175 = vld [vmem:[%s1109 + $0x11] sm:$0xff]
      %v1176 = vld [vmem:[%s1109 + $0x21] sm:$0xff]
      %v1177 = vld [vmem:[%s1109 + $0x31] sm:$0xff]
      %v1178 = vld [vmem:[%s1109 + $0x41] sm:$0xff]
      %v1179 = vld [vmem:[%s1109 + $0x51] sm:$0xff]
      %v1180 = vld [vmem:[%s1109 + $0x61] sm:$0xff]
      %v1181 = vld [vmem:[%s1109 + $0x71] sm:$0xff]
      %v1182 = vld [vmem:[%s1109 + $0xa1] sm:$0xff]
      %v1183 = vld [vmem:[%s1109 + $0xb1] sm:$0xff]
      %v1184 = vld [vmem:[%s1109 + $0xc1] sm:$0xff]
      %v1185 = vld [vmem:[%s1109 + $0xd1] sm:$0xff]
      %v1186 = vld [vmem:[%s1109 + $0xe1] sm:$0xff]
      %v1187 = vld [vmem:[%s1109 + $0xf1] sm:$0xff]
      %v1188 = vld [vmem:[%s1109 + $0x101] sm:$0xff]
      %v1189 = vld [vmem:[%s1109 + $0x111] sm:$0xff]
      %v1190 = vld [vmem:[%s1109 + $0x141] sm:$0xff]
      %v1191 = vld [vmem:[%s1109 + $0x151] sm:$0xff]
      %v1192 = vld [vmem:[%s1109 + $0x161] sm:$0xff]
      %v1193 = vld [vmem:[%s1109 + $0x171] sm:$0xff]
      %v1194 = vld [vmem:[%s1109 + $0x181] sm:$0xff]
      %v1195 = vld [vmem:[%s1109 + $0x191] sm:$0xff]
      %v1196 = vld [vmem:[%s1109 + $0x1a1] sm:$0xff]
      %v1197 = vld [vmem:[%s1109 + $0x1b1] sm:$0xff]
      %v1198 = vld [vmem:[%s1109 + $0x1e1] sm:$0xff]
      %v1199 = vld [vmem:[%s1109 + $0x1f1] sm:$0xff]
      %v1200 = vld [vmem:[%s1109 + $0x201] sm:$0xff]
      %v1201 = vld [vmem:[%s1109 + $0x211] sm:$0xff]
      %v1202 = vld [vmem:[%s1109 + $0x221] sm:$0xff]
      %v1203 = vld [vmem:[%s1109 + $0x231] sm:$0xff]
      %v1204 = vld [vmem:[%s1109 + $0x241] sm:$0xff]
      %v1205 = vld [vmem:[%s1109 + $0x251] sm:$0xff]
      %v1206 = vld [vmem:[%s1109 + $0x281] sm:$0xff]
      %v1207 = vld [vmem:[%s1109 + $0x291] sm:$0xff]
      %v1208 = vld [vmem:[%s1109 + $0x2a1] sm:$0xff]
      %v1209 = vld [vmem:[%s1109 + $0x2b1] sm:$0xff]
      %v1210 = vld [vmem:[%s1109 + $0x2c1] sm:$0xff]
      %v1211 = vld [vmem:[%s1109 + $0x2d1] sm:$0xff]
      %v1212 = vld [vmem:[%s1109 + $0x2e1] sm:$0xff]
      %v1213 = vld [vmem:[%s1109 + $0x2f1] sm:$0xff]
      %v1214 = vld [vmem:[%s1109 + $0x321] sm:$0xff]
      %v1215 = vld [vmem:[%s1109 + $0x331] sm:$0xff]
      %v1216 = vld [vmem:[%s1109 + $0x341] sm:$0xff]
      %v1217 = vld [vmem:[%s1109 + $0x351] sm:$0xff]
      %v1218 = vld [vmem:[%s1109 + $0x361] sm:$0xff]
      %v1219 = vld [vmem:[%s1109 + $0x371] sm:$0xff]
      %v1220 = vld [vmem:[%s1109 + $0x381] sm:$0xff]
      %v1221 = vld [vmem:[%s1109 + $0x391] sm:$0xff]
      %v1222 = vld [vmem:[%s1109 + $0x3c1] sm:$0xff]
      %v1223 = vld [vmem:[%s1109 + $0x3d1] sm:$0xff]
      %v1224 = vld [vmem:[%s1109 + $0x3e1] sm:$0xff]
      %v1225 = vld [vmem:[%s1109 + $0x3f1] sm:$0xff]
      %v1226 = vld [vmem:[%s1109 + $0x401] sm:$0xff]
      %v1227 = vld [vmem:[%s1109 + $0x411] sm:$0xff]
      %v1228 = vld [vmem:[%s1109 + $0x421] sm:$0xff]
      %v1229 = vld [vmem:[%s1109 + $0x431] sm:$0xff]
      %v1230 = vld [vmem:[%s1109 + $0x461] sm:$0xff]
      %v1231 = vld [vmem:[%s1109 + $0x471] sm:$0xff]
      %v1232 = vld [vmem:[%s1109 + $0x481] sm:$0xff]
      %v1233 = vld [vmem:[%s1109 + $0x491] sm:$0xff]
      %v1234 = vld [vmem:[%s1109 + $0x4a1] sm:$0xff]
      %v1235 = vld [vmem:[%s1109 + $0x4b1] sm:$0xff]
      %v1236 = vld [vmem:[%s1109 + $0x4c1] sm:$0xff]
      %v1237 = vld [vmem:[%s1109 + $0x4d1] sm:$0xff]
      %v1238 = vld [vmem:[%s1109 + $0x2] sm:$0xff]
      %v1239 = vld [vmem:[%s1109 + $0x12] sm:$0xff]
      %v1240 = vld [vmem:[%s1109 + $0x22] sm:$0xff]
      %v1241 = vld [vmem:[%s1109 + $0x32] sm:$0xff]
      %v1242 = vld [vmem:[%s1109 + $0x42] sm:$0xff]
      %v1243 = vld [vmem:[%s1109 + $0x52] sm:$0xff]
      %v1244 = vld [vmem:[%s1109 + $0x62] sm:$0xff]
      %v1245 = vld [vmem:[%s1109 + $0x72] sm:$0xff]
      %v1246 = vld [vmem:[%s1109 + $0xa2] sm:$0xff]
      %v1247 = vld [vmem:[%s1109 + $0xb2] sm:$0xff]
      %v1248 = vld [vmem:[%s1109 + $0xc2] sm:$0xff]
      %v1249 = vld [vmem:[%s1109 + $0xd2] sm:$0xff]
      %v1250 = vld [vmem:[%s1109 + $0xe2] sm:$0xff]
      %v1251 = vld [vmem:[%s1109 + $0xf2] sm:$0xff]
      %v1252 = vld [vmem:[%s1109 + $0x102] sm:$0xff]
      %v1253 = vld [vmem:[%s1109 + $0x112] sm:$0xff]
      %v1254 = vld [vmem:[%s1109 + $0x142] sm:$0xff]
      %v1255 = vld [vmem:[%s1109 + $0x152] sm:$0xff]
      %v1256 = vld [vmem:[%s1109 + $0x162] sm:$0xff]
      %v1257 = vld [vmem:[%s1109 + $0x172] sm:$0xff]
      %v1258 = vld [vmem:[%s1109 + $0x182] sm:$0xff]
      %v1259 = vld [vmem:[%s1109 + $0x192] sm:$0xff]
      %v1260 = vld [vmem:[%s1109 + $0x1a2] sm:$0xff]
      %v1261 = vld [vmem:[%s1109 + $0x1b2] sm:$0xff]
      %v1262 = vld [vmem:[%s1109 + $0x1e2] sm:$0xff]
      %v1263 = vld [vmem:[%s1109 + $0x1f2] sm:$0xff]
      %v1264 = vld [vmem:[%s1109 + $0x202] sm:$0xff]
      %v1265 = vld [vmem:[%s1109 + $0x212] sm:$0xff]
      %v1266 = vld [vmem:[%s1109 + $0x222] sm:$0xff]
      %v1267 = vld [vmem:[%s1109 + $0x232] sm:$0xff]
      %v1268 = vld [vmem:[%s1109 + $0x242] sm:$0xff]
      %v1269 = vld [vmem:[%s1109 + $0x252] sm:$0xff]
      %v1270 = vld [vmem:[%s1109 + $0x282] sm:$0xff]
      %v1271 = vld [vmem:[%s1109 + $0x292] sm:$0xff]
      %v1272 = vld [vmem:[%s1109 + $0x2a2] sm:$0xff]
      %v1273 = vld [vmem:[%s1109 + $0x2b2] sm:$0xff]
      %v1274 = vld [vmem:[%s1109 + $0x2c2] sm:$0xff]
      %v1275 = vld [vmem:[%s1109 + $0x2d2] sm:$0xff]
      %v1276 = vld [vmem:[%s1109 + $0x2e2] sm:$0xff]
      %v1277 = vld [vmem:[%s1109 + $0x2f2] sm:$0xff]
      %v1278 = vld [vmem:[%s1109 + $0x322] sm:$0xff]
      %v1279 = vld [vmem:[%s1109 + $0x332] sm:$0xff]
      %v1280 = vld [vmem:[%s1109 + $0x342] sm:$0xff]
      %v1281 = vld [vmem:[%s1109 + $0x352] sm:$0xff]
      %v1282 = vld [vmem:[%s1109 + $0x362] sm:$0xff]
      %v1283 = vld [vmem:[%s1109 + $0x372] sm:$0xff]
      %v1284 = vld [vmem:[%s1109 + $0x382] sm:$0xff]
      %v1285 = vld [vmem:[%s1109 + $0x392] sm:$0xff]
      %v1286 = vld [vmem:[%s1109 + $0x3c2] sm:$0xff]
      %v1287 = vld [vmem:[%s1109 + $0x3d2] sm:$0xff]
      %v1288 = vld [vmem:[%s1109 + $0x3e2] sm:$0xff]
      %v1289 = vld [vmem:[%s1109 + $0x3f2] sm:$0xff]
      %v1290 = vld [vmem:[%s1109 + $0x402] sm:$0xff]
      %v1291 = vld [vmem:[%s1109 + $0x412] sm:$0xff]
      %v1292 = vld [vmem:[%s1109 + $0x422] sm:$0xff]
      %v1293 = vld [vmem:[%s1109 + $0x432] sm:$0xff]
      %v1294 = vld [vmem:[%s1109 + $0x462] sm:$0xff]
      %v1295 = vld [vmem:[%s1109 + $0x472] sm:$0xff]
      %v1296 = vld [vmem:[%s1109 + $0x482] sm:$0xff]
      %v1297 = vld [vmem:[%s1109 + $0x492] sm:$0xff]
      %v1298 = vld [vmem:[%s1109 + $0x4a2] sm:$0xff]
      %v1299 = vld [vmem:[%s1109 + $0x4b2] sm:$0xff]
      %v1300 = vld [vmem:[%s1109 + $0x4c2] sm:$0xff]
      %v1301 = vld [vmem:[%s1109 + $0x4d2] sm:$0xff]
      %s1302 = scalar_lea.vmem %s138, 320
      %v1303 = vld [vmem:[%s1302] sm:$0xff]
      %v1304 = vld [vmem:[%s1302 + $0x10] sm:$0xff]
      %v1305 = vld [vmem:[%s1302 + $0x20] sm:$0xff]
      %v1306 = vld [vmem:[%s1302 + $0x30] sm:$0xff]
      %v1307 = vld [vmem:[%s1302 + $0x40] sm:$0xff]
      %v1308 = vld [vmem:[%s1302 + $0x50] sm:$0xff]
      %v1309 = vld [vmem:[%s1302 + $0x60] sm:$0xff]
      %v1310 = vld [vmem:[%s1302 + $0x70] sm:$0xff]
      %v1311 = vld [vmem:[%s1302 + $0xa0] sm:$0xff]
      %v1312 = vld [vmem:[%s1302 + $0xb0] sm:$0xff]
      %v1313 = vld [vmem:[%s1302 + $0xc0] sm:$0xff]
      %v1314 = vld [vmem:[%s1302 + $0xd0] sm:$0xff]
      %v1315 = vld [vmem:[%s1302 + $0xe0] sm:$0xff]
      %v1316 = vld [vmem:[%s1302 + $0xf0] sm:$0xff]
      %v1317 = vld [vmem:[%s1302 + $0x100] sm:$0xff]
      %v1318 = vld [vmem:[%s1302 + $0x110] sm:$0xff]
      %v1319 = vld [vmem:[%s1302 + $0x140] sm:$0xff]
      %v1320 = vld [vmem:[%s1302 + $0x150] sm:$0xff]
      %v1321 = vld [vmem:[%s1302 + $0x160] sm:$0xff]
      %v1322 = vld [vmem:[%s1302 + $0x170] sm:$0xff]
      %v1323 = vld [vmem:[%s1302 + $0x180] sm:$0xff]
      %v1324 = vld [vmem:[%s1302 + $0x190] sm:$0xff]
      %v1325 = vld [vmem:[%s1302 + $0x1a0] sm:$0xff]
      %v1326 = vld [vmem:[%s1302 + $0x1b0] sm:$0xff]
      %v1327 = vld [vmem:[%s1302 + $0x1e0] sm:$0xff]
      %v1328 = vld [vmem:[%s1302 + $0x1f0] sm:$0xff]
      %v1329 = vld [vmem:[%s1302 + $0x200] sm:$0xff]
      %v1330 = vld [vmem:[%s1302 + $0x210] sm:$0xff]
      %v1331 = vld [vmem:[%s1302 + $0x220] sm:$0xff]
      %v1332 = vld [vmem:[%s1302 + $0x230] sm:$0xff]
      %v1333 = vld [vmem:[%s1302 + $0x240] sm:$0xff]
      %v1334 = vld [vmem:[%s1302 + $0x250] sm:$0xff]
      %v1335 = vld [vmem:[%s1302 + $0x280] sm:$0xff]
      %v1336 = vld [vmem:[%s1302 + $0x290] sm:$0xff]
      %v1337 = vld [vmem:[%s1302 + $0x2a0] sm:$0xff]
      %v1338 = vld [vmem:[%s1302 + $0x2b0] sm:$0xff]
      %v1339 = vld [vmem:[%s1302 + $0x2c0] sm:$0xff]
      %v1340 = vld [vmem:[%s1302 + $0x2d0] sm:$0xff]
      %v1341 = vld [vmem:[%s1302 + $0x2e0] sm:$0xff]
      %v1342 = vld [vmem:[%s1302 + $0x2f0] sm:$0xff]
      %v1343 = vld [vmem:[%s1302 + $0x320] sm:$0xff]
      %v1344 = vld [vmem:[%s1302 + $0x330] sm:$0xff]
      %v1345 = vld [vmem:[%s1302 + $0x340] sm:$0xff]
      %v1346 = vld [vmem:[%s1302 + $0x350] sm:$0xff]
      %v1347 = vld [vmem:[%s1302 + $0x360] sm:$0xff]
      %v1348 = vld [vmem:[%s1302 + $0x370] sm:$0xff]
      %v1349 = vld [vmem:[%s1302 + $0x380] sm:$0xff]
      %v1350 = vld [vmem:[%s1302 + $0x390] sm:$0xff]
      %v1351 = vld [vmem:[%s1302 + $0x3c0] sm:$0xff]
      %v1352 = vld [vmem:[%s1302 + $0x3d0] sm:$0xff]
      %v1353 = vld [vmem:[%s1302 + $0x3e0] sm:$0xff]
      %v1354 = vld [vmem:[%s1302 + $0x3f0] sm:$0xff]
      %v1355 = vld [vmem:[%s1302 + $0x400] sm:$0xff]
      %v1356 = vld [vmem:[%s1302 + $0x410] sm:$0xff]
      %v1357 = vld [vmem:[%s1302 + $0x420] sm:$0xff]
      %v1358 = vld [vmem:[%s1302 + $0x430] sm:$0xff]
      %v1359 = vld [vmem:[%s1302 + $0x460] sm:$0xff]
      %v1360 = vld [vmem:[%s1302 + $0x470] sm:$0xff]
      %v1361 = vld [vmem:[%s1302 + $0x480] sm:$0xff]
      %v1362 = vld [vmem:[%s1302 + $0x490] sm:$0xff]
      %v1363 = vld [vmem:[%s1302 + $0x4a0] sm:$0xff]
      %v1364 = vld [vmem:[%s1302 + $0x4b0] sm:$0xff]
      %v1365 = vld [vmem:[%s1302 + $0x4c0] sm:$0xff]
      %v1366 = vld [vmem:[%s1302 + $0x4d0] sm:$0xff]
      %v1367 = vld [vmem:[%s1302 + $0x1] sm:$0xff]
      %v1368 = vld [vmem:[%s1302 + $0x11] sm:$0xff]
      %v1369 = vld [vmem:[%s1302 + $0x21] sm:$0xff]
      %v1370 = vld [vmem:[%s1302 + $0x31] sm:$0xff]
      %v1371 = vld [vmem:[%s1302 + $0x41] sm:$0xff]
      %v1372 = vld [vmem:[%s1302 + $0x51] sm:$0xff]
      %v1373 = vld [vmem:[%s1302 + $0x61] sm:$0xff]
      %v1374 = vld [vmem:[%s1302 + $0x71] sm:$0xff]
      %v1375 = vld [vmem:[%s1302 + $0xa1] sm:$0xff]
      %v1376 = vld [vmem:[%s1302 + $0xb1] sm:$0xff]
      %v1377 = vld [vmem:[%s1302 + $0xc1] sm:$0xff]
      %v1378 = vld [vmem:[%s1302 + $0xd1] sm:$0xff]
      %v1379 = vld [vmem:[%s1302 + $0xe1] sm:$0xff]
      %v1380 = vld [vmem:[%s1302 + $0xf1] sm:$0xff]
      %v1381 = vld [vmem:[%s1302 + $0x101] sm:$0xff]
      %v1382 = vld [vmem:[%s1302 + $0x111] sm:$0xff]
      %v1383 = vld [vmem:[%s1302 + $0x141] sm:$0xff]
      %v1384 = vld [vmem:[%s1302 + $0x151] sm:$0xff]
      %v1385 = vld [vmem:[%s1302 + $0x161] sm:$0xff]
      %v1386 = vld [vmem:[%s1302 + $0x171] sm:$0xff]
      %v1387 = vld [vmem:[%s1302 + $0x181] sm:$0xff]
      %v1388 = vld [vmem:[%s1302 + $0x191] sm:$0xff]
      %v1389 = vld [vmem:[%s1302 + $0x1a1] sm:$0xff]
      %v1390 = vld [vmem:[%s1302 + $0x1b1] sm:$0xff]
      %v1391 = vld [vmem:[%s1302 + $0x1e1] sm:$0xff]
      %v1392 = vld [vmem:[%s1302 + $0x1f1] sm:$0xff]
      %v1393 = vld [vmem:[%s1302 + $0x201] sm:$0xff]
      %v1394 = vld [vmem:[%s1302 + $0x211] sm:$0xff]
      %v1395 = vld [vmem:[%s1302 + $0x221] sm:$0xff]
      %v1396 = vld [vmem:[%s1302 + $0x231] sm:$0xff]
      %v1397 = vld [vmem:[%s1302 + $0x241] sm:$0xff]
      %v1398 = vld [vmem:[%s1302 + $0x251] sm:$0xff]
      %v1399 = vld [vmem:[%s1302 + $0x281] sm:$0xff]
      %v1400 = vld [vmem:[%s1302 + $0x291] sm:$0xff]
      %v1401 = vld [vmem:[%s1302 + $0x2a1] sm:$0xff]
      %v1402 = vld [vmem:[%s1302 + $0x2b1] sm:$0xff]
      %v1403 = vld [vmem:[%s1302 + $0x2c1] sm:$0xff]
      %v1404 = vld [vmem:[%s1302 + $0x2d1] sm:$0xff]
      %v1405 = vld [vmem:[%s1302 + $0x2e1] sm:$0xff]
      %v1406 = vld [vmem:[%s1302 + $0x2f1] sm:$0xff]
      %v1407 = vld [vmem:[%s1302 + $0x321] sm:$0xff]
      %v1408 = vld [vmem:[%s1302 + $0x331] sm:$0xff]
      %v1409 = vld [vmem:[%s1302 + $0x341] sm:$0xff]
      %v1410 = vld [vmem:[%s1302 + $0x351] sm:$0xff]
      %v1411 = vld [vmem:[%s1302 + $0x361] sm:$0xff]
      %v1412 = vld [vmem:[%s1302 + $0x371] sm:$0xff]
      %v1413 = vld [vmem:[%s1302 + $0x381] sm:$0xff]
      %v1414 = vld [vmem:[%s1302 + $0x391] sm:$0xff]
      %v1415 = vld [vmem:[%s1302 + $0x3c1] sm:$0xff]
      %v1416 = vld [vmem:[%s1302 + $0x3d1] sm:$0xff]
      %v1417 = vld [vmem:[%s1302 + $0x3e1] sm:$0xff]
      %v1418 = vld [vmem:[%s1302 + $0x3f1] sm:$0xff]
      %v1419 = vld [vmem:[%s1302 + $0x401] sm:$0xff]
      %v1420 = vld [vmem:[%s1302 + $0x411] sm:$0xff]
      %v1421 = vld [vmem:[%s1302 + $0x421] sm:$0xff]
      %v1422 = vld [vmem:[%s1302 + $0x431] sm:$0xff]
      %v1423 = vld [vmem:[%s1302 + $0x461] sm:$0xff]
      %v1424 = vld [vmem:[%s1302 + $0x471] sm:$0xff]
      %v1425 = vld [vmem:[%s1302 + $0x481] sm:$0xff]
      %v1426 = vld [vmem:[%s1302 + $0x491] sm:$0xff]
      %v1427 = vld [vmem:[%s1302 + $0x4a1] sm:$0xff]
      %v1428 = vld [vmem:[%s1302 + $0x4b1] sm:$0xff]
      %v1429 = vld [vmem:[%s1302 + $0x4c1] sm:$0xff]
      %v1430 = vld [vmem:[%s1302 + $0x4d1] sm:$0xff]
      %v1431 = vld [vmem:[%s1302 + $0x2] sm:$0xff]
      %v1432 = vld [vmem:[%s1302 + $0x12] sm:$0xff]
      %v1433 = vld [vmem:[%s1302 + $0x22] sm:$0xff]
      %v1434 = vld [vmem:[%s1302 + $0x32] sm:$0xff]
      %v1435 = vld [vmem:[%s1302 + $0x42] sm:$0xff]
      %v1436 = vld [vmem:[%s1302 + $0x52] sm:$0xff]
      %v1437 = vld [vmem:[%s1302 + $0x62] sm:$0xff]
      %v1438 = vld [vmem:[%s1302 + $0x72] sm:$0xff]
      %v1439 = vld [vmem:[%s1302 + $0xa2] sm:$0xff]
      %v1440 = vld [vmem:[%s1302 + $0xb2] sm:$0xff]
      %v1441 = vld [vmem:[%s1302 + $0xc2] sm:$0xff]
      %v1442 = vld [vmem:[%s1302 + $0xd2] sm:$0xff]
      %v1443 = vld [vmem:[%s1302 + $0xe2] sm:$0xff]
      %v1444 = vld [vmem:[%s1302 + $0xf2] sm:$0xff]
      %v1445 = vld [vmem:[%s1302 + $0x102] sm:$0xff]
      %v1446 = vld [vmem:[%s1302 + $0x112] sm:$0xff]
      %v1447 = vld [vmem:[%s1302 + $0x142] sm:$0xff]
      %v1448 = vld [vmem:[%s1302 + $0x152] sm:$0xff]
      %v1449 = vld [vmem:[%s1302 + $0x162] sm:$0xff]
      %v1450 = vld [vmem:[%s1302 + $0x172] sm:$0xff]
      %v1451 = vld [vmem:[%s1302 + $0x182] sm:$0xff]
      %v1452 = vld [vmem:[%s1302 + $0x192] sm:$0xff]
      %v1453 = vld [vmem:[%s1302 + $0x1a2] sm:$0xff]
      %v1454 = vld [vmem:[%s1302 + $0x1b2] sm:$0xff]
      %v1455 = vld [vmem:[%s1302 + $0x1e2] sm:$0xff]
      %v1456 = vld [vmem:[%s1302 + $0x1f2] sm:$0xff]
      %v1457 = vld [vmem:[%s1302 + $0x202] sm:$0xff]
      %v1458 = vld [vmem:[%s1302 + $0x212] sm:$0xff]
      %v1459 = vld [vmem:[%s1302 + $0x222] sm:$0xff]
      %v1460 = vld [vmem:[%s1302 + $0x232] sm:$0xff]
      %v1461 = vld [vmem:[%s1302 + $0x242] sm:$0xff]
      %v1462 = vld [vmem:[%s1302 + $0x252] sm:$0xff]
      %v1463 = vld [vmem:[%s1302 + $0x282] sm:$0xff]
      %v1464 = vld [vmem:[%s1302 + $0x292] sm:$0xff]
      %v1465 = vld [vmem:[%s1302 + $0x2a2] sm:$0xff]
      %v1466 = vld [vmem:[%s1302 + $0x2b2] sm:$0xff]
      %v1467 = vld [vmem:[%s1302 + $0x2c2] sm:$0xff]
      %v1468 = vld [vmem:[%s1302 + $0x2d2] sm:$0xff]
      %v1469 = vld [vmem:[%s1302 + $0x2e2] sm:$0xff]
      %v1470 = vld [vmem:[%s1302 + $0x2f2] sm:$0xff]
      %v1471 = vld [vmem:[%s1302 + $0x322] sm:$0xff]
      %v1472 = vld [vmem:[%s1302 + $0x332] sm:$0xff]
      %v1473 = vld [vmem:[%s1302 + $0x342] sm:$0xff]
      %v1474 = vld [vmem:[%s1302 + $0x352] sm:$0xff]
      %v1475 = vld [vmem:[%s1302 + $0x362] sm:$0xff]
      %v1476 = vld [vmem:[%s1302 + $0x372] sm:$0xff]
      %v1477 = vld [vmem:[%s1302 + $0x382] sm:$0xff]
      %v1478 = vld [vmem:[%s1302 + $0x392] sm:$0xff]
      %v1479 = vld [vmem:[%s1302 + $0x3c2] sm:$0xff]
      %v1480 = vld [vmem:[%s1302 + $0x3d2] sm:$0xff]
      %v1481 = vld [vmem:[%s1302 + $0x3e2] sm:$0xff]
      %v1482 = vld [vmem:[%s1302 + $0x3f2] sm:$0xff]
      %v1483 = vld [vmem:[%s1302 + $0x402] sm:$0xff]
      %v1484 = vld [vmem:[%s1302 + $0x412] sm:$0xff]
      %v1485 = vld [vmem:[%s1302 + $0x422] sm:$0xff]
      %v1486 = vld [vmem:[%s1302 + $0x432] sm:$0xff]
      %v1487 = vld [vmem:[%s1302 + $0x462] sm:$0xff]
      %v1488 = vld [vmem:[%s1302 + $0x472] sm:$0xff]
      %v1489 = vld [vmem:[%s1302 + $0x482] sm:$0xff]
      %v1490 = vld [vmem:[%s1302 + $0x492] sm:$0xff]
      %v1491 = vld [vmem:[%s1302 + $0x4a2] sm:$0xff]
      %v1492 = vld [vmem:[%s1302 + $0x4b2] sm:$0xff]
      %v1493 = vld [vmem:[%s1302 + $0x4c2] sm:$0xff]
      %v1494 = vld [vmem:[%s1302 + $0x4d2] sm:$0xff]
      %s1495 = scalar_lea.vmem %s138, 336
      %v1496 = vld [vmem:[%s1495] sm:$0xff]
      %v1497 = vld [vmem:[%s1495 + $0x10] sm:$0xff]
      %v1498 = vld [vmem:[%s1495 + $0x20] sm:$0xff]
      %v1499 = vld [vmem:[%s1495 + $0x30] sm:$0xff]
      %v1500 = vld [vmem:[%s1495 + $0x40] sm:$0xff]
      %v1501 = vld [vmem:[%s1495 + $0x50] sm:$0xff]
      %v1502 = vld [vmem:[%s1495 + $0x60] sm:$0xff]
      %v1503 = vld [vmem:[%s1495 + $0x70] sm:$0xff]
      %v1504 = vld [vmem:[%s1495 + $0xa0] sm:$0xff]
      %v1505 = vld [vmem:[%s1495 + $0xb0] sm:$0xff]
      %v1506 = vld [vmem:[%s1495 + $0xc0] sm:$0xff]
      %v1507 = vld [vmem:[%s1495 + $0xd0] sm:$0xff]
      %v1508 = vld [vmem:[%s1495 + $0xe0] sm:$0xff]
      %v1509 = vld [vmem:[%s1495 + $0xf0] sm:$0xff]
      %v1510 = vld [vmem:[%s1495 + $0x100] sm:$0xff]
      %v1511 = vld [vmem:[%s1495 + $0x110] sm:$0xff]
      %v1512 = vld [vmem:[%s1495 + $0x140] sm:$0xff]
      %v1513 = vld [vmem:[%s1495 + $0x150] sm:$0xff]
      %v1514 = vld [vmem:[%s1495 + $0x160] sm:$0xff]
      %v1515 = vld [vmem:[%s1495 + $0x170] sm:$0xff]
      %v1516 = vld [vmem:[%s1495 + $0x180] sm:$0xff]
      %v1517 = vld [vmem:[%s1495 + $0x190] sm:$0xff]
      %v1518 = vld [vmem:[%s1495 + $0x1a0] sm:$0xff]
      %v1519 = vld [vmem:[%s1495 + $0x1b0] sm:$0xff]
      %v1520 = vld [vmem:[%s1495 + $0x1e0] sm:$0xff]
      %v1521 = vld [vmem:[%s1495 + $0x1f0] sm:$0xff]
      %v1522 = vld [vmem:[%s1495 + $0x200] sm:$0xff]
      %v1523 = vld [vmem:[%s1495 + $0x210] sm:$0xff]
      %v1524 = vld [vmem:[%s1495 + $0x220] sm:$0xff]
      %v1525 = vld [vmem:[%s1495 + $0x230] sm:$0xff]
      %v1526 = vld [vmem:[%s1495 + $0x240] sm:$0xff]
      %v1527 = vld [vmem:[%s1495 + $0x250] sm:$0xff]
      %v1528 = vld [vmem:[%s1495 + $0x280] sm:$0xff]
      %v1529 = vld [vmem:[%s1495 + $0x290] sm:$0xff]
      %v1530 = vld [vmem:[%s1495 + $0x2a0] sm:$0xff]
      %v1531 = vld [vmem:[%s1495 + $0x2b0] sm:$0xff]
      %v1532 = vld [vmem:[%s1495 + $0x2c0] sm:$0xff]
      %v1533 = vld [vmem:[%s1495 + $0x2d0] sm:$0xff]
      %v1534 = vld [vmem:[%s1495 + $0x2e0] sm:$0xff]
      %v1535 = vld [vmem:[%s1495 + $0x2f0] sm:$0xff]
      %v1536 = vld [vmem:[%s1495 + $0x320] sm:$0xff]
      %v1537 = vld [vmem:[%s1495 + $0x330] sm:$0xff]
      %v1538 = vld [vmem:[%s1495 + $0x340] sm:$0xff]
      %v1539 = vld [vmem:[%s1495 + $0x350] sm:$0xff]
      %v1540 = vld [vmem:[%s1495 + $0x360] sm:$0xff]
      %v1541 = vld [vmem:[%s1495 + $0x370] sm:$0xff]
      %v1542 = vld [vmem:[%s1495 + $0x380] sm:$0xff]
      %v1543 = vld [vmem:[%s1495 + $0x390] sm:$0xff]
      %v1544 = vld [vmem:[%s1495 + $0x3c0] sm:$0xff]
      %v1545 = vld [vmem:[%s1495 + $0x3d0] sm:$0xff]
      %v1546 = vld [vmem:[%s1495 + $0x3e0] sm:$0xff]
      %v1547 = vld [vmem:[%s1495 + $0x3f0] sm:$0xff]
      %v1548 = vld [vmem:[%s1495 + $0x400] sm:$0xff]
      %v1549 = vld [vmem:[%s1495 + $0x410] sm:$0xff]
      %v1550 = vld [vmem:[%s1495 + $0x420] sm:$0xff]
      %v1551 = vld [vmem:[%s1495 + $0x430] sm:$0xff]
      %v1552 = vld [vmem:[%s1495 + $0x460] sm:$0xff]
      %v1553 = vld [vmem:[%s1495 + $0x470] sm:$0xff]
      %v1554 = vld [vmem:[%s1495 + $0x480] sm:$0xff]
      %v1555 = vld [vmem:[%s1495 + $0x490] sm:$0xff]
      %v1556 = vld [vmem:[%s1495 + $0x4a0] sm:$0xff]
      %v1557 = vld [vmem:[%s1495 + $0x4b0] sm:$0xff]
      %v1558 = vld [vmem:[%s1495 + $0x4c0] sm:$0xff]
      %v1559 = vld [vmem:[%s1495 + $0x4d0] sm:$0xff]
      %v1560 = vld [vmem:[%s1495 + $0x1] sm:$0xff]
      %v1561 = vld [vmem:[%s1495 + $0x11] sm:$0xff]
      %v1562 = vld [vmem:[%s1495 + $0x21] sm:$0xff]
      %v1563 = vld [vmem:[%s1495 + $0x31] sm:$0xff]
      %v1564 = vld [vmem:[%s1495 + $0x41] sm:$0xff]
      %v1565 = vld [vmem:[%s1495 + $0x51] sm:$0xff]
      %v1566 = vld [vmem:[%s1495 + $0x61] sm:$0xff]
      %v1567 = vld [vmem:[%s1495 + $0x71] sm:$0xff]
      %v1568 = vld [vmem:[%s1495 + $0xa1] sm:$0xff]
      %v1569 = vld [vmem:[%s1495 + $0xb1] sm:$0xff]
      %v1570 = vld [vmem:[%s1495 + $0xc1] sm:$0xff]
      %v1571 = vld [vmem:[%s1495 + $0xd1] sm:$0xff]
      %v1572 = vld [vmem:[%s1495 + $0xe1] sm:$0xff]
      %v1573 = vld [vmem:[%s1495 + $0xf1] sm:$0xff]
      %v1574 = vld [vmem:[%s1495 + $0x101] sm:$0xff]
      %v1575 = vld [vmem:[%s1495 + $0x111] sm:$0xff]
      %v1576 = vld [vmem:[%s1495 + $0x141] sm:$0xff]
      %v1577 = vld [vmem:[%s1495 + $0x151] sm:$0xff]
      %v1578 = vld [vmem:[%s1495 + $0x161] sm:$0xff]
      %v1579 = vld [vmem:[%s1495 + $0x171] sm:$0xff]
      %v1580 = vld [vmem:[%s1495 + $0x181] sm:$0xff]
      %v1581 = vld [vmem:[%s1495 + $0x191] sm:$0xff]
      %v1582 = vld [vmem:[%s1495 + $0x1a1] sm:$0xff]
      %v1583 = vld [vmem:[%s1495 + $0x1b1] sm:$0xff]
      %v1584 = vld [vmem:[%s1495 + $0x1e1] sm:$0xff]
      %v1585 = vld [vmem:[%s1495 + $0x1f1] sm:$0xff]
      %v1586 = vld [vmem:[%s1495 + $0x201] sm:$0xff]
      %v1587 = vld [vmem:[%s1495 + $0x211] sm:$0xff]
      %v1588 = vld [vmem:[%s1495 + $0x221] sm:$0xff]
      %v1589 = vld [vmem:[%s1495 + $0x231] sm:$0xff]
      %v1590 = vld [vmem:[%s1495 + $0x241] sm:$0xff]
      %v1591 = vld [vmem:[%s1495 + $0x251] sm:$0xff]
      %v1592 = vld [vmem:[%s1495 + $0x281] sm:$0xff]
      %v1593 = vld [vmem:[%s1495 + $0x291] sm:$0xff]
      %v1594 = vld [vmem:[%s1495 + $0x2a1] sm:$0xff]
      %v1595 = vld [vmem:[%s1495 + $0x2b1] sm:$0xff]
      %v1596 = vld [vmem:[%s1495 + $0x2c1] sm:$0xff]
      %v1597 = vld [vmem:[%s1495 + $0x2d1] sm:$0xff]
      %v1598 = vld [vmem:[%s1495 + $0x2e1] sm:$0xff]
      %v1599 = vld [vmem:[%s1495 + $0x2f1] sm:$0xff]
      %v1600 = vld [vmem:[%s1495 + $0x321] sm:$0xff]
      %v1601 = vld [vmem:[%s1495 + $0x331] sm:$0xff]
      %v1602 = vld [vmem:[%s1495 + $0x341] sm:$0xff]
      %v1603 = vld [vmem:[%s1495 + $0x351] sm:$0xff]
      %v1604 = vld [vmem:[%s1495 + $0x361] sm:$0xff]
      %v1605 = vld [vmem:[%s1495 + $0x371] sm:$0xff]
      %v1606 = vld [vmem:[%s1495 + $0x381] sm:$0xff]
      %v1607 = vld [vmem:[%s1495 + $0x391] sm:$0xff]
      %v1608 = vld [vmem:[%s1495 + $0x3c1] sm:$0xff]
      %v1609 = vld [vmem:[%s1495 + $0x3d1] sm:$0xff]
      %v1610 = vld [vmem:[%s1495 + $0x3e1] sm:$0xff]
      %v1611 = vld [vmem:[%s1495 + $0x3f1] sm:$0xff]
      %v1612 = vld [vmem:[%s1495 + $0x401] sm:$0xff]
      %v1613 = vld [vmem:[%s1495 + $0x411] sm:$0xff]
      %v1614 = vld [vmem:[%s1495 + $0x421] sm:$0xff]
      %v1615 = vld [vmem:[%s1495 + $0x431] sm:$0xff]
      %v1616 = vld [vmem:[%s1495 + $0x461] sm:$0xff]
      %v1617 = vld [vmem:[%s1495 + $0x471] sm:$0xff]
      %v1618 = vld [vmem:[%s1495 + $0x481] sm:$0xff]
      %v1619 = vld [vmem:[%s1495 + $0x491] sm:$0xff]
      %v1620 = vld [vmem:[%s1495 + $0x4a1] sm:$0xff]
      %v1621 = vld [vmem:[%s1495 + $0x4b1] sm:$0xff]
      %v1622 = vld [vmem:[%s1495 + $0x4c1] sm:$0xff]
      %v1623 = vld [vmem:[%s1495 + $0x4d1] sm:$0xff]
      %v1624 = vld [vmem:[%s1495 + $0x2] sm:$0xff]
      %v1625 = vld [vmem:[%s1495 + $0x12] sm:$0xff]
      %v1626 = vld [vmem:[%s1495 + $0x22] sm:$0xff]
      %v1627 = vld [vmem:[%s1495 + $0x32] sm:$0xff]
      %v1628 = vld [vmem:[%s1495 + $0x42] sm:$0xff]
      %v1629 = vld [vmem:[%s1495 + $0x52] sm:$0xff]
      %v1630 = vld [vmem:[%s1495 + $0x62] sm:$0xff]
      %v1631 = vld [vmem:[%s1495 + $0x72] sm:$0xff]
      %v1632 = vld [vmem:[%s1495 + $0xa2] sm:$0xff]
      %v1633 = vld [vmem:[%s1495 + $0xb2] sm:$0xff]
      %v1634 = vld [vmem:[%s1495 + $0xc2] sm:$0xff]
      %v1635 = vld [vmem:[%s1495 + $0xd2] sm:$0xff]
      %v1636 = vld [vmem:[%s1495 + $0xe2] sm:$0xff]
      %v1637 = vld [vmem:[%s1495 + $0xf2] sm:$0xff]
      %v1638 = vld [vmem:[%s1495 + $0x102] sm:$0xff]
      %v1639 = vld [vmem:[%s1495 + $0x112] sm:$0xff]
      %v1640 = vld [vmem:[%s1495 + $0x142] sm:$0xff]
      %v1641 = vld [vmem:[%s1495 + $0x152] sm:$0xff]
      %v1642 = vld [vmem:[%s1495 + $0x162] sm:$0xff]
      %v1643 = vld [vmem:[%s1495 + $0x172] sm:$0xff]
      %v1644 = vld [vmem:[%s1495 + $0x182] sm:$0xff]
      %v1645 = vld [vmem:[%s1495 + $0x192] sm:$0xff]
      %v1646 = vld [vmem:[%s1495 + $0x1a2] sm:$0xff]
      %v1647 = vld [vmem:[%s1495 + $0x1b2] sm:$0xff]
      %v1648 = vld [vmem:[%s1495 + $0x1e2] sm:$0xff]
      %v1649 = vld [vmem:[%s1495 + $0x1f2] sm:$0xff]
      %v1650 = vld [vmem:[%s1495 + $0x202] sm:$0xff]
      %v1651 = vld [vmem:[%s1495 + $0x212] sm:$0xff]
      %v1652 = vld [vmem:[%s1495 + $0x222] sm:$0xff]
      %v1653 = vld [vmem:[%s1495 + $0x232] sm:$0xff]
      %v1654 = vld [vmem:[%s1495 + $0x242] sm:$0xff]
      %v1655 = vld [vmem:[%s1495 + $0x252] sm:$0xff]
      %v1656 = vld [vmem:[%s1495 + $0x282] sm:$0xff]
      %v1657 = vld [vmem:[%s1495 + $0x292] sm:$0xff]
      %v1658 = vld [vmem:[%s1495 + $0x2a2] sm:$0xff]
      %v1659 = vld [vmem:[%s1495 + $0x2b2] sm:$0xff]
      %v1660 = vld [vmem:[%s1495 + $0x2c2] sm:$0xff]
      %v1661 = vld [vmem:[%s1495 + $0x2d2] sm:$0xff]
      %v1662 = vld [vmem:[%s1495 + $0x2e2] sm:$0xff]
      %v1663 = vld [vmem:[%s1495 + $0x2f2] sm:$0xff]
      %v1664 = vld [vmem:[%s1495 + $0x322] sm:$0xff]
      %v1665 = vld [vmem:[%s1495 + $0x332] sm:$0xff]
      %v1666 = vld [vmem:[%s1495 + $0x342] sm:$0xff]
      %v1667 = vld [vmem:[%s1495 + $0x352] sm:$0xff]
      %v1668 = vld [vmem:[%s1495 + $0x362] sm:$0xff]
      %v1669 = vld [vmem:[%s1495 + $0x372] sm:$0xff]
      %v1670 = vld [vmem:[%s1495 + $0x382] sm:$0xff]
      %v1671 = vld [vmem:[%s1495 + $0x392] sm:$0xff]
      %v1672 = vld [vmem:[%s1495 + $0x3c2] sm:$0xff]
      %v1673 = vld [vmem:[%s1495 + $0x3d2] sm:$0xff]
      %v1674 = vld [vmem:[%s1495 + $0x3e2] sm:$0xff]
      %v1675 = vld [vmem:[%s1495 + $0x3f2] sm:$0xff]
      %v1676 = vld [vmem:[%s1495 + $0x402] sm:$0xff]
      %v1677 = vld [vmem:[%s1495 + $0x412] sm:$0xff]
      %v1678 = vld [vmem:[%s1495 + $0x422] sm:$0xff]
      %v1679 = vld [vmem:[%s1495 + $0x432] sm:$0xff]
      %v1680 = vld [vmem:[%s1495 + $0x462] sm:$0xff]
      %v1681 = vld [vmem:[%s1495 + $0x472] sm:$0xff]
      %v1682 = vld [vmem:[%s1495 + $0x482] sm:$0xff]
      %v1683 = vld [vmem:[%s1495 + $0x492] sm:$0xff]
      %v1684 = vld [vmem:[%s1495 + $0x4a2] sm:$0xff]
      %v1685 = vld [vmem:[%s1495 + $0x4b2] sm:$0xff]
      %v1686 = vld [vmem:[%s1495 + $0x4c2] sm:$0xff]
      %v1687 = vld [vmem:[%s1495 + $0x4d2] sm:$0xff]
      %s1688 = scalar_lea.vmem %s138, 352
      %v1689 = vld [vmem:[%s1688] sm:$0xff]
      %v1690 = vld [vmem:[%s1688 + $0x10] sm:$0xff]
      %v1691 = vld [vmem:[%s1688 + $0x20] sm:$0xff]
      %v1692 = vld [vmem:[%s1688 + $0x30] sm:$0xff]
      %v1693 = vld [vmem:[%s1688 + $0x40] sm:$0xff]
      %v1694 = vld [vmem:[%s1688 + $0x50] sm:$0xff]
      %v1695 = vld [vmem:[%s1688 + $0x60] sm:$0xff]
      %v1696 = vld [vmem:[%s1688 + $0x70] sm:$0xff]
      %v1697 = vld [vmem:[%s1688 + $0xa0] sm:$0xff]
      %v1698 = vld [vmem:[%s1688 + $0xb0] sm:$0xff]
      %v1699 = vld [vmem:[%s1688 + $0xc0] sm:$0xff]
      %v1700 = vld [vmem:[%s1688 + $0xd0] sm:$0xff]
      %v1701 = vld [vmem:[%s1688 + $0xe0] sm:$0xff]
      %v1702 = vld [vmem:[%s1688 + $0xf0] sm:$0xff]
      %v1703 = vld [vmem:[%s1688 + $0x100] sm:$0xff]
      %v1704 = vld [vmem:[%s1688 + $0x110] sm:$0xff]
      %v1705 = vld [vmem:[%s1688 + $0x140] sm:$0xff]
      %v1706 = vld [vmem:[%s1688 + $0x150] sm:$0xff]
      %v1707 = vld [vmem:[%s1688 + $0x160] sm:$0xff]
      %v1708 = vld [vmem:[%s1688 + $0x170] sm:$0xff]
      %v1709 = vld [vmem:[%s1688 + $0x180] sm:$0xff]
      %v1710 = vld [vmem:[%s1688 + $0x190] sm:$0xff]
      %v1711 = vld [vmem:[%s1688 + $0x1a0] sm:$0xff]
      %v1712 = vld [vmem:[%s1688 + $0x1b0] sm:$0xff]
      %v1713 = vld [vmem:[%s1688 + $0x1e0] sm:$0xff]
      %v1714 = vld [vmem:[%s1688 + $0x1f0] sm:$0xff]
      %v1715 = vld [vmem:[%s1688 + $0x200] sm:$0xff]
      %v1716 = vld [vmem:[%s1688 + $0x210] sm:$0xff]
      %v1717 = vld [vmem:[%s1688 + $0x220] sm:$0xff]
      %v1718 = vld [vmem:[%s1688 + $0x230] sm:$0xff]
      %v1719 = vld [vmem:[%s1688 + $0x240] sm:$0xff]
      %v1720 = vld [vmem:[%s1688 + $0x250] sm:$0xff]
      %v1721 = vld [vmem:[%s1688 + $0x280] sm:$0xff]
      %v1722 = vld [vmem:[%s1688 + $0x290] sm:$0xff]
      %v1723 = vld [vmem:[%s1688 + $0x2a0] sm:$0xff]
      %v1724 = vld [vmem:[%s1688 + $0x2b0] sm:$0xff]
      %v1725 = vld [vmem:[%s1688 + $0x2c0] sm:$0xff]
      %v1726 = vld [vmem:[%s1688 + $0x2d0] sm:$0xff]
      %v1727 = vld [vmem:[%s1688 + $0x2e0] sm:$0xff]
      %v1728 = vld [vmem:[%s1688 + $0x2f0] sm:$0xff]
      %v1729 = vld [vmem:[%s1688 + $0x320] sm:$0xff]
      %v1730 = vld [vmem:[%s1688 + $0x330] sm:$0xff]
      %v1731 = vld [vmem:[%s1688 + $0x340] sm:$0xff]
      %v1732 = vld [vmem:[%s1688 + $0x350] sm:$0xff]
      %v1733 = vld [vmem:[%s1688 + $0x360] sm:$0xff]
      %v1734 = vld [vmem:[%s1688 + $0x370] sm:$0xff]
      %v1735 = vld [vmem:[%s1688 + $0x380] sm:$0xff]
      %v1736 = vld [vmem:[%s1688 + $0x390] sm:$0xff]
      %v1737 = vld [vmem:[%s1688 + $0x3c0] sm:$0xff]
      %v1738 = vld [vmem:[%s1688 + $0x3d0] sm:$0xff]
      %v1739 = vld [vmem:[%s1688 + $0x3e0] sm:$0xff]
      %v1740 = vld [vmem:[%s1688 + $0x3f0] sm:$0xff]
      %v1741 = vld [vmem:[%s1688 + $0x400] sm:$0xff]
      %v1742 = vld [vmem:[%s1688 + $0x410] sm:$0xff]
      %v1743 = vld [vmem:[%s1688 + $0x420] sm:$0xff]
      %v1744 = vld [vmem:[%s1688 + $0x430] sm:$0xff]
      %v1745 = vld [vmem:[%s1688 + $0x460] sm:$0xff]
      %v1746 = vld [vmem:[%s1688 + $0x470] sm:$0xff]
      %v1747 = vld [vmem:[%s1688 + $0x480] sm:$0xff]
      %v1748 = vld [vmem:[%s1688 + $0x490] sm:$0xff]
      %v1749 = vld [vmem:[%s1688 + $0x4a0] sm:$0xff]
      %v1750 = vld [vmem:[%s1688 + $0x4b0] sm:$0xff]
      %v1751 = vld [vmem:[%s1688 + $0x4c0] sm:$0xff]
      %v1752 = vld [vmem:[%s1688 + $0x4d0] sm:$0xff]
      %v1753 = vld [vmem:[%s1688 + $0x1] sm:$0xff]
      %v1754 = vld [vmem:[%s1688 + $0x11] sm:$0xff]
      %v1755 = vld [vmem:[%s1688 + $0x21] sm:$0xff]
      %v1756 = vld [vmem:[%s1688 + $0x31] sm:$0xff]
      %v1757 = vld [vmem:[%s1688 + $0x41] sm:$0xff]
      %v1758 = vld [vmem:[%s1688 + $0x51] sm:$0xff]
      %v1759 = vld [vmem:[%s1688 + $0x61] sm:$0xff]
      %v1760 = vld [vmem:[%s1688 + $0x71] sm:$0xff]
      %v1761 = vld [vmem:[%s1688 + $0xa1] sm:$0xff]
      %v1762 = vld [vmem:[%s1688 + $0xb1] sm:$0xff]
      %v1763 = vld [vmem:[%s1688 + $0xc1] sm:$0xff]
      %v1764 = vld [vmem:[%s1688 + $0xd1] sm:$0xff]
      %v1765 = vld [vmem:[%s1688 + $0xe1] sm:$0xff]
      %v1766 = vld [vmem:[%s1688 + $0xf1] sm:$0xff]
      %v1767 = vld [vmem:[%s1688 + $0x101] sm:$0xff]
      %v1768 = vld [vmem:[%s1688 + $0x111] sm:$0xff]
      %v1769 = vld [vmem:[%s1688 + $0x141] sm:$0xff]
      %v1770 = vld [vmem:[%s1688 + $0x151] sm:$0xff]
      %v1771 = vld [vmem:[%s1688 + $0x161] sm:$0xff]
      %v1772 = vld [vmem:[%s1688 + $0x171] sm:$0xff]
      %v1773 = vld [vmem:[%s1688 + $0x181] sm:$0xff]
      %v1774 = vld [vmem:[%s1688 + $0x191] sm:$0xff]
      %v1775 = vld [vmem:[%s1688 + $0x1a1] sm:$0xff]
      %v1776 = vld [vmem:[%s1688 + $0x1b1] sm:$0xff]
      %v1777 = vld [vmem:[%s1688 + $0x1e1] sm:$0xff]
      %v1778 = vld [vmem:[%s1688 + $0x1f1] sm:$0xff]
      %v1779 = vld [vmem:[%s1688 + $0x201] sm:$0xff]
      %v1780 = vld [vmem:[%s1688 + $0x211] sm:$0xff]
      %v1781 = vld [vmem:[%s1688 + $0x221] sm:$0xff]
      %v1782 = vld [vmem:[%s1688 + $0x231] sm:$0xff]
      %v1783 = vld [vmem:[%s1688 + $0x241] sm:$0xff]
      %v1784 = vld [vmem:[%s1688 + $0x251] sm:$0xff]
      %v1785 = vld [vmem:[%s1688 + $0x281] sm:$0xff]
      %v1786 = vld [vmem:[%s1688 + $0x291] sm:$0xff]
      %v1787 = vld [vmem:[%s1688 + $0x2a1] sm:$0xff]
      %v1788 = vld [vmem:[%s1688 + $0x2b1] sm:$0xff]
      %v1789 = vld [vmem:[%s1688 + $0x2c1] sm:$0xff]
      %v1790 = vld [vmem:[%s1688 + $0x2d1] sm:$0xff]
      %v1791 = vld [vmem:[%s1688 + $0x2e1] sm:$0xff]
      %v1792 = vld [vmem:[%s1688 + $0x2f1] sm:$0xff]
      %v1793 = vld [vmem:[%s1688 + $0x321] sm:$0xff]
      %v1794 = vld [vmem:[%s1688 + $0x331] sm:$0xff]
      %v1795 = vld [vmem:[%s1688 + $0x341] sm:$0xff]
      %v1796 = vld [vmem:[%s1688 + $0x351] sm:$0xff]
      %v1797 = vld [vmem:[%s1688 + $0x361] sm:$0xff]
      %v1798 = vld [vmem:[%s1688 + $0x371] sm:$0xff]
      %v1799 = vld [vmem:[%s1688 + $0x381] sm:$0xff]
      %v1800 = vld [vmem:[%s1688 + $0x391] sm:$0xff]
      %v1801 = vld [vmem:[%s1688 + $0x3c1] sm:$0xff]
      %v1802 = vld [vmem:[%s1688 + $0x3d1] sm:$0xff]
      %v1803 = vld [vmem:[%s1688 + $0x3e1] sm:$0xff]
      %v1804 = vld [vmem:[%s1688 + $0x3f1] sm:$0xff]
      %v1805 = vld [vmem:[%s1688 + $0x401] sm:$0xff]
      %v1806 = vld [vmem:[%s1688 + $0x411] sm:$0xff]
      %v1807 = vld [vmem:[%s1688 + $0x421] sm:$0xff]
      %v1808 = vld [vmem:[%s1688 + $0x431] sm:$0xff]
      %v1809 = vld [vmem:[%s1688 + $0x461] sm:$0xff]
      %v1810 = vld [vmem:[%s1688 + $0x471] sm:$0xff]
      %v1811 = vld [vmem:[%s1688 + $0x481] sm:$0xff]
      %v1812 = vld [vmem:[%s1688 + $0x491] sm:$0xff]
      %v1813 = vld [vmem:[%s1688 + $0x4a1] sm:$0xff]
      %v1814 = vld [vmem:[%s1688 + $0x4b1] sm:$0xff]
      %v1815 = vld [vmem:[%s1688 + $0x4c1] sm:$0xff]
      %v1816 = vld [vmem:[%s1688 + $0x4d1] sm:$0xff]
      %v1817 = vld [vmem:[%s1688 + $0x2] sm:$0xff]
      %v1818 = vld [vmem:[%s1688 + $0x12] sm:$0xff]
      %v1819 = vld [vmem:[%s1688 + $0x22] sm:$0xff]
      %v1820 = vld [vmem:[%s1688 + $0x32] sm:$0xff]
      %v1821 = vld [vmem:[%s1688 + $0x42] sm:$0xff]
      %v1822 = vld [vmem:[%s1688 + $0x52] sm:$0xff]
      %v1823 = vld [vmem:[%s1688 + $0x62] sm:$0xff]
      %v1824 = vld [vmem:[%s1688 + $0x72] sm:$0xff]
      %v1825 = vld [vmem:[%s1688 + $0xa2] sm:$0xff]
      %v1826 = vld [vmem:[%s1688 + $0xb2] sm:$0xff]
      %v1827 = vld [vmem:[%s1688 + $0xc2] sm:$0xff]
      %v1828 = vld [vmem:[%s1688 + $0xd2] sm:$0xff]
      %v1829 = vld [vmem:[%s1688 + $0xe2] sm:$0xff]
      %v1830 = vld [vmem:[%s1688 + $0xf2] sm:$0xff]
      %v1831 = vld [vmem:[%s1688 + $0x102] sm:$0xff]
      %v1832 = vld [vmem:[%s1688 + $0x112] sm:$0xff]
      %v1833 = vld [vmem:[%s1688 + $0x142] sm:$0xff]
      %v1834 = vld [vmem:[%s1688 + $0x152] sm:$0xff]
      %v1835 = vld [vmem:[%s1688 + $0x162] sm:$0xff]
      %v1836 = vld [vmem:[%s1688 + $0x172] sm:$0xff]
      %v1837 = vld [vmem:[%s1688 + $0x182] sm:$0xff]
      %v1838 = vld [vmem:[%s1688 + $0x192] sm:$0xff]
      %v1839 = vld [vmem:[%s1688 + $0x1a2] sm:$0xff]
      %v1840 = vld [vmem:[%s1688 + $0x1b2] sm:$0xff]
      %v1841 = vld [vmem:[%s1688 + $0x1e2] sm:$0xff]
      %v1842 = vld [vmem:[%s1688 + $0x1f2] sm:$0xff]
      %v1843 = vld [vmem:[%s1688 + $0x202] sm:$0xff]
      %v1844 = vld [vmem:[%s1688 + $0x212] sm:$0xff]
      %v1845 = vld [vmem:[%s1688 + $0x222] sm:$0xff]
      %v1846 = vld [vmem:[%s1688 + $0x232] sm:$0xff]
      %v1847 = vld [vmem:[%s1688 + $0x242] sm:$0xff]
      %v1848 = vld [vmem:[%s1688 + $0x252] sm:$0xff]
      %v1849 = vld [vmem:[%s1688 + $0x282] sm:$0xff]
      %v1850 = vld [vmem:[%s1688 + $0x292] sm:$0xff]
      %v1851 = vld [vmem:[%s1688 + $0x2a2] sm:$0xff]
      %v1852 = vld [vmem:[%s1688 + $0x2b2] sm:$0xff]
      %v1853 = vld [vmem:[%s1688 + $0x2c2] sm:$0xff]
      %v1854 = vld [vmem:[%s1688 + $0x2d2] sm:$0xff]
      %v1855 = vld [vmem:[%s1688 + $0x2e2] sm:$0xff]
      %v1856 = vld [vmem:[%s1688 + $0x2f2] sm:$0xff]
      %v1857 = vld [vmem:[%s1688 + $0x322] sm:$0xff]
      %v1858 = vld [vmem:[%s1688 + $0x332] sm:$0xff]
      %v1859 = vld [vmem:[%s1688 + $0x342] sm:$0xff]
      %v1860 = vld [vmem:[%s1688 + $0x352] sm:$0xff]
      %v1861 = vld [vmem:[%s1688 + $0x362] sm:$0xff]
      %v1862 = vld [vmem:[%s1688 + $0x372] sm:$0xff]
      %v1863 = vld [vmem:[%s1688 + $0x382] sm:$0xff]
      %v1864 = vld [vmem:[%s1688 + $0x392] sm:$0xff]
      %v1865 = vld [vmem:[%s1688 + $0x3c2] sm:$0xff]
      %v1866 = vld [vmem:[%s1688 + $0x3d2] sm:$0xff]
      %v1867 = vld [vmem:[%s1688 + $0x3e2] sm:$0xff]
      %v1868 = vld [vmem:[%s1688 + $0x3f2] sm:$0xff]
      %v1869 = vld [vmem:[%s1688 + $0x402] sm:$0xff]
      %v1870 = vld [vmem:[%s1688 + $0x412] sm:$0xff]
      %v1871 = vld [vmem:[%s1688 + $0x422] sm:$0xff]
      %v1872 = vld [vmem:[%s1688 + $0x432] sm:$0xff]
      %v1873 = vld [vmem:[%s1688 + $0x462] sm:$0xff]
      %v1874 = vld [vmem:[%s1688 + $0x472] sm:$0xff]
      %v1875 = vld [vmem:[%s1688 + $0x482] sm:$0xff]
      %v1876 = vld [vmem:[%s1688 + $0x492] sm:$0xff]
      %v1877 = vld [vmem:[%s1688 + $0x4a2] sm:$0xff]
      %v1878 = vld [vmem:[%s1688 + $0x4b2] sm:$0xff]
      %v1879 = vld [vmem:[%s1688 + $0x4c2] sm:$0xff]
      %v1880 = vld [vmem:[%s1688 + $0x4d2] sm:$0xff]
      %1945 = vrot.lane.b32.xlu0 %v209, 4
      %v1946 = vpop.permute.xlu0 %1945
      %1947 = vrot.lane.b32.xlu0 %v210, 4
      %v1948 = vpop.permute.xlu0 %1947
      %1949 = vrot.lane.b32.xlu0 %v211, 4
      %v1950 = vpop.permute.xlu0 %1949
      %1951 = vrot.lane.b32.xlu0 %v212, 4
      %v1952 = vpop.permute.xlu0 %1951
      %1953 = vrot.lane.b32.xlu0 %v213, 4
      %v1954 = vpop.permute.xlu0 %1953
      %1955 = vrot.lane.b32.xlu0 %v214, 4
      %v1956 = vpop.permute.xlu0 %1955
      %1957 = vrot.lane.b32.xlu0 %v215, 4
      %v1958 = vpop.permute.xlu0 %1957
      %1959 = vrot.lane.b32.xlu0 %v216, 4
      %v1960 = vpop.permute.xlu0 %1959
      %1961 = vrot.lane.b32.xlu0 %v217, 4
      %v1962 = vpop.permute.xlu0 %1961
      %1963 = vrot.lane.b32.xlu0 %v218, 4
      %v1964 = vpop.permute.xlu0 %1963
      %1965 = vrot.lane.b32.xlu0 %v219, 4
      %v1966 = vpop.permute.xlu0 %1965
      %1967 = vrot.lane.b32.xlu0 %v220, 4
      %v1968 = vpop.permute.xlu0 %1967
      %1969 = vrot.lane.b32.xlu0 %v221, 4
      %v1970 = vpop.permute.xlu0 %1969
      %1971 = vrot.lane.b32.xlu0 %v222, 4
      %v1972 = vpop.permute.xlu0 %1971
      %1973 = vrot.lane.b32.xlu0 %v223, 4
      %v1974 = vpop.permute.xlu0 %1973
      %1975 = vrot.lane.b32.xlu0 %v224, 4
      %v1976 = vpop.permute.xlu0 %1975
      %1977 = vrot.lane.b32.xlu0 %v225, 4
      %v1978 = vpop.permute.xlu0 %1977
      %1979 = vrot.lane.b32.xlu0 %v226, 4
      %v1980 = vpop.permute.xlu0 %1979
      %1981 = vrot.lane.b32.xlu0 %v227, 4
      %v1982 = vpop.permute.xlu0 %1981
      %1983 = vrot.lane.b32.xlu0 %v228, 4
      %v1984 = vpop.permute.xlu0 %1983
      %1985 = vrot.lane.b32.xlu0 %v229, 4
      %v1986 = vpop.permute.xlu0 %1985
      %1987 = vrot.lane.b32.xlu0 %v230, 4
      %v1988 = vpop.permute.xlu0 %1987
      %1989 = vrot.lane.b32.xlu0 %v231, 4
      %v1990 = vpop.permute.xlu0 %1989
      %1991 = vrot.lane.b32.xlu0 %v232, 4
      %v1992 = vpop.permute.xlu0 %1991
      %1993 = vrot.lane.b32.xlu0 %v233, 4
      %v1994 = vpop.permute.xlu0 %1993
      %1995 = vrot.lane.b32.xlu0 %v234, 4
      %v1996 = vpop.permute.xlu0 %1995
      %1997 = vrot.lane.b32.xlu0 %v235, 4
      %v1998 = vpop.permute.xlu0 %1997
      %1999 = vrot.lane.b32.xlu0 %v236, 4
      %v2000 = vpop.permute.xlu0 %1999
      %2001 = vrot.lane.b32.xlu0 %v237, 4
      %v2002 = vpop.permute.xlu0 %2001
      %2003 = vrot.lane.b32.xlu0 %v238, 4
      %v2004 = vpop.permute.xlu0 %2003
      %2005 = vrot.lane.b32.xlu0 %v239, 4
      %v2006 = vpop.permute.xlu0 %2005
      %2007 = vrot.lane.b32.xlu0 %v240, 4
      %v2008 = vpop.permute.xlu0 %2007
      %2009 = vrot.lane.b32.xlu0 %v241, 4
      %v2010 = vpop.permute.xlu0 %2009
      %2011 = vrot.lane.b32.xlu0 %v242, 4
      %v2012 = vpop.permute.xlu0 %2011
      %2013 = vrot.lane.b32.xlu0 %v243, 4
      %v2014 = vpop.permute.xlu0 %2013
      %2015 = vrot.lane.b32.xlu0 %v244, 4
      %v2016 = vpop.permute.xlu0 %2015
      %2017 = vrot.lane.b32.xlu0 %v245, 4
      %v2018 = vpop.permute.xlu0 %2017
      %2019 = vrot.lane.b32.xlu0 %v246, 4
      %v2020 = vpop.permute.xlu0 %2019
      %2021 = vrot.lane.b32.xlu0 %v247, 4
      %v2022 = vpop.permute.xlu0 %2021
      %2023 = vrot.lane.b32.xlu0 %v248, 4
      %v2024 = vpop.permute.xlu0 %2023
      %2025 = vrot.lane.b32.xlu0 %v249, 4
      %v2026 = vpop.permute.xlu0 %2025
      %2027 = vrot.lane.b32.xlu0 %v250, 4
      %v2028 = vpop.permute.xlu0 %2027
      %2029 = vrot.lane.b32.xlu0 %v251, 4
      %v2030 = vpop.permute.xlu0 %2029
      %2031 = vrot.lane.b32.xlu0 %v252, 4
      %v2032 = vpop.permute.xlu0 %2031
      %2033 = vrot.lane.b32.xlu0 %v253, 4
      %v2034 = vpop.permute.xlu0 %2033
      %2035 = vrot.lane.b32.xlu0 %v254, 4
      %v2036 = vpop.permute.xlu0 %2035
      %2037 = vrot.lane.b32.xlu0 %v255, 4
      %v2038 = vpop.permute.xlu0 %2037
      %2039 = vrot.lane.b32.xlu0 %v256, 4
      %v2040 = vpop.permute.xlu0 %2039
      %2041 = vrot.lane.b32.xlu0 %v257, 4
      %v2042 = vpop.permute.xlu0 %2041
      %2043 = vrot.lane.b32.xlu0 %v258, 4
      %v2044 = vpop.permute.xlu0 %2043
      %2045 = vrot.lane.b32.xlu0 %v259, 4
      %v2046 = vpop.permute.xlu0 %2045
      %2047 = vrot.lane.b32.xlu0 %v260, 4
      %v2048 = vpop.permute.xlu0 %2047
      %2049 = vrot.lane.b32.xlu0 %v261, 4
      %v2050 = vpop.permute.xlu0 %2049
      %2051 = vrot.lane.b32.xlu0 %v262, 4
      %v2052 = vpop.permute.xlu0 %2051
      %2053 = vrot.lane.b32.xlu0 %v263, 4
      %v2054 = vpop.permute.xlu0 %2053
      %2055 = vrot.lane.b32.xlu0 %v264, 4
      %v2056 = vpop.permute.xlu0 %2055
      %2057 = vrot.lane.b32.xlu0 %v265, 4
      %v2058 = vpop.permute.xlu0 %2057
      %2059 = vrot.lane.b32.xlu0 %v266, 4
      %v2060 = vpop.permute.xlu0 %2059
      %2061 = vrot.lane.b32.xlu0 %v267, 4
      %v2062 = vpop.permute.xlu0 %2061
      %2063 = vrot.lane.b32.xlu0 %v268, 4
      %v2064 = vpop.permute.xlu0 %2063
      %2065 = vrot.lane.b32.xlu0 %v269, 4
      %v2066 = vpop.permute.xlu0 %2065
      %2067 = vrot.lane.b32.xlu0 %v270, 4
      %v2068 = vpop.permute.xlu0 %2067
      %2069 = vrot.lane.b32.xlu0 %v271, 4
      %v2070 = vpop.permute.xlu0 %2069
      %2071 = vrot.lane.b32.xlu0 %v272, 4
      %v2072 = vpop.permute.xlu0 %2071
      %2201 = vrot.lane.b32.xlu0 %v273, 8
      %v2202 = vpop.permute.xlu0 %2201
      %2203 = vrot.lane.b32.xlu0 %v274, 8
      %v2204 = vpop.permute.xlu0 %2203
      %2205 = vrot.lane.b32.xlu0 %v275, 8
      %v2206 = vpop.permute.xlu0 %2205
      %2207 = vrot.lane.b32.xlu0 %v276, 8
      %v2208 = vpop.permute.xlu0 %2207
      %2209 = vrot.lane.b32.xlu0 %v277, 8
      %v2210 = vpop.permute.xlu0 %2209
      %2211 = vrot.lane.b32.xlu0 %v278, 8
      %v2212 = vpop.permute.xlu0 %2211
      %2213 = vrot.lane.b32.xlu0 %v279, 8
      %v2214 = vpop.permute.xlu0 %2213
      %2215 = vrot.lane.b32.xlu0 %v280, 8
      %v2216 = vpop.permute.xlu0 %2215
      %2217 = vrot.lane.b32.xlu0 %v281, 8
      %v2218 = vpop.permute.xlu0 %2217
      %2219 = vrot.lane.b32.xlu0 %v282, 8
      %v2220 = vpop.permute.xlu0 %2219
      %2221 = vrot.lane.b32.xlu0 %v283, 8
      %v2222 = vpop.permute.xlu0 %2221
      %2223 = vrot.lane.b32.xlu0 %v284, 8
      %v2224 = vpop.permute.xlu0 %2223
      %2225 = vrot.lane.b32.xlu0 %v285, 8
      %v2226 = vpop.permute.xlu0 %2225
      %2227 = vrot.lane.b32.xlu0 %v286, 8
      %v2228 = vpop.permute.xlu0 %2227
      %2229 = vrot.lane.b32.xlu0 %v287, 8
      %v2230 = vpop.permute.xlu0 %2229
      %2231 = vrot.lane.b32.xlu0 %v288, 8
      %v2232 = vpop.permute.xlu0 %2231
      %2233 = vrot.lane.b32.xlu0 %v289, 8
      %v2234 = vpop.permute.xlu0 %2233
      %2235 = vrot.lane.b32.xlu0 %v290, 8
      %v2236 = vpop.permute.xlu0 %2235
      %2237 = vrot.lane.b32.xlu0 %v291, 8
      %v2238 = vpop.permute.xlu0 %2237
      %2239 = vrot.lane.b32.xlu0 %v292, 8
      %v2240 = vpop.permute.xlu0 %2239
      %2241 = vrot.lane.b32.xlu0 %v293, 8
      %v2242 = vpop.permute.xlu0 %2241
      %2243 = vrot.lane.b32.xlu0 %v294, 8
      %v2244 = vpop.permute.xlu0 %2243
      %2245 = vrot.lane.b32.xlu0 %v295, 8
      %v2246 = vpop.permute.xlu0 %2245
      %2247 = vrot.lane.b32.xlu0 %v296, 8
      %v2248 = vpop.permute.xlu0 %2247
      %2249 = vrot.lane.b32.xlu0 %v297, 8
      %v2250 = vpop.permute.xlu0 %2249
      %2251 = vrot.lane.b32.xlu0 %v298, 8
      %v2252 = vpop.permute.xlu0 %2251
      %2253 = vrot.lane.b32.xlu0 %v299, 8
      %v2254 = vpop.permute.xlu0 %2253
      %2255 = vrot.lane.b32.xlu0 %v300, 8
      %v2256 = vpop.permute.xlu0 %2255
      %2257 = vrot.lane.b32.xlu0 %v301, 8
      %v2258 = vpop.permute.xlu0 %2257
      %2259 = vrot.lane.b32.xlu0 %v302, 8
      %v2260 = vpop.permute.xlu0 %2259
      %2261 = vrot.lane.b32.xlu0 %v303, 8
      %v2262 = vpop.permute.xlu0 %2261
      %2263 = vrot.lane.b32.xlu0 %v304, 8
      %v2264 = vpop.permute.xlu0 %2263
      %2265 = vrot.lane.b32.xlu0 %v305, 8
      %v2266 = vpop.permute.xlu0 %2265
      %2267 = vrot.lane.b32.xlu0 %v306, 8
      %v2268 = vpop.permute.xlu0 %2267
      %2269 = vrot.lane.b32.xlu0 %v307, 8
      %v2270 = vpop.permute.xlu0 %2269
      %2271 = vrot.lane.b32.xlu0 %v308, 8
      %v2272 = vpop.permute.xlu0 %2271
      %2273 = vrot.lane.b32.xlu0 %v309, 8
      %v2274 = vpop.permute.xlu0 %2273
      %2275 = vrot.lane.b32.xlu0 %v310, 8
      %v2276 = vpop.permute.xlu0 %2275
      %2277 = vrot.lane.b32.xlu0 %v311, 8
      %v2278 = vpop.permute.xlu0 %2277
      %2279 = vrot.lane.b32.xlu0 %v312, 8
      %v2280 = vpop.permute.xlu0 %2279
      %2281 = vrot.lane.b32.xlu0 %v313, 8
      %v2282 = vpop.permute.xlu0 %2281
      %2283 = vrot.lane.b32.xlu0 %v314, 8
      %v2284 = vpop.permute.xlu0 %2283
      %2285 = vrot.lane.b32.xlu0 %v315, 8
      %v2286 = vpop.permute.xlu0 %2285
      %2287 = vrot.lane.b32.xlu0 %v316, 8
      %v2288 = vpop.permute.xlu0 %2287
      %2289 = vrot.lane.b32.xlu0 %v317, 8
      %v2290 = vpop.permute.xlu0 %2289
      %2291 = vrot.lane.b32.xlu0 %v318, 8
      %v2292 = vpop.permute.xlu0 %2291
      %2293 = vrot.lane.b32.xlu0 %v319, 8
      %v2294 = vpop.permute.xlu0 %2293
      %2295 = vrot.lane.b32.xlu0 %v320, 8
      %v2296 = vpop.permute.xlu0 %2295
      %2297 = vrot.lane.b32.xlu0 %v321, 8
      %v2298 = vpop.permute.xlu0 %2297
      %2299 = vrot.lane.b32.xlu0 %v322, 8
      %v2300 = vpop.permute.xlu0 %2299
      %2301 = vrot.lane.b32.xlu0 %v323, 8
      %v2302 = vpop.permute.xlu0 %2301
      %2303 = vrot.lane.b32.xlu0 %v324, 8
      %v2304 = vpop.permute.xlu0 %2303
      %2305 = vrot.lane.b32.xlu0 %v325, 8
      %v2306 = vpop.permute.xlu0 %2305
      %2307 = vrot.lane.b32.xlu0 %v326, 8
      %v2308 = vpop.permute.xlu0 %2307
      %2309 = vrot.lane.b32.xlu0 %v327, 8
      %v2310 = vpop.permute.xlu0 %2309
      %2311 = vrot.lane.b32.xlu0 %v328, 8
      %v2312 = vpop.permute.xlu0 %2311
      %2313 = vrot.lane.b32.xlu0 %v329, 8
      %v2314 = vpop.permute.xlu0 %2313
      %2315 = vrot.lane.b32.xlu0 %v330, 8
      %v2316 = vpop.permute.xlu0 %2315
      %2317 = vrot.lane.b32.xlu0 %v331, 8
      %v2318 = vpop.permute.xlu0 %2317
      %2319 = vrot.lane.b32.xlu0 %v332, 8
      %v2320 = vpop.permute.xlu0 %2319
      %2321 = vrot.lane.b32.xlu0 %v333, 8
      %v2322 = vpop.permute.xlu0 %2321
      %2323 = vrot.lane.b32.xlu0 %v334, 8
      %v2324 = vpop.permute.xlu0 %2323
      %2325 = vrot.lane.b32.xlu0 %v335, 8
      %v2326 = vpop.permute.xlu0 %2325
      %2327 = vrot.lane.b32.xlu0 %v336, 8
      %v2328 = vpop.permute.xlu0 %2327
      %2457 = vrot.lane.b32.xlu0 %v338, 12
      %v2458 = vpop.permute.xlu0 %2457
      %2459 = vrot.lane.b32.xlu0 %v339, 12
      %v2460 = vpop.permute.xlu0 %2459
      %2461 = vrot.lane.b32.xlu0 %v340, 12
      %v2462 = vpop.permute.xlu0 %2461
      %2463 = vrot.lane.b32.xlu0 %v341, 12
      %v2464 = vpop.permute.xlu0 %2463
      %2465 = vrot.lane.b32.xlu0 %v342, 12
      %v2466 = vpop.permute.xlu0 %2465
      %2467 = vrot.lane.b32.xlu0 %v343, 12
      %v2468 = vpop.permute.xlu0 %2467
      %2469 = vrot.lane.b32.xlu0 %v344, 12
      %v2470 = vpop.permute.xlu0 %2469
      %2471 = vrot.lane.b32.xlu0 %v345, 12
      %v2472 = vpop.permute.xlu0 %2471
      %2473 = vrot.lane.b32.xlu0 %v346, 12
      %v2474 = vpop.permute.xlu0 %2473
      %2475 = vrot.lane.b32.xlu0 %v347, 12
      %v2476 = vpop.permute.xlu0 %2475
      %2477 = vrot.lane.b32.xlu0 %v348, 12
      %v2478 = vpop.permute.xlu0 %2477
      %2479 = vrot.lane.b32.xlu0 %v349, 12
      %v2480 = vpop.permute.xlu0 %2479
      %2481 = vrot.lane.b32.xlu0 %v350, 12
      %v2482 = vpop.permute.xlu0 %2481
      %2483 = vrot.lane.b32.xlu0 %v351, 12
      %v2484 = vpop.permute.xlu0 %2483
      %2485 = vrot.lane.b32.xlu0 %v352, 12
      %v2486 = vpop.permute.xlu0 %2485
      %2487 = vrot.lane.b32.xlu0 %v353, 12
      %v2488 = vpop.permute.xlu0 %2487
      %2489 = vrot.lane.b32.xlu0 %v354, 12
      %v2490 = vpop.permute.xlu0 %2489
      %2491 = vrot.lane.b32.xlu0 %v355, 12
      %v2492 = vpop.permute.xlu0 %2491
      %2493 = vrot.lane.b32.xlu0 %v356, 12
      %v2494 = vpop.permute.xlu0 %2493
      %2495 = vrot.lane.b32.xlu0 %v357, 12
      %v2496 = vpop.permute.xlu0 %2495
      %2497 = vrot.lane.b32.xlu0 %v358, 12
      %v2498 = vpop.permute.xlu0 %2497
      %2499 = vrot.lane.b32.xlu0 %v359, 12
      %v2500 = vpop.permute.xlu0 %2499
      %2501 = vrot.lane.b32.xlu0 %v360, 12
      %v2502 = vpop.permute.xlu0 %2501
      %2503 = vrot.lane.b32.xlu0 %v361, 12
      %v2504 = vpop.permute.xlu0 %2503
      %2505 = vrot.lane.b32.xlu0 %v362, 12
      %v2506 = vpop.permute.xlu0 %2505
      %2507 = vrot.lane.b32.xlu0 %v363, 12
      %v2508 = vpop.permute.xlu0 %2507
      %2509 = vrot.lane.b32.xlu0 %v364, 12
      %v2510 = vpop.permute.xlu0 %2509
      %2511 = vrot.lane.b32.xlu0 %v365, 12
      %v2512 = vpop.permute.xlu0 %2511
      %2513 = vrot.lane.b32.xlu0 %v366, 12
      %v2514 = vpop.permute.xlu0 %2513
      %2515 = vrot.lane.b32.xlu0 %v367, 12
      %v2516 = vpop.permute.xlu0 %2515
      %2517 = vrot.lane.b32.xlu0 %v368, 12
      %v2518 = vpop.permute.xlu0 %2517
      %2519 = vrot.lane.b32.xlu0 %v369, 12
      %v2520 = vpop.permute.xlu0 %2519
      %2521 = vrot.lane.b32.xlu0 %v370, 12
      %v2522 = vpop.permute.xlu0 %2521
      %2523 = vrot.lane.b32.xlu0 %v371, 12
      %v2524 = vpop.permute.xlu0 %2523
      %2525 = vrot.lane.b32.xlu0 %v372, 12
      %v2526 = vpop.permute.xlu0 %2525
      %2527 = vrot.lane.b32.xlu0 %v373, 12
      %v2528 = vpop.permute.xlu0 %2527
      %2529 = vrot.lane.b32.xlu0 %v374, 12
      %v2530 = vpop.permute.xlu0 %2529
      %2531 = vrot.lane.b32.xlu0 %v375, 12
      %v2532 = vpop.permute.xlu0 %2531
      %2533 = vrot.lane.b32.xlu0 %v376, 12
      %v2534 = vpop.permute.xlu0 %2533
      %2535 = vrot.lane.b32.xlu0 %v377, 12
      %v2536 = vpop.permute.xlu0 %2535
      %2537 = vrot.lane.b32.xlu0 %v378, 12
      %v2538 = vpop.permute.xlu0 %2537
      %2539 = vrot.lane.b32.xlu0 %v379, 12
      %v2540 = vpop.permute.xlu0 %2539
      %2541 = vrot.lane.b32.xlu0 %v380, 12
      %v2542 = vpop.permute.xlu0 %2541
      %2543 = vrot.lane.b32.xlu0 %v381, 12
      %v2544 = vpop.permute.xlu0 %2543
      %2545 = vrot.lane.b32.xlu0 %v382, 12
      %v2546 = vpop.permute.xlu0 %2545
      %2547 = vrot.lane.b32.xlu0 %v383, 12
      %v2548 = vpop.permute.xlu0 %2547
      %2549 = vrot.lane.b32.xlu0 %v384, 12
      %v2550 = vpop.permute.xlu0 %2549
      %2551 = vrot.lane.b32.xlu0 %v385, 12
      %v2552 = vpop.permute.xlu0 %2551
      %2553 = vrot.lane.b32.xlu0 %v386, 12
      %v2554 = vpop.permute.xlu0 %2553
      %2555 = vrot.lane.b32.xlu0 %v387, 12
      %v2556 = vpop.permute.xlu0 %2555
      %2557 = vrot.lane.b32.xlu0 %v388, 12
      %v2558 = vpop.permute.xlu0 %2557
      %2559 = vrot.lane.b32.xlu0 %v389, 12
      %v2560 = vpop.permute.xlu0 %2559
      %2561 = vrot.lane.b32.xlu0 %v390, 12
      %v2562 = vpop.permute.xlu0 %2561
      %2563 = vrot.lane.b32.xlu0 %v391, 12
      %v2564 = vpop.permute.xlu0 %2563
      %2565 = vrot.lane.b32.xlu0 %v392, 12
      %v2566 = vpop.permute.xlu0 %2565
      %2567 = vrot.lane.b32.xlu0 %v393, 12
      %v2568 = vpop.permute.xlu0 %2567
      %2569 = vrot.lane.b32.xlu0 %v394, 12
      %v2570 = vpop.permute.xlu0 %2569
      %2571 = vrot.lane.b32.xlu0 %v395, 12
      %v2572 = vpop.permute.xlu0 %2571
      %2573 = vrot.lane.b32.xlu0 %v396, 12
      %v2574 = vpop.permute.xlu0 %2573
      %2575 = vrot.lane.b32.xlu0 %v397, 12
      %v2576 = vpop.permute.xlu0 %2575
      %2577 = vrot.lane.b32.xlu0 %v398, 12
      %v2578 = vpop.permute.xlu0 %2577
      %2579 = vrot.lane.b32.xlu0 %v399, 12
      %v2580 = vpop.permute.xlu0 %2579
      %2581 = vrot.lane.b32.xlu0 %v400, 12
      %v2582 = vpop.permute.xlu0 %2581
      %2583 = vrot.lane.b32.xlu0 %v401, 12
      %v2584 = vpop.permute.xlu0 %2583
      %2713 = vrot.lane.b32.xlu0 %v402, 16
      %v2714 = vpop.permute.xlu0 %2713
      %2715 = vrot.lane.b32.xlu0 %v403, 16
      %v2716 = vpop.permute.xlu0 %2715
      %2717 = vrot.lane.b32.xlu0 %v404, 16
      %v2718 = vpop.permute.xlu0 %2717
      %2719 = vrot.lane.b32.xlu0 %v405, 16
      %v2720 = vpop.permute.xlu0 %2719
      %2721 = vrot.lane.b32.xlu0 %v406, 16
      %v2722 = vpop.permute.xlu0 %2721
      %2723 = vrot.lane.b32.xlu0 %v407, 16
      %v2724 = vpop.permute.xlu0 %2723
      %2725 = vrot.lane.b32.xlu0 %v408, 16
      %v2726 = vpop.permute.xlu0 %2725
      %2727 = vrot.lane.b32.xlu0 %v409, 16
      %v2728 = vpop.permute.xlu0 %2727
      %2729 = vrot.lane.b32.xlu0 %v410, 16
      %v2730 = vpop.permute.xlu0 %2729
      %2731 = vrot.lane.b32.xlu0 %v411, 16
      %v2732 = vpop.permute.xlu0 %2731
      %2733 = vrot.lane.b32.xlu0 %v412, 16
      %v2734 = vpop.permute.xlu0 %2733
      %2735 = vrot.lane.b32.xlu0 %v413, 16
      %v2736 = vpop.permute.xlu0 %2735
      %2737 = vrot.lane.b32.xlu0 %v414, 16
      %v2738 = vpop.permute.xlu0 %2737
      %2739 = vrot.lane.b32.xlu0 %v415, 16
      %v2740 = vpop.permute.xlu0 %2739
      %2741 = vrot.lane.b32.xlu0 %v416, 16
      %v2742 = vpop.permute.xlu0 %2741
      %2743 = vrot.lane.b32.xlu0 %v417, 16
      %v2744 = vpop.permute.xlu0 %2743
      %2745 = vrot.lane.b32.xlu0 %v418, 16
      %v2746 = vpop.permute.xlu0 %2745
      %2747 = vrot.lane.b32.xlu0 %v419, 16
      %v2748 = vpop.permute.xlu0 %2747
      %2749 = vrot.lane.b32.xlu0 %v420, 16
      %v2750 = vpop.permute.xlu0 %2749
      %2751 = vrot.lane.b32.xlu0 %v421, 16
      %v2752 = vpop.permute.xlu0 %2751
      %2753 = vrot.lane.b32.xlu0 %v422, 16
      %v2754 = vpop.permute.xlu0 %2753
      %2755 = vrot.lane.b32.xlu0 %v423, 16
      %v2756 = vpop.permute.xlu0 %2755
      %2757 = vrot.lane.b32.xlu0 %v424, 16
      %v2758 = vpop.permute.xlu0 %2757
      %2759 = vrot.lane.b32.xlu0 %v425, 16
      %v2760 = vpop.permute.xlu0 %2759
      %2761 = vrot.lane.b32.xlu0 %v426, 16
      %v2762 = vpop.permute.xlu0 %2761
      %2763 = vrot.lane.b32.xlu0 %v427, 16
      %v2764 = vpop.permute.xlu0 %2763
      %2765 = vrot.lane.b32.xlu0 %v428, 16
      %v2766 = vpop.permute.xlu0 %2765
      %2767 = vrot.lane.b32.xlu0 %v429, 16
      %v2768 = vpop.permute.xlu0 %2767
      %2769 = vrot.lane.b32.xlu0 %v430, 16
      %v2770 = vpop.permute.xlu0 %2769
      %2771 = vrot.lane.b32.xlu0 %v431, 16
      %v2772 = vpop.permute.xlu0 %2771
      %2773 = vrot.lane.b32.xlu0 %v432, 16
      %v2774 = vpop.permute.xlu0 %2773
      %2775 = vrot.lane.b32.xlu0 %v433, 16
      %v2776 = vpop.permute.xlu0 %2775
      %2777 = vrot.lane.b32.xlu0 %v434, 16
      %v2778 = vpop.permute.xlu0 %2777
      %2779 = vrot.lane.b32.xlu0 %v435, 16
      %v2780 = vpop.permute.xlu0 %2779
      %2781 = vrot.lane.b32.xlu0 %v436, 16
      %v2782 = vpop.permute.xlu0 %2781
      %2783 = vrot.lane.b32.xlu0 %v437, 16
      %v2784 = vpop.permute.xlu0 %2783
      %2785 = vrot.lane.b32.xlu0 %v438, 16
      %v2786 = vpop.permute.xlu0 %2785
      %2787 = vrot.lane.b32.xlu0 %v439, 16
      %v2788 = vpop.permute.xlu0 %2787
      %2789 = vrot.lane.b32.xlu0 %v440, 16
      %v2790 = vpop.permute.xlu0 %2789
      %2791 = vrot.lane.b32.xlu0 %v441, 16
      %v2792 = vpop.permute.xlu0 %2791
      %2793 = vrot.lane.b32.xlu0 %v442, 16
      %v2794 = vpop.permute.xlu0 %2793
      %2795 = vrot.lane.b32.xlu0 %v443, 16
      %v2796 = vpop.permute.xlu0 %2795
      %2797 = vrot.lane.b32.xlu0 %v444, 16
      %v2798 = vpop.permute.xlu0 %2797
      %2799 = vrot.lane.b32.xlu0 %v445, 16
      %v2800 = vpop.permute.xlu0 %2799
      %2801 = vrot.lane.b32.xlu0 %v446, 16
      %v2802 = vpop.permute.xlu0 %2801
      %2803 = vrot.lane.b32.xlu0 %v447, 16
      %v2804 = vpop.permute.xlu0 %2803
      %2805 = vrot.lane.b32.xlu0 %v448, 16
      %v2806 = vpop.permute.xlu0 %2805
      %2807 = vrot.lane.b32.xlu0 %v449, 16
      %v2808 = vpop.permute.xlu0 %2807
      %2809 = vrot.lane.b32.xlu0 %v450, 16
      %v2810 = vpop.permute.xlu0 %2809
      %2811 = vrot.lane.b32.xlu0 %v451, 16
      %v2812 = vpop.permute.xlu0 %2811
      %2813 = vrot.lane.b32.xlu0 %v452, 16
      %v2814 = vpop.permute.xlu0 %2813
      %2815 = vrot.lane.b32.xlu0 %v453, 16
      %v2816 = vpop.permute.xlu0 %2815
      %2817 = vrot.lane.b32.xlu0 %v454, 16
      %v2818 = vpop.permute.xlu0 %2817
      %2819 = vrot.lane.b32.xlu0 %v455, 16
      %v2820 = vpop.permute.xlu0 %2819
      %2821 = vrot.lane.b32.xlu0 %v456, 16
      %v2822 = vpop.permute.xlu0 %2821
      %2823 = vrot.lane.b32.xlu0 %v457, 16
      %v2824 = vpop.permute.xlu0 %2823
      %2825 = vrot.lane.b32.xlu0 %v458, 16
      %v2826 = vpop.permute.xlu0 %2825
      %2827 = vrot.lane.b32.xlu0 %v459, 16
      %v2828 = vpop.permute.xlu0 %2827
      %2829 = vrot.lane.b32.xlu0 %v460, 16
      %v2830 = vpop.permute.xlu0 %2829
      %2831 = vrot.lane.b32.xlu0 %v461, 16
      %v2832 = vpop.permute.xlu0 %2831
      %2833 = vrot.lane.b32.xlu0 %v462, 16
      %v2834 = vpop.permute.xlu0 %2833
      %2835 = vrot.lane.b32.xlu0 %v463, 16
      %v2836 = vpop.permute.xlu0 %2835
      %2837 = vrot.lane.b32.xlu0 %v464, 16
      %v2838 = vpop.permute.xlu0 %2837
      %2839 = vrot.lane.b32.xlu0 %v465, 16
      %v2840 = vpop.permute.xlu0 %2839
      %2969 = vrot.lane.b32.xlu0 %v466, 20
      %v2970 = vpop.permute.xlu0 %2969
      %2971 = vrot.lane.b32.xlu0 %v467, 20
      %v2972 = vpop.permute.xlu0 %2971
      %2973 = vrot.lane.b32.xlu0 %v468, 20
      %v2974 = vpop.permute.xlu0 %2973
      %2975 = vrot.lane.b32.xlu0 %v469, 20
      %v2976 = vpop.permute.xlu0 %2975
      %2977 = vrot.lane.b32.xlu0 %v470, 20
      %v2978 = vpop.permute.xlu0 %2977
      %2979 = vrot.lane.b32.xlu0 %v471, 20
      %v2980 = vpop.permute.xlu0 %2979
      %2981 = vrot.lane.b32.xlu0 %v472, 20
      %v2982 = vpop.permute.xlu0 %2981
      %2983 = vrot.lane.b32.xlu0 %v473, 20
      %v2984 = vpop.permute.xlu0 %2983
      %2985 = vrot.lane.b32.xlu0 %v474, 20
      %v2986 = vpop.permute.xlu0 %2985
      %2987 = vrot.lane.b32.xlu0 %v475, 20
      %v2988 = vpop.permute.xlu0 %2987
      %2989 = vrot.lane.b32.xlu0 %v476, 20
      %v2990 = vpop.permute.xlu0 %2989
      %2991 = vrot.lane.b32.xlu0 %v477, 20
      %v2992 = vpop.permute.xlu0 %2991
      %2993 = vrot.lane.b32.xlu0 %v478, 20
      %v2994 = vpop.permute.xlu0 %2993
      %2995 = vrot.lane.b32.xlu0 %v479, 20
      %v2996 = vpop.permute.xlu0 %2995
      %2997 = vrot.lane.b32.xlu0 %v480, 20
      %v2998 = vpop.permute.xlu0 %2997
      %2999 = vrot.lane.b32.xlu0 %v481, 20
      %v3000 = vpop.permute.xlu0 %2999
      %3001 = vrot.lane.b32.xlu0 %v482, 20
      %v3002 = vpop.permute.xlu0 %3001
      %3003 = vrot.lane.b32.xlu0 %v483, 20
      %v3004 = vpop.permute.xlu0 %3003
      %3005 = vrot.lane.b32.xlu0 %v484, 20
      %v3006 = vpop.permute.xlu0 %3005
      %3007 = vrot.lane.b32.xlu0 %v485, 20
      %v3008 = vpop.permute.xlu0 %3007
      %3009 = vrot.lane.b32.xlu0 %v486, 20
      %v3010 = vpop.permute.xlu0 %3009
      %3011 = vrot.lane.b32.xlu0 %v487, 20
      %v3012 = vpop.permute.xlu0 %3011
      %3013 = vrot.lane.b32.xlu0 %v488, 20
      %v3014 = vpop.permute.xlu0 %3013
      %3015 = vrot.lane.b32.xlu0 %v489, 20
      %v3016 = vpop.permute.xlu0 %3015
      %3017 = vrot.lane.b32.xlu0 %v490, 20
      %v3018 = vpop.permute.xlu0 %3017
      %3019 = vrot.lane.b32.xlu0 %v491, 20
      %v3020 = vpop.permute.xlu0 %3019
      %3021 = vrot.lane.b32.xlu0 %v492, 20
      %v3022 = vpop.permute.xlu0 %3021
      %3023 = vrot.lane.b32.xlu0 %v493, 20
      %v3024 = vpop.permute.xlu0 %3023
      %3025 = vrot.lane.b32.xlu0 %v494, 20
      %v3026 = vpop.permute.xlu0 %3025
      %3027 = vrot.lane.b32.xlu0 %v495, 20
      %v3028 = vpop.permute.xlu0 %3027
      %3029 = vrot.lane.b32.xlu0 %v496, 20
      %v3030 = vpop.permute.xlu0 %3029
      %3031 = vrot.lane.b32.xlu0 %v497, 20
      %v3032 = vpop.permute.xlu0 %3031
      %3033 = vrot.lane.b32.xlu0 %v498, 20
      %v3034 = vpop.permute.xlu0 %3033
      %3035 = vrot.lane.b32.xlu0 %v499, 20
      %v3036 = vpop.permute.xlu0 %3035
      %3037 = vrot.lane.b32.xlu0 %v500, 20
      %v3038 = vpop.permute.xlu0 %3037
      %3039 = vrot.lane.b32.xlu0 %v501, 20
      %v3040 = vpop.permute.xlu0 %3039
      %3041 = vrot.lane.b32.xlu0 %v502, 20
      %v3042 = vpop.permute.xlu0 %3041
      %3043 = vrot.lane.b32.xlu0 %v503, 20
      %v3044 = vpop.permute.xlu0 %3043
      %3045 = vrot.lane.b32.xlu0 %v504, 20
      %v3046 = vpop.permute.xlu0 %3045
      %3047 = vrot.lane.b32.xlu0 %v505, 20
      %v3048 = vpop.permute.xlu0 %3047
      %3049 = vrot.lane.b32.xlu0 %v506, 20
      %v3050 = vpop.permute.xlu0 %3049
      %3051 = vrot.lane.b32.xlu0 %v507, 20
      %v3052 = vpop.permute.xlu0 %3051
      %3053 = vrot.lane.b32.xlu0 %v508, 20
      %v3054 = vpop.permute.xlu0 %3053
      %3055 = vrot.lane.b32.xlu0 %v509, 20
      %v3056 = vpop.permute.xlu0 %3055
      %3057 = vrot.lane.b32.xlu0 %v510, 20
      %v3058 = vpop.permute.xlu0 %3057
      %3059 = vrot.lane.b32.xlu0 %v511, 20
      %v3060 = vpop.permute.xlu0 %3059
      %3061 = vrot.lane.b32.xlu0 %v512, 20
      %v3062 = vpop.permute.xlu0 %3061
      %3063 = vrot.lane.b32.xlu0 %v513, 20
      %v3064 = vpop.permute.xlu0 %3063
      %3065 = vrot.lane.b32.xlu0 %v514, 20
      %v3066 = vpop.permute.xlu0 %3065
      %3067 = vrot.lane.b32.xlu0 %v515, 20
      %v3068 = vpop.permute.xlu0 %3067
      %3069 = vrot.lane.b32.xlu0 %v516, 20
      %v3070 = vpop.permute.xlu0 %3069
      %3071 = vrot.lane.b32.xlu0 %v517, 20
      %v3072 = vpop.permute.xlu0 %3071
      %3073 = vrot.lane.b32.xlu0 %v518, 20
      %v3074 = vpop.permute.xlu0 %3073
      %3075 = vrot.lane.b32.xlu0 %v519, 20
      %v3076 = vpop.permute.xlu0 %3075
      %3077 = vrot.lane.b32.xlu0 %v520, 20
      %v3078 = vpop.permute.xlu0 %3077
      %3079 = vrot.lane.b32.xlu0 %v521, 20
      %v3080 = vpop.permute.xlu0 %3079
      %3081 = vrot.lane.b32.xlu0 %v522, 20
      %v3082 = vpop.permute.xlu0 %3081
      %3083 = vrot.lane.b32.xlu0 %v523, 20
      %v3084 = vpop.permute.xlu0 %3083
      %3085 = vrot.lane.b32.xlu0 %v524, 20
      %v3086 = vpop.permute.xlu0 %3085
      %3087 = vrot.lane.b32.xlu0 %v525, 20
      %v3088 = vpop.permute.xlu0 %3087
      %3089 = vrot.lane.b32.xlu0 %v526, 20
      %v3090 = vpop.permute.xlu0 %3089
      %3091 = vrot.lane.b32.xlu0 %v527, 20
      %v3092 = vpop.permute.xlu0 %3091
      %3093 = vrot.lane.b32.xlu0 %v528, 20
      %v3094 = vpop.permute.xlu0 %3093
      %3095 = vrot.lane.b32.xlu0 %v529, 20
      %v3096 = vpop.permute.xlu0 %3095
      %3225 = vrot.lane.b32.xlu0 %v531, 24
      %v3226 = vpop.permute.xlu0 %3225
      %3227 = vrot.lane.b32.xlu0 %v532, 24
      %v3228 = vpop.permute.xlu0 %3227
      %3229 = vrot.lane.b32.xlu0 %v533, 24
      %v3230 = vpop.permute.xlu0 %3229
      %3231 = vrot.lane.b32.xlu0 %v534, 24
      %v3232 = vpop.permute.xlu0 %3231
      %3233 = vrot.lane.b32.xlu0 %v535, 24
      %v3234 = vpop.permute.xlu0 %3233
      %3235 = vrot.lane.b32.xlu0 %v536, 24
      %v3236 = vpop.permute.xlu0 %3235
      %3237 = vrot.lane.b32.xlu0 %v537, 24
      %v3238 = vpop.permute.xlu0 %3237
      %3239 = vrot.lane.b32.xlu0 %v538, 24
      %v3240 = vpop.permute.xlu0 %3239
      %3241 = vrot.lane.b32.xlu0 %v539, 24
      %v3242 = vpop.permute.xlu0 %3241
      %3243 = vrot.lane.b32.xlu0 %v540, 24
      %v3244 = vpop.permute.xlu0 %3243
      %3245 = vrot.lane.b32.xlu0 %v541, 24
      %v3246 = vpop.permute.xlu0 %3245
      %3247 = vrot.lane.b32.xlu0 %v542, 24
      %v3248 = vpop.permute.xlu0 %3247
      %3249 = vrot.lane.b32.xlu0 %v543, 24
      %v3250 = vpop.permute.xlu0 %3249
      %3251 = vrot.lane.b32.xlu0 %v544, 24
      %v3252 = vpop.permute.xlu0 %3251
      %3253 = vrot.lane.b32.xlu0 %v545, 24
      %v3254 = vpop.permute.xlu0 %3253
      %3255 = vrot.lane.b32.xlu0 %v546, 24
      %v3256 = vpop.permute.xlu0 %3255
      %3257 = vrot.lane.b32.xlu0 %v547, 24
      %v3258 = vpop.permute.xlu0 %3257
      %3259 = vrot.lane.b32.xlu0 %v548, 24
      %v3260 = vpop.permute.xlu0 %3259
      %3261 = vrot.lane.b32.xlu0 %v549, 24
      %v3262 = vpop.permute.xlu0 %3261
      %3263 = vrot.lane.b32.xlu0 %v550, 24
      %v3264 = vpop.permute.xlu0 %3263
      %3265 = vrot.lane.b32.xlu0 %v551, 24
      %v3266 = vpop.permute.xlu0 %3265
      %3267 = vrot.lane.b32.xlu0 %v552, 24
      %v3268 = vpop.permute.xlu0 %3267
      %3269 = vrot.lane.b32.xlu0 %v553, 24
      %v3270 = vpop.permute.xlu0 %3269
      %3271 = vrot.lane.b32.xlu0 %v554, 24
      %v3272 = vpop.permute.xlu0 %3271
      %3273 = vrot.lane.b32.xlu0 %v555, 24
      %v3274 = vpop.permute.xlu0 %3273
      %3275 = vrot.lane.b32.xlu0 %v556, 24
      %v3276 = vpop.permute.xlu0 %3275
      %3277 = vrot.lane.b32.xlu0 %v557, 24
      %v3278 = vpop.permute.xlu0 %3277
      %3279 = vrot.lane.b32.xlu0 %v558, 24
      %v3280 = vpop.permute.xlu0 %3279
      %3281 = vrot.lane.b32.xlu0 %v559, 24
      %v3282 = vpop.permute.xlu0 %3281
      %3283 = vrot.lane.b32.xlu0 %v560, 24
      %v3284 = vpop.permute.xlu0 %3283
      %3285 = vrot.lane.b32.xlu0 %v561, 24
      %v3286 = vpop.permute.xlu0 %3285
      %3287 = vrot.lane.b32.xlu0 %v562, 24
      %v3288 = vpop.permute.xlu0 %3287
      %3289 = vrot.lane.b32.xlu0 %v563, 24
      %v3290 = vpop.permute.xlu0 %3289
      %3291 = vrot.lane.b32.xlu0 %v564, 24
      %v3292 = vpop.permute.xlu0 %3291
      %3293 = vrot.lane.b32.xlu0 %v565, 24
      %v3294 = vpop.permute.xlu0 %3293
      %3295 = vrot.lane.b32.xlu0 %v566, 24
      %v3296 = vpop.permute.xlu0 %3295
      %3297 = vrot.lane.b32.xlu0 %v567, 24
      %v3298 = vpop.permute.xlu0 %3297
      %3299 = vrot.lane.b32.xlu0 %v568, 24
      %v3300 = vpop.permute.xlu0 %3299
      %3301 = vrot.lane.b32.xlu0 %v569, 24
      %v3302 = vpop.permute.xlu0 %3301
      %3303 = vrot.lane.b32.xlu0 %v570, 24
      %v3304 = vpop.permute.xlu0 %3303
      %3305 = vrot.lane.b32.xlu0 %v571, 24
      %v3306 = vpop.permute.xlu0 %3305
      %3307 = vrot.lane.b32.xlu0 %v572, 24
      %v3308 = vpop.permute.xlu0 %3307
      %3309 = vrot.lane.b32.xlu0 %v573, 24
      %v3310 = vpop.permute.xlu0 %3309
      %3311 = vrot.lane.b32.xlu0 %v574, 24
      %v3312 = vpop.permute.xlu0 %3311
      %3313 = vrot.lane.b32.xlu0 %v575, 24
      %v3314 = vpop.permute.xlu0 %3313
      %3315 = vrot.lane.b32.xlu0 %v576, 24
      %v3316 = vpop.permute.xlu0 %3315
      %3317 = vrot.lane.b32.xlu0 %v577, 24
      %v3318 = vpop.permute.xlu0 %3317
      %3319 = vrot.lane.b32.xlu0 %v578, 24
      %v3320 = vpop.permute.xlu0 %3319
      %3321 = vrot.lane.b32.xlu0 %v579, 24
      %v3322 = vpop.permute.xlu0 %3321
      %3323 = vrot.lane.b32.xlu0 %v580, 24
      %v3324 = vpop.permute.xlu0 %3323
      %3325 = vrot.lane.b32.xlu0 %v581, 24
      %v3326 = vpop.permute.xlu0 %3325
      %3327 = vrot.lane.b32.xlu0 %v582, 24
      %v3328 = vpop.permute.xlu0 %3327
      %3329 = vrot.lane.b32.xlu0 %v583, 24
      %v3330 = vpop.permute.xlu0 %3329
      %3331 = vrot.lane.b32.xlu0 %v584, 24
      %v3332 = vpop.permute.xlu0 %3331
      %3333 = vrot.lane.b32.xlu0 %v585, 24
      %v3334 = vpop.permute.xlu0 %3333
      %3335 = vrot.lane.b32.xlu0 %v586, 24
      %v3336 = vpop.permute.xlu0 %3335
      %3337 = vrot.lane.b32.xlu0 %v587, 24
      %v3338 = vpop.permute.xlu0 %3337
      %3339 = vrot.lane.b32.xlu0 %v588, 24
      %v3340 = vpop.permute.xlu0 %3339
      %3341 = vrot.lane.b32.xlu0 %v589, 24
      %v3342 = vpop.permute.xlu0 %3341
      %3343 = vrot.lane.b32.xlu0 %v590, 24
      %v3344 = vpop.permute.xlu0 %3343
      %3345 = vrot.lane.b32.xlu0 %v591, 24
      %v3346 = vpop.permute.xlu0 %3345
      %3347 = vrot.lane.b32.xlu0 %v592, 24
      %v3348 = vpop.permute.xlu0 %3347
      %3349 = vrot.lane.b32.xlu0 %v593, 24
      %v3350 = vpop.permute.xlu0 %3349
      %3351 = vrot.lane.b32.xlu0 %v594, 24
      %v3352 = vpop.permute.xlu0 %3351
      %3481 = vrot.lane.b32.xlu0 %v595, 28
      %v3482 = vpop.permute.xlu0 %3481
      %3483 = vrot.lane.b32.xlu0 %v596, 28
      %v3484 = vpop.permute.xlu0 %3483
      %3485 = vrot.lane.b32.xlu0 %v597, 28
      %v3486 = vpop.permute.xlu0 %3485
      %3487 = vrot.lane.b32.xlu0 %v598, 28
      %v3488 = vpop.permute.xlu0 %3487
      %3489 = vrot.lane.b32.xlu0 %v599, 28
      %v3490 = vpop.permute.xlu0 %3489
      %3491 = vrot.lane.b32.xlu0 %v600, 28
      %v3492 = vpop.permute.xlu0 %3491
      %3493 = vrot.lane.b32.xlu0 %v601, 28
      %v3494 = vpop.permute.xlu0 %3493
      %3495 = vrot.lane.b32.xlu0 %v602, 28
      %v3496 = vpop.permute.xlu0 %3495
      %3497 = vrot.lane.b32.xlu0 %v603, 28
      %v3498 = vpop.permute.xlu0 %3497
      %3499 = vrot.lane.b32.xlu0 %v604, 28
      %v3500 = vpop.permute.xlu0 %3499
      %3501 = vrot.lane.b32.xlu0 %v605, 28
      %v3502 = vpop.permute.xlu0 %3501
      %3503 = vrot.lane.b32.xlu0 %v606, 28
      %v3504 = vpop.permute.xlu0 %3503
      %3505 = vrot.lane.b32.xlu0 %v607, 28
      %v3506 = vpop.permute.xlu0 %3505
      %3507 = vrot.lane.b32.xlu0 %v608, 28
      %v3508 = vpop.permute.xlu0 %3507
      %3509 = vrot.lane.b32.xlu0 %v609, 28
      %v3510 = vpop.permute.xlu0 %3509
      %3511 = vrot.lane.b32.xlu0 %v610, 28
      %v3512 = vpop.permute.xlu0 %3511
      %3513 = vrot.lane.b32.xlu0 %v611, 28
      %v3514 = vpop.permute.xlu0 %3513
      %3515 = vrot.lane.b32.xlu0 %v612, 28
      %v3516 = vpop.permute.xlu0 %3515
      %3517 = vrot.lane.b32.xlu0 %v613, 28
      %v3518 = vpop.permute.xlu0 %3517
      %3519 = vrot.lane.b32.xlu0 %v614, 28
      %v3520 = vpop.permute.xlu0 %3519
      %3521 = vrot.lane.b32.xlu0 %v615, 28
      %v3522 = vpop.permute.xlu0 %3521
      %3523 = vrot.lane.b32.xlu0 %v616, 28
      %v3524 = vpop.permute.xlu0 %3523
      %3525 = vrot.lane.b32.xlu0 %v617, 28
      %v3526 = vpop.permute.xlu0 %3525
      %3527 = vrot.lane.b32.xlu0 %v618, 28
      %v3528 = vpop.permute.xlu0 %3527
      %3529 = vrot.lane.b32.xlu0 %v619, 28
      %v3530 = vpop.permute.xlu0 %3529
      %3531 = vrot.lane.b32.xlu0 %v620, 28
      %v3532 = vpop.permute.xlu0 %3531
      %3533 = vrot.lane.b32.xlu0 %v621, 28
      %v3534 = vpop.permute.xlu0 %3533
      %3535 = vrot.lane.b32.xlu0 %v622, 28
      %v3536 = vpop.permute.xlu0 %3535
      %3537 = vrot.lane.b32.xlu0 %v623, 28
      %v3538 = vpop.permute.xlu0 %3537
      %3539 = vrot.lane.b32.xlu0 %v624, 28
      %v3540 = vpop.permute.xlu0 %3539
      %3541 = vrot.lane.b32.xlu0 %v625, 28
      %v3542 = vpop.permute.xlu0 %3541
      %3543 = vrot.lane.b32.xlu0 %v626, 28
      %v3544 = vpop.permute.xlu0 %3543
      %3545 = vrot.lane.b32.xlu0 %v627, 28
      %v3546 = vpop.permute.xlu0 %3545
      %3547 = vrot.lane.b32.xlu0 %v628, 28
      %v3548 = vpop.permute.xlu0 %3547
      %3549 = vrot.lane.b32.xlu0 %v629, 28
      %v3550 = vpop.permute.xlu0 %3549
      %3551 = vrot.lane.b32.xlu0 %v630, 28
      %v3552 = vpop.permute.xlu0 %3551
      %3553 = vrot.lane.b32.xlu0 %v631, 28
      %v3554 = vpop.permute.xlu0 %3553
      %3555 = vrot.lane.b32.xlu0 %v632, 28
      %v3556 = vpop.permute.xlu0 %3555
      %3557 = vrot.lane.b32.xlu0 %v633, 28
      %v3558 = vpop.permute.xlu0 %3557
      %3559 = vrot.lane.b32.xlu0 %v634, 28
      %v3560 = vpop.permute.xlu0 %3559
      %3561 = vrot.lane.b32.xlu0 %v635, 28
      %v3562 = vpop.permute.xlu0 %3561
      %3563 = vrot.lane.b32.xlu0 %v636, 28
      %v3564 = vpop.permute.xlu0 %3563
      %3565 = vrot.lane.b32.xlu0 %v637, 28
      %v3566 = vpop.permute.xlu0 %3565
      %3567 = vrot.lane.b32.xlu0 %v638, 28
      %v3568 = vpop.permute.xlu0 %3567
      %3569 = vrot.lane.b32.xlu0 %v639, 28
      %v3570 = vpop.permute.xlu0 %3569
      %3571 = vrot.lane.b32.xlu0 %v640, 28
      %v3572 = vpop.permute.xlu0 %3571
      %3573 = vrot.lane.b32.xlu0 %v641, 28
      %v3574 = vpop.permute.xlu0 %3573
      %3575 = vrot.lane.b32.xlu0 %v642, 28
      %v3576 = vpop.permute.xlu0 %3575
      %3577 = vrot.lane.b32.xlu0 %v643, 28
      %v3578 = vpop.permute.xlu0 %3577
      %3579 = vrot.lane.b32.xlu0 %v644, 28
      %v3580 = vpop.permute.xlu0 %3579
      %3581 = vrot.lane.b32.xlu0 %v645, 28
      %v3582 = vpop.permute.xlu0 %3581
      %3583 = vrot.lane.b32.xlu0 %v646, 28
      %v3584 = vpop.permute.xlu0 %3583
      %3585 = vrot.lane.b32.xlu0 %v647, 28
      %v3586 = vpop.permute.xlu0 %3585
      %3587 = vrot.lane.b32.xlu0 %v648, 28
      %v3588 = vpop.permute.xlu0 %3587
      %3589 = vrot.lane.b32.xlu0 %v649, 28
      %v3590 = vpop.permute.xlu0 %3589
      %3591 = vrot.lane.b32.xlu0 %v650, 28
      %v3592 = vpop.permute.xlu0 %3591
      %3593 = vrot.lane.b32.xlu0 %v651, 28
      %v3594 = vpop.permute.xlu0 %3593
      %3595 = vrot.lane.b32.xlu0 %v652, 28
      %v3596 = vpop.permute.xlu0 %3595
      %3597 = vrot.lane.b32.xlu0 %v653, 28
      %v3598 = vpop.permute.xlu0 %3597
      %3599 = vrot.lane.b32.xlu0 %v654, 28
      %v3600 = vpop.permute.xlu0 %3599
      %3601 = vrot.lane.b32.xlu0 %v655, 28
      %v3602 = vpop.permute.xlu0 %3601
      %3603 = vrot.lane.b32.xlu0 %v656, 28
      %v3604 = vpop.permute.xlu0 %3603
      %3605 = vrot.lane.b32.xlu0 %v657, 28
      %v3606 = vpop.permute.xlu0 %3605
      %3607 = vrot.lane.b32.xlu0 %v658, 28
      %v3608 = vpop.permute.xlu0 %3607
      %3737 = vrot.lane.b32.xlu0 %v659, 32
      %v3738 = vpop.permute.xlu0 %3737
      %3739 = vrot.lane.b32.xlu0 %v660, 32
      %v3740 = vpop.permute.xlu0 %3739
      %3741 = vrot.lane.b32.xlu0 %v661, 32
      %v3742 = vpop.permute.xlu0 %3741
      %3743 = vrot.lane.b32.xlu0 %v662, 32
      %v3744 = vpop.permute.xlu0 %3743
      %3745 = vrot.lane.b32.xlu0 %v663, 32
      %v3746 = vpop.permute.xlu0 %3745
      %3747 = vrot.lane.b32.xlu0 %v664, 32
      %v3748 = vpop.permute.xlu0 %3747
      %3749 = vrot.lane.b32.xlu0 %v665, 32
      %v3750 = vpop.permute.xlu0 %3749
      %3751 = vrot.lane.b32.xlu0 %v666, 32
      %v3752 = vpop.permute.xlu0 %3751
      %3753 = vrot.lane.b32.xlu0 %v667, 32
      %v3754 = vpop.permute.xlu0 %3753
      %3755 = vrot.lane.b32.xlu0 %v668, 32
      %v3756 = vpop.permute.xlu0 %3755
      %3757 = vrot.lane.b32.xlu0 %v669, 32
      %v3758 = vpop.permute.xlu0 %3757
      %3759 = vrot.lane.b32.xlu0 %v670, 32
      %v3760 = vpop.permute.xlu0 %3759
      %3761 = vrot.lane.b32.xlu0 %v671, 32
      %v3762 = vpop.permute.xlu0 %3761
      %3763 = vrot.lane.b32.xlu0 %v672, 32
      %v3764 = vpop.permute.xlu0 %3763
      %3765 = vrot.lane.b32.xlu0 %v673, 32
      %v3766 = vpop.permute.xlu0 %3765
      %3767 = vrot.lane.b32.xlu0 %v674, 32
      %v3768 = vpop.permute.xlu0 %3767
      %3769 = vrot.lane.b32.xlu0 %v675, 32
      %v3770 = vpop.permute.xlu0 %3769
      %3771 = vrot.lane.b32.xlu0 %v676, 32
      %v3772 = vpop.permute.xlu0 %3771
      %3773 = vrot.lane.b32.xlu0 %v677, 32
      %v3774 = vpop.permute.xlu0 %3773
      %3775 = vrot.lane.b32.xlu0 %v678, 32
      %v3776 = vpop.permute.xlu0 %3775
      %3777 = vrot.lane.b32.xlu0 %v679, 32
      %v3778 = vpop.permute.xlu0 %3777
      %3779 = vrot.lane.b32.xlu0 %v680, 32
      %v3780 = vpop.permute.xlu0 %3779
      %3781 = vrot.lane.b32.xlu0 %v681, 32
      %v3782 = vpop.permute.xlu0 %3781
      %3783 = vrot.lane.b32.xlu0 %v682, 32
      %v3784 = vpop.permute.xlu0 %3783
      %3785 = vrot.lane.b32.xlu0 %v683, 32
      %v3786 = vpop.permute.xlu0 %3785
      %3787 = vrot.lane.b32.xlu0 %v684, 32
      %v3788 = vpop.permute.xlu0 %3787
      %3789 = vrot.lane.b32.xlu0 %v685, 32
      %v3790 = vpop.permute.xlu0 %3789
      %3791 = vrot.lane.b32.xlu0 %v686, 32
      %v3792 = vpop.permute.xlu0 %3791
      %3793 = vrot.lane.b32.xlu0 %v687, 32
      %v3794 = vpop.permute.xlu0 %3793
      %3795 = vrot.lane.b32.xlu0 %v688, 32
      %v3796 = vpop.permute.xlu0 %3795
      %3797 = vrot.lane.b32.xlu0 %v689, 32
      %v3798 = vpop.permute.xlu0 %3797
      %3799 = vrot.lane.b32.xlu0 %v690, 32
      %v3800 = vpop.permute.xlu0 %3799
      %3801 = vrot.lane.b32.xlu0 %v691, 32
      %v3802 = vpop.permute.xlu0 %3801
      %3803 = vrot.lane.b32.xlu0 %v692, 32
      %v3804 = vpop.permute.xlu0 %3803
      %3805 = vrot.lane.b32.xlu0 %v693, 32
      %v3806 = vpop.permute.xlu0 %3805
      %3807 = vrot.lane.b32.xlu0 %v694, 32
      %v3808 = vpop.permute.xlu0 %3807
      %3809 = vrot.lane.b32.xlu0 %v695, 32
      %v3810 = vpop.permute.xlu0 %3809
      %3811 = vrot.lane.b32.xlu0 %v696, 32
      %v3812 = vpop.permute.xlu0 %3811
      %3813 = vrot.lane.b32.xlu0 %v697, 32
      %v3814 = vpop.permute.xlu0 %3813
      %3815 = vrot.lane.b32.xlu0 %v698, 32
      %v3816 = vpop.permute.xlu0 %3815
      %3817 = vrot.lane.b32.xlu0 %v699, 32
      %v3818 = vpop.permute.xlu0 %3817
      %3819 = vrot.lane.b32.xlu0 %v700, 32
      %v3820 = vpop.permute.xlu0 %3819
      %3821 = vrot.lane.b32.xlu0 %v701, 32
      %v3822 = vpop.permute.xlu0 %3821
      %3823 = vrot.lane.b32.xlu0 %v702, 32
      %v3824 = vpop.permute.xlu0 %3823
      %3825 = vrot.lane.b32.xlu0 %v703, 32
      %v3826 = vpop.permute.xlu0 %3825
      %3827 = vrot.lane.b32.xlu0 %v704, 32
      %v3828 = vpop.permute.xlu0 %3827
      %3829 = vrot.lane.b32.xlu0 %v705, 32
      %v3830 = vpop.permute.xlu0 %3829
      %3831 = vrot.lane.b32.xlu0 %v706, 32
      %v3832 = vpop.permute.xlu0 %3831
      %3833 = vrot.lane.b32.xlu0 %v707, 32
      %v3834 = vpop.permute.xlu0 %3833
      %3835 = vrot.lane.b32.xlu0 %v708, 32
      %v3836 = vpop.permute.xlu0 %3835
      %3837 = vrot.lane.b32.xlu0 %v709, 32
      %v3838 = vpop.permute.xlu0 %3837
      %3839 = vrot.lane.b32.xlu0 %v710, 32
      %v3840 = vpop.permute.xlu0 %3839
      %3841 = vrot.lane.b32.xlu0 %v711, 32
      %v3842 = vpop.permute.xlu0 %3841
      %3843 = vrot.lane.b32.xlu0 %v712, 32
      %v3844 = vpop.permute.xlu0 %3843
      %3845 = vrot.lane.b32.xlu0 %v713, 32
      %v3846 = vpop.permute.xlu0 %3845
      %3847 = vrot.lane.b32.xlu0 %v714, 32
      %v3848 = vpop.permute.xlu0 %3847
      %3849 = vrot.lane.b32.xlu0 %v715, 32
      %v3850 = vpop.permute.xlu0 %3849
      %3851 = vrot.lane.b32.xlu0 %v716, 32
      %v3852 = vpop.permute.xlu0 %3851
      %3853 = vrot.lane.b32.xlu0 %v717, 32
      %v3854 = vpop.permute.xlu0 %3853
      %3855 = vrot.lane.b32.xlu0 %v718, 32
      %v3856 = vpop.permute.xlu0 %3855
      %3857 = vrot.lane.b32.xlu0 %v719, 32
      %v3858 = vpop.permute.xlu0 %3857
      %3859 = vrot.lane.b32.xlu0 %v720, 32
      %v3860 = vpop.permute.xlu0 %3859
      %3861 = vrot.lane.b32.xlu0 %v721, 32
      %v3862 = vpop.permute.xlu0 %3861
      %3863 = vrot.lane.b32.xlu0 %v722, 32
      %v3864 = vpop.permute.xlu0 %3863
      %3993 = vrot.lane.b32.xlu0 %v724, 36
      %v3994 = vpop.permute.xlu0 %3993
      %3995 = vrot.lane.b32.xlu0 %v725, 36
      %v3996 = vpop.permute.xlu0 %3995
      %3997 = vrot.lane.b32.xlu0 %v726, 36
      %v3998 = vpop.permute.xlu0 %3997
      %3999 = vrot.lane.b32.xlu0 %v727, 36
      %v4000 = vpop.permute.xlu0 %3999
      %4001 = vrot.lane.b32.xlu0 %v728, 36
      %v4002 = vpop.permute.xlu0 %4001
      %4003 = vrot.lane.b32.xlu0 %v729, 36
      %v4004 = vpop.permute.xlu0 %4003
      %4005 = vrot.lane.b32.xlu0 %v730, 36
      %v4006 = vpop.permute.xlu0 %4005
      %4007 = vrot.lane.b32.xlu0 %v731, 36
      %v4008 = vpop.permute.xlu0 %4007
      %4009 = vrot.lane.b32.xlu0 %v732, 36
      %v4010 = vpop.permute.xlu0 %4009
      %4011 = vrot.lane.b32.xlu0 %v733, 36
      %v4012 = vpop.permute.xlu0 %4011
      %4013 = vrot.lane.b32.xlu0 %v734, 36
      %v4014 = vpop.permute.xlu0 %4013
      %4015 = vrot.lane.b32.xlu0 %v735, 36
      %v4016 = vpop.permute.xlu0 %4015
      %4017 = vrot.lane.b32.xlu0 %v736, 36
      %v4018 = vpop.permute.xlu0 %4017
      %4019 = vrot.lane.b32.xlu0 %v737, 36
      %v4020 = vpop.permute.xlu0 %4019
      %4021 = vrot.lane.b32.xlu0 %v738, 36
      %v4022 = vpop.permute.xlu0 %4021
      %4023 = vrot.lane.b32.xlu0 %v739, 36
      %v4024 = vpop.permute.xlu0 %4023
      %4025 = vrot.lane.b32.xlu0 %v740, 36
      %v4026 = vpop.permute.xlu0 %4025
      %4027 = vrot.lane.b32.xlu0 %v741, 36
      %v4028 = vpop.permute.xlu0 %4027
      %4029 = vrot.lane.b32.xlu0 %v742, 36
      %v4030 = vpop.permute.xlu0 %4029
      %4031 = vrot.lane.b32.xlu0 %v743, 36
      %v4032 = vpop.permute.xlu0 %4031
      %4033 = vrot.lane.b32.xlu0 %v744, 36
      %v4034 = vpop.permute.xlu0 %4033
      %4035 = vrot.lane.b32.xlu0 %v745, 36
      %v4036 = vpop.permute.xlu0 %4035
      %4037 = vrot.lane.b32.xlu0 %v746, 36
      %v4038 = vpop.permute.xlu0 %4037
      %4039 = vrot.lane.b32.xlu0 %v747, 36
      %v4040 = vpop.permute.xlu0 %4039
      %4041 = vrot.lane.b32.xlu0 %v748, 36
      %v4042 = vpop.permute.xlu0 %4041
      %4043 = vrot.lane.b32.xlu0 %v749, 36
      %v4044 = vpop.permute.xlu0 %4043
      %4045 = vrot.lane.b32.xlu0 %v750, 36
      %v4046 = vpop.permute.xlu0 %4045
      %4047 = vrot.lane.b32.xlu0 %v751, 36
      %v4048 = vpop.permute.xlu0 %4047
      %4049 = vrot.lane.b32.xlu0 %v752, 36
      %v4050 = vpop.permute.xlu0 %4049
      %4051 = vrot.lane.b32.xlu0 %v753, 36
      %v4052 = vpop.permute.xlu0 %4051
      %4053 = vrot.lane.b32.xlu0 %v754, 36
      %v4054 = vpop.permute.xlu0 %4053
      %4055 = vrot.lane.b32.xlu0 %v755, 36
      %v4056 = vpop.permute.xlu0 %4055
      %4057 = vrot.lane.b32.xlu0 %v756, 36
      %v4058 = vpop.permute.xlu0 %4057
      %4059 = vrot.lane.b32.xlu0 %v757, 36
      %v4060 = vpop.permute.xlu0 %4059
      %4061 = vrot.lane.b32.xlu0 %v758, 36
      %v4062 = vpop.permute.xlu0 %4061
      %4063 = vrot.lane.b32.xlu0 %v759, 36
      %v4064 = vpop.permute.xlu0 %4063
      %4065 = vrot.lane.b32.xlu0 %v760, 36
      %v4066 = vpop.permute.xlu0 %4065
      %4067 = vrot.lane.b32.xlu0 %v761, 36
      %v4068 = vpop.permute.xlu0 %4067
      %4069 = vrot.lane.b32.xlu0 %v762, 36
      %v4070 = vpop.permute.xlu0 %4069
      %4071 = vrot.lane.b32.xlu0 %v763, 36
      %v4072 = vpop.permute.xlu0 %4071
      %4073 = vrot.lane.b32.xlu0 %v764, 36
      %v4074 = vpop.permute.xlu0 %4073
      %4075 = vrot.lane.b32.xlu0 %v765, 36
      %v4076 = vpop.permute.xlu0 %4075
      %4077 = vrot.lane.b32.xlu0 %v766, 36
      %v4078 = vpop.permute.xlu0 %4077
      %4079 = vrot.lane.b32.xlu0 %v767, 36
      %v4080 = vpop.permute.xlu0 %4079
      %4081 = vrot.lane.b32.xlu0 %v768, 36
      %v4082 = vpop.permute.xlu0 %4081
      %4083 = vrot.lane.b32.xlu0 %v769, 36
      %v4084 = vpop.permute.xlu0 %4083
      %4085 = vrot.lane.b32.xlu0 %v770, 36
      %v4086 = vpop.permute.xlu0 %4085
      %4087 = vrot.lane.b32.xlu0 %v771, 36
      %v4088 = vpop.permute.xlu0 %4087
      %4089 = vrot.lane.b32.xlu0 %v772, 36
      %v4090 = vpop.permute.xlu0 %4089
      %4091 = vrot.lane.b32.xlu0 %v773, 36
      %v4092 = vpop.permute.xlu0 %4091
      %4093 = vrot.lane.b32.xlu0 %v774, 36
      %v4094 = vpop.permute.xlu0 %4093
      %4095 = vrot.lane.b32.xlu0 %v775, 36
      %v4096 = vpop.permute.xlu0 %4095
      %4097 = vrot.lane.b32.xlu0 %v776, 36
      %v4098 = vpop.permute.xlu0 %4097
      %4099 = vrot.lane.b32.xlu0 %v777, 36
      %v4100 = vpop.permute.xlu0 %4099
      %4101 = vrot.lane.b32.xlu0 %v778, 36
      %v4102 = vpop.permute.xlu0 %4101
      %4103 = vrot.lane.b32.xlu0 %v779, 36
      %v4104 = vpop.permute.xlu0 %4103
      %4105 = vrot.lane.b32.xlu0 %v780, 36
      %v4106 = vpop.permute.xlu0 %4105
      %4107 = vrot.lane.b32.xlu0 %v781, 36
      %v4108 = vpop.permute.xlu0 %4107
      %4109 = vrot.lane.b32.xlu0 %v782, 36
      %v4110 = vpop.permute.xlu0 %4109
      %4111 = vrot.lane.b32.xlu0 %v783, 36
      %v4112 = vpop.permute.xlu0 %4111
      %4113 = vrot.lane.b32.xlu0 %v784, 36
      %v4114 = vpop.permute.xlu0 %4113
      %4115 = vrot.lane.b32.xlu0 %v785, 36
      %v4116 = vpop.permute.xlu0 %4115
      %4117 = vrot.lane.b32.xlu0 %v786, 36
      %v4118 = vpop.permute.xlu0 %4117
      %4119 = vrot.lane.b32.xlu0 %v787, 36
      %v4120 = vpop.permute.xlu0 %4119
      %4249 = vrot.lane.b32.xlu0 %v788, 40
      %v4250 = vpop.permute.xlu0 %4249
      %4251 = vrot.lane.b32.xlu0 %v789, 40
      %v4252 = vpop.permute.xlu0 %4251
      %4253 = vrot.lane.b32.xlu0 %v790, 40
      %v4254 = vpop.permute.xlu0 %4253
      %4255 = vrot.lane.b32.xlu0 %v791, 40
      %v4256 = vpop.permute.xlu0 %4255
      %4257 = vrot.lane.b32.xlu0 %v792, 40
      %v4258 = vpop.permute.xlu0 %4257
      %4259 = vrot.lane.b32.xlu0 %v793, 40
      %v4260 = vpop.permute.xlu0 %4259
      %4261 = vrot.lane.b32.xlu0 %v794, 40
      %v4262 = vpop.permute.xlu0 %4261
      %4263 = vrot.lane.b32.xlu0 %v795, 40
      %v4264 = vpop.permute.xlu0 %4263
      %4265 = vrot.lane.b32.xlu0 %v796, 40
      %v4266 = vpop.permute.xlu0 %4265
      %4267 = vrot.lane.b32.xlu0 %v797, 40
      %v4268 = vpop.permute.xlu0 %4267
      %4269 = vrot.lane.b32.xlu0 %v798, 40
      %v4270 = vpop.permute.xlu0 %4269
      %4271 = vrot.lane.b32.xlu0 %v799, 40
      %v4272 = vpop.permute.xlu0 %4271
      %4273 = vrot.lane.b32.xlu0 %v800, 40
      %v4274 = vpop.permute.xlu0 %4273
      %4275 = vrot.lane.b32.xlu0 %v801, 40
      %v4276 = vpop.permute.xlu0 %4275
      %4277 = vrot.lane.b32.xlu0 %v802, 40
      %v4278 = vpop.permute.xlu0 %4277
      %4279 = vrot.lane.b32.xlu0 %v803, 40
      %v4280 = vpop.permute.xlu0 %4279
      %4281 = vrot.lane.b32.xlu0 %v804, 40
      %v4282 = vpop.permute.xlu0 %4281
      %4283 = vrot.lane.b32.xlu0 %v805, 40
      %v4284 = vpop.permute.xlu0 %4283
      %4285 = vrot.lane.b32.xlu0 %v806, 40
      %v4286 = vpop.permute.xlu0 %4285
      %4287 = vrot.lane.b32.xlu0 %v807, 40
      %v4288 = vpop.permute.xlu0 %4287
      %4289 = vrot.lane.b32.xlu0 %v808, 40
      %v4290 = vpop.permute.xlu0 %4289
      %4291 = vrot.lane.b32.xlu0 %v809, 40
      %v4292 = vpop.permute.xlu0 %4291
      %4293 = vrot.lane.b32.xlu0 %v810, 40
      %v4294 = vpop.permute.xlu0 %4293
      %4295 = vrot.lane.b32.xlu0 %v811, 40
      %v4296 = vpop.permute.xlu0 %4295
      %4297 = vrot.lane.b32.xlu0 %v812, 40
      %v4298 = vpop.permute.xlu0 %4297
      %4299 = vrot.lane.b32.xlu0 %v813, 40
      %v4300 = vpop.permute.xlu0 %4299
      %4301 = vrot.lane.b32.xlu0 %v814, 40
      %v4302 = vpop.permute.xlu0 %4301
      %4303 = vrot.lane.b32.xlu0 %v815, 40
      %v4304 = vpop.permute.xlu0 %4303
      %4305 = vrot.lane.b32.xlu0 %v816, 40
      %v4306 = vpop.permute.xlu0 %4305
      %4307 = vrot.lane.b32.xlu0 %v817, 40
      %v4308 = vpop.permute.xlu0 %4307
      %4309 = vrot.lane.b32.xlu0 %v818, 40
      %v4310 = vpop.permute.xlu0 %4309
      %4311 = vrot.lane.b32.xlu0 %v819, 40
      %v4312 = vpop.permute.xlu0 %4311
      %4313 = vrot.lane.b32.xlu0 %v820, 40
      %v4314 = vpop.permute.xlu0 %4313
      %4315 = vrot.lane.b32.xlu0 %v821, 40
      %v4316 = vpop.permute.xlu0 %4315
      %4317 = vrot.lane.b32.xlu0 %v822, 40
      %v4318 = vpop.permute.xlu0 %4317
      %4319 = vrot.lane.b32.xlu0 %v823, 40
      %v4320 = vpop.permute.xlu0 %4319
      %4321 = vrot.lane.b32.xlu0 %v824, 40
      %v4322 = vpop.permute.xlu0 %4321
      %4323 = vrot.lane.b32.xlu0 %v825, 40
      %v4324 = vpop.permute.xlu0 %4323
      %4325 = vrot.lane.b32.xlu0 %v826, 40
      %v4326 = vpop.permute.xlu0 %4325
      %4327 = vrot.lane.b32.xlu0 %v827, 40
      %v4328 = vpop.permute.xlu0 %4327
      %4329 = vrot.lane.b32.xlu0 %v828, 40
      %v4330 = vpop.permute.xlu0 %4329
      %4331 = vrot.lane.b32.xlu0 %v829, 40
      %v4332 = vpop.permute.xlu0 %4331
      %4333 = vrot.lane.b32.xlu0 %v830, 40
      %v4334 = vpop.permute.xlu0 %4333
      %4335 = vrot.lane.b32.xlu0 %v831, 40
      %v4336 = vpop.permute.xlu0 %4335
      %4337 = vrot.lane.b32.xlu0 %v832, 40
      %v4338 = vpop.permute.xlu0 %4337
      %4339 = vrot.lane.b32.xlu0 %v833, 40
      %v4340 = vpop.permute.xlu0 %4339
      %4341 = vrot.lane.b32.xlu0 %v834, 40
      %v4342 = vpop.permute.xlu0 %4341
      %4343 = vrot.lane.b32.xlu0 %v835, 40
      %v4344 = vpop.permute.xlu0 %4343
      %4345 = vrot.lane.b32.xlu0 %v836, 40
      %v4346 = vpop.permute.xlu0 %4345
      %4347 = vrot.lane.b32.xlu0 %v837, 40
      %v4348 = vpop.permute.xlu0 %4347
      %4349 = vrot.lane.b32.xlu0 %v838, 40
      %v4350 = vpop.permute.xlu0 %4349
      %4351 = vrot.lane.b32.xlu0 %v839, 40
      %v4352 = vpop.permute.xlu0 %4351
      %4353 = vrot.lane.b32.xlu0 %v840, 40
      %v4354 = vpop.permute.xlu0 %4353
      %4355 = vrot.lane.b32.xlu0 %v841, 40
      %v4356 = vpop.permute.xlu0 %4355
      %4357 = vrot.lane.b32.xlu0 %v842, 40
      %v4358 = vpop.permute.xlu0 %4357
      %4359 = vrot.lane.b32.xlu0 %v843, 40
      %v4360 = vpop.permute.xlu0 %4359
      %4361 = vrot.lane.b32.xlu0 %v844, 40
      %v4362 = vpop.permute.xlu0 %4361
      %4363 = vrot.lane.b32.xlu0 %v845, 40
      %v4364 = vpop.permute.xlu0 %4363
      %4365 = vrot.lane.b32.xlu0 %v846, 40
      %v4366 = vpop.permute.xlu0 %4365
      %4367 = vrot.lane.b32.xlu0 %v847, 40
      %v4368 = vpop.permute.xlu0 %4367
      %4369 = vrot.lane.b32.xlu0 %v848, 40
      %v4370 = vpop.permute.xlu0 %4369
      %4371 = vrot.lane.b32.xlu0 %v849, 40
      %v4372 = vpop.permute.xlu0 %4371
      %4373 = vrot.lane.b32.xlu0 %v850, 40
      %v4374 = vpop.permute.xlu0 %4373
      %4375 = vrot.lane.b32.xlu0 %v851, 40
      %v4376 = vpop.permute.xlu0 %4375
      %4505 = vrot.lane.b32.xlu0 %v852, 44
      %v4506 = vpop.permute.xlu0 %4505
      %4507 = vrot.lane.b32.xlu0 %v853, 44
      %v4508 = vpop.permute.xlu0 %4507
      %4509 = vrot.lane.b32.xlu0 %v854, 44
      %v4510 = vpop.permute.xlu0 %4509
      %4511 = vrot.lane.b32.xlu0 %v855, 44
      %v4512 = vpop.permute.xlu0 %4511
      %4513 = vrot.lane.b32.xlu0 %v856, 44
      %v4514 = vpop.permute.xlu0 %4513
      %4515 = vrot.lane.b32.xlu0 %v857, 44
      %v4516 = vpop.permute.xlu0 %4515
      %4517 = vrot.lane.b32.xlu0 %v858, 44
      %v4518 = vpop.permute.xlu0 %4517
      %4519 = vrot.lane.b32.xlu0 %v859, 44
      %v4520 = vpop.permute.xlu0 %4519
      %4521 = vrot.lane.b32.xlu0 %v860, 44
      %v4522 = vpop.permute.xlu0 %4521
      %4523 = vrot.lane.b32.xlu0 %v861, 44
      %v4524 = vpop.permute.xlu0 %4523
      %4525 = vrot.lane.b32.xlu0 %v862, 44
      %v4526 = vpop.permute.xlu0 %4525
      %4527 = vrot.lane.b32.xlu0 %v863, 44
      %v4528 = vpop.permute.xlu0 %4527
      %4529 = vrot.lane.b32.xlu0 %v864, 44
      %v4530 = vpop.permute.xlu0 %4529
      %4531 = vrot.lane.b32.xlu0 %v865, 44
      %v4532 = vpop.permute.xlu0 %4531
      %4533 = vrot.lane.b32.xlu0 %v866, 44
      %v4534 = vpop.permute.xlu0 %4533
      %4535 = vrot.lane.b32.xlu0 %v867, 44
      %v4536 = vpop.permute.xlu0 %4535
      %4537 = vrot.lane.b32.xlu0 %v868, 44
      %v4538 = vpop.permute.xlu0 %4537
      %4539 = vrot.lane.b32.xlu0 %v869, 44
      %v4540 = vpop.permute.xlu0 %4539
      %4541 = vrot.lane.b32.xlu0 %v870, 44
      %v4542 = vpop.permute.xlu0 %4541
      %4543 = vrot.lane.b32.xlu0 %v871, 44
      %v4544 = vpop.permute.xlu0 %4543
      %4545 = vrot.lane.b32.xlu0 %v872, 44
      %v4546 = vpop.permute.xlu0 %4545
      %4547 = vrot.lane.b32.xlu0 %v873, 44
      %v4548 = vpop.permute.xlu0 %4547
      %4549 = vrot.lane.b32.xlu0 %v874, 44
      %v4550 = vpop.permute.xlu0 %4549
      %4551 = vrot.lane.b32.xlu0 %v875, 44
      %v4552 = vpop.permute.xlu0 %4551
      %4553 = vrot.lane.b32.xlu0 %v876, 44
      %v4554 = vpop.permute.xlu0 %4553
      %4555 = vrot.lane.b32.xlu0 %v877, 44
      %v4556 = vpop.permute.xlu0 %4555
      %4557 = vrot.lane.b32.xlu0 %v878, 44
      %v4558 = vpop.permute.xlu0 %4557
      %4559 = vrot.lane.b32.xlu0 %v879, 44
      %v4560 = vpop.permute.xlu0 %4559
      %4561 = vrot.lane.b32.xlu0 %v880, 44
      %v4562 = vpop.permute.xlu0 %4561
      %4563 = vrot.lane.b32.xlu0 %v881, 44
      %v4564 = vpop.permute.xlu0 %4563
      %4565 = vrot.lane.b32.xlu0 %v882, 44
      %v4566 = vpop.permute.xlu0 %4565
      %4567 = vrot.lane.b32.xlu0 %v883, 44
      %v4568 = vpop.permute.xlu0 %4567
      %4569 = vrot.lane.b32.xlu0 %v884, 44
      %v4570 = vpop.permute.xlu0 %4569
      %4571 = vrot.lane.b32.xlu0 %v885, 44
      %v4572 = vpop.permute.xlu0 %4571
      %4573 = vrot.lane.b32.xlu0 %v886, 44
      %v4574 = vpop.permute.xlu0 %4573
      %4575 = vrot.lane.b32.xlu0 %v887, 44
      %v4576 = vpop.permute.xlu0 %4575
      %4577 = vrot.lane.b32.xlu0 %v888, 44
      %v4578 = vpop.permute.xlu0 %4577
      %4579 = vrot.lane.b32.xlu0 %v889, 44
      %v4580 = vpop.permute.xlu0 %4579
      %4581 = vrot.lane.b32.xlu0 %v890, 44
      %v4582 = vpop.permute.xlu0 %4581
      %4583 = vrot.lane.b32.xlu0 %v891, 44
      %v4584 = vpop.permute.xlu0 %4583
      %4585 = vrot.lane.b32.xlu0 %v892, 44
      %v4586 = vpop.permute.xlu0 %4585
      %4587 = vrot.lane.b32.xlu0 %v893, 44
      %v4588 = vpop.permute.xlu0 %4587
      %4589 = vrot.lane.b32.xlu0 %v894, 44
      %v4590 = vpop.permute.xlu0 %4589
      %4591 = vrot.lane.b32.xlu0 %v895, 44
      %v4592 = vpop.permute.xlu0 %4591
      %4593 = vrot.lane.b32.xlu0 %v896, 44
      %v4594 = vpop.permute.xlu0 %4593
      %4595 = vrot.lane.b32.xlu0 %v897, 44
      %v4596 = vpop.permute.xlu0 %4595
      %4597 = vrot.lane.b32.xlu0 %v898, 44
      %v4598 = vpop.permute.xlu0 %4597
      %4599 = vrot.lane.b32.xlu0 %v899, 44
      %v4600 = vpop.permute.xlu0 %4599
      %4601 = vrot.lane.b32.xlu0 %v900, 44
      %v4602 = vpop.permute.xlu0 %4601
      %4603 = vrot.lane.b32.xlu0 %v901, 44
      %v4604 = vpop.permute.xlu0 %4603
      %4605 = vrot.lane.b32.xlu0 %v902, 44
      %v4606 = vpop.permute.xlu0 %4605
      %4607 = vrot.lane.b32.xlu0 %v903, 44
      %v4608 = vpop.permute.xlu0 %4607
      %4609 = vrot.lane.b32.xlu0 %v904, 44
      %v4610 = vpop.permute.xlu0 %4609
      %4611 = vrot.lane.b32.xlu0 %v905, 44
      %v4612 = vpop.permute.xlu0 %4611
      %4613 = vrot.lane.b32.xlu0 %v906, 44
      %v4614 = vpop.permute.xlu0 %4613
      %4615 = vrot.lane.b32.xlu0 %v907, 44
      %v4616 = vpop.permute.xlu0 %4615
      %4617 = vrot.lane.b32.xlu0 %v908, 44
      %v4618 = vpop.permute.xlu0 %4617
      %4619 = vrot.lane.b32.xlu0 %v909, 44
      %v4620 = vpop.permute.xlu0 %4619
      %4621 = vrot.lane.b32.xlu0 %v910, 44
      %v4622 = vpop.permute.xlu0 %4621
      %4623 = vrot.lane.b32.xlu0 %v911, 44
      %v4624 = vpop.permute.xlu0 %4623
      %4625 = vrot.lane.b32.xlu0 %v912, 44
      %v4626 = vpop.permute.xlu0 %4625
      %4627 = vrot.lane.b32.xlu0 %v913, 44
      %v4628 = vpop.permute.xlu0 %4627
      %4629 = vrot.lane.b32.xlu0 %v914, 44
      %v4630 = vpop.permute.xlu0 %4629
      %4631 = vrot.lane.b32.xlu0 %v915, 44
      %v4632 = vpop.permute.xlu0 %4631
      %4761 = vrot.lane.b32.xlu0 %v917, 48
      %v4762 = vpop.permute.xlu0 %4761
      %4763 = vrot.lane.b32.xlu0 %v918, 48
      %v4764 = vpop.permute.xlu0 %4763
      %4765 = vrot.lane.b32.xlu0 %v919, 48
      %v4766 = vpop.permute.xlu0 %4765
      %4767 = vrot.lane.b32.xlu0 %v920, 48
      %v4768 = vpop.permute.xlu0 %4767
      %4769 = vrot.lane.b32.xlu0 %v921, 48
      %v4770 = vpop.permute.xlu0 %4769
      %4771 = vrot.lane.b32.xlu0 %v922, 48
      %v4772 = vpop.permute.xlu0 %4771
      %4773 = vrot.lane.b32.xlu0 %v923, 48
      %v4774 = vpop.permute.xlu0 %4773
      %4775 = vrot.lane.b32.xlu0 %v924, 48
      %v4776 = vpop.permute.xlu0 %4775
      %4777 = vrot.lane.b32.xlu0 %v925, 48
      %v4778 = vpop.permute.xlu0 %4777
      %4779 = vrot.lane.b32.xlu0 %v926, 48
      %v4780 = vpop.permute.xlu0 %4779
      %4781 = vrot.lane.b32.xlu0 %v927, 48
      %v4782 = vpop.permute.xlu0 %4781
      %4783 = vrot.lane.b32.xlu0 %v928, 48
      %v4784 = vpop.permute.xlu0 %4783
      %4785 = vrot.lane.b32.xlu0 %v929, 48
      %v4786 = vpop.permute.xlu0 %4785
      %4787 = vrot.lane.b32.xlu0 %v930, 48
      %v4788 = vpop.permute.xlu0 %4787
      %4789 = vrot.lane.b32.xlu0 %v931, 48
      %v4790 = vpop.permute.xlu0 %4789
      %4791 = vrot.lane.b32.xlu0 %v932, 48
      %v4792 = vpop.permute.xlu0 %4791
      %4793 = vrot.lane.b32.xlu0 %v933, 48
      %v4794 = vpop.permute.xlu0 %4793
      %4795 = vrot.lane.b32.xlu0 %v934, 48
      %v4796 = vpop.permute.xlu0 %4795
      %4797 = vrot.lane.b32.xlu0 %v935, 48
      %v4798 = vpop.permute.xlu0 %4797
      %4799 = vrot.lane.b32.xlu0 %v936, 48
      %v4800 = vpop.permute.xlu0 %4799
      %4801 = vrot.lane.b32.xlu0 %v937, 48
      %v4802 = vpop.permute.xlu0 %4801
      %4803 = vrot.lane.b32.xlu0 %v938, 48
      %v4804 = vpop.permute.xlu0 %4803
      %4805 = vrot.lane.b32.xlu0 %v939, 48
      %v4806 = vpop.permute.xlu0 %4805
      %4807 = vrot.lane.b32.xlu0 %v940, 48
      %v4808 = vpop.permute.xlu0 %4807
      %4809 = vrot.lane.b32.xlu0 %v941, 48
      %v4810 = vpop.permute.xlu0 %4809
      %4811 = vrot.lane.b32.xlu0 %v942, 48
      %v4812 = vpop.permute.xlu0 %4811
      %4813 = vrot.lane.b32.xlu0 %v943, 48
      %v4814 = vpop.permute.xlu0 %4813
      %4815 = vrot.lane.b32.xlu0 %v944, 48
      %v4816 = vpop.permute.xlu0 %4815
      %4817 = vrot.lane.b32.xlu0 %v945, 48
      %v4818 = vpop.permute.xlu0 %4817
      %4819 = vrot.lane.b32.xlu0 %v946, 48
      %v4820 = vpop.permute.xlu0 %4819
      %4821 = vrot.lane.b32.xlu0 %v947, 48
      %v4822 = vpop.permute.xlu0 %4821
      %4823 = vrot.lane.b32.xlu0 %v948, 48
      %v4824 = vpop.permute.xlu0 %4823
      %4825 = vrot.lane.b32.xlu0 %v949, 48
      %v4826 = vpop.permute.xlu0 %4825
      %4827 = vrot.lane.b32.xlu0 %v950, 48
      %v4828 = vpop.permute.xlu0 %4827
      %4829 = vrot.lane.b32.xlu0 %v951, 48
      %v4830 = vpop.permute.xlu0 %4829
      %4831 = vrot.lane.b32.xlu0 %v952, 48
      %v4832 = vpop.permute.xlu0 %4831
      %4833 = vrot.lane.b32.xlu0 %v953, 48
      %v4834 = vpop.permute.xlu0 %4833
      %4835 = vrot.lane.b32.xlu0 %v954, 48
      %v4836 = vpop.permute.xlu0 %4835
      %4837 = vrot.lane.b32.xlu0 %v955, 48
      %v4838 = vpop.permute.xlu0 %4837
      %4839 = vrot.lane.b32.xlu0 %v956, 48
      %v4840 = vpop.permute.xlu0 %4839
      %4841 = vrot.lane.b32.xlu0 %v957, 48
      %v4842 = vpop.permute.xlu0 %4841
      %4843 = vrot.lane.b32.xlu0 %v958, 48
      %v4844 = vpop.permute.xlu0 %4843
      %4845 = vrot.lane.b32.xlu0 %v959, 48
      %v4846 = vpop.permute.xlu0 %4845
      %4847 = vrot.lane.b32.xlu0 %v960, 48
      %v4848 = vpop.permute.xlu0 %4847
      %4849 = vrot.lane.b32.xlu0 %v961, 48
      %v4850 = vpop.permute.xlu0 %4849
      %4851 = vrot.lane.b32.xlu0 %v962, 48
      %v4852 = vpop.permute.xlu0 %4851
      %4853 = vrot.lane.b32.xlu0 %v963, 48
      %v4854 = vpop.permute.xlu0 %4853
      %4855 = vrot.lane.b32.xlu0 %v964, 48
      %v4856 = vpop.permute.xlu0 %4855
      %4857 = vrot.lane.b32.xlu0 %v965, 48
      %v4858 = vpop.permute.xlu0 %4857
      %4859 = vrot.lane.b32.xlu0 %v966, 48
      %v4860 = vpop.permute.xlu0 %4859
      %4861 = vrot.lane.b32.xlu0 %v967, 48
      %v4862 = vpop.permute.xlu0 %4861
      %4863 = vrot.lane.b32.xlu0 %v968, 48
      %v4864 = vpop.permute.xlu0 %4863
      %4865 = vrot.lane.b32.xlu0 %v969, 48
      %v4866 = vpop.permute.xlu0 %4865
      %4867 = vrot.lane.b32.xlu0 %v970, 48
      %v4868 = vpop.permute.xlu0 %4867
      %4869 = vrot.lane.b32.xlu0 %v971, 48
      %v4870 = vpop.permute.xlu0 %4869
      %4871 = vrot.lane.b32.xlu0 %v972, 48
      %v4872 = vpop.permute.xlu0 %4871
      %4873 = vrot.lane.b32.xlu0 %v973, 48
      %v4874 = vpop.permute.xlu0 %4873
      %4875 = vrot.lane.b32.xlu0 %v974, 48
      %v4876 = vpop.permute.xlu0 %4875
      %4877 = vrot.lane.b32.xlu0 %v975, 48
      %v4878 = vpop.permute.xlu0 %4877
      %4879 = vrot.lane.b32.xlu0 %v976, 48
      %v4880 = vpop.permute.xlu0 %4879
      %4881 = vrot.lane.b32.xlu0 %v977, 48
      %v4882 = vpop.permute.xlu0 %4881
      %4883 = vrot.lane.b32.xlu0 %v978, 48
      %v4884 = vpop.permute.xlu0 %4883
      %4885 = vrot.lane.b32.xlu0 %v979, 48
      %v4886 = vpop.permute.xlu0 %4885
      %4887 = vrot.lane.b32.xlu0 %v980, 48
      %v4888 = vpop.permute.xlu0 %4887
      %5017 = vrot.lane.b32.xlu0 %v981, 52
      %v5018 = vpop.permute.xlu0 %5017
      %5019 = vrot.lane.b32.xlu0 %v982, 52
      %v5020 = vpop.permute.xlu0 %5019
      %5021 = vrot.lane.b32.xlu0 %v983, 52
      %v5022 = vpop.permute.xlu0 %5021
      %5023 = vrot.lane.b32.xlu0 %v984, 52
      %v5024 = vpop.permute.xlu0 %5023
      %5025 = vrot.lane.b32.xlu0 %v985, 52
      %v5026 = vpop.permute.xlu0 %5025
      %5027 = vrot.lane.b32.xlu0 %v986, 52
      %v5028 = vpop.permute.xlu0 %5027
      %5029 = vrot.lane.b32.xlu0 %v987, 52
      %v5030 = vpop.permute.xlu0 %5029
      %5031 = vrot.lane.b32.xlu0 %v988, 52
      %v5032 = vpop.permute.xlu0 %5031
      %5033 = vrot.lane.b32.xlu0 %v989, 52
      %v5034 = vpop.permute.xlu0 %5033
      %5035 = vrot.lane.b32.xlu0 %v990, 52
      %v5036 = vpop.permute.xlu0 %5035
      %5037 = vrot.lane.b32.xlu0 %v991, 52
      %v5038 = vpop.permute.xlu0 %5037
      %5039 = vrot.lane.b32.xlu0 %v992, 52
      %v5040 = vpop.permute.xlu0 %5039
      %5041 = vrot.lane.b32.xlu0 %v993, 52
      %v5042 = vpop.permute.xlu0 %5041
      %5043 = vrot.lane.b32.xlu0 %v994, 52
      %v5044 = vpop.permute.xlu0 %5043
      %5045 = vrot.lane.b32.xlu0 %v995, 52
      %v5046 = vpop.permute.xlu0 %5045
      %5047 = vrot.lane.b32.xlu0 %v996, 52
      %v5048 = vpop.permute.xlu0 %5047
      %5049 = vrot.lane.b32.xlu0 %v997, 52
      %v5050 = vpop.permute.xlu0 %5049
      %5051 = vrot.lane.b32.xlu0 %v998, 52
      %v5052 = vpop.permute.xlu0 %5051
      %5053 = vrot.lane.b32.xlu0 %v999, 52
      %v5054 = vpop.permute.xlu0 %5053
      %5055 = vrot.lane.b32.xlu0 %v1000, 52
      %v5056 = vpop.permute.xlu0 %5055
      %5057 = vrot.lane.b32.xlu0 %v1001, 52
      %v5058 = vpop.permute.xlu0 %5057
      %5059 = vrot.lane.b32.xlu0 %v1002, 52
      %v5060 = vpop.permute.xlu0 %5059
      %5061 = vrot.lane.b32.xlu0 %v1003, 52
      %v5062 = vpop.permute.xlu0 %5061
      %5063 = vrot.lane.b32.xlu0 %v1004, 52
      %v5064 = vpop.permute.xlu0 %5063
      %5065 = vrot.lane.b32.xlu0 %v1005, 52
      %v5066 = vpop.permute.xlu0 %5065
      %5067 = vrot.lane.b32.xlu0 %v1006, 52
      %v5068 = vpop.permute.xlu0 %5067
      %5069 = vrot.lane.b32.xlu0 %v1007, 52
      %v5070 = vpop.permute.xlu0 %5069
      %5071 = vrot.lane.b32.xlu0 %v1008, 52
      %v5072 = vpop.permute.xlu0 %5071
      %5073 = vrot.lane.b32.xlu0 %v1009, 52
      %v5074 = vpop.permute.xlu0 %5073
      %5075 = vrot.lane.b32.xlu0 %v1010, 52
      %v5076 = vpop.permute.xlu0 %5075
      %5077 = vrot.lane.b32.xlu0 %v1011, 52
      %v5078 = vpop.permute.xlu0 %5077
      %5079 = vrot.lane.b32.xlu0 %v1012, 52
      %v5080 = vpop.permute.xlu0 %5079
      %5081 = vrot.lane.b32.xlu0 %v1013, 52
      %v5082 = vpop.permute.xlu0 %5081
      %5083 = vrot.lane.b32.xlu0 %v1014, 52
      %v5084 = vpop.permute.xlu0 %5083
      %5085 = vrot.lane.b32.xlu0 %v1015, 52
      %v5086 = vpop.permute.xlu0 %5085
      %5087 = vrot.lane.b32.xlu0 %v1016, 52
      %v5088 = vpop.permute.xlu0 %5087
      %5089 = vrot.lane.b32.xlu0 %v1017, 52
      %v5090 = vpop.permute.xlu0 %5089
      %5091 = vrot.lane.b32.xlu0 %v1018, 52
      %v5092 = vpop.permute.xlu0 %5091
      %5093 = vrot.lane.b32.xlu0 %v1019, 52
      %v5094 = vpop.permute.xlu0 %5093
      %5095 = vrot.lane.b32.xlu0 %v1020, 52
      %v5096 = vpop.permute.xlu0 %5095
      %5097 = vrot.lane.b32.xlu0 %v1021, 52
      %v5098 = vpop.permute.xlu0 %5097
      %5099 = vrot.lane.b32.xlu0 %v1022, 52
      %v5100 = vpop.permute.xlu0 %5099
      %5101 = vrot.lane.b32.xlu0 %v1023, 52
      %v5102 = vpop.permute.xlu0 %5101
      %5103 = vrot.lane.b32.xlu0 %v1024, 52
      %v5104 = vpop.permute.xlu0 %5103
      %5105 = vrot.lane.b32.xlu0 %v1025, 52
      %v5106 = vpop.permute.xlu0 %5105
      %5107 = vrot.lane.b32.xlu0 %v1026, 52
      %v5108 = vpop.permute.xlu0 %5107
      %5109 = vrot.lane.b32.xlu0 %v1027, 52
      %v5110 = vpop.permute.xlu0 %5109
      %5111 = vrot.lane.b32.xlu0 %v1028, 52
      %v5112 = vpop.permute.xlu0 %5111
      %5113 = vrot.lane.b32.xlu0 %v1029, 52
      %v5114 = vpop.permute.xlu0 %5113
      %5115 = vrot.lane.b32.xlu0 %v1030, 52
      %v5116 = vpop.permute.xlu0 %5115
      %5117 = vrot.lane.b32.xlu0 %v1031, 52
      %v5118 = vpop.permute.xlu0 %5117
      %5119 = vrot.lane.b32.xlu0 %v1032, 52
      %v5120 = vpop.permute.xlu0 %5119
      %5121 = vrot.lane.b32.xlu0 %v1033, 52
      %v5122 = vpop.permute.xlu0 %5121
      %5123 = vrot.lane.b32.xlu0 %v1034, 52
      %v5124 = vpop.permute.xlu0 %5123
      %5125 = vrot.lane.b32.xlu0 %v1035, 52
      %v5126 = vpop.permute.xlu0 %5125
      %5127 = vrot.lane.b32.xlu0 %v1036, 52
      %v5128 = vpop.permute.xlu0 %5127
      %5129 = vrot.lane.b32.xlu0 %v1037, 52
      %v5130 = vpop.permute.xlu0 %5129
      %5131 = vrot.lane.b32.xlu0 %v1038, 52
      %v5132 = vpop.permute.xlu0 %5131
      %5133 = vrot.lane.b32.xlu0 %v1039, 52
      %v5134 = vpop.permute.xlu0 %5133
      %5135 = vrot.lane.b32.xlu0 %v1040, 52
      %v5136 = vpop.permute.xlu0 %5135
      %5137 = vrot.lane.b32.xlu0 %v1041, 52
      %v5138 = vpop.permute.xlu0 %5137
      %5139 = vrot.lane.b32.xlu0 %v1042, 52
      %v5140 = vpop.permute.xlu0 %5139
      %5141 = vrot.lane.b32.xlu0 %v1043, 52
      %v5142 = vpop.permute.xlu0 %5141
      %5143 = vrot.lane.b32.xlu0 %v1044, 52
      %v5144 = vpop.permute.xlu0 %5143
      %5273 = vrot.lane.b32.xlu0 %v1045, 56
      %v5274 = vpop.permute.xlu0 %5273
      %5275 = vrot.lane.b32.xlu0 %v1046, 56
      %v5276 = vpop.permute.xlu0 %5275
      %5277 = vrot.lane.b32.xlu0 %v1047, 56
      %v5278 = vpop.permute.xlu0 %5277
      %5279 = vrot.lane.b32.xlu0 %v1048, 56
      %v5280 = vpop.permute.xlu0 %5279
      %5281 = vrot.lane.b32.xlu0 %v1049, 56
      %v5282 = vpop.permute.xlu0 %5281
      %5283 = vrot.lane.b32.xlu0 %v1050, 56
      %v5284 = vpop.permute.xlu0 %5283
      %5285 = vrot.lane.b32.xlu0 %v1051, 56
      %v5286 = vpop.permute.xlu0 %5285
      %5287 = vrot.lane.b32.xlu0 %v1052, 56
      %v5288 = vpop.permute.xlu0 %5287
      %5289 = vrot.lane.b32.xlu0 %v1053, 56
      %v5290 = vpop.permute.xlu0 %5289
      %5291 = vrot.lane.b32.xlu0 %v1054, 56
      %v5292 = vpop.permute.xlu0 %5291
      %5293 = vrot.lane.b32.xlu0 %v1055, 56
      %v5294 = vpop.permute.xlu0 %5293
      %5295 = vrot.lane.b32.xlu0 %v1056, 56
      %v5296 = vpop.permute.xlu0 %5295
      %5297 = vrot.lane.b32.xlu0 %v1057, 56
      %v5298 = vpop.permute.xlu0 %5297
      %5299 = vrot.lane.b32.xlu0 %v1058, 56
      %v5300 = vpop.permute.xlu0 %5299
      %5301 = vrot.lane.b32.xlu0 %v1059, 56
      %v5302 = vpop.permute.xlu0 %5301
      %5303 = vrot.lane.b32.xlu0 %v1060, 56
      %v5304 = vpop.permute.xlu0 %5303
      %5305 = vrot.lane.b32.xlu0 %v1061, 56
      %v5306 = vpop.permute.xlu0 %5305
      %5307 = vrot.lane.b32.xlu0 %v1062, 56
      %v5308 = vpop.permute.xlu0 %5307
      %5309 = vrot.lane.b32.xlu0 %v1063, 56
      %v5310 = vpop.permute.xlu0 %5309
      %5311 = vrot.lane.b32.xlu0 %v1064, 56
      %v5312 = vpop.permute.xlu0 %5311
      %5313 = vrot.lane.b32.xlu0 %v1065, 56
      %v5314 = vpop.permute.xlu0 %5313
      %5315 = vrot.lane.b32.xlu0 %v1066, 56
      %v5316 = vpop.permute.xlu0 %5315
      %5317 = vrot.lane.b32.xlu0 %v1067, 56
      %v5318 = vpop.permute.xlu0 %5317
      %5319 = vrot.lane.b32.xlu0 %v1068, 56
      %v5320 = vpop.permute.xlu0 %5319
      %5321 = vrot.lane.b32.xlu0 %v1069, 56
      %v5322 = vpop.permute.xlu0 %5321
      %5323 = vrot.lane.b32.xlu0 %v1070, 56
      %v5324 = vpop.permute.xlu0 %5323
      %5325 = vrot.lane.b32.xlu0 %v1071, 56
      %v5326 = vpop.permute.xlu0 %5325
      %5327 = vrot.lane.b32.xlu0 %v1072, 56
      %v5328 = vpop.permute.xlu0 %5327
      %5329 = vrot.lane.b32.xlu0 %v1073, 56
      %v5330 = vpop.permute.xlu0 %5329
      %5331 = vrot.lane.b32.xlu0 %v1074, 56
      %v5332 = vpop.permute.xlu0 %5331
      %5333 = vrot.lane.b32.xlu0 %v1075, 56
      %v5334 = vpop.permute.xlu0 %5333
      %5335 = vrot.lane.b32.xlu0 %v1076, 56
      %v5336 = vpop.permute.xlu0 %5335
      %5337 = vrot.lane.b32.xlu0 %v1077, 56
      %v5338 = vpop.permute.xlu0 %5337
      %5339 = vrot.lane.b32.xlu0 %v1078, 56
      %v5340 = vpop.permute.xlu0 %5339
      %5341 = vrot.lane.b32.xlu0 %v1079, 56
      %v5342 = vpop.permute.xlu0 %5341
      %5343 = vrot.lane.b32.xlu0 %v1080, 56
      %v5344 = vpop.permute.xlu0 %5343
      %5345 = vrot.lane.b32.xlu0 %v1081, 56
      %v5346 = vpop.permute.xlu0 %5345
      %5347 = vrot.lane.b32.xlu0 %v1082, 56
      %v5348 = vpop.permute.xlu0 %5347
      %5349 = vrot.lane.b32.xlu0 %v1083, 56
      %v5350 = vpop.permute.xlu0 %5349
      %5351 = vrot.lane.b32.xlu0 %v1084, 56
      %v5352 = vpop.permute.xlu0 %5351
      %5353 = vrot.lane.b32.xlu0 %v1085, 56
      %v5354 = vpop.permute.xlu0 %5353
      %5355 = vrot.lane.b32.xlu0 %v1086, 56
      %v5356 = vpop.permute.xlu0 %5355
      %5357 = vrot.lane.b32.xlu0 %v1087, 56
      %v5358 = vpop.permute.xlu0 %5357
      %5359 = vrot.lane.b32.xlu0 %v1088, 56
      %v5360 = vpop.permute.xlu0 %5359
      %5361 = vrot.lane.b32.xlu0 %v1089, 56
      %v5362 = vpop.permute.xlu0 %5361
      %5363 = vrot.lane.b32.xlu0 %v1090, 56
      %v5364 = vpop.permute.xlu0 %5363
      %5365 = vrot.lane.b32.xlu0 %v1091, 56
      %v5366 = vpop.permute.xlu0 %5365
      %5367 = vrot.lane.b32.xlu0 %v1092, 56
      %v5368 = vpop.permute.xlu0 %5367
      %5369 = vrot.lane.b32.xlu0 %v1093, 56
      %v5370 = vpop.permute.xlu0 %5369
      %5371 = vrot.lane.b32.xlu0 %v1094, 56
      %v5372 = vpop.permute.xlu0 %5371
      %5373 = vrot.lane.b32.xlu0 %v1095, 56
      %v5374 = vpop.permute.xlu0 %5373
      %5375 = vrot.lane.b32.xlu0 %v1096, 56
      %v5376 = vpop.permute.xlu0 %5375
      %5377 = vrot.lane.b32.xlu0 %v1097, 56
      %v5378 = vpop.permute.xlu0 %5377
      %5379 = vrot.lane.b32.xlu0 %v1098, 56
      %v5380 = vpop.permute.xlu0 %5379
      %5381 = vrot.lane.b32.xlu0 %v1099, 56
      %v5382 = vpop.permute.xlu0 %5381
      %5383 = vrot.lane.b32.xlu0 %v1100, 56
      %v5384 = vpop.permute.xlu0 %5383
      %5385 = vrot.lane.b32.xlu0 %v1101, 56
      %v5386 = vpop.permute.xlu0 %5385
      %5387 = vrot.lane.b32.xlu0 %v1102, 56
      %v5388 = vpop.permute.xlu0 %5387
      %5389 = vrot.lane.b32.xlu0 %v1103, 56
      %v5390 = vpop.permute.xlu0 %5389
      %5391 = vrot.lane.b32.xlu0 %v1104, 56
      %v5392 = vpop.permute.xlu0 %5391
      %5393 = vrot.lane.b32.xlu0 %v1105, 56
      %v5394 = vpop.permute.xlu0 %5393
      %5395 = vrot.lane.b32.xlu0 %v1106, 56
      %v5396 = vpop.permute.xlu0 %5395
      %5397 = vrot.lane.b32.xlu0 %v1107, 56
      %v5398 = vpop.permute.xlu0 %5397
      %5399 = vrot.lane.b32.xlu0 %v1108, 56
      %v5400 = vpop.permute.xlu0 %5399
      %5529 = vrot.lane.b32.xlu0 %v1110, 60
      %v5530 = vpop.permute.xlu0 %5529
      %5531 = vrot.lane.b32.xlu0 %v1111, 60
      %v5532 = vpop.permute.xlu0 %5531
      %5533 = vrot.lane.b32.xlu0 %v1112, 60
      %v5534 = vpop.permute.xlu0 %5533
      %5535 = vrot.lane.b32.xlu0 %v1113, 60
      %v5536 = vpop.permute.xlu0 %5535
      %5537 = vrot.lane.b32.xlu0 %v1114, 60
      %v5538 = vpop.permute.xlu0 %5537
      %5539 = vrot.lane.b32.xlu0 %v1115, 60
      %v5540 = vpop.permute.xlu0 %5539
      %5541 = vrot.lane.b32.xlu0 %v1116, 60
      %v5542 = vpop.permute.xlu0 %5541
      %5543 = vrot.lane.b32.xlu0 %v1117, 60
      %v5544 = vpop.permute.xlu0 %5543
      %5545 = vrot.lane.b32.xlu0 %v1118, 60
      %v5546 = vpop.permute.xlu0 %5545
      %5547 = vrot.lane.b32.xlu0 %v1119, 60
      %v5548 = vpop.permute.xlu0 %5547
      %5549 = vrot.lane.b32.xlu0 %v1120, 60
      %v5550 = vpop.permute.xlu0 %5549
      %5551 = vrot.lane.b32.xlu0 %v1121, 60
      %v5552 = vpop.permute.xlu0 %5551
      %5553 = vrot.lane.b32.xlu0 %v1122, 60
      %v5554 = vpop.permute.xlu0 %5553
      %5555 = vrot.lane.b32.xlu0 %v1123, 60
      %v5556 = vpop.permute.xlu0 %5555
      %5557 = vrot.lane.b32.xlu0 %v1124, 60
      %v5558 = vpop.permute.xlu0 %5557
      %5559 = vrot.lane.b32.xlu0 %v1125, 60
      %v5560 = vpop.permute.xlu0 %5559
      %5561 = vrot.lane.b32.xlu0 %v1126, 60
      %v5562 = vpop.permute.xlu0 %5561
      %5563 = vrot.lane.b32.xlu0 %v1127, 60
      %v5564 = vpop.permute.xlu0 %5563
      %5565 = vrot.lane.b32.xlu0 %v1128, 60
      %v5566 = vpop.permute.xlu0 %5565
      %5567 = vrot.lane.b32.xlu0 %v1129, 60
      %v5568 = vpop.permute.xlu0 %5567
      %5569 = vrot.lane.b32.xlu0 %v1130, 60
      %v5570 = vpop.permute.xlu0 %5569
      %5571 = vrot.lane.b32.xlu0 %v1131, 60
      %v5572 = vpop.permute.xlu0 %5571
      %5573 = vrot.lane.b32.xlu0 %v1132, 60
      %v5574 = vpop.permute.xlu0 %5573
      %5575 = vrot.lane.b32.xlu0 %v1133, 60
      %v5576 = vpop.permute.xlu0 %5575
      %5577 = vrot.lane.b32.xlu0 %v1134, 60
      %v5578 = vpop.permute.xlu0 %5577
      %5579 = vrot.lane.b32.xlu0 %v1135, 60
      %v5580 = vpop.permute.xlu0 %5579
      %5581 = vrot.lane.b32.xlu0 %v1136, 60
      %v5582 = vpop.permute.xlu0 %5581
      %5583 = vrot.lane.b32.xlu0 %v1137, 60
      %v5584 = vpop.permute.xlu0 %5583
      %5585 = vrot.lane.b32.xlu0 %v1138, 60
      %v5586 = vpop.permute.xlu0 %5585
      %5587 = vrot.lane.b32.xlu0 %v1139, 60
      %v5588 = vpop.permute.xlu0 %5587
      %5589 = vrot.lane.b32.xlu0 %v1140, 60
      %v5590 = vpop.permute.xlu0 %5589
      %5591 = vrot.lane.b32.xlu0 %v1141, 60
      %v5592 = vpop.permute.xlu0 %5591
      %5593 = vrot.lane.b32.xlu0 %v1142, 60
      %v5594 = vpop.permute.xlu0 %5593
      %5595 = vrot.lane.b32.xlu0 %v1143, 60
      %v5596 = vpop.permute.xlu0 %5595
      %5597 = vrot.lane.b32.xlu0 %v1144, 60
      %v5598 = vpop.permute.xlu0 %5597
      %5599 = vrot.lane.b32.xlu0 %v1145, 60
      %v5600 = vpop.permute.xlu0 %5599
      %5601 = vrot.lane.b32.xlu0 %v1146, 60
      %v5602 = vpop.permute.xlu0 %5601
      %5603 = vrot.lane.b32.xlu0 %v1147, 60
      %v5604 = vpop.permute.xlu0 %5603
      %5605 = vrot.lane.b32.xlu0 %v1148, 60
      %v5606 = vpop.permute.xlu0 %5605
      %5607 = vrot.lane.b32.xlu0 %v1149, 60
      %v5608 = vpop.permute.xlu0 %5607
      %5609 = vrot.lane.b32.xlu0 %v1150, 60
      %v5610 = vpop.permute.xlu0 %5609
      %5611 = vrot.lane.b32.xlu0 %v1151, 60
      %v5612 = vpop.permute.xlu0 %5611
      %5613 = vrot.lane.b32.xlu0 %v1152, 60
      %v5614 = vpop.permute.xlu0 %5613
      %5615 = vrot.lane.b32.xlu0 %v1153, 60
      %v5616 = vpop.permute.xlu0 %5615
      %5617 = vrot.lane.b32.xlu0 %v1154, 60
      %v5618 = vpop.permute.xlu0 %5617
      %5619 = vrot.lane.b32.xlu0 %v1155, 60
      %v5620 = vpop.permute.xlu0 %5619
      %5621 = vrot.lane.b32.xlu0 %v1156, 60
      %v5622 = vpop.permute.xlu0 %5621
      %5623 = vrot.lane.b32.xlu0 %v1157, 60
      %v5624 = vpop.permute.xlu0 %5623
      %5625 = vrot.lane.b32.xlu0 %v1158, 60
      %v5626 = vpop.permute.xlu0 %5625
      %5627 = vrot.lane.b32.xlu0 %v1159, 60
      %v5628 = vpop.permute.xlu0 %5627
      %5629 = vrot.lane.b32.xlu0 %v1160, 60
      %v5630 = vpop.permute.xlu0 %5629
      %5631 = vrot.lane.b32.xlu0 %v1161, 60
      %v5632 = vpop.permute.xlu0 %5631
      %5633 = vrot.lane.b32.xlu0 %v1162, 60
      %v5634 = vpop.permute.xlu0 %5633
      %5635 = vrot.lane.b32.xlu0 %v1163, 60
      %v5636 = vpop.permute.xlu0 %5635
      %5637 = vrot.lane.b32.xlu0 %v1164, 60
      %v5638 = vpop.permute.xlu0 %5637
      %5639 = vrot.lane.b32.xlu0 %v1165, 60
      %v5640 = vpop.permute.xlu0 %5639
      %5641 = vrot.lane.b32.xlu0 %v1166, 60
      %v5642 = vpop.permute.xlu0 %5641
      %5643 = vrot.lane.b32.xlu0 %v1167, 60
      %v5644 = vpop.permute.xlu0 %5643
      %5645 = vrot.lane.b32.xlu0 %v1168, 60
      %v5646 = vpop.permute.xlu0 %5645
      %5647 = vrot.lane.b32.xlu0 %v1169, 60
      %v5648 = vpop.permute.xlu0 %5647
      %5649 = vrot.lane.b32.xlu0 %v1170, 60
      %v5650 = vpop.permute.xlu0 %5649
      %5651 = vrot.lane.b32.xlu0 %v1171, 60
      %v5652 = vpop.permute.xlu0 %5651
      %5653 = vrot.lane.b32.xlu0 %v1172, 60
      %v5654 = vpop.permute.xlu0 %5653
      %5655 = vrot.lane.b32.xlu0 %v1173, 60
      %v5656 = vpop.permute.xlu0 %5655
      %vm5721 = vcmask 31744
      %v5722 = vsel %vm5721, %v145, %v1946
      %v5723 = vsel %vm5721, %v146, %v1948
      %v5724 = vsel %vm5721, %v147, %v1950
      %v5725 = vsel %vm5721, %v148, %v1952
      %v5726 = vsel %vm5721, %v149, %v1954
      %v5727 = vsel %vm5721, %v150, %v1956
      %v5728 = vsel %vm5721, %v151, %v1958
      %v5729 = vsel %vm5721, %v152, %v1960
      %v5730 = vsel %vm5721, %v153, %v1962
      %v5731 = vsel %vm5721, %v154, %v1964
      %v5732 = vsel %vm5721, %v155, %v1966
      %v5733 = vsel %vm5721, %v156, %v1968
      %v5734 = vsel %vm5721, %v157, %v1970
      %v5735 = vsel %vm5721, %v158, %v1972
      %v5736 = vsel %vm5721, %v159, %v1974
      %v5737 = vsel %vm5721, %v160, %v1976
      %v5738 = vsel %vm5721, %v161, %v1978
      %v5739 = vsel %vm5721, %v162, %v1980
      %v5740 = vsel %vm5721, %v163, %v1982
      %v5741 = vsel %vm5721, %v164, %v1984
      %v5742 = vsel %vm5721, %v165, %v1986
      %v5743 = vsel %vm5721, %v166, %v1988
      %v5744 = vsel %vm5721, %v167, %v1990
      %v5745 = vsel %vm5721, %v168, %v1992
      %v5746 = vsel %vm5721, %v169, %v1994
      %v5747 = vsel %vm5721, %v170, %v1996
      %v5748 = vsel %vm5721, %v171, %v1998
      %v5749 = vsel %vm5721, %v172, %v2000
      %v5750 = vsel %vm5721, %v173, %v2002
      %v5751 = vsel %vm5721, %v174, %v2004
      %v5752 = vsel %vm5721, %v175, %v2006
      %v5753 = vsel %vm5721, %v176, %v2008
      %v5754 = vsel %vm5721, %v177, %v2010
      %v5755 = vsel %vm5721, %v178, %v2012
      %v5756 = vsel %vm5721, %v179, %v2014
      %v5757 = vsel %vm5721, %v180, %v2016
      %v5758 = vsel %vm5721, %v181, %v2018
      %v5759 = vsel %vm5721, %v182, %v2020
      %v5760 = vsel %vm5721, %v183, %v2022
      %v5761 = vsel %vm5721, %v184, %v2024
      %v5762 = vsel %vm5721, %v185, %v2026
      %v5763 = vsel %vm5721, %v186, %v2028
      %v5764 = vsel %vm5721, %v187, %v2030
      %v5765 = vsel %vm5721, %v188, %v2032
      %v5766 = vsel %vm5721, %v189, %v2034
      %v5767 = vsel %vm5721, %v190, %v2036
      %v5768 = vsel %vm5721, %v191, %v2038
      %v5769 = vsel %vm5721, %v192, %v2040
      %v5770 = vsel %vm5721, %v193, %v2042
      %v5771 = vsel %vm5721, %v194, %v2044
      %v5772 = vsel %vm5721, %v195, %v2046
      %v5773 = vsel %vm5721, %v196, %v2048
      %v5774 = vsel %vm5721, %v197, %v2050
      %v5775 = vsel %vm5721, %v198, %v2052
      %v5776 = vsel %vm5721, %v199, %v2054
      %v5777 = vsel %vm5721, %v200, %v2056
      %v5778 = vsel %vm5721, %v201, %v2058
      %v5779 = vsel %vm5721, %v202, %v2060
      %v5780 = vsel %vm5721, %v203, %v2062
      %v5781 = vsel %vm5721, %v204, %v2064
      %v5782 = vsel %vm5721, %v205, %v2066
      %v5783 = vsel %vm5721, %v206, %v2068
      %v5784 = vsel %vm5721, %v207, %v2070
      %v5785 = vsel %vm5721, %v208, %v2072
      %vm5786 = vcmask 64512
      %v5787 = vsel %vm5786, %v5722, %v2202
      %v5788 = vsel %vm5786, %v5723, %v2204
      %v5789 = vsel %vm5786, %v5724, %v2206
      %v5790 = vsel %vm5786, %v5725, %v2208
      %v5791 = vsel %vm5786, %v5726, %v2210
      %v5792 = vsel %vm5786, %v5727, %v2212
      %v5793 = vsel %vm5786, %v5728, %v2214
      %v5794 = vsel %vm5786, %v5729, %v2216
      %v5795 = vsel %vm5786, %v5730, %v2218
      %v5796 = vsel %vm5786, %v5731, %v2220
      %v5797 = vsel %vm5786, %v5732, %v2222
      %v5798 = vsel %vm5786, %v5733, %v2224
      %v5799 = vsel %vm5786, %v5734, %v2226
      %v5800 = vsel %vm5786, %v5735, %v2228
      %v5801 = vsel %vm5786, %v5736, %v2230
      %v5802 = vsel %vm5786, %v5737, %v2232
      %v5803 = vsel %vm5786, %v5738, %v2234
      %v5804 = vsel %vm5786, %v5739, %v2236
      %v5805 = vsel %vm5786, %v5740, %v2238
      %v5806 = vsel %vm5786, %v5741, %v2240
      %v5807 = vsel %vm5786, %v5742, %v2242
      %v5808 = vsel %vm5786, %v5743, %v2244
      %v5809 = vsel %vm5786, %v5744, %v2246
      %v5810 = vsel %vm5786, %v5745, %v2248
      %v5811 = vsel %vm5786, %v5746, %v2250
      %v5812 = vsel %vm5786, %v5747, %v2252
      %v5813 = vsel %vm5786, %v5748, %v2254
      %v5814 = vsel %vm5786, %v5749, %v2256
      %v5815 = vsel %vm5786, %v5750, %v2258
      %v5816 = vsel %vm5786, %v5751, %v2260
      %v5817 = vsel %vm5786, %v5752, %v2262
      %v5818 = vsel %vm5786, %v5753, %v2264
      %v5819 = vsel %vm5786, %v5754, %v2266
      %v5820 = vsel %vm5786, %v5755, %v2268
      %v5821 = vsel %vm5786, %v5756, %v2270
      %v5822 = vsel %vm5786, %v5757, %v2272
      %v5823 = vsel %vm5786, %v5758, %v2274
      %v5824 = vsel %vm5786, %v5759, %v2276
      %v5825 = vsel %vm5786, %v5760, %v2278
      %v5826 = vsel %vm5786, %v5761, %v2280
      %v5827 = vsel %vm5786, %v5762, %v2282
      %v5828 = vsel %vm5786, %v5763, %v2284
      %v5829 = vsel %vm5786, %v5764, %v2286
      %v5830 = vsel %vm5786, %v5765, %v2288
      %v5831 = vsel %vm5786, %v5766, %v2290
      %v5832 = vsel %vm5786, %v5767, %v2292
      %v5833 = vsel %vm5786, %v5768, %v2294
      %v5834 = vsel %vm5786, %v5769, %v2296
      %v5835 = vsel %vm5786, %v5770, %v2298
      %v5836 = vsel %vm5786, %v5771, %v2300
      %v5837 = vsel %vm5786, %v5772, %v2302
      %v5838 = vsel %vm5786, %v5773, %v2304
      %v5839 = vsel %vm5786, %v5774, %v2306
      %v5840 = vsel %vm5786, %v5775, %v2308
      %v5841 = vsel %vm5786, %v5776, %v2310
      %v5842 = vsel %vm5786, %v5777, %v2312
      %v5843 = vsel %vm5786, %v5778, %v2314
      %v5844 = vsel %vm5786, %v5779, %v2316
      %v5845 = vsel %vm5786, %v5780, %v2318
      %v5846 = vsel %vm5786, %v5781, %v2320
      %v5847 = vsel %vm5786, %v5782, %v2322
      %v5848 = vsel %vm5786, %v5783, %v2324
      %v5849 = vsel %vm5786, %v5784, %v2326
      %v5850 = vsel %vm5786, %v5785, %v2328
      %vm5851 = vcmask 97280
      %v5852 = vsel %vm5851, %v5787, %v2458
      %v5853 = vsel %vm5851, %v5788, %v2460
      %v5854 = vsel %vm5851, %v5789, %v2462
      %v5855 = vsel %vm5851, %v5790, %v2464
      %v5856 = vsel %vm5851, %v5791, %v2466
      %v5857 = vsel %vm5851, %v5792, %v2468
      %v5858 = vsel %vm5851, %v5793, %v2470
      %v5859 = vsel %vm5851, %v5794, %v2472
      %v5860 = vsel %vm5851, %v5795, %v2474
      %v5861 = vsel %vm5851, %v5796, %v2476
      %v5862 = vsel %vm5851, %v5797, %v2478
      %v5863 = vsel %vm5851, %v5798, %v2480
      %v5864 = vsel %vm5851, %v5799, %v2482
      %v5865 = vsel %vm5851, %v5800, %v2484
      %v5866 = vsel %vm5851, %v5801, %v2486
      %v5867 = vsel %vm5851, %v5802, %v2488
      %v5868 = vsel %vm5851, %v5803, %v2490
      %v5869 = vsel %vm5851, %v5804, %v2492
      %v5870 = vsel %vm5851, %v5805, %v2494
      %v5871 = vsel %vm5851, %v5806, %v2496
      %v5872 = vsel %vm5851, %v5807, %v2498
      %v5873 = vsel %vm5851, %v5808, %v2500
      %v5874 = vsel %vm5851, %v5809, %v2502
      %v5875 = vsel %vm5851, %v5810, %v2504
      %v5876 = vsel %vm5851, %v5811, %v2506
      %v5877 = vsel %vm5851, %v5812, %v2508
      %v5878 = vsel %vm5851, %v5813, %v2510
      %v5879 = vsel %vm5851, %v5814, %v2512
      %v5880 = vsel %vm5851, %v5815, %v2514
      %v5881 = vsel %vm5851, %v5816, %v2516
      %v5882 = vsel %vm5851, %v5817, %v2518
      %v5883 = vsel %vm5851, %v5818, %v2520
      %v5884 = vsel %vm5851, %v5819, %v2522
      %v5885 = vsel %vm5851, %v5820, %v2524
      %v5886 = vsel %vm5851, %v5821, %v2526
      %v5887 = vsel %vm5851, %v5822, %v2528
      %v5888 = vsel %vm5851, %v5823, %v2530
      %v5889 = vsel %vm5851, %v5824, %v2532
      %v5890 = vsel %vm5851, %v5825, %v2534
      %v5891 = vsel %vm5851, %v5826, %v2536
      %v5892 = vsel %vm5851, %v5827, %v2538
      %v5893 = vsel %vm5851, %v5828, %v2540
      %v5894 = vsel %vm5851, %v5829, %v2542
      %v5895 = vsel %vm5851, %v5830, %v2544
      %v5896 = vsel %vm5851, %v5831, %v2546
      %v5897 = vsel %vm5851, %v5832, %v2548
      %v5898 = vsel %vm5851, %v5833, %v2550
      %v5899 = vsel %vm5851, %v5834, %v2552
      %v5900 = vsel %vm5851, %v5835, %v2554
      %v5901 = vsel %vm5851, %v5836, %v2556
      %v5902 = vsel %vm5851, %v5837, %v2558
      %v5903 = vsel %vm5851, %v5838, %v2560
      %v5904 = vsel %vm5851, %v5839, %v2562
      %v5905 = vsel %vm5851, %v5840, %v2564
      %v5906 = vsel %vm5851, %v5841, %v2566
      %v5907 = vsel %vm5851, %v5842, %v2568
      %v5908 = vsel %vm5851, %v5843, %v2570
      %v5909 = vsel %vm5851, %v5844, %v2572
      %v5910 = vsel %vm5851, %v5845, %v2574
      %v5911 = vsel %vm5851, %v5846, %v2576
      %v5912 = vsel %vm5851, %v5847, %v2578
      %v5913 = vsel %vm5851, %v5848, %v2580
      %v5914 = vsel %vm5851, %v5849, %v2582
      %v5915 = vsel %vm5851, %v5850, %v2584
      %vm5916 = vcmask 130048
      %v5917 = vsel %vm5916, %v5852, %v2714
      %v5918 = vsel %vm5916, %v5853, %v2716
      %v5919 = vsel %vm5916, %v5854, %v2718
      %v5920 = vsel %vm5916, %v5855, %v2720
      %v5921 = vsel %vm5916, %v5856, %v2722
      %v5922 = vsel %vm5916, %v5857, %v2724
      %v5923 = vsel %vm5916, %v5858, %v2726
      %v5924 = vsel %vm5916, %v5859, %v2728
      %v5925 = vsel %vm5916, %v5860, %v2730
      %v5926 = vsel %vm5916, %v5861, %v2732
      %v5927 = vsel %vm5916, %v5862, %v2734
      %v5928 = vsel %vm5916, %v5863, %v2736
      %v5929 = vsel %vm5916, %v5864, %v2738
      %v5930 = vsel %vm5916, %v5865, %v2740
      %v5931 = vsel %vm5916, %v5866, %v2742
      %v5932 = vsel %vm5916, %v5867, %v2744
      %v5933 = vsel %vm5916, %v5868, %v2746
      %v5934 = vsel %vm5916, %v5869, %v2748
      %v5935 = vsel %vm5916, %v5870, %v2750
      %v5936 = vsel %vm5916, %v5871, %v2752
      %v5937 = vsel %vm5916, %v5872, %v2754
      %v5938 = vsel %vm5916, %v5873, %v2756
      %v5939 = vsel %vm5916, %v5874, %v2758
      %v5940 = vsel %vm5916, %v5875, %v2760
      %v5941 = vsel %vm5916, %v5876, %v2762
      %v5942 = vsel %vm5916, %v5877, %v2764
      %v5943 = vsel %vm5916, %v5878, %v2766
      %v5944 = vsel %vm5916, %v5879, %v2768
      %v5945 = vsel %vm5916, %v5880, %v2770
      %v5946 = vsel %vm5916, %v5881, %v2772
      %v5947 = vsel %vm5916, %v5882, %v2774
      %v5948 = vsel %vm5916, %v5883, %v2776
      %v5949 = vsel %vm5916, %v5884, %v2778
      %v5950 = vsel %vm5916, %v5885, %v2780
      %v5951 = vsel %vm5916, %v5886, %v2782
      %v5952 = vsel %vm5916, %v5887, %v2784
      %v5953 = vsel %vm5916, %v5888, %v2786
      %v5954 = vsel %vm5916, %v5889, %v2788
      %v5955 = vsel %vm5916, %v5890, %v2790
      %v5956 = vsel %vm5916, %v5891, %v2792
      %v5957 = vsel %vm5916, %v5892, %v2794
      %v5958 = vsel %vm5916, %v5893, %v2796
      %v5959 = vsel %vm5916, %v5894, %v2798
      %v5960 = vsel %vm5916, %v5895, %v2800
      %v5961 = vsel %vm5916, %v5896, %v2802
      %v5962 = vsel %vm5916, %v5897, %v2804
      %v5963 = vsel %vm5916, %v5898, %v2806
      %v5964 = vsel %vm5916, %v5899, %v2808
      %v5965 = vsel %vm5916, %v5900, %v2810
      %v5966 = vsel %vm5916, %v5901, %v2812
      %v5967 = vsel %vm5916, %v5902, %v2814
      %v5968 = vsel %vm5916, %v5903, %v2816
      %v5969 = vsel %vm5916, %v5904, %v2818
      %v5970 = vsel %vm5916, %v5905, %v2820
      %v5971 = vsel %vm5916, %v5906, %v2822
      %v5972 = vsel %vm5916, %v5907, %v2824
      %v5973 = vsel %vm5916, %v5908, %v2826
      %v5974 = vsel %vm5916, %v5909, %v2828
      %v5975 = vsel %vm5916, %v5910, %v2830
      %v5976 = vsel %vm5916, %v5911, %v2832
      %v5977 = vsel %vm5916, %v5912, %v2834
      %v5978 = vsel %vm5916, %v5913, %v2836
      %v5979 = vsel %vm5916, %v5914, %v2838
      %v5980 = vsel %vm5916, %v5915, %v2840
      %vm5981 = vcmask 162816
      %v5982 = vsel %vm5981, %v5917, %v2970
      %v5983 = vsel %vm5981, %v5918, %v2972
      %v5984 = vsel %vm5981, %v5919, %v2974
      %v5985 = vsel %vm5981, %v5920, %v2976
      %v5986 = vsel %vm5981, %v5921, %v2978
      %v5987 = vsel %vm5981, %v5922, %v2980
      %v5988 = vsel %vm5981, %v5923, %v2982
      %v5989 = vsel %vm5981, %v5924, %v2984
      %v5990 = vsel %vm5981, %v5925, %v2986
      %v5991 = vsel %vm5981, %v5926, %v2988
      %v5992 = vsel %vm5981, %v5927, %v2990
      %v5993 = vsel %vm5981, %v5928, %v2992
      %v5994 = vsel %vm5981, %v5929, %v2994
      %v5995 = vsel %vm5981, %v5930, %v2996
      %v5996 = vsel %vm5981, %v5931, %v2998
      %v5997 = vsel %vm5981, %v5932, %v3000
      %v5998 = vsel %vm5981, %v5933, %v3002
      %v5999 = vsel %vm5981, %v5934, %v3004
      %v6000 = vsel %vm5981, %v5935, %v3006
      %v6001 = vsel %vm5981, %v5936, %v3008
      %v6002 = vsel %vm5981, %v5937, %v3010
      %v6003 = vsel %vm5981, %v5938, %v3012
      %v6004 = vsel %vm5981, %v5939, %v3014
      %v6005 = vsel %vm5981, %v5940, %v3016
      %v6006 = vsel %vm5981, %v5941, %v3018
      %v6007 = vsel %vm5981, %v5942, %v3020
      %v6008 = vsel %vm5981, %v5943, %v3022
      %v6009 = vsel %vm5981, %v5944, %v3024
      %v6010 = vsel %vm5981, %v5945, %v3026
      %v6011 = vsel %vm5981, %v5946, %v3028
      %v6012 = vsel %vm5981, %v5947, %v3030
      %v6013 = vsel %vm5981, %v5948, %v3032
      %v6014 = vsel %vm5981, %v5949, %v3034
      %v6015 = vsel %vm5981, %v5950, %v3036
      %v6016 = vsel %vm5981, %v5951, %v3038
      %v6017 = vsel %vm5981, %v5952, %v3040
      %v6018 = vsel %vm5981, %v5953, %v3042
      %v6019 = vsel %vm5981, %v5954, %v3044
      %v6020 = vsel %vm5981, %v5955, %v3046
      %v6021 = vsel %vm5981, %v5956, %v3048
      %v6022 = vsel %vm5981, %v5957, %v3050
      %v6023 = vsel %vm5981, %v5958, %v3052
      %v6024 = vsel %vm5981, %v5959, %v3054
      %v6025 = vsel %vm5981, %v5960, %v3056
      %v6026 = vsel %vm5981, %v5961, %v3058
      %v6027 = vsel %vm5981, %v5962, %v3060
      %v6028 = vsel %vm5981, %v5963, %v3062
      %v6029 = vsel %vm5981, %v5964, %v3064
      %v6030 = vsel %vm5981, %v5965, %v3066
      %v6031 = vsel %vm5981, %v5966, %v3068
      %v6032 = vsel %vm5981, %v5967, %v3070
      %v6033 = vsel %vm5981, %v5968, %v3072
      %v6034 = vsel %vm5981, %v5969, %v3074
      %v6035 = vsel %vm5981, %v5970, %v3076
      %v6036 = vsel %vm5981, %v5971, %v3078
      %v6037 = vsel %vm5981, %v5972, %v3080
      %v6038 = vsel %vm5981, %v5973, %v3082
      %v6039 = vsel %vm5981, %v5974, %v3084
      %v6040 = vsel %vm5981, %v5975, %v3086
      %v6041 = vsel %vm5981, %v5976, %v3088
      %v6042 = vsel %vm5981, %v5977, %v3090
      %v6043 = vsel %vm5981, %v5978, %v3092
      %v6044 = vsel %vm5981, %v5979, %v3094
      %v6045 = vsel %vm5981, %v5980, %v3096
      %vm6046 = vcmask 195584
      %v6047 = vsel %vm6046, %v5982, %v3226
      %v6048 = vsel %vm6046, %v5983, %v3228
      %v6049 = vsel %vm6046, %v5984, %v3230
      %v6050 = vsel %vm6046, %v5985, %v3232
      %v6051 = vsel %vm6046, %v5986, %v3234
      %v6052 = vsel %vm6046, %v5987, %v3236
      %v6053 = vsel %vm6046, %v5988, %v3238
      %v6054 = vsel %vm6046, %v5989, %v3240
      %v6055 = vsel %vm6046, %v5990, %v3242
      %v6056 = vsel %vm6046, %v5991, %v3244
      %v6057 = vsel %vm6046, %v5992, %v3246
      %v6058 = vsel %vm6046, %v5993, %v3248
      %v6059 = vsel %vm6046, %v5994, %v3250
      %v6060 = vsel %vm6046, %v5995, %v3252
      %v6061 = vsel %vm6046, %v5996, %v3254
      %v6062 = vsel %vm6046, %v5997, %v3256
      %v6063 = vsel %vm6046, %v5998, %v3258
      %v6064 = vsel %vm6046, %v5999, %v3260
      %v6065 = vsel %vm6046, %v6000, %v3262
      %v6066 = vsel %vm6046, %v6001, %v3264
      %v6067 = vsel %vm6046, %v6002, %v3266
      %v6068 = vsel %vm6046, %v6003, %v3268
      %v6069 = vsel %vm6046, %v6004, %v3270
      %v6070 = vsel %vm6046, %v6005, %v3272
      %v6071 = vsel %vm6046, %v6006, %v3274
      %v6072 = vsel %vm6046, %v6007, %v3276
      %v6073 = vsel %vm6046, %v6008, %v3278
      %v6074 = vsel %vm6046, %v6009, %v3280
      %v6075 = vsel %vm6046, %v6010, %v3282
      %v6076 = vsel %vm6046, %v6011, %v3284
      %v6077 = vsel %vm6046, %v6012, %v3286
      %v6078 = vsel %vm6046, %v6013, %v3288
      %v6079 = vsel %vm6046, %v6014, %v3290
      %v6080 = vsel %vm6046, %v6015, %v3292
      %v6081 = vsel %vm6046, %v6016, %v3294
      %v6082 = vsel %vm6046, %v6017, %v3296
      %v6083 = vsel %vm6046, %v6018, %v3298
      %v6084 = vsel %vm6046, %v6019, %v3300
      %v6085 = vsel %vm6046, %v6020, %v3302
      %v6086 = vsel %vm6046, %v6021, %v3304
      %v6087 = vsel %vm6046, %v6022, %v3306
      %v6088 = vsel %vm6046, %v6023, %v3308
      %v6089 = vsel %vm6046, %v6024, %v3310
      %v6090 = vsel %vm6046, %v6025, %v3312
      %v6091 = vsel %vm6046, %v6026, %v3314
      %v6092 = vsel %vm6046, %v6027, %v3316
      %v6093 = vsel %vm6046, %v6028, %v3318
      %v6094 = vsel %vm6046, %v6029, %v3320
      %v6095 = vsel %vm6046, %v6030, %v3322
      %v6096 = vsel %vm6046, %v6031, %v3324
      %v6097 = vsel %vm6046, %v6032, %v3326
      %v6098 = vsel %vm6046, %v6033, %v3328
      %v6099 = vsel %vm6046, %v6034, %v3330
      %v6100 = vsel %vm6046, %v6035, %v3332
      %v6101 = vsel %vm6046, %v6036, %v3334
      %v6102 = vsel %vm6046, %v6037, %v3336
      %v6103 = vsel %vm6046, %v6038, %v3338
      %v6104 = vsel %vm6046, %v6039, %v3340
      %v6105 = vsel %vm6046, %v6040, %v3342
      %v6106 = vsel %vm6046, %v6041, %v3344
      %v6107 = vsel %vm6046, %v6042, %v3346
      %v6108 = vsel %vm6046, %v6043, %v3348
      %v6109 = vsel %vm6046, %v6044, %v3350
      %v6110 = vsel %vm6046, %v6045, %v3352
      %vm6111 = vcmask 228352
      %v6112 = vsel %vm6111, %v6047, %v3482
      %v6113 = vsel %vm6111, %v6048, %v3484
      %v6114 = vsel %vm6111, %v6049, %v3486
      %v6115 = vsel %vm6111, %v6050, %v3488
      %v6116 = vsel %vm6111, %v6051, %v3490
      %v6117 = vsel %vm6111, %v6052, %v3492
      %v6118 = vsel %vm6111, %v6053, %v3494
      %v6119 = vsel %vm6111, %v6054, %v3496
      %v6120 = vsel %vm6111, %v6055, %v3498
      %v6121 = vsel %vm6111, %v6056, %v3500
      %v6122 = vsel %vm6111, %v6057, %v3502
      %v6123 = vsel %vm6111, %v6058, %v3504
      %v6124 = vsel %vm6111, %v6059, %v3506
      %v6125 = vsel %vm6111, %v6060, %v3508
      %v6126 = vsel %vm6111, %v6061, %v3510
      %v6127 = vsel %vm6111, %v6062, %v3512
      %v6128 = vsel %vm6111, %v6063, %v3514
      %v6129 = vsel %vm6111, %v6064, %v3516
      %v6130 = vsel %vm6111, %v6065, %v3518
      %v6131 = vsel %vm6111, %v6066, %v3520
      %v6132 = vsel %vm6111, %v6067, %v3522
      %v6133 = vsel %vm6111, %v6068, %v3524
      %v6134 = vsel %vm6111, %v6069, %v3526
      %v6135 = vsel %vm6111, %v6070, %v3528
      %v6136 = vsel %vm6111, %v6071, %v3530
      %v6137 = vsel %vm6111, %v6072, %v3532
      %v6138 = vsel %vm6111, %v6073, %v3534
      %v6139 = vsel %vm6111, %v6074, %v3536
      %v6140 = vsel %vm6111, %v6075, %v3538
      %v6141 = vsel %vm6111, %v6076, %v3540
      %v6142 = vsel %vm6111, %v6077, %v3542
      %v6143 = vsel %vm6111, %v6078, %v3544
      %v6144 = vsel %vm6111, %v6079, %v3546
      %v6145 = vsel %vm6111, %v6080, %v3548
      %v6146 = vsel %vm6111, %v6081, %v3550
      %v6147 = vsel %vm6111, %v6082, %v3552
      %v6148 = vsel %vm6111, %v6083, %v3554
      %v6149 = vsel %vm6111, %v6084, %v3556
      %v6150 = vsel %vm6111, %v6085, %v3558
      %v6151 = vsel %vm6111, %v6086, %v3560
      %v6152 = vsel %vm6111, %v6087, %v3562
      %v6153 = vsel %vm6111, %v6088, %v3564
      %v6154 = vsel %vm6111, %v6089, %v3566
      %v6155 = vsel %vm6111, %v6090, %v3568
      %v6156 = vsel %vm6111, %v6091, %v3570
      %v6157 = vsel %vm6111, %v6092, %v3572
      %v6158 = vsel %vm6111, %v6093, %v3574
      %v6159 = vsel %vm6111, %v6094, %v3576
      %v6160 = vsel %vm6111, %v6095, %v3578
      %v6161 = vsel %vm6111, %v6096, %v3580
      %v6162 = vsel %vm6111, %v6097, %v3582
      %v6163 = vsel %vm6111, %v6098, %v3584
      %v6164 = vsel %vm6111, %v6099, %v3586
      %v6165 = vsel %vm6111, %v6100, %v3588
      %v6166 = vsel %vm6111, %v6101, %v3590
      %v6167 = vsel %vm6111, %v6102, %v3592
      %v6168 = vsel %vm6111, %v6103, %v3594
      %v6169 = vsel %vm6111, %v6104, %v3596
      %v6170 = vsel %vm6111, %v6105, %v3598
      %v6171 = vsel %vm6111, %v6106, %v3600
      %v6172 = vsel %vm6111, %v6107, %v3602
      %v6173 = vsel %vm6111, %v6108, %v3604
      %v6174 = vsel %vm6111, %v6109, %v3606
      %v6175 = vsel %vm6111, %v6110, %v3608
      %vm6176 = vcmask 261120
      %v6177 = vsel %vm6176, %v6112, %v3738
      %v6178 = vsel %vm6176, %v6113, %v3740
      %v6179 = vsel %vm6176, %v6114, %v3742
      %v6180 = vsel %vm6176, %v6115, %v3744
      %v6181 = vsel %vm6176, %v6116, %v3746
      %v6182 = vsel %vm6176, %v6117, %v3748
      %v6183 = vsel %vm6176, %v6118, %v3750
      %v6184 = vsel %vm6176, %v6119, %v3752
      %v6185 = vsel %vm6176, %v6120, %v3754
      %v6186 = vsel %vm6176, %v6121, %v3756
      %v6187 = vsel %vm6176, %v6122, %v3758
      %v6188 = vsel %vm6176, %v6123, %v3760
      %v6189 = vsel %vm6176, %v6124, %v3762
      %v6190 = vsel %vm6176, %v6125, %v3764
      %v6191 = vsel %vm6176, %v6126, %v3766
      %v6192 = vsel %vm6176, %v6127, %v3768
      %v6193 = vsel %vm6176, %v6128, %v3770
      %v6194 = vsel %vm6176, %v6129, %v3772
      %v6195 = vsel %vm6176, %v6130, %v3774
      %v6196 = vsel %vm6176, %v6131, %v3776
      %v6197 = vsel %vm6176, %v6132, %v3778
      %v6198 = vsel %vm6176, %v6133, %v3780
      %v6199 = vsel %vm6176, %v6134, %v3782
      %v6200 = vsel %vm6176, %v6135, %v3784
      %v6201 = vsel %vm6176, %v6136, %v3786
      %v6202 = vsel %vm6176, %v6137, %v3788
      %v6203 = vsel %vm6176, %v6138, %v3790
      %v6204 = vsel %vm6176, %v6139, %v3792
      %v6205 = vsel %vm6176, %v6140, %v3794
      %v6206 = vsel %vm6176, %v6141, %v3796
      %v6207 = vsel %vm6176, %v6142, %v3798
      %v6208 = vsel %vm6176, %v6143, %v3800
      %v6209 = vsel %vm6176, %v6144, %v3802
      %v6210 = vsel %vm6176, %v6145, %v3804
      %v6211 = vsel %vm6176, %v6146, %v3806
      %v6212 = vsel %vm6176, %v6147, %v3808
      %v6213 = vsel %vm6176, %v6148, %v3810
      %v6214 = vsel %vm6176, %v6149, %v3812
      %v6215 = vsel %vm6176, %v6150, %v3814
      %v6216 = vsel %vm6176, %v6151, %v3816
      %v6217 = vsel %vm6176, %v6152, %v3818
      %v6218 = vsel %vm6176, %v6153, %v3820
      %v6219 = vsel %vm6176, %v6154, %v3822
      %v6220 = vsel %vm6176, %v6155, %v3824
      %v6221 = vsel %vm6176, %v6156, %v3826
      %v6222 = vsel %vm6176, %v6157, %v3828
      %v6223 = vsel %vm6176, %v6158, %v3830
      %v6224 = vsel %vm6176, %v6159, %v3832
      %v6225 = vsel %vm6176, %v6160, %v3834
      %v6226 = vsel %vm6176, %v6161, %v3836
      %v6227 = vsel %vm6176, %v6162, %v3838
      %v6228 = vsel %vm6176, %v6163, %v3840
      %v6229 = vsel %vm6176, %v6164, %v3842
      %v6230 = vsel %vm6176, %v6165, %v3844
      %v6231 = vsel %vm6176, %v6166, %v3846
      %v6232 = vsel %vm6176, %v6167, %v3848
      %v6233 = vsel %vm6176, %v6168, %v3850
      %v6234 = vsel %vm6176, %v6169, %v3852
      %v6235 = vsel %vm6176, %v6170, %v3854
      %v6236 = vsel %vm6176, %v6171, %v3856
      %v6237 = vsel %vm6176, %v6172, %v3858
      %v6238 = vsel %vm6176, %v6173, %v3860
      %v6239 = vsel %vm6176, %v6174, %v3862
      %v6240 = vsel %vm6176, %v6175, %v3864
      %vm6241 = vcmask 293888
      %v6242 = vsel %vm6241, %v6177, %v3994
      %v6243 = vsel %vm6241, %v6178, %v3996
      %v6244 = vsel %vm6241, %v6179, %v3998
      %v6245 = vsel %vm6241, %v6180, %v4000
      %v6246 = vsel %vm6241, %v6181, %v4002
      %v6247 = vsel %vm6241, %v6182, %v4004
      %v6248 = vsel %vm6241, %v6183, %v4006
      %v6249 = vsel %vm6241, %v6184, %v4008
      %v6250 = vsel %vm6241, %v6185, %v4010
      %v6251 = vsel %vm6241, %v6186, %v4012
      %v6252 = vsel %vm6241, %v6187, %v4014
      %v6253 = vsel %vm6241, %v6188, %v4016
      %v6254 = vsel %vm6241, %v6189, %v4018
      %v6255 = vsel %vm6241, %v6190, %v4020
      %v6256 = vsel %vm6241, %v6191, %v4022
      %v6257 = vsel %vm6241, %v6192, %v4024
      %v6258 = vsel %vm6241, %v6193, %v4026
      %v6259 = vsel %vm6241, %v6194, %v4028
      %v6260 = vsel %vm6241, %v6195, %v4030
      %v6261 = vsel %vm6241, %v6196, %v4032
      %v6262 = vsel %vm6241, %v6197, %v4034
      %v6263 = vsel %vm6241, %v6198, %v4036
      %v6264 = vsel %vm6241, %v6199, %v4038
      %v6265 = vsel %vm6241, %v6200, %v4040
      %v6266 = vsel %vm6241, %v6201, %v4042
      %v6267 = vsel %vm6241, %v6202, %v4044
      %v6268 = vsel %vm6241, %v6203, %v4046
      %v6269 = vsel %vm6241, %v6204, %v4048
      %v6270 = vsel %vm6241, %v6205, %v4050
      %v6271 = vsel %vm6241, %v6206, %v4052
      %v6272 = vsel %vm6241, %v6207, %v4054
      %v6273 = vsel %vm6241, %v6208, %v4056
      %v6274 = vsel %vm6241, %v6209, %v4058
      %v6275 = vsel %vm6241, %v6210, %v4060
      %v6276 = vsel %vm6241, %v6211, %v4062
      %v6277 = vsel %vm6241, %v6212, %v4064
      %v6278 = vsel %vm6241, %v6213, %v4066
      %v6279 = vsel %vm6241, %v6214, %v4068
      %v6280 = vsel %vm6241, %v6215, %v4070
      %v6281 = vsel %vm6241, %v6216, %v4072
      %v6282 = vsel %vm6241, %v6217, %v4074
      %v6283 = vsel %vm6241, %v6218, %v4076
      %v6284 = vsel %vm6241, %v6219, %v4078
      %v6285 = vsel %vm6241, %v6220, %v4080
      %v6286 = vsel %vm6241, %v6221, %v4082
      %v6287 = vsel %vm6241, %v6222, %v4084
      %v6288 = vsel %vm6241, %v6223, %v4086
      %v6289 = vsel %vm6241, %v6224, %v4088
      %v6290 = vsel %vm6241, %v6225, %v4090
      %v6291 = vsel %vm6241, %v6226, %v4092
      %v6292 = vsel %vm6241, %v6227, %v4094
      %v6293 = vsel %vm6241, %v6228, %v4096
      %v6294 = vsel %vm6241, %v6229, %v4098
      %v6295 = vsel %vm6241, %v6230, %v4100
      %v6296 = vsel %vm6241, %v6231, %v4102
      %v6297 = vsel %vm6241, %v6232, %v4104
      %v6298 = vsel %vm6241, %v6233, %v4106
      %v6299 = vsel %vm6241, %v6234, %v4108
      %v6300 = vsel %vm6241, %v6235, %v4110
      %v6301 = vsel %vm6241, %v6236, %v4112
      %v6302 = vsel %vm6241, %v6237, %v4114
      %v6303 = vsel %vm6241, %v6238, %v4116
      %v6304 = vsel %vm6241, %v6239, %v4118
      %v6305 = vsel %vm6241, %v6240, %v4120
      %vm6306 = vcmask 326656
      %v6307 = vsel %vm6306, %v6242, %v4250
      %v6308 = vsel %vm6306, %v6243, %v4252
      %v6309 = vsel %vm6306, %v6244, %v4254
      %v6310 = vsel %vm6306, %v6245, %v4256
      %v6311 = vsel %vm6306, %v6246, %v4258
      %v6312 = vsel %vm6306, %v6247, %v4260
      %v6313 = vsel %vm6306, %v6248, %v4262
      %v6314 = vsel %vm6306, %v6249, %v4264
      %v6315 = vsel %vm6306, %v6250, %v4266
      %v6316 = vsel %vm6306, %v6251, %v4268
      %v6317 = vsel %vm6306, %v6252, %v4270
      %v6318 = vsel %vm6306, %v6253, %v4272
      %v6319 = vsel %vm6306, %v6254, %v4274
      %v6320 = vsel %vm6306, %v6255, %v4276
      %v6321 = vsel %vm6306, %v6256, %v4278
      %v6322 = vsel %vm6306, %v6257, %v4280
      %v6323 = vsel %vm6306, %v6258, %v4282
      %v6324 = vsel %vm6306, %v6259, %v4284
      %v6325 = vsel %vm6306, %v6260, %v4286
      %v6326 = vsel %vm6306, %v6261, %v4288
      %v6327 = vsel %vm6306, %v6262, %v4290
      %v6328 = vsel %vm6306, %v6263, %v4292
      %v6329 = vsel %vm6306, %v6264, %v4294
      %v6330 = vsel %vm6306, %v6265, %v4296
      %v6331 = vsel %vm6306, %v6266, %v4298
      %v6332 = vsel %vm6306, %v6267, %v4300
      %v6333 = vsel %vm6306, %v6268, %v4302
      %v6334 = vsel %vm6306, %v6269, %v4304
      %v6335 = vsel %vm6306, %v6270, %v4306
      %v6336 = vsel %vm6306, %v6271, %v4308
      %v6337 = vsel %vm6306, %v6272, %v4310
      %v6338 = vsel %vm6306, %v6273, %v4312
      %v6339 = vsel %vm6306, %v6274, %v4314
      %v6340 = vsel %vm6306, %v6275, %v4316
      %v6341 = vsel %vm6306, %v6276, %v4318
      %v6342 = vsel %vm6306, %v6277, %v4320
      %v6343 = vsel %vm6306, %v6278, %v4322
      %v6344 = vsel %vm6306, %v6279, %v4324
      %v6345 = vsel %vm6306, %v6280, %v4326
      %v6346 = vsel %vm6306, %v6281, %v4328
      %v6347 = vsel %vm6306, %v6282, %v4330
      %v6348 = vsel %vm6306, %v6283, %v4332
      %v6349 = vsel %vm6306, %v6284, %v4334
      %v6350 = vsel %vm6306, %v6285, %v4336
      %v6351 = vsel %vm6306, %v6286, %v4338
      %v6352 = vsel %vm6306, %v6287, %v4340
      %v6353 = vsel %vm6306, %v6288, %v4342
      %v6354 = vsel %vm6306, %v6289, %v4344
      %v6355 = vsel %vm6306, %v6290, %v4346
      %v6356 = vsel %vm6306, %v6291, %v4348
      %v6357 = vsel %vm6306, %v6292, %v4350
      %v6358 = vsel %vm6306, %v6293, %v4352
      %v6359 = vsel %vm6306, %v6294, %v4354
      %v6360 = vsel %vm6306, %v6295, %v4356
      %v6361 = vsel %vm6306, %v6296, %v4358
      %v6362 = vsel %vm6306, %v6297, %v4360
      %v6363 = vsel %vm6306, %v6298, %v4362
      %v6364 = vsel %vm6306, %v6299, %v4364
      %v6365 = vsel %vm6306, %v6300, %v4366
      %v6366 = vsel %vm6306, %v6301, %v4368
      %v6367 = vsel %vm6306, %v6302, %v4370
      %v6368 = vsel %vm6306, %v6303, %v4372
      %v6369 = vsel %vm6306, %v6304, %v4374
      %v6370 = vsel %vm6306, %v6305, %v4376
      %vm6371 = vcmask 359424
      %v6372 = vsel %vm6371, %v6307, %v4506
      %v6373 = vsel %vm6371, %v6308, %v4508
      %v6374 = vsel %vm6371, %v6309, %v4510
      %v6375 = vsel %vm6371, %v6310, %v4512
      %v6376 = vsel %vm6371, %v6311, %v4514
      %v6377 = vsel %vm6371, %v6312, %v4516
      %v6378 = vsel %vm6371, %v6313, %v4518
      %v6379 = vsel %vm6371, %v6314, %v4520
      %v6380 = vsel %vm6371, %v6315, %v4522
      %v6381 = vsel %vm6371, %v6316, %v4524
      %v6382 = vsel %vm6371, %v6317, %v4526
      %v6383 = vsel %vm6371, %v6318, %v4528
      %v6384 = vsel %vm6371, %v6319, %v4530
      %v6385 = vsel %vm6371, %v6320, %v4532
      %v6386 = vsel %vm6371, %v6321, %v4534
      %v6387 = vsel %vm6371, %v6322, %v4536
      %v6388 = vsel %vm6371, %v6323, %v4538
      %v6389 = vsel %vm6371, %v6324, %v4540
      %v6390 = vsel %vm6371, %v6325, %v4542
      %v6391 = vsel %vm6371, %v6326, %v4544
      %v6392 = vsel %vm6371, %v6327, %v4546
      %v6393 = vsel %vm6371, %v6328, %v4548
      %v6394 = vsel %vm6371, %v6329, %v4550
      %v6395 = vsel %vm6371, %v6330, %v4552
      %v6396 = vsel %vm6371, %v6331, %v4554
      %v6397 = vsel %vm6371, %v6332, %v4556
      %v6398 = vsel %vm6371, %v6333, %v4558
      %v6399 = vsel %vm6371, %v6334, %v4560
      %v6400 = vsel %vm6371, %v6335, %v4562
      %v6401 = vsel %vm6371, %v6336, %v4564
      %v6402 = vsel %vm6371, %v6337, %v4566
      %v6403 = vsel %vm6371, %v6338, %v4568
      %v6404 = vsel %vm6371, %v6339, %v4570
      %v6405 = vsel %vm6371, %v6340, %v4572
      %v6406 = vsel %vm6371, %v6341, %v4574
      %v6407 = vsel %vm6371, %v6342, %v4576
      %v6408 = vsel %vm6371, %v6343, %v4578
      %v6409 = vsel %vm6371, %v6344, %v4580
      %v6410 = vsel %vm6371, %v6345, %v4582
      %v6411 = vsel %vm6371, %v6346, %v4584
      %v6412 = vsel %vm6371, %v6347, %v4586
      %v6413 = vsel %vm6371, %v6348, %v4588
      %v6414 = vsel %vm6371, %v6349, %v4590
      %v6415 = vsel %vm6371, %v6350, %v4592
      %v6416 = vsel %vm6371, %v6351, %v4594
      %v6417 = vsel %vm6371, %v6352, %v4596
      %v6418 = vsel %vm6371, %v6353, %v4598
      %v6419 = vsel %vm6371, %v6354, %v4600
      %v6420 = vsel %vm6371, %v6355, %v4602
      %v6421 = vsel %vm6371, %v6356, %v4604
      %v6422 = vsel %vm6371, %v6357, %v4606
      %v6423 = vsel %vm6371, %v6358, %v4608
      %v6424 = vsel %vm6371, %v6359, %v4610
      %v6425 = vsel %vm6371, %v6360, %v4612
      %v6426 = vsel %vm6371, %v6361, %v4614
      %v6427 = vsel %vm6371, %v6362, %v4616
      %v6428 = vsel %vm6371, %v6363, %v4618
      %v6429 = vsel %vm6371, %v6364, %v4620
      %v6430 = vsel %vm6371, %v6365, %v4622
      %v6431 = vsel %vm6371, %v6366, %v4624
      %v6432 = vsel %vm6371, %v6367, %v4626
      %v6433 = vsel %vm6371, %v6368, %v4628
      %v6434 = vsel %vm6371, %v6369, %v4630
      %v6435 = vsel %vm6371, %v6370, %v4632
      %vm6436 = vcmask 392192
      %v6437 = vsel %vm6436, %v6372, %v4762
      %v6438 = vsel %vm6436, %v6373, %v4764
      %v6439 = vsel %vm6436, %v6374, %v4766
      %v6440 = vsel %vm6436, %v6375, %v4768
      %v6441 = vsel %vm6436, %v6376, %v4770
      %v6442 = vsel %vm6436, %v6377, %v4772
      %v6443 = vsel %vm6436, %v6378, %v4774
      %v6444 = vsel %vm6436, %v6379, %v4776
      %v6445 = vsel %vm6436, %v6380, %v4778
      %v6446 = vsel %vm6436, %v6381, %v4780
      %v6447 = vsel %vm6436, %v6382, %v4782
      %v6448 = vsel %vm6436, %v6383, %v4784
      %v6449 = vsel %vm6436, %v6384, %v4786
      %v6450 = vsel %vm6436, %v6385, %v4788
      %v6451 = vsel %vm6436, %v6386, %v4790
      %v6452 = vsel %vm6436, %v6387, %v4792
      %v6453 = vsel %vm6436, %v6388, %v4794
      %v6454 = vsel %vm6436, %v6389, %v4796
      %v6455 = vsel %vm6436, %v6390, %v4798
      %v6456 = vsel %vm6436, %v6391, %v4800
      %v6457 = vsel %vm6436, %v6392, %v4802
      %v6458 = vsel %vm6436, %v6393, %v4804
      %v6459 = vsel %vm6436, %v6394, %v4806
      %v6460 = vsel %vm6436, %v6395, %v4808
      %v6461 = vsel %vm6436, %v6396, %v4810
      %v6462 = vsel %vm6436, %v6397, %v4812
      %v6463 = vsel %vm6436, %v6398, %v4814
      %v6464 = vsel %vm6436, %v6399, %v4816
      %v6465 = vsel %vm6436, %v6400, %v4818
      %v6466 = vsel %vm6436, %v6401, %v4820
      %v6467 = vsel %vm6436, %v6402, %v4822
      %v6468 = vsel %vm6436, %v6403, %v4824
      %v6469 = vsel %vm6436, %v6404, %v4826
      %v6470 = vsel %vm6436, %v6405, %v4828
      %v6471 = vsel %vm6436, %v6406, %v4830
      %v6472 = vsel %vm6436, %v6407, %v4832
      %v6473 = vsel %vm6436, %v6408, %v4834
      %v6474 = vsel %vm6436, %v6409, %v4836
      %v6475 = vsel %vm6436, %v6410, %v4838
      %v6476 = vsel %vm6436, %v6411, %v4840
      %v6477 = vsel %vm6436, %v6412, %v4842
      %v6478 = vsel %vm6436, %v6413, %v4844
      %v6479 = vsel %vm6436, %v6414, %v4846
      %v6480 = vsel %vm6436, %v6415, %v4848
      %v6481 = vsel %vm6436, %v6416, %v4850
      %v6482 = vsel %vm6436, %v6417, %v4852
      %v6483 = vsel %vm6436, %v6418, %v4854
      %v6484 = vsel %vm6436, %v6419, %v4856
      %v6485 = vsel %vm6436, %v6420, %v4858
      %v6486 = vsel %vm6436, %v6421, %v4860
      %v6487 = vsel %vm6436, %v6422, %v4862
      %v6488 = vsel %vm6436, %v6423, %v4864
      %v6489 = vsel %vm6436, %v6424, %v4866
      %v6490 = vsel %vm6436, %v6425, %v4868
      %v6491 = vsel %vm6436, %v6426, %v4870
      %v6492 = vsel %vm6436, %v6427, %v4872
      %v6493 = vsel %vm6436, %v6428, %v4874
      %v6494 = vsel %vm6436, %v6429, %v4876
      %v6495 = vsel %vm6436, %v6430, %v4878
      %v6496 = vsel %vm6436, %v6431, %v4880
      %v6497 = vsel %vm6436, %v6432, %v4882
      %v6498 = vsel %vm6436, %v6433, %v4884
      %v6499 = vsel %vm6436, %v6434, %v4886
      %v6500 = vsel %vm6436, %v6435, %v4888
      %vm6501 = vcmask 424960
      %v6502 = vsel %vm6501, %v6437, %v5018
      %v6503 = vsel %vm6501, %v6438, %v5020
      %v6504 = vsel %vm6501, %v6439, %v5022
      %v6505 = vsel %vm6501, %v6440, %v5024
      %v6506 = vsel %vm6501, %v6441, %v5026
      %v6507 = vsel %vm6501, %v6442, %v5028
      %v6508 = vsel %vm6501, %v6443, %v5030
      %v6509 = vsel %vm6501, %v6444, %v5032
      %v6510 = vsel %vm6501, %v6445, %v5034
      %v6511 = vsel %vm6501, %v6446, %v5036
      %v6512 = vsel %vm6501, %v6447, %v5038
      %v6513 = vsel %vm6501, %v6448, %v5040
      %v6514 = vsel %vm6501, %v6449, %v5042
      %v6515 = vsel %vm6501, %v6450, %v5044
      %v6516 = vsel %vm6501, %v6451, %v5046
      %v6517 = vsel %vm6501, %v6452, %v5048
      %v6518 = vsel %vm6501, %v6453, %v5050
      %v6519 = vsel %vm6501, %v6454, %v5052
      %v6520 = vsel %vm6501, %v6455, %v5054
      %v6521 = vsel %vm6501, %v6456, %v5056
      %v6522 = vsel %vm6501, %v6457, %v5058
      %v6523 = vsel %vm6501, %v6458, %v5060
      %v6524 = vsel %vm6501, %v6459, %v5062
      %v6525 = vsel %vm6501, %v6460, %v5064
      %v6526 = vsel %vm6501, %v6461, %v5066
      %v6527 = vsel %vm6501, %v6462, %v5068
      %v6528 = vsel %vm6501, %v6463, %v5070
      %v6529 = vsel %vm6501, %v6464, %v5072
      %v6530 = vsel %vm6501, %v6465, %v5074
      %v6531 = vsel %vm6501, %v6466, %v5076
      %v6532 = vsel %vm6501, %v6467, %v5078
      %v6533 = vsel %vm6501, %v6468, %v5080
      %v6534 = vsel %vm6501, %v6469, %v5082
      %v6535 = vsel %vm6501, %v6470, %v5084
      %v6536 = vsel %vm6501, %v6471, %v5086
      %v6537 = vsel %vm6501, %v6472, %v5088
      %v6538 = vsel %vm6501, %v6473, %v5090
      %v6539 = vsel %vm6501, %v6474, %v5092
      %v6540 = vsel %vm6501, %v6475, %v5094
      %v6541 = vsel %vm6501, %v6476, %v5096
      %v6542 = vsel %vm6501, %v6477, %v5098
      %v6543 = vsel %vm6501, %v6478, %v5100
      %v6544 = vsel %vm6501, %v6479, %v5102
      %v6545 = vsel %vm6501, %v6480, %v5104
      %v6546 = vsel %vm6501, %v6481, %v5106
      %v6547 = vsel %vm6501, %v6482, %v5108
      %v6548 = vsel %vm6501, %v6483, %v5110
      %v6549 = vsel %vm6501, %v6484, %v5112
      %v6550 = vsel %vm6501, %v6485, %v5114
      %v6551 = vsel %vm6501, %v6486, %v5116
      %v6552 = vsel %vm6501, %v6487, %v5118
      %v6553 = vsel %vm6501, %v6488, %v5120
      %v6554 = vsel %vm6501, %v6489, %v5122
      %v6555 = vsel %vm6501, %v6490, %v5124
      %v6556 = vsel %vm6501, %v6491, %v5126
      %v6557 = vsel %vm6501, %v6492, %v5128
      %v6558 = vsel %vm6501, %v6493, %v5130
      %v6559 = vsel %vm6501, %v6494, %v5132
      %v6560 = vsel %vm6501, %v6495, %v5134
      %v6561 = vsel %vm6501, %v6496, %v5136
      %v6562 = vsel %vm6501, %v6497, %v5138
      %v6563 = vsel %vm6501, %v6498, %v5140
      %v6564 = vsel %vm6501, %v6499, %v5142
      %v6565 = vsel %vm6501, %v6500, %v5144
      %vm6566 = vcmask 457728
      %v6567 = vsel %vm6566, %v6502, %v5274
      %v6568 = vsel %vm6566, %v6503, %v5276
      %v6569 = vsel %vm6566, %v6504, %v5278
      %v6570 = vsel %vm6566, %v6505, %v5280
      %v6571 = vsel %vm6566, %v6506, %v5282
      %v6572 = vsel %vm6566, %v6507, %v5284
      %v6573 = vsel %vm6566, %v6508, %v5286
      %v6574 = vsel %vm6566, %v6509, %v5288
      %v6575 = vsel %vm6566, %v6510, %v5290
      %v6576 = vsel %vm6566, %v6511, %v5292
      %v6577 = vsel %vm6566, %v6512, %v5294
      %v6578 = vsel %vm6566, %v6513, %v5296
      %v6579 = vsel %vm6566, %v6514, %v5298
      %v6580 = vsel %vm6566, %v6515, %v5300
      %v6581 = vsel %vm6566, %v6516, %v5302
      %v6582 = vsel %vm6566, %v6517, %v5304
      %v6583 = vsel %vm6566, %v6518, %v5306
      %v6584 = vsel %vm6566, %v6519, %v5308
      %v6585 = vsel %vm6566, %v6520, %v5310
      %v6586 = vsel %vm6566, %v6521, %v5312
      %v6587 = vsel %vm6566, %v6522, %v5314
      %v6588 = vsel %vm6566, %v6523, %v5316
      %v6589 = vsel %vm6566, %v6524, %v5318
      %v6590 = vsel %vm6566, %v6525, %v5320
      %v6591 = vsel %vm6566, %v6526, %v5322
      %v6592 = vsel %vm6566, %v6527, %v5324
      %v6593 = vsel %vm6566, %v6528, %v5326
      %v6594 = vsel %vm6566, %v6529, %v5328
      %v6595 = vsel %vm6566, %v6530, %v5330
      %v6596 = vsel %vm6566, %v6531, %v5332
      %v6597 = vsel %vm6566, %v6532, %v5334
      %v6598 = vsel %vm6566, %v6533, %v5336
      %v6599 = vsel %vm6566, %v6534, %v5338
      %v6600 = vsel %vm6566, %v6535, %v5340
      %v6601 = vsel %vm6566, %v6536, %v5342
      %v6602 = vsel %vm6566, %v6537, %v5344
      %v6603 = vsel %vm6566, %v6538, %v5346
      %v6604 = vsel %vm6566, %v6539, %v5348
      %v6605 = vsel %vm6566, %v6540, %v5350
      %v6606 = vsel %vm6566, %v6541, %v5352
      %v6607 = vsel %vm6566, %v6542, %v5354
      %v6608 = vsel %vm6566, %v6543, %v5356
      %v6609 = vsel %vm6566, %v6544, %v5358
      %v6610 = vsel %vm6566, %v6545, %v5360
      %v6611 = vsel %vm6566, %v6546, %v5362
      %v6612 = vsel %vm6566, %v6547, %v5364
      %v6613 = vsel %vm6566, %v6548, %v5366
      %v6614 = vsel %vm6566, %v6549, %v5368
      %v6615 = vsel %vm6566, %v6550, %v5370
      %v6616 = vsel %vm6566, %v6551, %v5372
      %v6617 = vsel %vm6566, %v6552, %v5374
      %v6618 = vsel %vm6566, %v6553, %v5376
      %v6619 = vsel %vm6566, %v6554, %v5378
      %v6620 = vsel %vm6566, %v6555, %v5380
      %v6621 = vsel %vm6566, %v6556, %v5382
      %v6622 = vsel %vm6566, %v6557, %v5384
      %v6623 = vsel %vm6566, %v6558, %v5386
      %v6624 = vsel %vm6566, %v6559, %v5388
      %v6625 = vsel %vm6566, %v6560, %v5390
      %v6626 = vsel %vm6566, %v6561, %v5392
      %v6627 = vsel %vm6566, %v6562, %v5394
      %v6628 = vsel %vm6566, %v6563, %v5396
      %v6629 = vsel %vm6566, %v6564, %v5398
      %v6630 = vsel %vm6566, %v6565, %v5400
      %vm6631 = vcmask 490496
      %v6632 = vsel %vm6631, %v6567, %v5530
      %v6633 = vsel %vm6631, %v6568, %v5532
      %v6634 = vsel %vm6631, %v6569, %v5534
      %v6635 = vsel %vm6631, %v6570, %v5536
      %v6636 = vsel %vm6631, %v6571, %v5538
      %v6637 = vsel %vm6631, %v6572, %v5540
      %v6638 = vsel %vm6631, %v6573, %v5542
      %v6639 = vsel %vm6631, %v6574, %v5544
      %v6640 = vsel %vm6631, %v6575, %v5546
      %v6641 = vsel %vm6631, %v6576, %v5548
      %v6642 = vsel %vm6631, %v6577, %v5550
      %v6643 = vsel %vm6631, %v6578, %v5552
      %v6644 = vsel %vm6631, %v6579, %v5554
      %v6645 = vsel %vm6631, %v6580, %v5556
      %v6646 = vsel %vm6631, %v6581, %v5558
      %v6647 = vsel %vm6631, %v6582, %v5560
      %v6648 = vsel %vm6631, %v6583, %v5562
      %v6649 = vsel %vm6631, %v6584, %v5564
      %v6650 = vsel %vm6631, %v6585, %v5566
      %v6651 = vsel %vm6631, %v6586, %v5568
      %v6652 = vsel %vm6631, %v6587, %v5570
      %v6653 = vsel %vm6631, %v6588, %v5572
      %v6654 = vsel %vm6631, %v6589, %v5574
      %v6655 = vsel %vm6631, %v6590, %v5576
      %v6656 = vsel %vm6631, %v6591, %v5578
      %v6657 = vsel %vm6631, %v6592, %v5580
      %v6658 = vsel %vm6631, %v6593, %v5582
      %v6659 = vsel %vm6631, %v6594, %v5584
      %v6660 = vsel %vm6631, %v6595, %v5586
      %v6661 = vsel %vm6631, %v6596, %v5588
      %v6662 = vsel %vm6631, %v6597, %v5590
      %v6663 = vsel %vm6631, %v6598, %v5592
      %v6664 = vsel %vm6631, %v6599, %v5594
      %v6665 = vsel %vm6631, %v6600, %v5596
      %v6666 = vsel %vm6631, %v6601, %v5598
      %v6667 = vsel %vm6631, %v6602, %v5600
      %v6668 = vsel %vm6631, %v6603, %v5602
      %v6669 = vsel %vm6631, %v6604, %v5604
      %v6670 = vsel %vm6631, %v6605, %v5606
      %v6671 = vsel %vm6631, %v6606, %v5608
      %v6672 = vsel %vm6631, %v6607, %v5610
      %v6673 = vsel %vm6631, %v6608, %v5612
      %v6674 = vsel %vm6631, %v6609, %v5614
      %v6675 = vsel %vm6631, %v6610, %v5616
      %v6676 = vsel %vm6631, %v6611, %v5618
      %v6677 = vsel %vm6631, %v6612, %v5620
      %v6678 = vsel %vm6631, %v6613, %v5622
      %v6679 = vsel %vm6631, %v6614, %v5624
      %v6680 = vsel %vm6631, %v6615, %v5626
      %v6681 = vsel %vm6631, %v6616, %v5628
      %v6682 = vsel %vm6631, %v6617, %v5630
      %v6683 = vsel %vm6631, %v6618, %v5632
      %v6684 = vsel %vm6631, %v6619, %v5634
      %v6685 = vsel %vm6631, %v6620, %v5636
      %v6686 = vsel %vm6631, %v6621, %v5638
      %v6687 = vsel %vm6631, %v6622, %v5640
      %v6688 = vsel %vm6631, %v6623, %v5642
      %v6689 = vsel %vm6631, %v6624, %v5644
      %v6690 = vsel %vm6631, %v6625, %v5646
      %v6691 = vsel %vm6631, %v6626, %v5648
      %v6692 = vsel %vm6631, %v6627, %v5650
      %v6693 = vsel %vm6631, %v6628, %v5652
      %v6694 = vsel %vm6631, %v6629, %v5654
      %v6695 = vsel %vm6631, %v6630, %v5656
      %6760 = vrot.lane.b32.xlu0 %v1238, 4
      %v6761 = vpop.permute.xlu0 %6760
      %6762 = vrot.lane.b32.xlu0 %v1239, 4
      %v6763 = vpop.permute.xlu0 %6762
      %6764 = vrot.lane.b32.xlu0 %v1240, 4
      %v6765 = vpop.permute.xlu0 %6764
      %6766 = vrot.lane.b32.xlu0 %v1241, 4
      %v6767 = vpop.permute.xlu0 %6766
      %6768 = vrot.lane.b32.xlu0 %v1242, 4
      %v6769 = vpop.permute.xlu0 %6768
      %6770 = vrot.lane.b32.xlu0 %v1243, 4
      %v6771 = vpop.permute.xlu0 %6770
      %6772 = vrot.lane.b32.xlu0 %v1244, 4
      %v6773 = vpop.permute.xlu0 %6772
      %6774 = vrot.lane.b32.xlu0 %v1245, 4
      %v6775 = vpop.permute.xlu0 %6774
      %6776 = vrot.lane.b32.xlu0 %v1246, 4
      %v6777 = vpop.permute.xlu0 %6776
      %6778 = vrot.lane.b32.xlu0 %v1247, 4
      %v6779 = vpop.permute.xlu0 %6778
      %6780 = vrot.lane.b32.xlu0 %v1248, 4
      %v6781 = vpop.permute.xlu0 %6780
      %6782 = vrot.lane.b32.xlu0 %v1249, 4
      %v6783 = vpop.permute.xlu0 %6782
      %6784 = vrot.lane.b32.xlu0 %v1250, 4
      %v6785 = vpop.permute.xlu0 %6784
      %6786 = vrot.lane.b32.xlu0 %v1251, 4
      %v6787 = vpop.permute.xlu0 %6786
      %6788 = vrot.lane.b32.xlu0 %v1252, 4
      %v6789 = vpop.permute.xlu0 %6788
      %6790 = vrot.lane.b32.xlu0 %v1253, 4
      %v6791 = vpop.permute.xlu0 %6790
      %6792 = vrot.lane.b32.xlu0 %v1254, 4
      %v6793 = vpop.permute.xlu0 %6792
      %6794 = vrot.lane.b32.xlu0 %v1255, 4
      %v6795 = vpop.permute.xlu0 %6794
      %6796 = vrot.lane.b32.xlu0 %v1256, 4
      %v6797 = vpop.permute.xlu0 %6796
      %6798 = vrot.lane.b32.xlu0 %v1257, 4
      %v6799 = vpop.permute.xlu0 %6798
      %6800 = vrot.lane.b32.xlu0 %v1258, 4
      %v6801 = vpop.permute.xlu0 %6800
      %6802 = vrot.lane.b32.xlu0 %v1259, 4
      %v6803 = vpop.permute.xlu0 %6802
      %6804 = vrot.lane.b32.xlu0 %v1260, 4
      %v6805 = vpop.permute.xlu0 %6804
      %6806 = vrot.lane.b32.xlu0 %v1261, 4
      %v6807 = vpop.permute.xlu0 %6806
      %6808 = vrot.lane.b32.xlu0 %v1262, 4
      %v6809 = vpop.permute.xlu0 %6808
      %6810 = vrot.lane.b32.xlu0 %v1263, 4
      %v6811 = vpop.permute.xlu0 %6810
      %6812 = vrot.lane.b32.xlu0 %v1264, 4
      %v6813 = vpop.permute.xlu0 %6812
      %6814 = vrot.lane.b32.xlu0 %v1265, 4
      %v6815 = vpop.permute.xlu0 %6814
      %6816 = vrot.lane.b32.xlu0 %v1266, 4
      %v6817 = vpop.permute.xlu0 %6816
      %6818 = vrot.lane.b32.xlu0 %v1267, 4
      %v6819 = vpop.permute.xlu0 %6818
      %6820 = vrot.lane.b32.xlu0 %v1268, 4
      %v6821 = vpop.permute.xlu0 %6820
      %6822 = vrot.lane.b32.xlu0 %v1269, 4
      %v6823 = vpop.permute.xlu0 %6822
      %6824 = vrot.lane.b32.xlu0 %v1270, 4
      %v6825 = vpop.permute.xlu0 %6824
      %6826 = vrot.lane.b32.xlu0 %v1271, 4
      %v6827 = vpop.permute.xlu0 %6826
      %6828 = vrot.lane.b32.xlu0 %v1272, 4
      %v6829 = vpop.permute.xlu0 %6828
      %6830 = vrot.lane.b32.xlu0 %v1273, 4
      %v6831 = vpop.permute.xlu0 %6830
      %6832 = vrot.lane.b32.xlu0 %v1274, 4
      %v6833 = vpop.permute.xlu0 %6832
      %6834 = vrot.lane.b32.xlu0 %v1275, 4
      %v6835 = vpop.permute.xlu0 %6834
      %6836 = vrot.lane.b32.xlu0 %v1276, 4
      %v6837 = vpop.permute.xlu0 %6836
      %6838 = vrot.lane.b32.xlu0 %v1277, 4
      %v6839 = vpop.permute.xlu0 %6838
      %6840 = vrot.lane.b32.xlu0 %v1278, 4
      %v6841 = vpop.permute.xlu0 %6840
      %6842 = vrot.lane.b32.xlu0 %v1279, 4
      %v6843 = vpop.permute.xlu0 %6842
      %6844 = vrot.lane.b32.xlu0 %v1280, 4
      %v6845 = vpop.permute.xlu0 %6844
      %6846 = vrot.lane.b32.xlu0 %v1281, 4
      %v6847 = vpop.permute.xlu0 %6846
      %6848 = vrot.lane.b32.xlu0 %v1282, 4
      %v6849 = vpop.permute.xlu0 %6848
      %6850 = vrot.lane.b32.xlu0 %v1283, 4
      %v6851 = vpop.permute.xlu0 %6850
      %6852 = vrot.lane.b32.xlu0 %v1284, 4
      %v6853 = vpop.permute.xlu0 %6852
      %6854 = vrot.lane.b32.xlu0 %v1285, 4
      %v6855 = vpop.permute.xlu0 %6854
      %6856 = vrot.lane.b32.xlu0 %v1286, 4
      %v6857 = vpop.permute.xlu0 %6856
      %6858 = vrot.lane.b32.xlu0 %v1287, 4
      %v6859 = vpop.permute.xlu0 %6858
      %6860 = vrot.lane.b32.xlu0 %v1288, 4
      %v6861 = vpop.permute.xlu0 %6860
      %6862 = vrot.lane.b32.xlu0 %v1289, 4
      %v6863 = vpop.permute.xlu0 %6862
      %6864 = vrot.lane.b32.xlu0 %v1290, 4
      %v6865 = vpop.permute.xlu0 %6864
      %6866 = vrot.lane.b32.xlu0 %v1291, 4
      %v6867 = vpop.permute.xlu0 %6866
      %6868 = vrot.lane.b32.xlu0 %v1292, 4
      %v6869 = vpop.permute.xlu0 %6868
      %6870 = vrot.lane.b32.xlu0 %v1293, 4
      %v6871 = vpop.permute.xlu0 %6870
      %6872 = vrot.lane.b32.xlu0 %v1294, 4
      %v6873 = vpop.permute.xlu0 %6872
      %6874 = vrot.lane.b32.xlu0 %v1295, 4
      %v6875 = vpop.permute.xlu0 %6874
      %6876 = vrot.lane.b32.xlu0 %v1296, 4
      %v6877 = vpop.permute.xlu0 %6876
      %6878 = vrot.lane.b32.xlu0 %v1297, 4
      %v6879 = vpop.permute.xlu0 %6878
      %6880 = vrot.lane.b32.xlu0 %v1298, 4
      %v6881 = vpop.permute.xlu0 %6880
      %6882 = vrot.lane.b32.xlu0 %v1299, 4
      %v6883 = vpop.permute.xlu0 %6882
      %6884 = vrot.lane.b32.xlu0 %v1300, 4
      %v6885 = vpop.permute.xlu0 %6884
      %6886 = vrot.lane.b32.xlu0 %v1301, 4
      %v6887 = vpop.permute.xlu0 %6886
      %7016 = vrot.lane.b32.xlu0 %v1303, 8
      %v7017 = vpop.permute.xlu0 %7016
      %7018 = vrot.lane.b32.xlu0 %v1304, 8
      %v7019 = vpop.permute.xlu0 %7018
      %7020 = vrot.lane.b32.xlu0 %v1305, 8
      %v7021 = vpop.permute.xlu0 %7020
      %7022 = vrot.lane.b32.xlu0 %v1306, 8
      %v7023 = vpop.permute.xlu0 %7022
      %7024 = vrot.lane.b32.xlu0 %v1307, 8
      %v7025 = vpop.permute.xlu0 %7024
      %7026 = vrot.lane.b32.xlu0 %v1308, 8
      %v7027 = vpop.permute.xlu0 %7026
      %7028 = vrot.lane.b32.xlu0 %v1309, 8
      %v7029 = vpop.permute.xlu0 %7028
      %7030 = vrot.lane.b32.xlu0 %v1310, 8
      %v7031 = vpop.permute.xlu0 %7030
      %7032 = vrot.lane.b32.xlu0 %v1311, 8
      %v7033 = vpop.permute.xlu0 %7032
      %7034 = vrot.lane.b32.xlu0 %v1312, 8
      %v7035 = vpop.permute.xlu0 %7034
      %7036 = vrot.lane.b32.xlu0 %v1313, 8
      %v7037 = vpop.permute.xlu0 %7036
      %7038 = vrot.lane.b32.xlu0 %v1314, 8
      %v7039 = vpop.permute.xlu0 %7038
      %7040 = vrot.lane.b32.xlu0 %v1315, 8
      %v7041 = vpop.permute.xlu0 %7040
      %7042 = vrot.lane.b32.xlu0 %v1316, 8
      %v7043 = vpop.permute.xlu0 %7042
      %7044 = vrot.lane.b32.xlu0 %v1317, 8
      %v7045 = vpop.permute.xlu0 %7044
      %7046 = vrot.lane.b32.xlu0 %v1318, 8
      %v7047 = vpop.permute.xlu0 %7046
      %7048 = vrot.lane.b32.xlu0 %v1319, 8
      %v7049 = vpop.permute.xlu0 %7048
      %7050 = vrot.lane.b32.xlu0 %v1320, 8
      %v7051 = vpop.permute.xlu0 %7050
      %7052 = vrot.lane.b32.xlu0 %v1321, 8
      %v7053 = vpop.permute.xlu0 %7052
      %7054 = vrot.lane.b32.xlu0 %v1322, 8
      %v7055 = vpop.permute.xlu0 %7054
      %7056 = vrot.lane.b32.xlu0 %v1323, 8
      %v7057 = vpop.permute.xlu0 %7056
      %7058 = vrot.lane.b32.xlu0 %v1324, 8
      %v7059 = vpop.permute.xlu0 %7058
      %7060 = vrot.lane.b32.xlu0 %v1325, 8
      %v7061 = vpop.permute.xlu0 %7060
      %7062 = vrot.lane.b32.xlu0 %v1326, 8
      %v7063 = vpop.permute.xlu0 %7062
      %7064 = vrot.lane.b32.xlu0 %v1327, 8
      %v7065 = vpop.permute.xlu0 %7064
      %7066 = vrot.lane.b32.xlu0 %v1328, 8
      %v7067 = vpop.permute.xlu0 %7066
      %7068 = vrot.lane.b32.xlu0 %v1329, 8
      %v7069 = vpop.permute.xlu0 %7068
      %7070 = vrot.lane.b32.xlu0 %v1330, 8
      %v7071 = vpop.permute.xlu0 %7070
      %7072 = vrot.lane.b32.xlu0 %v1331, 8
      %v7073 = vpop.permute.xlu0 %7072
      %7074 = vrot.lane.b32.xlu0 %v1332, 8
      %v7075 = vpop.permute.xlu0 %7074
      %7076 = vrot.lane.b32.xlu0 %v1333, 8
      %v7077 = vpop.permute.xlu0 %7076
      %7078 = vrot.lane.b32.xlu0 %v1334, 8
      %v7079 = vpop.permute.xlu0 %7078
      %7080 = vrot.lane.b32.xlu0 %v1335, 8
      %v7081 = vpop.permute.xlu0 %7080
      %7082 = vrot.lane.b32.xlu0 %v1336, 8
      %v7083 = vpop.permute.xlu0 %7082
      %7084 = vrot.lane.b32.xlu0 %v1337, 8
      %v7085 = vpop.permute.xlu0 %7084
      %7086 = vrot.lane.b32.xlu0 %v1338, 8
      %v7087 = vpop.permute.xlu0 %7086
      %7088 = vrot.lane.b32.xlu0 %v1339, 8
      %v7089 = vpop.permute.xlu0 %7088
      %7090 = vrot.lane.b32.xlu0 %v1340, 8
      %v7091 = vpop.permute.xlu0 %7090
      %7092 = vrot.lane.b32.xlu0 %v1341, 8
      %v7093 = vpop.permute.xlu0 %7092
      %7094 = vrot.lane.b32.xlu0 %v1342, 8
      %v7095 = vpop.permute.xlu0 %7094
      %7096 = vrot.lane.b32.xlu0 %v1343, 8
      %v7097 = vpop.permute.xlu0 %7096
      %7098 = vrot.lane.b32.xlu0 %v1344, 8
      %v7099 = vpop.permute.xlu0 %7098
      %7100 = vrot.lane.b32.xlu0 %v1345, 8
      %v7101 = vpop.permute.xlu0 %7100
      %7102 = vrot.lane.b32.xlu0 %v1346, 8
      %v7103 = vpop.permute.xlu0 %7102
      %7104 = vrot.lane.b32.xlu0 %v1347, 8
      %v7105 = vpop.permute.xlu0 %7104
      %7106 = vrot.lane.b32.xlu0 %v1348, 8
      %v7107 = vpop.permute.xlu0 %7106
      %7108 = vrot.lane.b32.xlu0 %v1349, 8
      %v7109 = vpop.permute.xlu0 %7108
      %7110 = vrot.lane.b32.xlu0 %v1350, 8
      %v7111 = vpop.permute.xlu0 %7110
      %7112 = vrot.lane.b32.xlu0 %v1351, 8
      %v7113 = vpop.permute.xlu0 %7112
      %7114 = vrot.lane.b32.xlu0 %v1352, 8
      %v7115 = vpop.permute.xlu0 %7114
      %7116 = vrot.lane.b32.xlu0 %v1353, 8
      %v7117 = vpop.permute.xlu0 %7116
      %7118 = vrot.lane.b32.xlu0 %v1354, 8
      %v7119 = vpop.permute.xlu0 %7118
      %7120 = vrot.lane.b32.xlu0 %v1355, 8
      %v7121 = vpop.permute.xlu0 %7120
      %7122 = vrot.lane.b32.xlu0 %v1356, 8
      %v7123 = vpop.permute.xlu0 %7122
      %7124 = vrot.lane.b32.xlu0 %v1357, 8
      %v7125 = vpop.permute.xlu0 %7124
      %7126 = vrot.lane.b32.xlu0 %v1358, 8
      %v7127 = vpop.permute.xlu0 %7126
      %7128 = vrot.lane.b32.xlu0 %v1359, 8
      %v7129 = vpop.permute.xlu0 %7128
      %7130 = vrot.lane.b32.xlu0 %v1360, 8
      %v7131 = vpop.permute.xlu0 %7130
      %7132 = vrot.lane.b32.xlu0 %v1361, 8
      %v7133 = vpop.permute.xlu0 %7132
      %7134 = vrot.lane.b32.xlu0 %v1362, 8
      %v7135 = vpop.permute.xlu0 %7134
      %7136 = vrot.lane.b32.xlu0 %v1363, 8
      %v7137 = vpop.permute.xlu0 %7136
      %7138 = vrot.lane.b32.xlu0 %v1364, 8
      %v7139 = vpop.permute.xlu0 %7138
      %7140 = vrot.lane.b32.xlu0 %v1365, 8
      %v7141 = vpop.permute.xlu0 %7140
      %7142 = vrot.lane.b32.xlu0 %v1366, 8
      %v7143 = vpop.permute.xlu0 %7142
      %7272 = vrot.lane.b32.xlu0 %v1367, 12
      %v7273 = vpop.permute.xlu0 %7272
      %7274 = vrot.lane.b32.xlu0 %v1368, 12
      %v7275 = vpop.permute.xlu0 %7274
      %7276 = vrot.lane.b32.xlu0 %v1369, 12
      %v7277 = vpop.permute.xlu0 %7276
      %7278 = vrot.lane.b32.xlu0 %v1370, 12
      %v7279 = vpop.permute.xlu0 %7278
      %7280 = vrot.lane.b32.xlu0 %v1371, 12
      %v7281 = vpop.permute.xlu0 %7280
      %7282 = vrot.lane.b32.xlu0 %v1372, 12
      %v7283 = vpop.permute.xlu0 %7282
      %7284 = vrot.lane.b32.xlu0 %v1373, 12
      %v7285 = vpop.permute.xlu0 %7284
      %7286 = vrot.lane.b32.xlu0 %v1374, 12
      %v7287 = vpop.permute.xlu0 %7286
      %7288 = vrot.lane.b32.xlu0 %v1375, 12
      %v7289 = vpop.permute.xlu0 %7288
      %7290 = vrot.lane.b32.xlu0 %v1376, 12
      %v7291 = vpop.permute.xlu0 %7290
      %7292 = vrot.lane.b32.xlu0 %v1377, 12
      %v7293 = vpop.permute.xlu0 %7292
      %7294 = vrot.lane.b32.xlu0 %v1378, 12
      %v7295 = vpop.permute.xlu0 %7294
      %7296 = vrot.lane.b32.xlu0 %v1379, 12
      %v7297 = vpop.permute.xlu0 %7296
      %7298 = vrot.lane.b32.xlu0 %v1380, 12
      %v7299 = vpop.permute.xlu0 %7298
      %7300 = vrot.lane.b32.xlu0 %v1381, 12
      %v7301 = vpop.permute.xlu0 %7300
      %7302 = vrot.lane.b32.xlu0 %v1382, 12
      %v7303 = vpop.permute.xlu0 %7302
      %7304 = vrot.lane.b32.xlu0 %v1383, 12
      %v7305 = vpop.permute.xlu0 %7304
      %7306 = vrot.lane.b32.xlu0 %v1384, 12
      %v7307 = vpop.permute.xlu0 %7306
      %7308 = vrot.lane.b32.xlu0 %v1385, 12
      %v7309 = vpop.permute.xlu0 %7308
      %7310 = vrot.lane.b32.xlu0 %v1386, 12
      %v7311 = vpop.permute.xlu0 %7310
      %7312 = vrot.lane.b32.xlu0 %v1387, 12
      %v7313 = vpop.permute.xlu0 %7312
      %7314 = vrot.lane.b32.xlu0 %v1388, 12
      %v7315 = vpop.permute.xlu0 %7314
      %7316 = vrot.lane.b32.xlu0 %v1389, 12
      %v7317 = vpop.permute.xlu0 %7316
      %7318 = vrot.lane.b32.xlu0 %v1390, 12
      %v7319 = vpop.permute.xlu0 %7318
      %7320 = vrot.lane.b32.xlu0 %v1391, 12
      %v7321 = vpop.permute.xlu0 %7320
      %7322 = vrot.lane.b32.xlu0 %v1392, 12
      %v7323 = vpop.permute.xlu0 %7322
      %7324 = vrot.lane.b32.xlu0 %v1393, 12
      %v7325 = vpop.permute.xlu0 %7324
      %7326 = vrot.lane.b32.xlu0 %v1394, 12
      %v7327 = vpop.permute.xlu0 %7326
      %7328 = vrot.lane.b32.xlu0 %v1395, 12
      %v7329 = vpop.permute.xlu0 %7328
      %7330 = vrot.lane.b32.xlu0 %v1396, 12
      %v7331 = vpop.permute.xlu0 %7330
      %7332 = vrot.lane.b32.xlu0 %v1397, 12
      %v7333 = vpop.permute.xlu0 %7332
      %7334 = vrot.lane.b32.xlu0 %v1398, 12
      %v7335 = vpop.permute.xlu0 %7334
      %7336 = vrot.lane.b32.xlu0 %v1399, 12
      %v7337 = vpop.permute.xlu0 %7336
      %7338 = vrot.lane.b32.xlu0 %v1400, 12
      %v7339 = vpop.permute.xlu0 %7338
      %7340 = vrot.lane.b32.xlu0 %v1401, 12
      %v7341 = vpop.permute.xlu0 %7340
      %7342 = vrot.lane.b32.xlu0 %v1402, 12
      %v7343 = vpop.permute.xlu0 %7342
      %7344 = vrot.lane.b32.xlu0 %v1403, 12
      %v7345 = vpop.permute.xlu0 %7344
      %7346 = vrot.lane.b32.xlu0 %v1404, 12
      %v7347 = vpop.permute.xlu0 %7346
      %7348 = vrot.lane.b32.xlu0 %v1405, 12
      %v7349 = vpop.permute.xlu0 %7348
      %7350 = vrot.lane.b32.xlu0 %v1406, 12
      %v7351 = vpop.permute.xlu0 %7350
      %7352 = vrot.lane.b32.xlu0 %v1407, 12
      %v7353 = vpop.permute.xlu0 %7352
      %7354 = vrot.lane.b32.xlu0 %v1408, 12
      %v7355 = vpop.permute.xlu0 %7354
      %7356 = vrot.lane.b32.xlu0 %v1409, 12
      %v7357 = vpop.permute.xlu0 %7356
      %7358 = vrot.lane.b32.xlu0 %v1410, 12
      %v7359 = vpop.permute.xlu0 %7358
      %7360 = vrot.lane.b32.xlu0 %v1411, 12
      %v7361 = vpop.permute.xlu0 %7360
      %7362 = vrot.lane.b32.xlu0 %v1412, 12
      %v7363 = vpop.permute.xlu0 %7362
      %7364 = vrot.lane.b32.xlu0 %v1413, 12
      %v7365 = vpop.permute.xlu0 %7364
      %7366 = vrot.lane.b32.xlu0 %v1414, 12
      %v7367 = vpop.permute.xlu0 %7366
      %7368 = vrot.lane.b32.xlu0 %v1415, 12
      %v7369 = vpop.permute.xlu0 %7368
      %7370 = vrot.lane.b32.xlu0 %v1416, 12
      %v7371 = vpop.permute.xlu0 %7370
      %7372 = vrot.lane.b32.xlu0 %v1417, 12
      %v7373 = vpop.permute.xlu0 %7372
      %7374 = vrot.lane.b32.xlu0 %v1418, 12
      %v7375 = vpop.permute.xlu0 %7374
      %7376 = vrot.lane.b32.xlu0 %v1419, 12
      %v7377 = vpop.permute.xlu0 %7376
      %7378 = vrot.lane.b32.xlu0 %v1420, 12
      %v7379 = vpop.permute.xlu0 %7378
      %7380 = vrot.lane.b32.xlu0 %v1421, 12
      %v7381 = vpop.permute.xlu0 %7380
      %7382 = vrot.lane.b32.xlu0 %v1422, 12
      %v7383 = vpop.permute.xlu0 %7382
      %7384 = vrot.lane.b32.xlu0 %v1423, 12
      %v7385 = vpop.permute.xlu0 %7384
      %7386 = vrot.lane.b32.xlu0 %v1424, 12
      %v7387 = vpop.permute.xlu0 %7386
      %7388 = vrot.lane.b32.xlu0 %v1425, 12
      %v7389 = vpop.permute.xlu0 %7388
      %7390 = vrot.lane.b32.xlu0 %v1426, 12
      %v7391 = vpop.permute.xlu0 %7390
      %7392 = vrot.lane.b32.xlu0 %v1427, 12
      %v7393 = vpop.permute.xlu0 %7392
      %7394 = vrot.lane.b32.xlu0 %v1428, 12
      %v7395 = vpop.permute.xlu0 %7394
      %7396 = vrot.lane.b32.xlu0 %v1429, 12
      %v7397 = vpop.permute.xlu0 %7396
      %7398 = vrot.lane.b32.xlu0 %v1430, 12
      %v7399 = vpop.permute.xlu0 %7398
      %7528 = vrot.lane.b32.xlu0 %v1431, 16
      %v7529 = vpop.permute.xlu0 %7528
      %7530 = vrot.lane.b32.xlu0 %v1432, 16
      %v7531 = vpop.permute.xlu0 %7530
      %7532 = vrot.lane.b32.xlu0 %v1433, 16
      %v7533 = vpop.permute.xlu0 %7532
      %7534 = vrot.lane.b32.xlu0 %v1434, 16
      %v7535 = vpop.permute.xlu0 %7534
      %7536 = vrot.lane.b32.xlu0 %v1435, 16
      %v7537 = vpop.permute.xlu0 %7536
      %7538 = vrot.lane.b32.xlu0 %v1436, 16
      %v7539 = vpop.permute.xlu0 %7538
      %7540 = vrot.lane.b32.xlu0 %v1437, 16
      %v7541 = vpop.permute.xlu0 %7540
      %7542 = vrot.lane.b32.xlu0 %v1438, 16
      %v7543 = vpop.permute.xlu0 %7542
      %7544 = vrot.lane.b32.xlu0 %v1439, 16
      %v7545 = vpop.permute.xlu0 %7544
      %7546 = vrot.lane.b32.xlu0 %v1440, 16
      %v7547 = vpop.permute.xlu0 %7546
      %7548 = vrot.lane.b32.xlu0 %v1441, 16
      %v7549 = vpop.permute.xlu0 %7548
      %7550 = vrot.lane.b32.xlu0 %v1442, 16
      %v7551 = vpop.permute.xlu0 %7550
      %7552 = vrot.lane.b32.xlu0 %v1443, 16
      %v7553 = vpop.permute.xlu0 %7552
      %7554 = vrot.lane.b32.xlu0 %v1444, 16
      %v7555 = vpop.permute.xlu0 %7554
      %7556 = vrot.lane.b32.xlu0 %v1445, 16
      %v7557 = vpop.permute.xlu0 %7556
      %7558 = vrot.lane.b32.xlu0 %v1446, 16
      %v7559 = vpop.permute.xlu0 %7558
      %7560 = vrot.lane.b32.xlu0 %v1447, 16
      %v7561 = vpop.permute.xlu0 %7560
      %7562 = vrot.lane.b32.xlu0 %v1448, 16
      %v7563 = vpop.permute.xlu0 %7562
      %7564 = vrot.lane.b32.xlu0 %v1449, 16
      %v7565 = vpop.permute.xlu0 %7564
      %7566 = vrot.lane.b32.xlu0 %v1450, 16
      %v7567 = vpop.permute.xlu0 %7566
      %7568 = vrot.lane.b32.xlu0 %v1451, 16
      %v7569 = vpop.permute.xlu0 %7568
      %7570 = vrot.lane.b32.xlu0 %v1452, 16
      %v7571 = vpop.permute.xlu0 %7570
      %7572 = vrot.lane.b32.xlu0 %v1453, 16
      %v7573 = vpop.permute.xlu0 %7572
      %7574 = vrot.lane.b32.xlu0 %v1454, 16
      %v7575 = vpop.permute.xlu0 %7574
      %7576 = vrot.lane.b32.xlu0 %v1455, 16
      %v7577 = vpop.permute.xlu0 %7576
      %7578 = vrot.lane.b32.xlu0 %v1456, 16
      %v7579 = vpop.permute.xlu0 %7578
      %7580 = vrot.lane.b32.xlu0 %v1457, 16
      %v7581 = vpop.permute.xlu0 %7580
      %7582 = vrot.lane.b32.xlu0 %v1458, 16
      %v7583 = vpop.permute.xlu0 %7582
      %7584 = vrot.lane.b32.xlu0 %v1459, 16
      %v7585 = vpop.permute.xlu0 %7584
      %7586 = vrot.lane.b32.xlu0 %v1460, 16
      %v7587 = vpop.permute.xlu0 %7586
      %7588 = vrot.lane.b32.xlu0 %v1461, 16
      %v7589 = vpop.permute.xlu0 %7588
      %7590 = vrot.lane.b32.xlu0 %v1462, 16
      %v7591 = vpop.permute.xlu0 %7590
      %7592 = vrot.lane.b32.xlu0 %v1463, 16
      %v7593 = vpop.permute.xlu0 %7592
      %7594 = vrot.lane.b32.xlu0 %v1464, 16
      %v7595 = vpop.permute.xlu0 %7594
      %7596 = vrot.lane.b32.xlu0 %v1465, 16
      %v7597 = vpop.permute.xlu0 %7596
      %7598 = vrot.lane.b32.xlu0 %v1466, 16
      %v7599 = vpop.permute.xlu0 %7598
      %7600 = vrot.lane.b32.xlu0 %v1467, 16
      %v7601 = vpop.permute.xlu0 %7600
      %7602 = vrot.lane.b32.xlu0 %v1468, 16
      %v7603 = vpop.permute.xlu0 %7602
      %7604 = vrot.lane.b32.xlu0 %v1469, 16
      %v7605 = vpop.permute.xlu0 %7604
      %7606 = vrot.lane.b32.xlu0 %v1470, 16
      %v7607 = vpop.permute.xlu0 %7606
      %7608 = vrot.lane.b32.xlu0 %v1471, 16
      %v7609 = vpop.permute.xlu0 %7608
      %7610 = vrot.lane.b32.xlu0 %v1472, 16
      %v7611 = vpop.permute.xlu0 %7610
      %7612 = vrot.lane.b32.xlu0 %v1473, 16
      %v7613 = vpop.permute.xlu0 %7612
      %7614 = vrot.lane.b32.xlu0 %v1474, 16
      %v7615 = vpop.permute.xlu0 %7614
      %7616 = vrot.lane.b32.xlu0 %v1475, 16
      %v7617 = vpop.permute.xlu0 %7616
      %7618 = vrot.lane.b32.xlu0 %v1476, 16
      %v7619 = vpop.permute.xlu0 %7618
      %7620 = vrot.lane.b32.xlu0 %v1477, 16
      %v7621 = vpop.permute.xlu0 %7620
      %7622 = vrot.lane.b32.xlu0 %v1478, 16
      %v7623 = vpop.permute.xlu0 %7622
      %7624 = vrot.lane.b32.xlu0 %v1479, 16
      %v7625 = vpop.permute.xlu0 %7624
      %7626 = vrot.lane.b32.xlu0 %v1480, 16
      %v7627 = vpop.permute.xlu0 %7626
      %7628 = vrot.lane.b32.xlu0 %v1481, 16
      %v7629 = vpop.permute.xlu0 %7628
      %7630 = vrot.lane.b32.xlu0 %v1482, 16
      %v7631 = vpop.permute.xlu0 %7630
      %7632 = vrot.lane.b32.xlu0 %v1483, 16
      %v7633 = vpop.permute.xlu0 %7632
      %7634 = vrot.lane.b32.xlu0 %v1484, 16
      %v7635 = vpop.permute.xlu0 %7634
      %7636 = vrot.lane.b32.xlu0 %v1485, 16
      %v7637 = vpop.permute.xlu0 %7636
      %7638 = vrot.lane.b32.xlu0 %v1486, 16
      %v7639 = vpop.permute.xlu0 %7638
      %7640 = vrot.lane.b32.xlu0 %v1487, 16
      %v7641 = vpop.permute.xlu0 %7640
      %7642 = vrot.lane.b32.xlu0 %v1488, 16
      %v7643 = vpop.permute.xlu0 %7642
      %7644 = vrot.lane.b32.xlu0 %v1489, 16
      %v7645 = vpop.permute.xlu0 %7644
      %7646 = vrot.lane.b32.xlu0 %v1490, 16
      %v7647 = vpop.permute.xlu0 %7646
      %7648 = vrot.lane.b32.xlu0 %v1491, 16
      %v7649 = vpop.permute.xlu0 %7648
      %7650 = vrot.lane.b32.xlu0 %v1492, 16
      %v7651 = vpop.permute.xlu0 %7650
      %7652 = vrot.lane.b32.xlu0 %v1493, 16
      %v7653 = vpop.permute.xlu0 %7652
      %7654 = vrot.lane.b32.xlu0 %v1494, 16
      %v7655 = vpop.permute.xlu0 %7654
      %7784 = vrot.lane.b32.xlu0 %v1496, 20
      %v7785 = vpop.permute.xlu0 %7784
      %7786 = vrot.lane.b32.xlu0 %v1497, 20
      %v7787 = vpop.permute.xlu0 %7786
      %7788 = vrot.lane.b32.xlu0 %v1498, 20
      %v7789 = vpop.permute.xlu0 %7788
      %7790 = vrot.lane.b32.xlu0 %v1499, 20
      %v7791 = vpop.permute.xlu0 %7790
      %7792 = vrot.lane.b32.xlu0 %v1500, 20
      %v7793 = vpop.permute.xlu0 %7792
      %7794 = vrot.lane.b32.xlu0 %v1501, 20
      %v7795 = vpop.permute.xlu0 %7794
      %7796 = vrot.lane.b32.xlu0 %v1502, 20
      %v7797 = vpop.permute.xlu0 %7796
      %7798 = vrot.lane.b32.xlu0 %v1503, 20
      %v7799 = vpop.permute.xlu0 %7798
      %7800 = vrot.lane.b32.xlu0 %v1504, 20
      %v7801 = vpop.permute.xlu0 %7800
      %7802 = vrot.lane.b32.xlu0 %v1505, 20
      %v7803 = vpop.permute.xlu0 %7802
      %7804 = vrot.lane.b32.xlu0 %v1506, 20
      %v7805 = vpop.permute.xlu0 %7804
      %7806 = vrot.lane.b32.xlu0 %v1507, 20
      %v7807 = vpop.permute.xlu0 %7806
      %7808 = vrot.lane.b32.xlu0 %v1508, 20
      %v7809 = vpop.permute.xlu0 %7808
      %7810 = vrot.lane.b32.xlu0 %v1509, 20
      %v7811 = vpop.permute.xlu0 %7810
      %7812 = vrot.lane.b32.xlu0 %v1510, 20
      %v7813 = vpop.permute.xlu0 %7812
      %7814 = vrot.lane.b32.xlu0 %v1511, 20
      %v7815 = vpop.permute.xlu0 %7814
      %7816 = vrot.lane.b32.xlu0 %v1512, 20
      %v7817 = vpop.permute.xlu0 %7816
      %7818 = vrot.lane.b32.xlu0 %v1513, 20
      %v7819 = vpop.permute.xlu0 %7818
      %7820 = vrot.lane.b32.xlu0 %v1514, 20
      %v7821 = vpop.permute.xlu0 %7820
      %7822 = vrot.lane.b32.xlu0 %v1515, 20
      %v7823 = vpop.permute.xlu0 %7822
      %7824 = vrot.lane.b32.xlu0 %v1516, 20
      %v7825 = vpop.permute.xlu0 %7824
      %7826 = vrot.lane.b32.xlu0 %v1517, 20
      %v7827 = vpop.permute.xlu0 %7826
      %7828 = vrot.lane.b32.xlu0 %v1518, 20
      %v7829 = vpop.permute.xlu0 %7828
      %7830 = vrot.lane.b32.xlu0 %v1519, 20
      %v7831 = vpop.permute.xlu0 %7830
      %7832 = vrot.lane.b32.xlu0 %v1520, 20
      %v7833 = vpop.permute.xlu0 %7832
      %7834 = vrot.lane.b32.xlu0 %v1521, 20
      %v7835 = vpop.permute.xlu0 %7834
      %7836 = vrot.lane.b32.xlu0 %v1522, 20
      %v7837 = vpop.permute.xlu0 %7836
      %7838 = vrot.lane.b32.xlu0 %v1523, 20
      %v7839 = vpop.permute.xlu0 %7838
      %7840 = vrot.lane.b32.xlu0 %v1524, 20
      %v7841 = vpop.permute.xlu0 %7840
      %7842 = vrot.lane.b32.xlu0 %v1525, 20
      %v7843 = vpop.permute.xlu0 %7842
      %7844 = vrot.lane.b32.xlu0 %v1526, 20
      %v7845 = vpop.permute.xlu0 %7844
      %7846 = vrot.lane.b32.xlu0 %v1527, 20
      %v7847 = vpop.permute.xlu0 %7846
      %7848 = vrot.lane.b32.xlu0 %v1528, 20
      %v7849 = vpop.permute.xlu0 %7848
      %7850 = vrot.lane.b32.xlu0 %v1529, 20
      %v7851 = vpop.permute.xlu0 %7850
      %7852 = vrot.lane.b32.xlu0 %v1530, 20
      %v7853 = vpop.permute.xlu0 %7852
      %7854 = vrot.lane.b32.xlu0 %v1531, 20
      %v7855 = vpop.permute.xlu0 %7854
      %7856 = vrot.lane.b32.xlu0 %v1532, 20
      %v7857 = vpop.permute.xlu0 %7856
      %7858 = vrot.lane.b32.xlu0 %v1533, 20
      %v7859 = vpop.permute.xlu0 %7858
      %7860 = vrot.lane.b32.xlu0 %v1534, 20
      %v7861 = vpop.permute.xlu0 %7860
      %7862 = vrot.lane.b32.xlu0 %v1535, 20
      %v7863 = vpop.permute.xlu0 %7862
      %7864 = vrot.lane.b32.xlu0 %v1536, 20
      %v7865 = vpop.permute.xlu0 %7864
      %7866 = vrot.lane.b32.xlu0 %v1537, 20
      %v7867 = vpop.permute.xlu0 %7866
      %7868 = vrot.lane.b32.xlu0 %v1538, 20
      %v7869 = vpop.permute.xlu0 %7868
      %7870 = vrot.lane.b32.xlu0 %v1539, 20
      %v7871 = vpop.permute.xlu0 %7870
      %7872 = vrot.lane.b32.xlu0 %v1540, 20
      %v7873 = vpop.permute.xlu0 %7872
      %7874 = vrot.lane.b32.xlu0 %v1541, 20
      %v7875 = vpop.permute.xlu0 %7874
      %7876 = vrot.lane.b32.xlu0 %v1542, 20
      %v7877 = vpop.permute.xlu0 %7876
      %7878 = vrot.lane.b32.xlu0 %v1543, 20
      %v7879 = vpop.permute.xlu0 %7878
      %7880 = vrot.lane.b32.xlu0 %v1544, 20
      %v7881 = vpop.permute.xlu0 %7880
      %7882 = vrot.lane.b32.xlu0 %v1545, 20
      %v7883 = vpop.permute.xlu0 %7882
      %7884 = vrot.lane.b32.xlu0 %v1546, 20
      %v7885 = vpop.permute.xlu0 %7884
      %7886 = vrot.lane.b32.xlu0 %v1547, 20
      %v7887 = vpop.permute.xlu0 %7886
      %7888 = vrot.lane.b32.xlu0 %v1548, 20
      %v7889 = vpop.permute.xlu0 %7888
      %7890 = vrot.lane.b32.xlu0 %v1549, 20
      %v7891 = vpop.permute.xlu0 %7890
      %7892 = vrot.lane.b32.xlu0 %v1550, 20
      %v7893 = vpop.permute.xlu0 %7892
      %7894 = vrot.lane.b32.xlu0 %v1551, 20
      %v7895 = vpop.permute.xlu0 %7894
      %7896 = vrot.lane.b32.xlu0 %v1552, 20
      %v7897 = vpop.permute.xlu0 %7896
      %7898 = vrot.lane.b32.xlu0 %v1553, 20
      %v7899 = vpop.permute.xlu0 %7898
      %7900 = vrot.lane.b32.xlu0 %v1554, 20
      %v7901 = vpop.permute.xlu0 %7900
      %7902 = vrot.lane.b32.xlu0 %v1555, 20
      %v7903 = vpop.permute.xlu0 %7902
      %7904 = vrot.lane.b32.xlu0 %v1556, 20
      %v7905 = vpop.permute.xlu0 %7904
      %7906 = vrot.lane.b32.xlu0 %v1557, 20
      %v7907 = vpop.permute.xlu0 %7906
      %7908 = vrot.lane.b32.xlu0 %v1558, 20
      %v7909 = vpop.permute.xlu0 %7908
      %7910 = vrot.lane.b32.xlu0 %v1559, 20
      %v7911 = vpop.permute.xlu0 %7910
      %8040 = vrot.lane.b32.xlu0 %v1560, 24
      %v8041 = vpop.permute.xlu0 %8040
      %8042 = vrot.lane.b32.xlu0 %v1561, 24
      %v8043 = vpop.permute.xlu0 %8042
      %8044 = vrot.lane.b32.xlu0 %v1562, 24
      %v8045 = vpop.permute.xlu0 %8044
      %8046 = vrot.lane.b32.xlu0 %v1563, 24
      %v8047 = vpop.permute.xlu0 %8046
      %8048 = vrot.lane.b32.xlu0 %v1564, 24
      %v8049 = vpop.permute.xlu0 %8048
      %8050 = vrot.lane.b32.xlu0 %v1565, 24
      %v8051 = vpop.permute.xlu0 %8050
      %8052 = vrot.lane.b32.xlu0 %v1566, 24
      %v8053 = vpop.permute.xlu0 %8052
      %8054 = vrot.lane.b32.xlu0 %v1567, 24
      %v8055 = vpop.permute.xlu0 %8054
      %8056 = vrot.lane.b32.xlu0 %v1568, 24
      %v8057 = vpop.permute.xlu0 %8056
      %8058 = vrot.lane.b32.xlu0 %v1569, 24
      %v8059 = vpop.permute.xlu0 %8058
      %8060 = vrot.lane.b32.xlu0 %v1570, 24
      %v8061 = vpop.permute.xlu0 %8060
      %8062 = vrot.lane.b32.xlu0 %v1571, 24
      %v8063 = vpop.permute.xlu0 %8062
      %8064 = vrot.lane.b32.xlu0 %v1572, 24
      %v8065 = vpop.permute.xlu0 %8064
      %8066 = vrot.lane.b32.xlu0 %v1573, 24
      %v8067 = vpop.permute.xlu0 %8066
      %8068 = vrot.lane.b32.xlu0 %v1574, 24
      %v8069 = vpop.permute.xlu0 %8068
      %8070 = vrot.lane.b32.xlu0 %v1575, 24
      %v8071 = vpop.permute.xlu0 %8070
      %8072 = vrot.lane.b32.xlu0 %v1576, 24
      %v8073 = vpop.permute.xlu0 %8072
      %8074 = vrot.lane.b32.xlu0 %v1577, 24
      %v8075 = vpop.permute.xlu0 %8074
      %8076 = vrot.lane.b32.xlu0 %v1578, 24
      %v8077 = vpop.permute.xlu0 %8076
      %8078 = vrot.lane.b32.xlu0 %v1579, 24
      %v8079 = vpop.permute.xlu0 %8078
      %8080 = vrot.lane.b32.xlu0 %v1580, 24
      %v8081 = vpop.permute.xlu0 %8080
      %8082 = vrot.lane.b32.xlu0 %v1581, 24
      %v8083 = vpop.permute.xlu0 %8082
      %8084 = vrot.lane.b32.xlu0 %v1582, 24
      %v8085 = vpop.permute.xlu0 %8084
      %8086 = vrot.lane.b32.xlu0 %v1583, 24
      %v8087 = vpop.permute.xlu0 %8086
      %8088 = vrot.lane.b32.xlu0 %v1584, 24
      %v8089 = vpop.permute.xlu0 %8088
      %8090 = vrot.lane.b32.xlu0 %v1585, 24
      %v8091 = vpop.permute.xlu0 %8090
      %8092 = vrot.lane.b32.xlu0 %v1586, 24
      %v8093 = vpop.permute.xlu0 %8092
      %8094 = vrot.lane.b32.xlu0 %v1587, 24
      %v8095 = vpop.permute.xlu0 %8094
      %8096 = vrot.lane.b32.xlu0 %v1588, 24
      %v8097 = vpop.permute.xlu0 %8096
      %8098 = vrot.lane.b32.xlu0 %v1589, 24
      %v8099 = vpop.permute.xlu0 %8098
      %8100 = vrot.lane.b32.xlu0 %v1590, 24
      %v8101 = vpop.permute.xlu0 %8100
      %8102 = vrot.lane.b32.xlu0 %v1591, 24
      %v8103 = vpop.permute.xlu0 %8102
      %8104 = vrot.lane.b32.xlu0 %v1592, 24
      %v8105 = vpop.permute.xlu0 %8104
      %8106 = vrot.lane.b32.xlu0 %v1593, 24
      %v8107 = vpop.permute.xlu0 %8106
      %8108 = vrot.lane.b32.xlu0 %v1594, 24
      %v8109 = vpop.permute.xlu0 %8108
      %8110 = vrot.lane.b32.xlu0 %v1595, 24
      %v8111 = vpop.permute.xlu0 %8110
      %8112 = vrot.lane.b32.xlu0 %v1596, 24
      %v8113 = vpop.permute.xlu0 %8112
      %8114 = vrot.lane.b32.xlu0 %v1597, 24
      %v8115 = vpop.permute.xlu0 %8114
      %8116 = vrot.lane.b32.xlu0 %v1598, 24
      %v8117 = vpop.permute.xlu0 %8116
      %8118 = vrot.lane.b32.xlu0 %v1599, 24
      %v8119 = vpop.permute.xlu0 %8118
      %8120 = vrot.lane.b32.xlu0 %v1600, 24
      %v8121 = vpop.permute.xlu0 %8120
      %8122 = vrot.lane.b32.xlu0 %v1601, 24
      %v8123 = vpop.permute.xlu0 %8122
      %8124 = vrot.lane.b32.xlu0 %v1602, 24
      %v8125 = vpop.permute.xlu0 %8124
      %8126 = vrot.lane.b32.xlu0 %v1603, 24
      %v8127 = vpop.permute.xlu0 %8126
      %8128 = vrot.lane.b32.xlu0 %v1604, 24
      %v8129 = vpop.permute.xlu0 %8128
      %8130 = vrot.lane.b32.xlu0 %v1605, 24
      %v8131 = vpop.permute.xlu0 %8130
      %8132 = vrot.lane.b32.xlu0 %v1606, 24
      %v8133 = vpop.permute.xlu0 %8132
      %8134 = vrot.lane.b32.xlu0 %v1607, 24
      %v8135 = vpop.permute.xlu0 %8134
      %8136 = vrot.lane.b32.xlu0 %v1608, 24
      %v8137 = vpop.permute.xlu0 %8136
      %8138 = vrot.lane.b32.xlu0 %v1609, 24
      %v8139 = vpop.permute.xlu0 %8138
      %8140 = vrot.lane.b32.xlu0 %v1610, 24
      %v8141 = vpop.permute.xlu0 %8140
      %8142 = vrot.lane.b32.xlu0 %v1611, 24
      %v8143 = vpop.permute.xlu0 %8142
      %8144 = vrot.lane.b32.xlu0 %v1612, 24
      %v8145 = vpop.permute.xlu0 %8144
      %8146 = vrot.lane.b32.xlu0 %v1613, 24
      %v8147 = vpop.permute.xlu0 %8146
      %8148 = vrot.lane.b32.xlu0 %v1614, 24
      %v8149 = vpop.permute.xlu0 %8148
      %8150 = vrot.lane.b32.xlu0 %v1615, 24
      %v8151 = vpop.permute.xlu0 %8150
      %8152 = vrot.lane.b32.xlu0 %v1616, 24
      %v8153 = vpop.permute.xlu0 %8152
      %8154 = vrot.lane.b32.xlu0 %v1617, 24
      %v8155 = vpop.permute.xlu0 %8154
      %8156 = vrot.lane.b32.xlu0 %v1618, 24
      %v8157 = vpop.permute.xlu0 %8156
      %8158 = vrot.lane.b32.xlu0 %v1619, 24
      %v8159 = vpop.permute.xlu0 %8158
      %8160 = vrot.lane.b32.xlu0 %v1620, 24
      %v8161 = vpop.permute.xlu0 %8160
      %8162 = vrot.lane.b32.xlu0 %v1621, 24
      %v8163 = vpop.permute.xlu0 %8162
      %8164 = vrot.lane.b32.xlu0 %v1622, 24
      %v8165 = vpop.permute.xlu0 %8164
      %8166 = vrot.lane.b32.xlu0 %v1623, 24
      %v8167 = vpop.permute.xlu0 %8166
      %8296 = vrot.lane.b32.xlu0 %v1624, 28
      %v8297 = vpop.permute.xlu0 %8296
      %8298 = vrot.lane.b32.xlu0 %v1625, 28
      %v8299 = vpop.permute.xlu0 %8298
      %8300 = vrot.lane.b32.xlu0 %v1626, 28
      %v8301 = vpop.permute.xlu0 %8300
      %8302 = vrot.lane.b32.xlu0 %v1627, 28
      %v8303 = vpop.permute.xlu0 %8302
      %8304 = vrot.lane.b32.xlu0 %v1628, 28
      %v8305 = vpop.permute.xlu0 %8304
      %8306 = vrot.lane.b32.xlu0 %v1629, 28
      %v8307 = vpop.permute.xlu0 %8306
      %8308 = vrot.lane.b32.xlu0 %v1630, 28
      %v8309 = vpop.permute.xlu0 %8308
      %8310 = vrot.lane.b32.xlu0 %v1631, 28
      %v8311 = vpop.permute.xlu0 %8310
      %8312 = vrot.lane.b32.xlu0 %v1632, 28
      %v8313 = vpop.permute.xlu0 %8312
      %8314 = vrot.lane.b32.xlu0 %v1633, 28
      %v8315 = vpop.permute.xlu0 %8314
      %8316 = vrot.lane.b32.xlu0 %v1634, 28
      %v8317 = vpop.permute.xlu0 %8316
      %8318 = vrot.lane.b32.xlu0 %v1635, 28
      %v8319 = vpop.permute.xlu0 %8318
      %8320 = vrot.lane.b32.xlu0 %v1636, 28
      %v8321 = vpop.permute.xlu0 %8320
      %8322 = vrot.lane.b32.xlu0 %v1637, 28
      %v8323 = vpop.permute.xlu0 %8322
      %8324 = vrot.lane.b32.xlu0 %v1638, 28
      %v8325 = vpop.permute.xlu0 %8324
      %8326 = vrot.lane.b32.xlu0 %v1639, 28
      %v8327 = vpop.permute.xlu0 %8326
      %8328 = vrot.lane.b32.xlu0 %v1640, 28
      %v8329 = vpop.permute.xlu0 %8328
      %8330 = vrot.lane.b32.xlu0 %v1641, 28
      %v8331 = vpop.permute.xlu0 %8330
      %8332 = vrot.lane.b32.xlu0 %v1642, 28
      %v8333 = vpop.permute.xlu0 %8332
      %8334 = vrot.lane.b32.xlu0 %v1643, 28
      %v8335 = vpop.permute.xlu0 %8334
      %8336 = vrot.lane.b32.xlu0 %v1644, 28
      %v8337 = vpop.permute.xlu0 %8336
      %8338 = vrot.lane.b32.xlu0 %v1645, 28
      %v8339 = vpop.permute.xlu0 %8338
      %8340 = vrot.lane.b32.xlu0 %v1646, 28
      %v8341 = vpop.permute.xlu0 %8340
      %8342 = vrot.lane.b32.xlu0 %v1647, 28
      %v8343 = vpop.permute.xlu0 %8342
      %8344 = vrot.lane.b32.xlu0 %v1648, 28
      %v8345 = vpop.permute.xlu0 %8344
      %8346 = vrot.lane.b32.xlu0 %v1649, 28
      %v8347 = vpop.permute.xlu0 %8346
      %8348 = vrot.lane.b32.xlu0 %v1650, 28
      %v8349 = vpop.permute.xlu0 %8348
      %8350 = vrot.lane.b32.xlu0 %v1651, 28
      %v8351 = vpop.permute.xlu0 %8350
      %8352 = vrot.lane.b32.xlu0 %v1652, 28
      %v8353 = vpop.permute.xlu0 %8352
      %8354 = vrot.lane.b32.xlu0 %v1653, 28
      %v8355 = vpop.permute.xlu0 %8354
      %8356 = vrot.lane.b32.xlu0 %v1654, 28
      %v8357 = vpop.permute.xlu0 %8356
      %8358 = vrot.lane.b32.xlu0 %v1655, 28
      %v8359 = vpop.permute.xlu0 %8358
      %8360 = vrot.lane.b32.xlu0 %v1656, 28
      %v8361 = vpop.permute.xlu0 %8360
      %8362 = vrot.lane.b32.xlu0 %v1657, 28
      %v8363 = vpop.permute.xlu0 %8362
      %8364 = vrot.lane.b32.xlu0 %v1658, 28
      %v8365 = vpop.permute.xlu0 %8364
      %8366 = vrot.lane.b32.xlu0 %v1659, 28
      %v8367 = vpop.permute.xlu0 %8366
      %8368 = vrot.lane.b32.xlu0 %v1660, 28
      %v8369 = vpop.permute.xlu0 %8368
      %8370 = vrot.lane.b32.xlu0 %v1661, 28
      %v8371 = vpop.permute.xlu0 %8370
      %8372 = vrot.lane.b32.xlu0 %v1662, 28
      %v8373 = vpop.permute.xlu0 %8372
      %8374 = vrot.lane.b32.xlu0 %v1663, 28
      %v8375 = vpop.permute.xlu0 %8374
      %8376 = vrot.lane.b32.xlu0 %v1664, 28
      %v8377 = vpop.permute.xlu0 %8376
      %8378 = vrot.lane.b32.xlu0 %v1665, 28
      %v8379 = vpop.permute.xlu0 %8378
      %8380 = vrot.lane.b32.xlu0 %v1666, 28
      %v8381 = vpop.permute.xlu0 %8380
      %8382 = vrot.lane.b32.xlu0 %v1667, 28
      %v8383 = vpop.permute.xlu0 %8382
      %8384 = vrot.lane.b32.xlu0 %v1668, 28
      %v8385 = vpop.permute.xlu0 %8384
      %8386 = vrot.lane.b32.xlu0 %v1669, 28
      %v8387 = vpop.permute.xlu0 %8386
      %8388 = vrot.lane.b32.xlu0 %v1670, 28
      %v8389 = vpop.permute.xlu0 %8388
      %8390 = vrot.lane.b32.xlu0 %v1671, 28
      %v8391 = vpop.permute.xlu0 %8390
      %8392 = vrot.lane.b32.xlu0 %v1672, 28
      %v8393 = vpop.permute.xlu0 %8392
      %8394 = vrot.lane.b32.xlu0 %v1673, 28
      %v8395 = vpop.permute.xlu0 %8394
      %8396 = vrot.lane.b32.xlu0 %v1674, 28
      %v8397 = vpop.permute.xlu0 %8396
      %8398 = vrot.lane.b32.xlu0 %v1675, 28
      %v8399 = vpop.permute.xlu0 %8398
      %8400 = vrot.lane.b32.xlu0 %v1676, 28
      %v8401 = vpop.permute.xlu0 %8400
      %8402 = vrot.lane.b32.xlu0 %v1677, 28
      %v8403 = vpop.permute.xlu0 %8402
      %8404 = vrot.lane.b32.xlu0 %v1678, 28
      %v8405 = vpop.permute.xlu0 %8404
      %8406 = vrot.lane.b32.xlu0 %v1679, 28
      %v8407 = vpop.permute.xlu0 %8406
      %8408 = vrot.lane.b32.xlu0 %v1680, 28
      %v8409 = vpop.permute.xlu0 %8408
      %8410 = vrot.lane.b32.xlu0 %v1681, 28
      %v8411 = vpop.permute.xlu0 %8410
      %8412 = vrot.lane.b32.xlu0 %v1682, 28
      %v8413 = vpop.permute.xlu0 %8412
      %8414 = vrot.lane.b32.xlu0 %v1683, 28
      %v8415 = vpop.permute.xlu0 %8414
      %8416 = vrot.lane.b32.xlu0 %v1684, 28
      %v8417 = vpop.permute.xlu0 %8416
      %8418 = vrot.lane.b32.xlu0 %v1685, 28
      %v8419 = vpop.permute.xlu0 %8418
      %8420 = vrot.lane.b32.xlu0 %v1686, 28
      %v8421 = vpop.permute.xlu0 %8420
      %8422 = vrot.lane.b32.xlu0 %v1687, 28
      %v8423 = vpop.permute.xlu0 %8422
      %8552 = vrot.lane.b32.xlu0 %v1689, 32
      %v8553 = vpop.permute.xlu0 %8552
      %8554 = vrot.lane.b32.xlu0 %v1690, 32
      %v8555 = vpop.permute.xlu0 %8554
      %8556 = vrot.lane.b32.xlu0 %v1691, 32
      %v8557 = vpop.permute.xlu0 %8556
      %8558 = vrot.lane.b32.xlu0 %v1692, 32
      %v8559 = vpop.permute.xlu0 %8558
      %8560 = vrot.lane.b32.xlu0 %v1693, 32
      %v8561 = vpop.permute.xlu0 %8560
      %8562 = vrot.lane.b32.xlu0 %v1694, 32
      %v8563 = vpop.permute.xlu0 %8562
      %8564 = vrot.lane.b32.xlu0 %v1695, 32
      %v8565 = vpop.permute.xlu0 %8564
      %8566 = vrot.lane.b32.xlu0 %v1696, 32
      %v8567 = vpop.permute.xlu0 %8566
      %8568 = vrot.lane.b32.xlu0 %v1697, 32
      %v8569 = vpop.permute.xlu0 %8568
      %8570 = vrot.lane.b32.xlu0 %v1698, 32
      %v8571 = vpop.permute.xlu0 %8570
      %8572 = vrot.lane.b32.xlu0 %v1699, 32
      %v8573 = vpop.permute.xlu0 %8572
      %8574 = vrot.lane.b32.xlu0 %v1700, 32
      %v8575 = vpop.permute.xlu0 %8574
      %8576 = vrot.lane.b32.xlu0 %v1701, 32
      %v8577 = vpop.permute.xlu0 %8576
      %8578 = vrot.lane.b32.xlu0 %v1702, 32
      %v8579 = vpop.permute.xlu0 %8578
      %8580 = vrot.lane.b32.xlu0 %v1703, 32
      %v8581 = vpop.permute.xlu0 %8580
      %8582 = vrot.lane.b32.xlu0 %v1704, 32
      %v8583 = vpop.permute.xlu0 %8582
      %8584 = vrot.lane.b32.xlu0 %v1705, 32
      %v8585 = vpop.permute.xlu0 %8584
      %8586 = vrot.lane.b32.xlu0 %v1706, 32
      %v8587 = vpop.permute.xlu0 %8586
      %8588 = vrot.lane.b32.xlu0 %v1707, 32
      %v8589 = vpop.permute.xlu0 %8588
      %8590 = vrot.lane.b32.xlu0 %v1708, 32
      %v8591 = vpop.permute.xlu0 %8590
      %8592 = vrot.lane.b32.xlu0 %v1709, 32
      %v8593 = vpop.permute.xlu0 %8592
      %8594 = vrot.lane.b32.xlu0 %v1710, 32
      %v8595 = vpop.permute.xlu0 %8594
      %8596 = vrot.lane.b32.xlu0 %v1711, 32
      %v8597 = vpop.permute.xlu0 %8596
      %8598 = vrot.lane.b32.xlu0 %v1712, 32
      %v8599 = vpop.permute.xlu0 %8598
      %8600 = vrot.lane.b32.xlu0 %v1713, 32
      %v8601 = vpop.permute.xlu0 %8600
      %8602 = vrot.lane.b32.xlu0 %v1714, 32
      %v8603 = vpop.permute.xlu0 %8602
      %8604 = vrot.lane.b32.xlu0 %v1715, 32
      %v8605 = vpop.permute.xlu0 %8604
      %8606 = vrot.lane.b32.xlu0 %v1716, 32
      %v8607 = vpop.permute.xlu0 %8606
      %8608 = vrot.lane.b32.xlu0 %v1717, 32
      %v8609 = vpop.permute.xlu0 %8608
      %8610 = vrot.lane.b32.xlu0 %v1718, 32
      %v8611 = vpop.permute.xlu0 %8610
      %8612 = vrot.lane.b32.xlu0 %v1719, 32
      %v8613 = vpop.permute.xlu0 %8612
      %8614 = vrot.lane.b32.xlu0 %v1720, 32
      %v8615 = vpop.permute.xlu0 %8614
      %8616 = vrot.lane.b32.xlu0 %v1721, 32
      %v8617 = vpop.permute.xlu0 %8616
      %8618 = vrot.lane.b32.xlu0 %v1722, 32
      %v8619 = vpop.permute.xlu0 %8618
      %8620 = vrot.lane.b32.xlu0 %v1723, 32
      %v8621 = vpop.permute.xlu0 %8620
      %8622 = vrot.lane.b32.xlu0 %v1724, 32
      %v8623 = vpop.permute.xlu0 %8622
      %8624 = vrot.lane.b32.xlu0 %v1725, 32
      %v8625 = vpop.permute.xlu0 %8624
      %8626 = vrot.lane.b32.xlu0 %v1726, 32
      %v8627 = vpop.permute.xlu0 %8626
      %8628 = vrot.lane.b32.xlu0 %v1727, 32
      %v8629 = vpop.permute.xlu0 %8628
      %8630 = vrot.lane.b32.xlu0 %v1728, 32
      %v8631 = vpop.permute.xlu0 %8630
      %8632 = vrot.lane.b32.xlu0 %v1729, 32
      %v8633 = vpop.permute.xlu0 %8632
      %8634 = vrot.lane.b32.xlu0 %v1730, 32
      %v8635 = vpop.permute.xlu0 %8634
      %8636 = vrot.lane.b32.xlu0 %v1731, 32
      %v8637 = vpop.permute.xlu0 %8636
      %8638 = vrot.lane.b32.xlu0 %v1732, 32
      %v8639 = vpop.permute.xlu0 %8638
      %8640 = vrot.lane.b32.xlu0 %v1733, 32
      %v8641 = vpop.permute.xlu0 %8640
      %8642 = vrot.lane.b32.xlu0 %v1734, 32
      %v8643 = vpop.permute.xlu0 %8642
      %8644 = vrot.lane.b32.xlu0 %v1735, 32
      %v8645 = vpop.permute.xlu0 %8644
      %8646 = vrot.lane.b32.xlu0 %v1736, 32
      %v8647 = vpop.permute.xlu0 %8646
      %8648 = vrot.lane.b32.xlu0 %v1737, 32
      %v8649 = vpop.permute.xlu0 %8648
      %8650 = vrot.lane.b32.xlu0 %v1738, 32
      %v8651 = vpop.permute.xlu0 %8650
      %8652 = vrot.lane.b32.xlu0 %v1739, 32
      %v8653 = vpop.permute.xlu0 %8652
      %8654 = vrot.lane.b32.xlu0 %v1740, 32
      %v8655 = vpop.permute.xlu0 %8654
      %8656 = vrot.lane.b32.xlu0 %v1741, 32
      %v8657 = vpop.permute.xlu0 %8656
      %8658 = vrot.lane.b32.xlu0 %v1742, 32
      %v8659 = vpop.permute.xlu0 %8658
      %8660 = vrot.lane.b32.xlu0 %v1743, 32
      %v8661 = vpop.permute.xlu0 %8660
      %8662 = vrot.lane.b32.xlu0 %v1744, 32
      %v8663 = vpop.permute.xlu0 %8662
      %8664 = vrot.lane.b32.xlu0 %v1745, 32
      %v8665 = vpop.permute.xlu0 %8664
      %8666 = vrot.lane.b32.xlu0 %v1746, 32
      %v8667 = vpop.permute.xlu0 %8666
      %8668 = vrot.lane.b32.xlu0 %v1747, 32
      %v8669 = vpop.permute.xlu0 %8668
      %8670 = vrot.lane.b32.xlu0 %v1748, 32
      %v8671 = vpop.permute.xlu0 %8670
      %8672 = vrot.lane.b32.xlu0 %v1749, 32
      %v8673 = vpop.permute.xlu0 %8672
      %8674 = vrot.lane.b32.xlu0 %v1750, 32
      %v8675 = vpop.permute.xlu0 %8674
      %8676 = vrot.lane.b32.xlu0 %v1751, 32
      %v8677 = vpop.permute.xlu0 %8676
      %8678 = vrot.lane.b32.xlu0 %v1752, 32
      %v8679 = vpop.permute.xlu0 %8678
      %8808 = vrot.lane.b32.xlu0 %v1753, 36
      %v8809 = vpop.permute.xlu0 %8808
      %8810 = vrot.lane.b32.xlu0 %v1754, 36
      %v8811 = vpop.permute.xlu0 %8810
      %8812 = vrot.lane.b32.xlu0 %v1755, 36
      %v8813 = vpop.permute.xlu0 %8812
      %8814 = vrot.lane.b32.xlu0 %v1756, 36
      %v8815 = vpop.permute.xlu0 %8814
      %8816 = vrot.lane.b32.xlu0 %v1757, 36
      %v8817 = vpop.permute.xlu0 %8816
      %8818 = vrot.lane.b32.xlu0 %v1758, 36
      %v8819 = vpop.permute.xlu0 %8818
      %8820 = vrot.lane.b32.xlu0 %v1759, 36
      %v8821 = vpop.permute.xlu0 %8820
      %8822 = vrot.lane.b32.xlu0 %v1760, 36
      %v8823 = vpop.permute.xlu0 %8822
      %8824 = vrot.lane.b32.xlu0 %v1761, 36
      %v8825 = vpop.permute.xlu0 %8824
      %8826 = vrot.lane.b32.xlu0 %v1762, 36
      %v8827 = vpop.permute.xlu0 %8826
      %8828 = vrot.lane.b32.xlu0 %v1763, 36
      %v8829 = vpop.permute.xlu0 %8828
      %8830 = vrot.lane.b32.xlu0 %v1764, 36
      %v8831 = vpop.permute.xlu0 %8830
      %8832 = vrot.lane.b32.xlu0 %v1765, 36
      %v8833 = vpop.permute.xlu0 %8832
      %8834 = vrot.lane.b32.xlu0 %v1766, 36
      %v8835 = vpop.permute.xlu0 %8834
      %8836 = vrot.lane.b32.xlu0 %v1767, 36
      %v8837 = vpop.permute.xlu0 %8836
      %8838 = vrot.lane.b32.xlu0 %v1768, 36
      %v8839 = vpop.permute.xlu0 %8838
      %8840 = vrot.lane.b32.xlu0 %v1769, 36
      %v8841 = vpop.permute.xlu0 %8840
      %8842 = vrot.lane.b32.xlu0 %v1770, 36
      %v8843 = vpop.permute.xlu0 %8842
      %8844 = vrot.lane.b32.xlu0 %v1771, 36
      %v8845 = vpop.permute.xlu0 %8844
      %8846 = vrot.lane.b32.xlu0 %v1772, 36
      %v8847 = vpop.permute.xlu0 %8846
      %8848 = vrot.lane.b32.xlu0 %v1773, 36
      %v8849 = vpop.permute.xlu0 %8848
      %8850 = vrot.lane.b32.xlu0 %v1774, 36
      %v8851 = vpop.permute.xlu0 %8850
      %8852 = vrot.lane.b32.xlu0 %v1775, 36
      %v8853 = vpop.permute.xlu0 %8852
      %8854 = vrot.lane.b32.xlu0 %v1776, 36
      %v8855 = vpop.permute.xlu0 %8854
      %8856 = vrot.lane.b32.xlu0 %v1777, 36
      %v8857 = vpop.permute.xlu0 %8856
      %8858 = vrot.lane.b32.xlu0 %v1778, 36
      %v8859 = vpop.permute.xlu0 %8858
      %8860 = vrot.lane.b32.xlu0 %v1779, 36
      %v8861 = vpop.permute.xlu0 %8860
      %8862 = vrot.lane.b32.xlu0 %v1780, 36
      %v8863 = vpop.permute.xlu0 %8862
      %8864 = vrot.lane.b32.xlu0 %v1781, 36
      %v8865 = vpop.permute.xlu0 %8864
      %8866 = vrot.lane.b32.xlu0 %v1782, 36
      %v8867 = vpop.permute.xlu0 %8866
      %8868 = vrot.lane.b32.xlu0 %v1783, 36
      %v8869 = vpop.permute.xlu0 %8868
      %8870 = vrot.lane.b32.xlu0 %v1784, 36
      %v8871 = vpop.permute.xlu0 %8870
      %8872 = vrot.lane.b32.xlu0 %v1785, 36
      %v8873 = vpop.permute.xlu0 %8872
      %8874 = vrot.lane.b32.xlu0 %v1786, 36
      %v8875 = vpop.permute.xlu0 %8874
      %8876 = vrot.lane.b32.xlu0 %v1787, 36
      %v8877 = vpop.permute.xlu0 %8876
      %8878 = vrot.lane.b32.xlu0 %v1788, 36
      %v8879 = vpop.permute.xlu0 %8878
      %8880 = vrot.lane.b32.xlu0 %v1789, 36
      %v8881 = vpop.permute.xlu0 %8880
      %8882 = vrot.lane.b32.xlu0 %v1790, 36
      %v8883 = vpop.permute.xlu0 %8882
      %8884 = vrot.lane.b32.xlu0 %v1791, 36
      %v8885 = vpop.permute.xlu0 %8884
      %8886 = vrot.lane.b32.xlu0 %v1792, 36
      %v8887 = vpop.permute.xlu0 %8886
      %8888 = vrot.lane.b32.xlu0 %v1793, 36
      %v8889 = vpop.permute.xlu0 %8888
      %8890 = vrot.lane.b32.xlu0 %v1794, 36
      %v8891 = vpop.permute.xlu0 %8890
      %8892 = vrot.lane.b32.xlu0 %v1795, 36
      %v8893 = vpop.permute.xlu0 %8892
      %8894 = vrot.lane.b32.xlu0 %v1796, 36
      %v8895 = vpop.permute.xlu0 %8894
      %8896 = vrot.lane.b32.xlu0 %v1797, 36
      %v8897 = vpop.permute.xlu0 %8896
      %8898 = vrot.lane.b32.xlu0 %v1798, 36
      %v8899 = vpop.permute.xlu0 %8898
      %8900 = vrot.lane.b32.xlu0 %v1799, 36
      %v8901 = vpop.permute.xlu0 %8900
      %8902 = vrot.lane.b32.xlu0 %v1800, 36
      %v8903 = vpop.permute.xlu0 %8902
      %8904 = vrot.lane.b32.xlu0 %v1801, 36
      %v8905 = vpop.permute.xlu0 %8904
      %8906 = vrot.lane.b32.xlu0 %v1802, 36
      %v8907 = vpop.permute.xlu0 %8906
      %8908 = vrot.lane.b32.xlu0 %v1803, 36
      %v8909 = vpop.permute.xlu0 %8908
      %8910 = vrot.lane.b32.xlu0 %v1804, 36
      %v8911 = vpop.permute.xlu0 %8910
      %8912 = vrot.lane.b32.xlu0 %v1805, 36
      %v8913 = vpop.permute.xlu0 %8912
      %8914 = vrot.lane.b32.xlu0 %v1806, 36
      %v8915 = vpop.permute.xlu0 %8914
      %8916 = vrot.lane.b32.xlu0 %v1807, 36
      %v8917 = vpop.permute.xlu0 %8916
      %8918 = vrot.lane.b32.xlu0 %v1808, 36
      %v8919 = vpop.permute.xlu0 %8918
      %8920 = vrot.lane.b32.xlu0 %v1809, 36
      %v8921 = vpop.permute.xlu0 %8920
      %8922 = vrot.lane.b32.xlu0 %v1810, 36
      %v8923 = vpop.permute.xlu0 %8922
      %8924 = vrot.lane.b32.xlu0 %v1811, 36
      %v8925 = vpop.permute.xlu0 %8924
      %8926 = vrot.lane.b32.xlu0 %v1812, 36
      %v8927 = vpop.permute.xlu0 %8926
      %8928 = vrot.lane.b32.xlu0 %v1813, 36
      %v8929 = vpop.permute.xlu0 %8928
      %8930 = vrot.lane.b32.xlu0 %v1814, 36
      %v8931 = vpop.permute.xlu0 %8930
      %8932 = vrot.lane.b32.xlu0 %v1815, 36
      %v8933 = vpop.permute.xlu0 %8932
      %8934 = vrot.lane.b32.xlu0 %v1816, 36
      %v8935 = vpop.permute.xlu0 %8934
      %9064 = vrot.lane.b32.xlu0 %v1817, 40
      %v9065 = vpop.permute.xlu0 %9064
      %9066 = vrot.lane.b32.xlu0 %v1818, 40
      %v9067 = vpop.permute.xlu0 %9066
      %9068 = vrot.lane.b32.xlu0 %v1819, 40
      %v9069 = vpop.permute.xlu0 %9068
      %9070 = vrot.lane.b32.xlu0 %v1820, 40
      %v9071 = vpop.permute.xlu0 %9070
      %9072 = vrot.lane.b32.xlu0 %v1821, 40
      %v9073 = vpop.permute.xlu0 %9072
      %9074 = vrot.lane.b32.xlu0 %v1822, 40
      %v9075 = vpop.permute.xlu0 %9074
      %9076 = vrot.lane.b32.xlu0 %v1823, 40
      %v9077 = vpop.permute.xlu0 %9076
      %9078 = vrot.lane.b32.xlu0 %v1824, 40
      %v9079 = vpop.permute.xlu0 %9078
      %9080 = vrot.lane.b32.xlu0 %v1825, 40
      %v9081 = vpop.permute.xlu0 %9080
      %9082 = vrot.lane.b32.xlu0 %v1826, 40
      %v9083 = vpop.permute.xlu0 %9082
      %9084 = vrot.lane.b32.xlu0 %v1827, 40
      %v9085 = vpop.permute.xlu0 %9084
      %9086 = vrot.lane.b32.xlu0 %v1828, 40
      %v9087 = vpop.permute.xlu0 %9086
      %9088 = vrot.lane.b32.xlu0 %v1829, 40
      %v9089 = vpop.permute.xlu0 %9088
      %9090 = vrot.lane.b32.xlu0 %v1830, 40
      %v9091 = vpop.permute.xlu0 %9090
      %9092 = vrot.lane.b32.xlu0 %v1831, 40
      %v9093 = vpop.permute.xlu0 %9092
      %9094 = vrot.lane.b32.xlu0 %v1832, 40
      %v9095 = vpop.permute.xlu0 %9094
      %9096 = vrot.lane.b32.xlu0 %v1833, 40
      %v9097 = vpop.permute.xlu0 %9096
      %9098 = vrot.lane.b32.xlu0 %v1834, 40
      %v9099 = vpop.permute.xlu0 %9098
      %9100 = vrot.lane.b32.xlu0 %v1835, 40
      %v9101 = vpop.permute.xlu0 %9100
      %9102 = vrot.lane.b32.xlu0 %v1836, 40
      %v9103 = vpop.permute.xlu0 %9102
      %9104 = vrot.lane.b32.xlu0 %v1837, 40
      %v9105 = vpop.permute.xlu0 %9104
      %9106 = vrot.lane.b32.xlu0 %v1838, 40
      %v9107 = vpop.permute.xlu0 %9106
      %9108 = vrot.lane.b32.xlu0 %v1839, 40
      %v9109 = vpop.permute.xlu0 %9108
      %9110 = vrot.lane.b32.xlu0 %v1840, 40
      %v9111 = vpop.permute.xlu0 %9110
      %9112 = vrot.lane.b32.xlu0 %v1841, 40
      %v9113 = vpop.permute.xlu0 %9112
      %9114 = vrot.lane.b32.xlu0 %v1842, 40
      %v9115 = vpop.permute.xlu0 %9114
      %9116 = vrot.lane.b32.xlu0 %v1843, 40
      %v9117 = vpop.permute.xlu0 %9116
      %9118 = vrot.lane.b32.xlu0 %v1844, 40
      %v9119 = vpop.permute.xlu0 %9118
      %9120 = vrot.lane.b32.xlu0 %v1845, 40
      %v9121 = vpop.permute.xlu0 %9120
      %9122 = vrot.lane.b32.xlu0 %v1846, 40
      %v9123 = vpop.permute.xlu0 %9122
      %9124 = vrot.lane.b32.xlu0 %v1847, 40
      %v9125 = vpop.permute.xlu0 %9124
      %9126 = vrot.lane.b32.xlu0 %v1848, 40
      %v9127 = vpop.permute.xlu0 %9126
      %9128 = vrot.lane.b32.xlu0 %v1849, 40
      %v9129 = vpop.permute.xlu0 %9128
      %9130 = vrot.lane.b32.xlu0 %v1850, 40
      %v9131 = vpop.permute.xlu0 %9130
      %9132 = vrot.lane.b32.xlu0 %v1851, 40
      %v9133 = vpop.permute.xlu0 %9132
      %9134 = vrot.lane.b32.xlu0 %v1852, 40
      %v9135 = vpop.permute.xlu0 %9134
      %9136 = vrot.lane.b32.xlu0 %v1853, 40
      %v9137 = vpop.permute.xlu0 %9136
      %9138 = vrot.lane.b32.xlu0 %v1854, 40
      %v9139 = vpop.permute.xlu0 %9138
      %9140 = vrot.lane.b32.xlu0 %v1855, 40
      %v9141 = vpop.permute.xlu0 %9140
      %9142 = vrot.lane.b32.xlu0 %v1856, 40
      %v9143 = vpop.permute.xlu0 %9142
      %9144 = vrot.lane.b32.xlu0 %v1857, 40
      %v9145 = vpop.permute.xlu0 %9144
      %9146 = vrot.lane.b32.xlu0 %v1858, 40
      %v9147 = vpop.permute.xlu0 %9146
      %9148 = vrot.lane.b32.xlu0 %v1859, 40
      %v9149 = vpop.permute.xlu0 %9148
      %9150 = vrot.lane.b32.xlu0 %v1860, 40
      %v9151 = vpop.permute.xlu0 %9150
      %9152 = vrot.lane.b32.xlu0 %v1861, 40
      %v9153 = vpop.permute.xlu0 %9152
      %9154 = vrot.lane.b32.xlu0 %v1862, 40
      %v9155 = vpop.permute.xlu0 %9154
      %9156 = vrot.lane.b32.xlu0 %v1863, 40
      %v9157 = vpop.permute.xlu0 %9156
      %9158 = vrot.lane.b32.xlu0 %v1864, 40
      %v9159 = vpop.permute.xlu0 %9158
      %9160 = vrot.lane.b32.xlu0 %v1865, 40
      %v9161 = vpop.permute.xlu0 %9160
      %9162 = vrot.lane.b32.xlu0 %v1866, 40
      %v9163 = vpop.permute.xlu0 %9162
      %9164 = vrot.lane.b32.xlu0 %v1867, 40
      %v9165 = vpop.permute.xlu0 %9164
      %9166 = vrot.lane.b32.xlu0 %v1868, 40
      %v9167 = vpop.permute.xlu0 %9166
      %9168 = vrot.lane.b32.xlu0 %v1869, 40
      %v9169 = vpop.permute.xlu0 %9168
      %9170 = vrot.lane.b32.xlu0 %v1870, 40
      %v9171 = vpop.permute.xlu0 %9170
      %9172 = vrot.lane.b32.xlu0 %v1871, 40
      %v9173 = vpop.permute.xlu0 %9172
      %9174 = vrot.lane.b32.xlu0 %v1872, 40
      %v9175 = vpop.permute.xlu0 %9174
      %9176 = vrot.lane.b32.xlu0 %v1873, 40
      %v9177 = vpop.permute.xlu0 %9176
      %9178 = vrot.lane.b32.xlu0 %v1874, 40
      %v9179 = vpop.permute.xlu0 %9178
      %9180 = vrot.lane.b32.xlu0 %v1875, 40
      %v9181 = vpop.permute.xlu0 %9180
      %9182 = vrot.lane.b32.xlu0 %v1876, 40
      %v9183 = vpop.permute.xlu0 %9182
      %9184 = vrot.lane.b32.xlu0 %v1877, 40
      %v9185 = vpop.permute.xlu0 %9184
      %9186 = vrot.lane.b32.xlu0 %v1878, 40
      %v9187 = vpop.permute.xlu0 %9186
      %9188 = vrot.lane.b32.xlu0 %v1879, 40
      %v9189 = vpop.permute.xlu0 %9188
      %9190 = vrot.lane.b32.xlu0 %v1880, 40
      %v9191 = vpop.permute.xlu0 %9190
      %v9256 = vsel %vm5721, %v1174, %v6761
      %v9257 = vsel %vm5721, %v1175, %v6763
      %v9258 = vsel %vm5721, %v1176, %v6765
      %v9259 = vsel %vm5721, %v1177, %v6767
      %v9260 = vsel %vm5721, %v1178, %v6769
      %v9261 = vsel %vm5721, %v1179, %v6771
      %v9262 = vsel %vm5721, %v1180, %v6773
      %v9263 = vsel %vm5721, %v1181, %v6775
      %v9264 = vsel %vm5721, %v1182, %v6777
      %v9265 = vsel %vm5721, %v1183, %v6779
      %v9266 = vsel %vm5721, %v1184, %v6781
      %v9267 = vsel %vm5721, %v1185, %v6783
      %v9268 = vsel %vm5721, %v1186, %v6785
      %v9269 = vsel %vm5721, %v1187, %v6787
      %v9270 = vsel %vm5721, %v1188, %v6789
      %v9271 = vsel %vm5721, %v1189, %v6791
      %v9272 = vsel %vm5721, %v1190, %v6793
      %v9273 = vsel %vm5721, %v1191, %v6795
      %v9274 = vsel %vm5721, %v1192, %v6797
      %v9275 = vsel %vm5721, %v1193, %v6799
      %v9276 = vsel %vm5721, %v1194, %v6801
      %v9277 = vsel %vm5721, %v1195, %v6803
      %v9278 = vsel %vm5721, %v1196, %v6805
      %v9279 = vsel %vm5721, %v1197, %v6807
      %v9280 = vsel %vm5721, %v1198, %v6809
      %v9281 = vsel %vm5721, %v1199, %v6811
      %v9282 = vsel %vm5721, %v1200, %v6813
      %v9283 = vsel %vm5721, %v1201, %v6815
      %v9284 = vsel %vm5721, %v1202, %v6817
      %v9285 = vsel %vm5721, %v1203, %v6819
      %v9286 = vsel %vm5721, %v1204, %v6821
      %v9287 = vsel %vm5721, %v1205, %v6823
      %v9288 = vsel %vm5721, %v1206, %v6825
      %v9289 = vsel %vm5721, %v1207, %v6827
      %v9290 = vsel %vm5721, %v1208, %v6829
      %v9291 = vsel %vm5721, %v1209, %v6831
      %v9292 = vsel %vm5721, %v1210, %v6833
      %v9293 = vsel %vm5721, %v1211, %v6835
      %v9294 = vsel %vm5721, %v1212, %v6837
      %v9295 = vsel %vm5721, %v1213, %v6839
      %v9296 = vsel %vm5721, %v1214, %v6841
      %v9297 = vsel %vm5721, %v1215, %v6843
      %v9298 = vsel %vm5721, %v1216, %v6845
      %v9299 = vsel %vm5721, %v1217, %v6847
      %v9300 = vsel %vm5721, %v1218, %v6849
      %v9301 = vsel %vm5721, %v1219, %v6851
      %v9302 = vsel %vm5721, %v1220, %v6853
      %v9303 = vsel %vm5721, %v1221, %v6855
      %v9304 = vsel %vm5721, %v1222, %v6857
      %v9305 = vsel %vm5721, %v1223, %v6859
      %v9306 = vsel %vm5721, %v1224, %v6861
      %v9307 = vsel %vm5721, %v1225, %v6863
      %v9308 = vsel %vm5721, %v1226, %v6865
      %v9309 = vsel %vm5721, %v1227, %v6867
      %v9310 = vsel %vm5721, %v1228, %v6869
      %v9311 = vsel %vm5721, %v1229, %v6871
      %v9312 = vsel %vm5721, %v1230, %v6873
      %v9313 = vsel %vm5721, %v1231, %v6875
      %v9314 = vsel %vm5721, %v1232, %v6877
      %v9315 = vsel %vm5721, %v1233, %v6879
      %v9316 = vsel %vm5721, %v1234, %v6881
      %v9317 = vsel %vm5721, %v1235, %v6883
      %v9318 = vsel %vm5721, %v1236, %v6885
      %v9319 = vsel %vm5721, %v1237, %v6887
      %v9320 = vsel %vm5786, %v9256, %v7017
      %v9321 = vsel %vm5786, %v9257, %v7019
      %v9322 = vsel %vm5786, %v9258, %v7021
      %v9323 = vsel %vm5786, %v9259, %v7023
      %v9324 = vsel %vm5786, %v9260, %v7025
      %v9325 = vsel %vm5786, %v9261, %v7027
      %v9326 = vsel %vm5786, %v9262, %v7029
      %v9327 = vsel %vm5786, %v9263, %v7031
      %v9328 = vsel %vm5786, %v9264, %v7033
      %v9329 = vsel %vm5786, %v9265, %v7035
      %v9330 = vsel %vm5786, %v9266, %v7037
      %v9331 = vsel %vm5786, %v9267, %v7039
      %v9332 = vsel %vm5786, %v9268, %v7041
      %v9333 = vsel %vm5786, %v9269, %v7043
      %v9334 = vsel %vm5786, %v9270, %v7045
      %v9335 = vsel %vm5786, %v9271, %v7047
      %v9336 = vsel %vm5786, %v9272, %v7049
      %v9337 = vsel %vm5786, %v9273, %v7051
      %v9338 = vsel %vm5786, %v9274, %v7053
      %v9339 = vsel %vm5786, %v9275, %v7055
      %v9340 = vsel %vm5786, %v9276, %v7057
      %v9341 = vsel %vm5786, %v9277, %v7059
      %v9342 = vsel %vm5786, %v9278, %v7061
      %v9343 = vsel %vm5786, %v9279, %v7063
      %v9344 = vsel %vm5786, %v9280, %v7065
      %v9345 = vsel %vm5786, %v9281, %v7067
      %v9346 = vsel %vm5786, %v9282, %v7069
      %v9347 = vsel %vm5786, %v9283, %v7071
      %v9348 = vsel %vm5786, %v9284, %v7073
      %v9349 = vsel %vm5786, %v9285, %v7075
      %v9350 = vsel %vm5786, %v9286, %v7077
      %v9351 = vsel %vm5786, %v9287, %v7079
      %v9352 = vsel %vm5786, %v9288, %v7081
      %v9353 = vsel %vm5786, %v9289, %v7083
      %v9354 = vsel %vm5786, %v9290, %v7085
      %v9355 = vsel %vm5786, %v9291, %v7087
      %v9356 = vsel %vm5786, %v9292, %v7089
      %v9357 = vsel %vm5786, %v9293, %v7091
      %v9358 = vsel %vm5786, %v9294, %v7093
      %v9359 = vsel %vm5786, %v9295, %v7095
      %v9360 = vsel %vm5786, %v9296, %v7097
      %v9361 = vsel %vm5786, %v9297, %v7099
      %v9362 = vsel %vm5786, %v9298, %v7101
      %v9363 = vsel %vm5786, %v9299, %v7103
      %v9364 = vsel %vm5786, %v9300, %v7105
      %v9365 = vsel %vm5786, %v9301, %v7107
      %v9366 = vsel %vm5786, %v9302, %v7109
      %v9367 = vsel %vm5786, %v9303, %v7111
      %v9368 = vsel %vm5786, %v9304, %v7113
      %v9369 = vsel %vm5786, %v9305, %v7115
      %v9370 = vsel %vm5786, %v9306, %v7117
      %v9371 = vsel %vm5786, %v9307, %v7119
      %v9372 = vsel %vm5786, %v9308, %v7121
      %v9373 = vsel %vm5786, %v9309, %v7123
      %v9374 = vsel %vm5786, %v9310, %v7125
      %v9375 = vsel %vm5786, %v9311, %v7127
      %v9376 = vsel %vm5786, %v9312, %v7129
      %v9377 = vsel %vm5786, %v9313, %v7131
      %v9378 = vsel %vm5786, %v9314, %v7133
      %v9379 = vsel %vm5786, %v9315, %v7135
      %v9380 = vsel %vm5786, %v9316, %v7137
      %v9381 = vsel %vm5786, %v9317, %v7139
      %v9382 = vsel %vm5786, %v9318, %v7141
      %v9383 = vsel %vm5786, %v9319, %v7143
      %v9384 = vsel %vm5851, %v9320, %v7273
      %v9385 = vsel %vm5851, %v9321, %v7275
      %v9386 = vsel %vm5851, %v9322, %v7277
      %v9387 = vsel %vm5851, %v9323, %v7279
      %v9388 = vsel %vm5851, %v9324, %v7281
      %v9389 = vsel %vm5851, %v9325, %v7283
      %v9390 = vsel %vm5851, %v9326, %v7285
      %v9391 = vsel %vm5851, %v9327, %v7287
      %v9392 = vsel %vm5851, %v9328, %v7289
      %v9393 = vsel %vm5851, %v9329, %v7291
      %v9394 = vsel %vm5851, %v9330, %v7293
      %v9395 = vsel %vm5851, %v9331, %v7295
      %v9396 = vsel %vm5851, %v9332, %v7297
      %v9397 = vsel %vm5851, %v9333, %v7299
      %v9398 = vsel %vm5851, %v9334, %v7301
      %v9399 = vsel %vm5851, %v9335, %v7303
      %v9400 = vsel %vm5851, %v9336, %v7305
      %v9401 = vsel %vm5851, %v9337, %v7307
      %v9402 = vsel %vm5851, %v9338, %v7309
      %v9403 = vsel %vm5851, %v9339, %v7311
      %v9404 = vsel %vm5851, %v9340, %v7313
      %v9405 = vsel %vm5851, %v9341, %v7315
      %v9406 = vsel %vm5851, %v9342, %v7317
      %v9407 = vsel %vm5851, %v9343, %v7319
      %v9408 = vsel %vm5851, %v9344, %v7321
      %v9409 = vsel %vm5851, %v9345, %v7323
      %v9410 = vsel %vm5851, %v9346, %v7325
      %v9411 = vsel %vm5851, %v9347, %v7327
      %v9412 = vsel %vm5851, %v9348, %v7329
      %v9413 = vsel %vm5851, %v9349, %v7331
      %v9414 = vsel %vm5851, %v9350, %v7333
      %v9415 = vsel %vm5851, %v9351, %v7335
      %v9416 = vsel %vm5851, %v9352, %v7337
      %v9417 = vsel %vm5851, %v9353, %v7339
      %v9418 = vsel %vm5851, %v9354, %v7341
      %v9419 = vsel %vm5851, %v9355, %v7343
      %v9420 = vsel %vm5851, %v9356, %v7345
      %v9421 = vsel %vm5851, %v9357, %v7347
      %v9422 = vsel %vm5851, %v9358, %v7349
      %v9423 = vsel %vm5851, %v9359, %v7351
      %v9424 = vsel %vm5851, %v9360, %v7353
      %v9425 = vsel %vm5851, %v9361, %v7355
      %v9426 = vsel %vm5851, %v9362, %v7357
      %v9427 = vsel %vm5851, %v9363, %v7359
      %v9428 = vsel %vm5851, %v9364, %v7361
      %v9429 = vsel %vm5851, %v9365, %v7363
      %v9430 = vsel %vm5851, %v9366, %v7365
      %v9431 = vsel %vm5851, %v9367, %v7367
      %v9432 = vsel %vm5851, %v9368, %v7369
      %v9433 = vsel %vm5851, %v9369, %v7371
      %v9434 = vsel %vm5851, %v9370, %v7373
      %v9435 = vsel %vm5851, %v9371, %v7375
      %v9436 = vsel %vm5851, %v9372, %v7377
      %v9437 = vsel %vm5851, %v9373, %v7379
      %v9438 = vsel %vm5851, %v9374, %v7381
      %v9439 = vsel %vm5851, %v9375, %v7383
      %v9440 = vsel %vm5851, %v9376, %v7385
      %v9441 = vsel %vm5851, %v9377, %v7387
      %v9442 = vsel %vm5851, %v9378, %v7389
      %v9443 = vsel %vm5851, %v9379, %v7391
      %v9444 = vsel %vm5851, %v9380, %v7393
      %v9445 = vsel %vm5851, %v9381, %v7395
      %v9446 = vsel %vm5851, %v9382, %v7397
      %v9447 = vsel %vm5851, %v9383, %v7399
      %v9448 = vsel %vm5916, %v9384, %v7529
      %v9449 = vsel %vm5916, %v9385, %v7531
      %v9450 = vsel %vm5916, %v9386, %v7533
      %v9451 = vsel %vm5916, %v9387, %v7535
      %v9452 = vsel %vm5916, %v9388, %v7537
      %v9453 = vsel %vm5916, %v9389, %v7539
      %v9454 = vsel %vm5916, %v9390, %v7541
      %v9455 = vsel %vm5916, %v9391, %v7543
      %v9456 = vsel %vm5916, %v9392, %v7545
      %v9457 = vsel %vm5916, %v9393, %v7547
      %v9458 = vsel %vm5916, %v9394, %v7549
      %v9459 = vsel %vm5916, %v9395, %v7551
      %v9460 = vsel %vm5916, %v9396, %v7553
      %v9461 = vsel %vm5916, %v9397, %v7555
      %v9462 = vsel %vm5916, %v9398, %v7557
      %v9463 = vsel %vm5916, %v9399, %v7559
      %v9464 = vsel %vm5916, %v9400, %v7561
      %v9465 = vsel %vm5916, %v9401, %v7563
      %v9466 = vsel %vm5916, %v9402, %v7565
      %v9467 = vsel %vm5916, %v9403, %v7567
      %v9468 = vsel %vm5916, %v9404, %v7569
      %v9469 = vsel %vm5916, %v9405, %v7571
      %v9470 = vsel %vm5916, %v9406, %v7573
      %v9471 = vsel %vm5916, %v9407, %v7575
      %v9472 = vsel %vm5916, %v9408, %v7577
      %v9473 = vsel %vm5916, %v9409, %v7579
      %v9474 = vsel %vm5916, %v9410, %v7581
      %v9475 = vsel %vm5916, %v9411, %v7583
      %v9476 = vsel %vm5916, %v9412, %v7585
      %v9477 = vsel %vm5916, %v9413, %v7587
      %v9478 = vsel %vm5916, %v9414, %v7589
      %v9479 = vsel %vm5916, %v9415, %v7591
      %v9480 = vsel %vm5916, %v9416, %v7593
      %v9481 = vsel %vm5916, %v9417, %v7595
      %v9482 = vsel %vm5916, %v9418, %v7597
      %v9483 = vsel %vm5916, %v9419, %v7599
      %v9484 = vsel %vm5916, %v9420, %v7601
      %v9485 = vsel %vm5916, %v9421, %v7603
      %v9486 = vsel %vm5916, %v9422, %v7605
      %v9487 = vsel %vm5916, %v9423, %v7607
      %v9488 = vsel %vm5916, %v9424, %v7609
      %v9489 = vsel %vm5916, %v9425, %v7611
      %v9490 = vsel %vm5916, %v9426, %v7613
      %v9491 = vsel %vm5916, %v9427, %v7615
      %v9492 = vsel %vm5916, %v9428, %v7617
      %v9493 = vsel %vm5916, %v9429, %v7619
      %v9494 = vsel %vm5916, %v9430, %v7621
      %v9495 = vsel %vm5916, %v9431, %v7623
      %v9496 = vsel %vm5916, %v9432, %v7625
      %v9497 = vsel %vm5916, %v9433, %v7627
      %v9498 = vsel %vm5916, %v9434, %v7629
      %v9499 = vsel %vm5916, %v9435, %v7631
      %v9500 = vsel %vm5916, %v9436, %v7633
      %v9501 = vsel %vm5916, %v9437, %v7635
      %v9502 = vsel %vm5916, %v9438, %v7637
      %v9503 = vsel %vm5916, %v9439, %v7639
      %v9504 = vsel %vm5916, %v9440, %v7641
      %v9505 = vsel %vm5916, %v9441, %v7643
      %v9506 = vsel %vm5916, %v9442, %v7645
      %v9507 = vsel %vm5916, %v9443, %v7647
      %v9508 = vsel %vm5916, %v9444, %v7649
      %v9509 = vsel %vm5916, %v9445, %v7651
      %v9510 = vsel %vm5916, %v9446, %v7653
      %v9511 = vsel %vm5916, %v9447, %v7655
      %v9512 = vsel %vm5981, %v9448, %v7785
      %v9513 = vsel %vm5981, %v9449, %v7787
      %v9514 = vsel %vm5981, %v9450, %v7789
      %v9515 = vsel %vm5981, %v9451, %v7791
      %v9516 = vsel %vm5981, %v9452, %v7793
      %v9517 = vsel %vm5981, %v9453, %v7795
      %v9518 = vsel %vm5981, %v9454, %v7797
      %v9519 = vsel %vm5981, %v9455, %v7799
      %v9520 = vsel %vm5981, %v9456, %v7801
      %v9521 = vsel %vm5981, %v9457, %v7803
      %v9522 = vsel %vm5981, %v9458, %v7805
      %v9523 = vsel %vm5981, %v9459, %v7807
      %v9524 = vsel %vm5981, %v9460, %v7809
      %v9525 = vsel %vm5981, %v9461, %v7811
      %v9526 = vsel %vm5981, %v9462, %v7813
      %v9527 = vsel %vm5981, %v9463, %v7815
      %v9528 = vsel %vm5981, %v9464, %v7817
      %v9529 = vsel %vm5981, %v9465, %v7819
      %v9530 = vsel %vm5981, %v9466, %v7821
      %v9531 = vsel %vm5981, %v9467, %v7823
      %v9532 = vsel %vm5981, %v9468, %v7825
      %v9533 = vsel %vm5981, %v9469, %v7827
      %v9534 = vsel %vm5981, %v9470, %v7829
      %v9535 = vsel %vm5981, %v9471, %v7831
      %v9536 = vsel %vm5981, %v9472, %v7833
      %v9537 = vsel %vm5981, %v9473, %v7835
      %v9538 = vsel %vm5981, %v9474, %v7837
      %v9539 = vsel %vm5981, %v9475, %v7839
      %v9540 = vsel %vm5981, %v9476, %v7841
      %v9541 = vsel %vm5981, %v9477, %v7843
      %v9542 = vsel %vm5981, %v9478, %v7845
      %v9543 = vsel %vm5981, %v9479, %v7847
      %v9544 = vsel %vm5981, %v9480, %v7849
      %v9545 = vsel %vm5981, %v9481, %v7851
      %v9546 = vsel %vm5981, %v9482, %v7853
      %v9547 = vsel %vm5981, %v9483, %v7855
      %v9548 = vsel %vm5981, %v9484, %v7857
      %v9549 = vsel %vm5981, %v9485, %v7859
      %v9550 = vsel %vm5981, %v9486, %v7861
      %v9551 = vsel %vm5981, %v9487, %v7863
      %v9552 = vsel %vm5981, %v9488, %v7865
      %v9553 = vsel %vm5981, %v9489, %v7867
      %v9554 = vsel %vm5981, %v9490, %v7869
      %v9555 = vsel %vm5981, %v9491, %v7871
      %v9556 = vsel %vm5981, %v9492, %v7873
      %v9557 = vsel %vm5981, %v9493, %v7875
      %v9558 = vsel %vm5981, %v9494, %v7877
      %v9559 = vsel %vm5981, %v9495, %v7879
      %v9560 = vsel %vm5981, %v9496, %v7881
      %v9561 = vsel %vm5981, %v9497, %v7883
      %v9562 = vsel %vm5981, %v9498, %v7885
      %v9563 = vsel %vm5981, %v9499, %v7887
      %v9564 = vsel %vm5981, %v9500, %v7889
      %v9565 = vsel %vm5981, %v9501, %v7891
      %v9566 = vsel %vm5981, %v9502, %v7893
      %v9567 = vsel %vm5981, %v9503, %v7895
      %v9568 = vsel %vm5981, %v9504, %v7897
      %v9569 = vsel %vm5981, %v9505, %v7899
      %v9570 = vsel %vm5981, %v9506, %v7901
      %v9571 = vsel %vm5981, %v9507, %v7903
      %v9572 = vsel %vm5981, %v9508, %v7905
      %v9573 = vsel %vm5981, %v9509, %v7907
      %v9574 = vsel %vm5981, %v9510, %v7909
      %v9575 = vsel %vm5981, %v9511, %v7911
      %v9576 = vsel %vm6046, %v9512, %v8041
      %v9577 = vsel %vm6046, %v9513, %v8043
      %v9578 = vsel %vm6046, %v9514, %v8045
      %v9579 = vsel %vm6046, %v9515, %v8047
      %v9580 = vsel %vm6046, %v9516, %v8049
      %v9581 = vsel %vm6046, %v9517, %v8051
      %v9582 = vsel %vm6046, %v9518, %v8053
      %v9583 = vsel %vm6046, %v9519, %v8055
      %v9584 = vsel %vm6046, %v9520, %v8057
      %v9585 = vsel %vm6046, %v9521, %v8059
      %v9586 = vsel %vm6046, %v9522, %v8061
      %v9587 = vsel %vm6046, %v9523, %v8063
      %v9588 = vsel %vm6046, %v9524, %v8065
      %v9589 = vsel %vm6046, %v9525, %v8067
      %v9590 = vsel %vm6046, %v9526, %v8069
      %v9591 = vsel %vm6046, %v9527, %v8071
      %v9592 = vsel %vm6046, %v9528, %v8073
      %v9593 = vsel %vm6046, %v9529, %v8075
      %v9594 = vsel %vm6046, %v9530, %v8077
      %v9595 = vsel %vm6046, %v9531, %v8079
      %v9596 = vsel %vm6046, %v9532, %v8081
      %v9597 = vsel %vm6046, %v9533, %v8083
      %v9598 = vsel %vm6046, %v9534, %v8085
      %v9599 = vsel %vm6046, %v9535, %v8087
      %v9600 = vsel %vm6046, %v9536, %v8089
      %v9601 = vsel %vm6046, %v9537, %v8091
      %v9602 = vsel %vm6046, %v9538, %v8093
      %v9603 = vsel %vm6046, %v9539, %v8095
      %v9604 = vsel %vm6046, %v9540, %v8097
      %v9605 = vsel %vm6046, %v9541, %v8099
      %v9606 = vsel %vm6046, %v9542, %v8101
      %v9607 = vsel %vm6046, %v9543, %v8103
      %v9608 = vsel %vm6046, %v9544, %v8105
      %v9609 = vsel %vm6046, %v9545, %v8107
      %v9610 = vsel %vm6046, %v9546, %v8109
      %v9611 = vsel %vm6046, %v9547, %v8111
      %v9612 = vsel %vm6046, %v9548, %v8113
      %v9613 = vsel %vm6046, %v9549, %v8115
      %v9614 = vsel %vm6046, %v9550, %v8117
      %v9615 = vsel %vm6046, %v9551, %v8119
      %v9616 = vsel %vm6046, %v9552, %v8121
      %v9617 = vsel %vm6046, %v9553, %v8123
      %v9618 = vsel %vm6046, %v9554, %v8125
      %v9619 = vsel %vm6046, %v9555, %v8127
      %v9620 = vsel %vm6046, %v9556, %v8129
      %v9621 = vsel %vm6046, %v9557, %v8131
      %v9622 = vsel %vm6046, %v9558, %v8133
      %v9623 = vsel %vm6046, %v9559, %v8135
      %v9624 = vsel %vm6046, %v9560, %v8137
      %v9625 = vsel %vm6046, %v9561, %v8139
      %v9626 = vsel %vm6046, %v9562, %v8141
      %v9627 = vsel %vm6046, %v9563, %v8143
      %v9628 = vsel %vm6046, %v9564, %v8145
      %v9629 = vsel %vm6046, %v9565, %v8147
      %v9630 = vsel %vm6046, %v9566, %v8149
      %v9631 = vsel %vm6046, %v9567, %v8151
      %v9632 = vsel %vm6046, %v9568, %v8153
      %v9633 = vsel %vm6046, %v9569, %v8155
      %v9634 = vsel %vm6046, %v9570, %v8157
      %v9635 = vsel %vm6046, %v9571, %v8159
      %v9636 = vsel %vm6046, %v9572, %v8161
      %v9637 = vsel %vm6046, %v9573, %v8163
      %v9638 = vsel %vm6046, %v9574, %v8165
      %v9639 = vsel %vm6046, %v9575, %v8167
      %v9640 = vsel %vm6111, %v9576, %v8297
      %v9641 = vsel %vm6111, %v9577, %v8299
      %v9642 = vsel %vm6111, %v9578, %v8301
      %v9643 = vsel %vm6111, %v9579, %v8303
      %v9644 = vsel %vm6111, %v9580, %v8305
      %v9645 = vsel %vm6111, %v9581, %v8307
      %v9646 = vsel %vm6111, %v9582, %v8309
      %v9647 = vsel %vm6111, %v9583, %v8311
      %v9648 = vsel %vm6111, %v9584, %v8313
      %v9649 = vsel %vm6111, %v9585, %v8315
      %v9650 = vsel %vm6111, %v9586, %v8317
      %v9651 = vsel %vm6111, %v9587, %v8319
      %v9652 = vsel %vm6111, %v9588, %v8321
      %v9653 = vsel %vm6111, %v9589, %v8323
      %v9654 = vsel %vm6111, %v9590, %v8325
      %v9655 = vsel %vm6111, %v9591, %v8327
      %v9656 = vsel %vm6111, %v9592, %v8329
      %v9657 = vsel %vm6111, %v9593, %v8331
      %v9658 = vsel %vm6111, %v9594, %v8333
      %v9659 = vsel %vm6111, %v9595, %v8335
      %v9660 = vsel %vm6111, %v9596, %v8337
      %v9661 = vsel %vm6111, %v9597, %v8339
      %v9662 = vsel %vm6111, %v9598, %v8341
      %v9663 = vsel %vm6111, %v9599, %v8343
      %v9664 = vsel %vm6111, %v9600, %v8345
      %v9665 = vsel %vm6111, %v9601, %v8347
      %v9666 = vsel %vm6111, %v9602, %v8349
      %v9667 = vsel %vm6111, %v9603, %v8351
      %v9668 = vsel %vm6111, %v9604, %v8353
      %v9669 = vsel %vm6111, %v9605, %v8355
      %v9670 = vsel %vm6111, %v9606, %v8357
      %v9671 = vsel %vm6111, %v9607, %v8359
      %v9672 = vsel %vm6111, %v9608, %v8361
      %v9673 = vsel %vm6111, %v9609, %v8363
      %v9674 = vsel %vm6111, %v9610, %v8365
      %v9675 = vsel %vm6111, %v9611, %v8367
      %v9676 = vsel %vm6111, %v9612, %v8369
      %v9677 = vsel %vm6111, %v9613, %v8371
      %v9678 = vsel %vm6111, %v9614, %v8373
      %v9679 = vsel %vm6111, %v9615, %v8375
      %v9680 = vsel %vm6111, %v9616, %v8377
      %v9681 = vsel %vm6111, %v9617, %v8379
      %v9682 = vsel %vm6111, %v9618, %v8381
      %v9683 = vsel %vm6111, %v9619, %v8383
      %v9684 = vsel %vm6111, %v9620, %v8385
      %v9685 = vsel %vm6111, %v9621, %v8387
      %v9686 = vsel %vm6111, %v9622, %v8389
      %v9687 = vsel %vm6111, %v9623, %v8391
      %v9688 = vsel %vm6111, %v9624, %v8393
      %v9689 = vsel %vm6111, %v9625, %v8395
      %v9690 = vsel %vm6111, %v9626, %v8397
      %v9691 = vsel %vm6111, %v9627, %v8399
      %v9692 = vsel %vm6111, %v9628, %v8401
      %v9693 = vsel %vm6111, %v9629, %v8403
      %v9694 = vsel %vm6111, %v9630, %v8405
      %v9695 = vsel %vm6111, %v9631, %v8407
      %v9696 = vsel %vm6111, %v9632, %v8409
      %v9697 = vsel %vm6111, %v9633, %v8411
      %v9698 = vsel %vm6111, %v9634, %v8413
      %v9699 = vsel %vm6111, %v9635, %v8415
      %v9700 = vsel %vm6111, %v9636, %v8417
      %v9701 = vsel %vm6111, %v9637, %v8419
      %v9702 = vsel %vm6111, %v9638, %v8421
      %v9703 = vsel %vm6111, %v9639, %v8423
      %v9704 = vsel %vm6176, %v9640, %v8553
      %v9705 = vsel %vm6176, %v9641, %v8555
      %v9706 = vsel %vm6176, %v9642, %v8557
      %v9707 = vsel %vm6176, %v9643, %v8559
      %v9708 = vsel %vm6176, %v9644, %v8561
      %v9709 = vsel %vm6176, %v9645, %v8563
      %v9710 = vsel %vm6176, %v9646, %v8565
      %v9711 = vsel %vm6176, %v9647, %v8567
      %v9712 = vsel %vm6176, %v9648, %v8569
      %v9713 = vsel %vm6176, %v9649, %v8571
      %v9714 = vsel %vm6176, %v9650, %v8573
      %v9715 = vsel %vm6176, %v9651, %v8575
      %v9716 = vsel %vm6176, %v9652, %v8577
      %v9717 = vsel %vm6176, %v9653, %v8579
      %v9718 = vsel %vm6176, %v9654, %v8581
      %v9719 = vsel %vm6176, %v9655, %v8583
      %v9720 = vsel %vm6176, %v9656, %v8585
      %v9721 = vsel %vm6176, %v9657, %v8587
      %v9722 = vsel %vm6176, %v9658, %v8589
      %v9723 = vsel %vm6176, %v9659, %v8591
      %v9724 = vsel %vm6176, %v9660, %v8593
      %v9725 = vsel %vm6176, %v9661, %v8595
      %v9726 = vsel %vm6176, %v9662, %v8597
      %v9727 = vsel %vm6176, %v9663, %v8599
      %v9728 = vsel %vm6176, %v9664, %v8601
      %v9729 = vsel %vm6176, %v9665, %v8603
      %v9730 = vsel %vm6176, %v9666, %v8605
      %v9731 = vsel %vm6176, %v9667, %v8607
      %v9732 = vsel %vm6176, %v9668, %v8609
      %v9733 = vsel %vm6176, %v9669, %v8611
      %v9734 = vsel %vm6176, %v9670, %v8613
      %v9735 = vsel %vm6176, %v9671, %v8615
      %v9736 = vsel %vm6176, %v9672, %v8617
      %v9737 = vsel %vm6176, %v9673, %v8619
      %v9738 = vsel %vm6176, %v9674, %v8621
      %v9739 = vsel %vm6176, %v9675, %v8623
      %v9740 = vsel %vm6176, %v9676, %v8625
      %v9741 = vsel %vm6176, %v9677, %v8627
      %v9742 = vsel %vm6176, %v9678, %v8629
      %v9743 = vsel %vm6176, %v9679, %v8631
      %v9744 = vsel %vm6176, %v9680, %v8633
      %v9745 = vsel %vm6176, %v9681, %v8635
      %v9746 = vsel %vm6176, %v9682, %v8637
      %v9747 = vsel %vm6176, %v9683, %v8639
      %v9748 = vsel %vm6176, %v9684, %v8641
      %v9749 = vsel %vm6176, %v9685, %v8643
      %v9750 = vsel %vm6176, %v9686, %v8645
      %v9751 = vsel %vm6176, %v9687, %v8647
      %v9752 = vsel %vm6176, %v9688, %v8649
      %v9753 = vsel %vm6176, %v9689, %v8651
      %v9754 = vsel %vm6176, %v9690, %v8653
      %v9755 = vsel %vm6176, %v9691, %v8655
      %v9756 = vsel %vm6176, %v9692, %v8657
      %v9757 = vsel %vm6176, %v9693, %v8659
      %v9758 = vsel %vm6176, %v9694, %v8661
      %v9759 = vsel %vm6176, %v9695, %v8663
      %v9760 = vsel %vm6176, %v9696, %v8665
      %v9761 = vsel %vm6176, %v9697, %v8667
      %v9762 = vsel %vm6176, %v9698, %v8669
      %v9763 = vsel %vm6176, %v9699, %v8671
      %v9764 = vsel %vm6176, %v9700, %v8673
      %v9765 = vsel %vm6176, %v9701, %v8675
      %v9766 = vsel %vm6176, %v9702, %v8677
      %v9767 = vsel %vm6176, %v9703, %v8679
      %v9768 = vsel %vm6241, %v9704, %v8809
      %v9769 = vsel %vm6241, %v9705, %v8811
      %v9770 = vsel %vm6241, %v9706, %v8813
      %v9771 = vsel %vm6241, %v9707, %v8815
      %v9772 = vsel %vm6241, %v9708, %v8817
      %v9773 = vsel %vm6241, %v9709, %v8819
      %v9774 = vsel %vm6241, %v9710, %v8821
      %v9775 = vsel %vm6241, %v9711, %v8823
      %v9776 = vsel %vm6241, %v9712, %v8825
      %v9777 = vsel %vm6241, %v9713, %v8827
      %v9778 = vsel %vm6241, %v9714, %v8829
      %v9779 = vsel %vm6241, %v9715, %v8831
      %v9780 = vsel %vm6241, %v9716, %v8833
      %v9781 = vsel %vm6241, %v9717, %v8835
      %v9782 = vsel %vm6241, %v9718, %v8837
      %v9783 = vsel %vm6241, %v9719, %v8839
      %v9784 = vsel %vm6241, %v9720, %v8841
      %v9785 = vsel %vm6241, %v9721, %v8843
      %v9786 = vsel %vm6241, %v9722, %v8845
      %v9787 = vsel %vm6241, %v9723, %v8847
      %v9788 = vsel %vm6241, %v9724, %v8849
      %v9789 = vsel %vm6241, %v9725, %v8851
      %v9790 = vsel %vm6241, %v9726, %v8853
      %v9791 = vsel %vm6241, %v9727, %v8855
      %v9792 = vsel %vm6241, %v9728, %v8857
      %v9793 = vsel %vm6241, %v9729, %v8859
      %v9794 = vsel %vm6241, %v9730, %v8861
      %v9795 = vsel %vm6241, %v9731, %v8863
      %v9796 = vsel %vm6241, %v9732, %v8865
      %v9797 = vsel %vm6241, %v9733, %v8867
      %v9798 = vsel %vm6241, %v9734, %v8869
      %v9799 = vsel %vm6241, %v9735, %v8871
      %v9800 = vsel %vm6241, %v9736, %v8873
      %v9801 = vsel %vm6241, %v9737, %v8875
      %v9802 = vsel %vm6241, %v9738, %v8877
      %v9803 = vsel %vm6241, %v9739, %v8879
      %v9804 = vsel %vm6241, %v9740, %v8881
      %v9805 = vsel %vm6241, %v9741, %v8883
      %v9806 = vsel %vm6241, %v9742, %v8885
      %v9807 = vsel %vm6241, %v9743, %v8887
      %v9808 = vsel %vm6241, %v9744, %v8889
      %v9809 = vsel %vm6241, %v9745, %v8891
      %v9810 = vsel %vm6241, %v9746, %v8893
      %v9811 = vsel %vm6241, %v9747, %v8895
      %v9812 = vsel %vm6241, %v9748, %v8897
      %v9813 = vsel %vm6241, %v9749, %v8899
      %v9814 = vsel %vm6241, %v9750, %v8901
      %v9815 = vsel %vm6241, %v9751, %v8903
      %v9816 = vsel %vm6241, %v9752, %v8905
      %v9817 = vsel %vm6241, %v9753, %v8907
      %v9818 = vsel %vm6241, %v9754, %v8909
      %v9819 = vsel %vm6241, %v9755, %v8911
      %v9820 = vsel %vm6241, %v9756, %v8913
      %v9821 = vsel %vm6241, %v9757, %v8915
      %v9822 = vsel %vm6241, %v9758, %v8917
      %v9823 = vsel %vm6241, %v9759, %v8919
      %v9824 = vsel %vm6241, %v9760, %v8921
      %v9825 = vsel %vm6241, %v9761, %v8923
      %v9826 = vsel %vm6241, %v9762, %v8925
      %v9827 = vsel %vm6241, %v9763, %v8927
      %v9828 = vsel %vm6241, %v9764, %v8929
      %v9829 = vsel %vm6241, %v9765, %v8931
      %v9830 = vsel %vm6241, %v9766, %v8933
      %v9831 = vsel %vm6241, %v9767, %v8935
      %v9832 = vsel %vm6306, %v9768, %v9065
      %v9833 = vsel %vm6306, %v9769, %v9067
      %v9834 = vsel %vm6306, %v9770, %v9069
      %v9835 = vsel %vm6306, %v9771, %v9071
      %v9836 = vsel %vm6306, %v9772, %v9073
      %v9837 = vsel %vm6306, %v9773, %v9075
      %v9838 = vsel %vm6306, %v9774, %v9077
      %v9839 = vsel %vm6306, %v9775, %v9079
      %v9840 = vsel %vm6306, %v9776, %v9081
      %v9841 = vsel %vm6306, %v9777, %v9083
      %v9842 = vsel %vm6306, %v9778, %v9085
      %v9843 = vsel %vm6306, %v9779, %v9087
      %v9844 = vsel %vm6306, %v9780, %v9089
      %v9845 = vsel %vm6306, %v9781, %v9091
      %v9846 = vsel %vm6306, %v9782, %v9093
      %v9847 = vsel %vm6306, %v9783, %v9095
      %v9848 = vsel %vm6306, %v9784, %v9097
      %v9849 = vsel %vm6306, %v9785, %v9099
      %v9850 = vsel %vm6306, %v9786, %v9101
      %v9851 = vsel %vm6306, %v9787, %v9103
      %v9852 = vsel %vm6306, %v9788, %v9105
      %v9853 = vsel %vm6306, %v9789, %v9107
      %v9854 = vsel %vm6306, %v9790, %v9109
      %v9855 = vsel %vm6306, %v9791, %v9111
      %v9856 = vsel %vm6306, %v9792, %v9113
      %v9857 = vsel %vm6306, %v9793, %v9115
      %v9858 = vsel %vm6306, %v9794, %v9117
      %v9859 = vsel %vm6306, %v9795, %v9119
      %v9860 = vsel %vm6306, %v9796, %v9121
      %v9861 = vsel %vm6306, %v9797, %v9123
      %v9862 = vsel %vm6306, %v9798, %v9125
      %v9863 = vsel %vm6306, %v9799, %v9127
      %v9864 = vsel %vm6306, %v9800, %v9129
      %v9865 = vsel %vm6306, %v9801, %v9131
      %v9866 = vsel %vm6306, %v9802, %v9133
      %v9867 = vsel %vm6306, %v9803, %v9135
      %v9868 = vsel %vm6306, %v9804, %v9137
      %v9869 = vsel %vm6306, %v9805, %v9139
      %v9870 = vsel %vm6306, %v9806, %v9141
      %v9871 = vsel %vm6306, %v9807, %v9143
      %v9872 = vsel %vm6306, %v9808, %v9145
      %v9873 = vsel %vm6306, %v9809, %v9147
      %v9874 = vsel %vm6306, %v9810, %v9149
      %v9875 = vsel %vm6306, %v9811, %v9151
      %v9876 = vsel %vm6306, %v9812, %v9153
      %v9877 = vsel %vm6306, %v9813, %v9155
      %v9878 = vsel %vm6306, %v9814, %v9157
      %v9879 = vsel %vm6306, %v9815, %v9159
      %v9880 = vsel %vm6306, %v9816, %v9161
      %v9881 = vsel %vm6306, %v9817, %v9163
      %v9882 = vsel %vm6306, %v9818, %v9165
      %v9883 = vsel %vm6306, %v9819, %v9167
      %v9884 = vsel %vm6306, %v9820, %v9169
      %v9885 = vsel %vm6306, %v9821, %v9171
      %v9886 = vsel %vm6306, %v9822, %v9173
      %v9887 = vsel %vm6306, %v9823, %v9175
      %v9888 = vsel %vm6306, %v9824, %v9177
      %v9889 = vsel %vm6306, %v9825, %v9179
      %v9890 = vsel %vm6306, %v9826, %v9181
      %v9891 = vsel %vm6306, %v9827, %v9183
      %v9892 = vsel %vm6306, %v9828, %v9185
      %v9893 = vsel %vm6306, %v9829, %v9187
      %v9894 = vsel %vm6306, %v9830, %v9189
      %v9895 = vsel %vm6306, %v9831, %v9191
      %9960 = vrot.lane.b32.xlu0 %v9832, 64
      %v9961 = vpop.permute.xlu0 %9960
      %9962 = vrot.lane.b32.xlu0 %v9833, 64
      %v9963 = vpop.permute.xlu0 %9962
      %9964 = vrot.lane.b32.xlu0 %v9834, 64
      %v9965 = vpop.permute.xlu0 %9964
      %9966 = vrot.lane.b32.xlu0 %v9835, 64
      %v9967 = vpop.permute.xlu0 %9966
      %9968 = vrot.lane.b32.xlu0 %v9836, 64
      %v9969 = vpop.permute.xlu0 %9968
      %9970 = vrot.lane.b32.xlu0 %v9837, 64
      %v9971 = vpop.permute.xlu0 %9970
      %9972 = vrot.lane.b32.xlu0 %v9838, 64
      %v9973 = vpop.permute.xlu0 %9972
      %9974 = vrot.lane.b32.xlu0 %v9839, 64
      %v9975 = vpop.permute.xlu0 %9974
      %9976 = vrot.lane.b32.xlu0 %v9840, 64
      %v9977 = vpop.permute.xlu0 %9976
      %9978 = vrot.lane.b32.xlu0 %v9841, 64
      %v9979 = vpop.permute.xlu0 %9978
      %9980 = vrot.lane.b32.xlu0 %v9842, 64
      %v9981 = vpop.permute.xlu0 %9980
      %9982 = vrot.lane.b32.xlu0 %v9843, 64
      %v9983 = vpop.permute.xlu0 %9982
      %9984 = vrot.lane.b32.xlu0 %v9844, 64
      %v9985 = vpop.permute.xlu0 %9984
      %9986 = vrot.lane.b32.xlu0 %v9845, 64
      %v9987 = vpop.permute.xlu0 %9986
      %9988 = vrot.lane.b32.xlu0 %v9846, 64
      %v9989 = vpop.permute.xlu0 %9988
      %9990 = vrot.lane.b32.xlu0 %v9847, 64
      %v9991 = vpop.permute.xlu0 %9990
      %9992 = vrot.lane.b32.xlu0 %v9848, 64
      %v9993 = vpop.permute.xlu0 %9992
      %9994 = vrot.lane.b32.xlu0 %v9849, 64
      %v9995 = vpop.permute.xlu0 %9994
      %9996 = vrot.lane.b32.xlu0 %v9850, 64
      %v9997 = vpop.permute.xlu0 %9996
      %9998 = vrot.lane.b32.xlu0 %v9851, 64
      %v9999 = vpop.permute.xlu0 %9998
      %10000 = vrot.lane.b32.xlu0 %v9852, 64
      %v10001 = vpop.permute.xlu0 %10000
      %10002 = vrot.lane.b32.xlu0 %v9853, 64
      %v10003 = vpop.permute.xlu0 %10002
      %10004 = vrot.lane.b32.xlu0 %v9854, 64
      %v10005 = vpop.permute.xlu0 %10004
      %10006 = vrot.lane.b32.xlu0 %v9855, 64
      %v10007 = vpop.permute.xlu0 %10006
      %10008 = vrot.lane.b32.xlu0 %v9856, 64
      %v10009 = vpop.permute.xlu0 %10008
      %10010 = vrot.lane.b32.xlu0 %v9857, 64
      %v10011 = vpop.permute.xlu0 %10010
      %10012 = vrot.lane.b32.xlu0 %v9858, 64
      %v10013 = vpop.permute.xlu0 %10012
      %10014 = vrot.lane.b32.xlu0 %v9859, 64
      %v10015 = vpop.permute.xlu0 %10014
      %10016 = vrot.lane.b32.xlu0 %v9860, 64
      %v10017 = vpop.permute.xlu0 %10016
      %10018 = vrot.lane.b32.xlu0 %v9861, 64
      %v10019 = vpop.permute.xlu0 %10018
      %10020 = vrot.lane.b32.xlu0 %v9862, 64
      %v10021 = vpop.permute.xlu0 %10020
      %10022 = vrot.lane.b32.xlu0 %v9863, 64
      %v10023 = vpop.permute.xlu0 %10022
      %10024 = vrot.lane.b32.xlu0 %v9864, 64
      %v10025 = vpop.permute.xlu0 %10024
      %10026 = vrot.lane.b32.xlu0 %v9865, 64
      %v10027 = vpop.permute.xlu0 %10026
      %10028 = vrot.lane.b32.xlu0 %v9866, 64
      %v10029 = vpop.permute.xlu0 %10028
      %10030 = vrot.lane.b32.xlu0 %v9867, 64
      %v10031 = vpop.permute.xlu0 %10030
      %10032 = vrot.lane.b32.xlu0 %v9868, 64
      %v10033 = vpop.permute.xlu0 %10032
      %10034 = vrot.lane.b32.xlu0 %v9869, 64
      %v10035 = vpop.permute.xlu0 %10034
      %10036 = vrot.lane.b32.xlu0 %v9870, 64
      %v10037 = vpop.permute.xlu0 %10036
      %10038 = vrot.lane.b32.xlu0 %v9871, 64
      %v10039 = vpop.permute.xlu0 %10038
      %10040 = vrot.lane.b32.xlu0 %v9872, 64
      %v10041 = vpop.permute.xlu0 %10040
      %10042 = vrot.lane.b32.xlu0 %v9873, 64
      %v10043 = vpop.permute.xlu0 %10042
      %10044 = vrot.lane.b32.xlu0 %v9874, 64
      %v10045 = vpop.permute.xlu0 %10044
      %10046 = vrot.lane.b32.xlu0 %v9875, 64
      %v10047 = vpop.permute.xlu0 %10046
      %10048 = vrot.lane.b32.xlu0 %v9876, 64
      %v10049 = vpop.permute.xlu0 %10048
      %10050 = vrot.lane.b32.xlu0 %v9877, 64
      %v10051 = vpop.permute.xlu0 %10050
      %10052 = vrot.lane.b32.xlu0 %v9878, 64
      %v10053 = vpop.permute.xlu0 %10052
      %10054 = vrot.lane.b32.xlu0 %v9879, 64
      %v10055 = vpop.permute.xlu0 %10054
      %10056 = vrot.lane.b32.xlu0 %v9880, 64
      %v10057 = vpop.permute.xlu0 %10056
      %10058 = vrot.lane.b32.xlu0 %v9881, 64
      %v10059 = vpop.permute.xlu0 %10058
      %10060 = vrot.lane.b32.xlu0 %v9882, 64
      %v10061 = vpop.permute.xlu0 %10060
      %10062 = vrot.lane.b32.xlu0 %v9883, 64
      %v10063 = vpop.permute.xlu0 %10062
      %10064 = vrot.lane.b32.xlu0 %v9884, 64
      %v10065 = vpop.permute.xlu0 %10064
      %10066 = vrot.lane.b32.xlu0 %v9885, 64
      %v10067 = vpop.permute.xlu0 %10066
      %10068 = vrot.lane.b32.xlu0 %v9886, 64
      %v10069 = vpop.permute.xlu0 %10068
      %10070 = vrot.lane.b32.xlu0 %v9887, 64
      %v10071 = vpop.permute.xlu0 %10070
      %10072 = vrot.lane.b32.xlu0 %v9888, 64
      %v10073 = vpop.permute.xlu0 %10072
      %10074 = vrot.lane.b32.xlu0 %v9889, 64
      %v10075 = vpop.permute.xlu0 %10074
      %10076 = vrot.lane.b32.xlu0 %v9890, 64
      %v10077 = vpop.permute.xlu0 %10076
      %10078 = vrot.lane.b32.xlu0 %v9891, 64
      %v10079 = vpop.permute.xlu0 %10078
      %10080 = vrot.lane.b32.xlu0 %v9892, 64
      %v10081 = vpop.permute.xlu0 %10080
      %10082 = vrot.lane.b32.xlu0 %v9893, 64
      %v10083 = vpop.permute.xlu0 %10082
      %10084 = vrot.lane.b32.xlu0 %v9894, 64
      %v10085 = vpop.permute.xlu0 %10084
      %10086 = vrot.lane.b32.xlu0 %v9895, 64
      %v10087 = vpop.permute.xlu0 %10086
      %vm10152 = vcmask 523264
      %v10153 = vsel %vm10152, %v6632, %v9961
      %v10154 = vsel %vm10152, %v6633, %v9963
      %v10155 = vsel %vm10152, %v6634, %v9965
      %v10156 = vsel %vm10152, %v6635, %v9967
      %v10157 = vsel %vm10152, %v6636, %v9969
      %v10158 = vsel %vm10152, %v6637, %v9971
      %v10159 = vsel %vm10152, %v6638, %v9973
      %v10160 = vsel %vm10152, %v6639, %v9975
      %v10161 = vsel %vm10152, %v6640, %v9977
      %v10162 = vsel %vm10152, %v6641, %v9979
      %v10163 = vsel %vm10152, %v6642, %v9981
      %v10164 = vsel %vm10152, %v6643, %v9983
      %v10165 = vsel %vm10152, %v6644, %v9985
      %v10166 = vsel %vm10152, %v6645, %v9987
      %v10167 = vsel %vm10152, %v6646, %v9989
      %v10168 = vsel %vm10152, %v6647, %v9991
      %v10169 = vsel %vm10152, %v6648, %v9993
      %v10170 = vsel %vm10152, %v6649, %v9995
      %v10171 = vsel %vm10152, %v6650, %v9997
      %v10172 = vsel %vm10152, %v6651, %v9999
      %v10173 = vsel %vm10152, %v6652, %v10001
      %v10174 = vsel %vm10152, %v6653, %v10003
      %v10175 = vsel %vm10152, %v6654, %v10005
      %v10176 = vsel %vm10152, %v6655, %v10007
      %v10177 = vsel %vm10152, %v6656, %v10009
      %v10178 = vsel %vm10152, %v6657, %v10011
      %v10179 = vsel %vm10152, %v6658, %v10013
      %v10180 = vsel %vm10152, %v6659, %v10015
      %v10181 = vsel %vm10152, %v6660, %v10017
      %v10182 = vsel %vm10152, %v6661, %v10019
      %v10183 = vsel %vm10152, %v6662, %v10021
      %v10184 = vsel %vm10152, %v6663, %v10023
      %v10185 = vsel %vm10152, %v6664, %v10025
      %v10186 = vsel %vm10152, %v6665, %v10027
      %v10187 = vsel %vm10152, %v6666, %v10029
      %v10188 = vsel %vm10152, %v6667, %v10031
      %v10189 = vsel %vm10152, %v6668, %v10033
      %v10190 = vsel %vm10152, %v6669, %v10035
      %v10191 = vsel %vm10152, %v6670, %v10037
      %v10192 = vsel %vm10152, %v6671, %v10039
      %v10193 = vsel %vm10152, %v6672, %v10041
      %v10194 = vsel %vm10152, %v6673, %v10043
      %v10195 = vsel %vm10152, %v6674, %v10045
      %v10196 = vsel %vm10152, %v6675, %v10047
      %v10197 = vsel %vm10152, %v6676, %v10049
      %v10198 = vsel %vm10152, %v6677, %v10051
      %v10199 = vsel %vm10152, %v6678, %v10053
      %v10200 = vsel %vm10152, %v6679, %v10055
      %v10201 = vsel %vm10152, %v6680, %v10057
      %v10202 = vsel %vm10152, %v6681, %v10059
      %v10203 = vsel %vm10152, %v6682, %v10061
      %v10204 = vsel %vm10152, %v6683, %v10063
      %v10205 = vsel %vm10152, %v6684, %v10065
      %v10206 = vsel %vm10152, %v6685, %v10067
      %v10207 = vsel %vm10152, %v6686, %v10069
      %v10208 = vsel %vm10152, %v6687, %v10071
      %v10209 = vsel %vm10152, %v6688, %v10073
      %v10210 = vsel %vm10152, %v6689, %v10075
      %v10211 = vsel %vm10152, %v6690, %v10077
      %v10212 = vsel %vm10152, %v6691, %v10079
      %v10213 = vsel %vm10152, %v6692, %v10081
      %v10214 = vsel %vm10152, %v6693, %v10083
      %v10215 = vsel %vm10152, %v6694, %v10085
      %v10216 = vsel %vm10152, %v6695, %v10087
      %v10217 = vpack.c.bf16 %v10154, %v10153
      %v10218 = vpack.c.bf16 %v10156, %v10155
      %v10219 = vpack.c.bf16 %v10158, %v10157
      %v10220 = vpack.c.bf16 %v10160, %v10159
      %v10221 = vpack.c.bf16 %v10162, %v10161
      %v10222 = vpack.c.bf16 %v10164, %v10163
      %v10223 = vpack.c.bf16 %v10166, %v10165
      %v10224 = vpack.c.bf16 %v10168, %v10167
      %v10225 = vpack.c.bf16 %v10170, %v10169
      %v10226 = vpack.c.bf16 %v10172, %v10171
      %v10227 = vpack.c.bf16 %v10174, %v10173
      %v10228 = vpack.c.bf16 %v10176, %v10175
      %v10229 = vpack.c.bf16 %v10178, %v10177
      %v10230 = vpack.c.bf16 %v10180, %v10179
      %v10231 = vpack.c.bf16 %v10182, %v10181
      %v10232 = vpack.c.bf16 %v10184, %v10183
      %v10233 = vpack.c.bf16 %v10186, %v10185
      %v10234 = vpack.c.bf16 %v10188, %v10187
      %v10235 = vpack.c.bf16 %v10190, %v10189
      %v10236 = vpack.c.bf16 %v10192, %v10191
      %v10237 = vpack.c.bf16 %v10194, %v10193
      %v10238 = vpack.c.bf16 %v10196, %v10195
      %v10239 = vpack.c.bf16 %v10198, %v10197
      %v10240 = vpack.c.bf16 %v10200, %v10199
      %v10241 = vpack.c.bf16 %v10202, %v10201
      %v10242 = vpack.c.bf16 %v10204, %v10203
      %v10243 = vpack.c.bf16 %v10206, %v10205
      %v10244 = vpack.c.bf16 %v10208, %v10207
      %v10245 = vpack.c.bf16 %v10210, %v10209
      %v10246 = vpack.c.bf16 %v10212, %v10211
      %v10247 = vpack.c.bf16 %v10214, %v10213
      %v10248 = vpack.c.bf16 %v10216, %v10215
      %v10249 = vld [vmem:[%s1] sm:$0xf]
      %v10250 = vld [vmem:[%s1 + $0x4] sm:$0xf]
      %v10251 = vld [vmem:[%s1 + $0x8] sm:$0xf]
      %v10252 = vld [vmem:[%s1 + $0xc] sm:$0xf]
      %v10253 = vld [vmem:[%s1 + $0x10] sm:$0xf]
      %v10254 = vld [vmem:[%s1 + $0x14] sm:$0xf]
      %v10255 = vld [vmem:[%s1 + $0x18] sm:$0xf]
      %v10256 = vld [vmem:[%s1 + $0x1c] sm:$0xf]
      %v10257 = vld [vmem:[%s1 + $0x20] sm:$0xf]
      %v10258 = vld [vmem:[%s1 + $0x24] sm:$0xf]
      %v10259 = vld [vmem:[%s1 + $0x28] sm:$0xf]
      %v10260 = vld [vmem:[%s1 + $0x2c] sm:$0xf]
      %v10261 = vld [vmem:[%s1 + $0x30] sm:$0xf]
      %v10262 = vld [vmem:[%s1 + $0x34] sm:$0x3]
      %v10277 = vunpack.c.l.b16 %v10249
      %v10278 = vunpack.c.l.b16 %v10250
      %v10279 = vunpack.c.l.b16 %v10251
      %v10280 = vunpack.c.l.b16 %v10252
      %v10281 = vunpack.c.l.b16 %v10253
      %v10282 = vunpack.c.l.b16 %v10254
      %v10283 = vunpack.c.l.b16 %v10255
      %v10284 = vunpack.c.l.b16 %v10256
      %v10285 = vunpack.c.l.b16 %v10257
      %v10286 = vunpack.c.l.b16 %v10258
      %v10287 = vunpack.c.l.b16 %v10259
      %v10288 = vunpack.c.l.b16 %v10260
      %v10289 = vunpack.c.l.b16 %v10261
      %v10290 = vunpack.c.l.b16 %v10262
      %v10291 = vpack.c.b16 %v10278, %v10277
      %v10292 = vpack.c.b16 %v10280, %v10279
      %v10293 = vpack.c.b16 %v10282, %v10281
      %v10294 = vpack.c.b16 %v10284, %v10283
      %v10295 = vpack.c.b16 %v10286, %v10285
      %v10296 = vpack.c.b16 %v10288, %v10287
      %v10297 = vpack.c.b16 %v10290, %v10289
      %vm10304 = vcmask 883712
      %v10306 = vsel %vm10304, %v10217, 0
      %v10309 = vsel %vm10304, %v10218, 0
      %v10312 = vsel %vm10304, %v10219, 0
      %v10315 = vsel %vm10304, %v10220, 0
      %v10318 = vsel %vm10304, %v10221, 0
      %v10321 = vsel %vm10304, %v10222, 0
      %v10324 = vsel %vm10304, %v10223, 0
      %v10327 = vsel %vm10304, %v10224, 0
      %v10330 = vsel %vm10304, %v10225, 0
      %v10333 = vsel %vm10304, %v10226, 0
      %v10336 = vsel %vm10304, %v10227, 0
      %v10339 = vsel %vm10304, %v10228, 0
      %v10342 = vsel %vm10304, %v10229, 0
      %v10345 = vsel %vm10304, %v10230, 0
      %v10348 = vsel %vm10304, %v10231, 0
      %v10351 = vsel %vm10304, %v10232, 0
      %v10354 = vsel %vm10304, %v10233, 0
      %v10357 = vsel %vm10304, %v10234, 0
      %v10360 = vsel %vm10304, %v10235, 0
      %v10363 = vsel %vm10304, %v10236, 0
      %v10366 = vsel %vm10304, %v10237, 0
      %v10369 = vsel %vm10304, %v10238, 0
      %v10372 = vsel %vm10304, %v10239, 0
      %v10375 = vsel %vm10304, %v10240, 0
      %v10378 = vsel %vm10304, %v10241, 0
      %v10381 = vsel %vm10304, %v10242, 0
      %v10384 = vsel %vm10304, %v10243, 0
      %v10387 = vsel %vm10304, %v10244, 0
      %v10390 = vsel %vm10304, %v10245, 0
      %v10393 = vsel %vm10304, %v10246, 0
      %v10396 = vsel %vm10304, %v10247, 0
      %v10399 = vsel %vm10304, %v10248, 0
      %vm10401 = vcmask 1045504
      %v10403 = vsel %vm10401, %v10297, 0
      %10405 = vmatpush.bf16.msra.mxu0 0
      %10406 = vmatpush.bf16.msra.mxu0 %v10403
      %10407 = vmatpush.bf16.msra.mxu0 %v10296
      %10408 = vmatpush.bf16.msra.mxu0 %v10295
      %10409 = vmatpush.bf16.msra.mxu0 %v10294
      %10410 = vmatpush.bf16.msra.mxu0 %v10293
      %10411 = vmatpush.bf16.msra.mxu0 %v10292
      %10412 = vmatpush.bf16.msra.mxu0 %v10291
      %10413 = vmatmul.bf16.gmra.mxu0 %v10306
      %v10414 = vpop.f32.mrf.mxu0
      %v10415 = vadd.f32 0.0, %v10414
      %v10416 = vpop.f32.mrf.mxu0
      %v10417 = vadd.f32 0.0, %v10416
      %10418 = vmatmul.bf16.gmra.mxu0 %v10309
      %v10419 = vpop.f32.mrf.mxu0
      %v10420 = vadd.f32 0.0, %v10419
      %v10421 = vpop.f32.mrf.mxu0
      %v10422 = vadd.f32 0.0, %v10421
      %10423 = vmatmul.bf16.gmra.mxu0 %v10312
      %v10424 = vpop.f32.mrf.mxu0
      %v10425 = vadd.f32 0.0, %v10424
      %v10426 = vpop.f32.mrf.mxu0
      %v10427 = vadd.f32 0.0, %v10426
      %10428 = vmatmul.bf16.gmra.mxu0 %v10315
      %v10429 = vpop.f32.mrf.mxu0
      %v10430 = vadd.f32 0.0, %v10429
      %v10431 = vpop.f32.mrf.mxu0
      %v10432 = vadd.f32 0.0, %v10431
      %10433 = vmatmul.bf16.gmra.mxu0 %v10318
      %v10434 = vpop.f32.mrf.mxu0
      %v10435 = vadd.f32 0.0, %v10434
      %v10436 = vpop.f32.mrf.mxu0
      %v10437 = vadd.f32 0.0, %v10436
      %10438 = vmatmul.bf16.gmra.mxu0 %v10321
      %v10439 = vpop.f32.mrf.mxu0
      %v10440 = vadd.f32 0.0, %v10439
      %v10441 = vpop.f32.mrf.mxu0
      %v10442 = vadd.f32 0.0, %v10441
      %10443 = vmatmul.bf16.gmra.mxu0 %v10324
      %v10444 = vpop.f32.mrf.mxu0
      %v10445 = vadd.f32 0.0, %v10444
      %v10446 = vpop.f32.mrf.mxu0
      %v10447 = vadd.f32 0.0, %v10446
      %10448 = vmatmul.bf16.gmra.mxu0 %v10327
      %v10449 = vpop.f32.mrf.mxu0
      %v10450 = vadd.f32 0.0, %v10449
      %v10451 = vpop.f32.mrf.mxu0
      %v10452 = vadd.f32 0.0, %v10451
      %10453 = vmatmul.bf16.gmra.mxu0 %v10330
      %v10454 = vpop.f32.mrf.mxu0
      %v10455 = vadd.f32 0.0, %v10454
      %v10456 = vpop.f32.mrf.mxu0
      %v10457 = vadd.f32 0.0, %v10456
      %10458 = vmatmul.bf16.gmra.mxu0 %v10333
      %v10459 = vpop.f32.mrf.mxu0
      %v10460 = vadd.f32 0.0, %v10459
      %v10461 = vpop.f32.mrf.mxu0
      %v10462 = vadd.f32 0.0, %v10461
      %10463 = vmatmul.bf16.gmra.mxu0 %v10336
      %v10464 = vpop.f32.mrf.mxu0
      %v10465 = vadd.f32 0.0, %v10464
      %v10466 = vpop.f32.mrf.mxu0
      %v10467 = vadd.f32 0.0, %v10466
      %10468 = vmatmul.bf16.gmra.mxu0 %v10339
      %v10469 = vpop.f32.mrf.mxu0
      %v10470 = vadd.f32 0.0, %v10469
      %v10471 = vpop.f32.mrf.mxu0
      %v10472 = vadd.f32 0.0, %v10471
      %10473 = vmatmul.bf16.gmra.mxu0 %v10342
      %v10474 = vpop.f32.mrf.mxu0
      %v10475 = vadd.f32 0.0, %v10474
      %v10476 = vpop.f32.mrf.mxu0
      %v10477 = vadd.f32 0.0, %v10476
      %10478 = vmatmul.bf16.gmra.mxu0 %v10345
      %v10479 = vpop.f32.mrf.mxu0
      %v10480 = vadd.f32 0.0, %v10479
      %v10481 = vpop.f32.mrf.mxu0
      %v10482 = vadd.f32 0.0, %v10481
      %10483 = vmatmul.bf16.gmra.mxu0 %v10348
      %v10484 = vpop.f32.mrf.mxu0
      %v10485 = vadd.f32 0.0, %v10484
      %v10486 = vpop.f32.mrf.mxu0
      %v10487 = vadd.f32 0.0, %v10486
      %10488 = vmatmul.bf16.gmra.mxu0 %v10351
      %v10489 = vpop.f32.mrf.mxu0
      %v10490 = vadd.f32 0.0, %v10489
      %v10491 = vpop.f32.mrf.mxu0
      %v10492 = vadd.f32 0.0, %v10491
      %10493 = vmatmul.bf16.gmra.mxu0 %v10354
      %v10494 = vpop.f32.mrf.mxu0
      %v10495 = vadd.f32 0.0, %v10494
      %v10496 = vpop.f32.mrf.mxu0
      %v10497 = vadd.f32 0.0, %v10496
      %10498 = vmatmul.bf16.gmra.mxu0 %v10357
      %v10499 = vpop.f32.mrf.mxu0
      %v10500 = vadd.f32 0.0, %v10499
      %v10501 = vpop.f32.mrf.mxu0
      %v10502 = vadd.f32 0.0, %v10501
      %10503 = vmatmul.bf16.gmra.mxu0 %v10360
      %v10504 = vpop.f32.mrf.mxu0
      %v10505 = vadd.f32 0.0, %v10504
      %v10506 = vpop.f32.mrf.mxu0
      %v10507 = vadd.f32 0.0, %v10506
      %10508 = vmatmul.bf16.gmra.mxu0 %v10363
      %v10509 = vpop.f32.mrf.mxu0
      %v10510 = vadd.f32 0.0, %v10509
      %v10511 = vpop.f32.mrf.mxu0
      %v10512 = vadd.f32 0.0, %v10511
      %10513 = vmatmul.bf16.gmra.mxu0 %v10366
      %v10514 = vpop.f32.mrf.mxu0
      %v10515 = vadd.f32 0.0, %v10514
      %v10516 = vpop.f32.mrf.mxu0
      %v10517 = vadd.f32 0.0, %v10516
      %10518 = vmatmul.bf16.gmra.mxu0 %v10369
      %v10519 = vpop.f32.mrf.mxu0
      %v10520 = vadd.f32 0.0, %v10519
      %v10521 = vpop.f32.mrf.mxu0
      %v10522 = vadd.f32 0.0, %v10521
      %10523 = vmatmul.bf16.gmra.mxu0 %v10372
      %v10524 = vpop.f32.mrf.mxu0
      %v10525 = vadd.f32 0.0, %v10524
      %v10526 = vpop.f32.mrf.mxu0
      %v10527 = vadd.f32 0.0, %v10526
      %10528 = vmatmul.bf16.gmra.mxu0 %v10375
      %v10529 = vpop.f32.mrf.mxu0
      %v10530 = vadd.f32 0.0, %v10529
      %v10531 = vpop.f32.mrf.mxu0
      %v10532 = vadd.f32 0.0, %v10531
      %10533 = vmatmul.bf16.gmra.mxu0 %v10378
      %v10534 = vpop.f32.mrf.mxu0
      %v10535 = vadd.f32 0.0, %v10534
      %v10536 = vpop.f32.mrf.mxu0
      %v10537 = vadd.f32 0.0, %v10536
      %10538 = vmatmul.bf16.gmra.mxu0 %v10381
      %v10539 = vpop.f32.mrf.mxu0
      %v10540 = vadd.f32 0.0, %v10539
      %v10541 = vpop.f32.mrf.mxu0
      %v10542 = vadd.f32 0.0, %v10541
      %10543 = vmatmul.bf16.gmra.mxu0 %v10384
      %v10544 = vpop.f32.mrf.mxu0
      %v10545 = vadd.f32 0.0, %v10544
      %v10546 = vpop.f32.mrf.mxu0
      %v10547 = vadd.f32 0.0, %v10546
      %10548 = vmatmul.bf16.gmra.mxu0 %v10387
      %v10549 = vpop.f32.mrf.mxu0
      %v10550 = vadd.f32 0.0, %v10549
      %v10551 = vpop.f32.mrf.mxu0
      %v10552 = vadd.f32 0.0, %v10551
      %10553 = vmatmul.bf16.gmra.mxu0 %v10390
      %v10554 = vpop.f32.mrf.mxu0
      %v10555 = vadd.f32 0.0, %v10554
      %v10556 = vpop.f32.mrf.mxu0
      %v10557 = vadd.f32 0.0, %v10556
      %10558 = vmatmul.bf16.gmra.mxu0 %v10393
      %v10559 = vpop.f32.mrf.mxu0
      %v10560 = vadd.f32 0.0, %v10559
      %v10561 = vpop.f32.mrf.mxu0
      %v10562 = vadd.f32 0.0, %v10561
      %10563 = vmatmul.bf16.gmra.mxu0 %v10396
      %v10564 = vpop.f32.mrf.mxu0
      %v10565 = vadd.f32 0.0, %v10564
      %v10566 = vpop.f32.mrf.mxu0
      %v10567 = vadd.f32 0.0, %v10566
      %10568 = vmatmul.bf16.gmra.mxu0 %v10399
      %v10569 = vpop.f32.mrf.mxu0
      %v10570 = vadd.f32 0.0, %v10569
      %v10571 = vpop.f32.mrf.mxu0
      %v10572 = vadd.f32 0.0, %v10571
      %10573 = vdwg.mxu0
      %v10574 = vsel %vm10152, %v10415, 0.0
      %v10575 = vsel %vm10152, %v10417, 0.0
      %v10576 = vadd.f32 %v10574, %v10575
      %v10577 = vsel %vm10152, %v10420, 0.0
      %v10578 = vadd.f32 %v10576, %v10577
      %v10579 = vsel %vm10152, %v10422, 0.0
      %v10580 = vadd.f32 %v10578, %v10579
      %v10581 = vsel %vm10152, %v10425, 0.0
      %v10582 = vadd.f32 %v10580, %v10581
      %v10583 = vsel %vm10152, %v10427, 0.0
      %v10584 = vadd.f32 %v10582, %v10583
      %v10585 = vsel %vm10152, %v10430, 0.0
      %v10586 = vadd.f32 %v10584, %v10585
      %v10587 = vsel %vm10152, %v10432, 0.0
      %v10588 = vadd.f32 %v10586, %v10587
      %v10589 = vsel %vm10152, %v10435, 0.0
      %v10590 = vadd.f32 %v10588, %v10589
      %v10591 = vsel %vm10152, %v10437, 0.0
      %v10592 = vadd.f32 %v10590, %v10591
      %v10593 = vsel %vm10152, %v10440, 0.0
      %v10594 = vadd.f32 %v10592, %v10593
      %v10595 = vsel %vm10152, %v10442, 0.0
      %v10596 = vadd.f32 %v10594, %v10595
      %v10597 = vsel %vm10152, %v10445, 0.0
      %v10598 = vadd.f32 %v10596, %v10597
      %v10599 = vsel %vm10152, %v10447, 0.0
      %v10600 = vadd.f32 %v10598, %v10599
      %v10601 = vsel %vm10152, %v10450, 0.0
      %v10602 = vadd.f32 %v10600, %v10601
      %v10603 = vsel %vm10152, %v10452, 0.0
      %v10604 = vadd.f32 %v10602, %v10603
      %v10605 = vsel %vm10152, %v10455, 0.0
      %v10606 = vadd.f32 %v10604, %v10605
      %v10607 = vsel %vm10152, %v10457, 0.0
      %v10608 = vadd.f32 %v10606, %v10607
      %v10609 = vsel %vm10152, %v10460, 0.0
      %v10610 = vadd.f32 %v10608, %v10609
      %v10611 = vsel %vm10152, %v10462, 0.0
      %v10612 = vadd.f32 %v10610, %v10611
      %v10613 = vsel %vm10152, %v10465, 0.0
      %v10614 = vadd.f32 %v10612, %v10613
      %v10615 = vsel %vm10152, %v10467, 0.0
      %v10616 = vadd.f32 %v10614, %v10615
      %v10617 = vsel %vm10152, %v10470, 0.0
      %v10618 = vadd.f32 %v10616, %v10617
      %v10619 = vsel %vm10152, %v10472, 0.0
      %v10620 = vadd.f32 %v10618, %v10619
      %v10621 = vsel %vm10152, %v10475, 0.0
      %v10622 = vadd.f32 %v10620, %v10621
      %v10623 = vsel %vm10152, %v10477, 0.0
      %v10624 = vadd.f32 %v10622, %v10623
      %v10625 = vsel %vm10152, %v10480, 0.0
      %v10626 = vadd.f32 %v10624, %v10625
      %v10627 = vsel %vm10152, %v10482, 0.0
      %v10628 = vadd.f32 %v10626, %v10627
      %v10629 = vsel %vm10152, %v10485, 0.0
      %v10630 = vadd.f32 %v10628, %v10629
      %v10631 = vsel %vm10152, %v10487, 0.0
      %v10632 = vadd.f32 %v10630, %v10631
      %v10633 = vsel %vm10152, %v10490, 0.0
      %v10634 = vadd.f32 %v10632, %v10633
      %v10635 = vsel %vm10152, %v10492, 0.0
      %v10636 = vadd.f32 %v10634, %v10635
      %v10637 = vsel %vm10152, %v10495, 0.0
      %v10638 = vadd.f32 %v10636, %v10637
      %v10639 = vsel %vm10152, %v10497, 0.0
      %v10640 = vadd.f32 %v10638, %v10639
      %v10641 = vsel %vm10152, %v10500, 0.0
      %v10642 = vadd.f32 %v10640, %v10641
      %v10643 = vsel %vm10152, %v10502, 0.0
      %v10644 = vadd.f32 %v10642, %v10643
      %v10645 = vsel %vm10152, %v10505, 0.0
      %v10646 = vadd.f32 %v10644, %v10645
      %v10647 = vsel %vm10152, %v10507, 0.0
      %v10648 = vadd.f32 %v10646, %v10647
      %v10649 = vsel %vm10152, %v10510, 0.0
      %v10650 = vadd.f32 %v10648, %v10649
      %v10651 = vsel %vm10152, %v10512, 0.0
      %v10652 = vadd.f32 %v10650, %v10651
      %v10653 = vsel %vm10152, %v10515, 0.0
      %v10654 = vadd.f32 %v10652, %v10653
      %v10655 = vsel %vm10152, %v10517, 0.0
      %v10656 = vadd.f32 %v10654, %v10655
      %v10657 = vsel %vm10152, %v10520, 0.0
      %v10658 = vadd.f32 %v10656, %v10657
      %v10659 = vsel %vm10152, %v10522, 0.0
      %v10660 = vadd.f32 %v10658, %v10659
      %v10661 = vsel %vm10152, %v10525, 0.0
      %v10662 = vadd.f32 %v10660, %v10661
      %v10663 = vsel %vm10152, %v10527, 0.0
      %v10664 = vadd.f32 %v10662, %v10663
      %v10665 = vsel %vm10152, %v10530, 0.0
      %v10666 = vadd.f32 %v10664, %v10665
      %v10667 = vsel %vm10152, %v10532, 0.0
      %v10668 = vadd.f32 %v10666, %v10667
      %v10669 = vsel %vm10152, %v10535, 0.0
      %v10670 = vadd.f32 %v10668, %v10669
      %v10671 = vsel %vm10152, %v10537, 0.0
      %v10672 = vadd.f32 %v10670, %v10671
      %v10673 = vsel %vm10152, %v10540, 0.0
      %v10674 = vadd.f32 %v10672, %v10673
      %v10675 = vsel %vm10152, %v10542, 0.0
      %v10676 = vadd.f32 %v10674, %v10675
      %v10677 = vsel %vm10152, %v10545, 0.0
      %v10678 = vadd.f32 %v10676, %v10677
      %v10679 = vsel %vm10152, %v10547, 0.0
      %v10680 = vadd.f32 %v10678, %v10679
      %v10681 = vsel %vm10152, %v10550, 0.0
      %v10682 = vadd.f32 %v10680, %v10681
      %v10683 = vsel %vm10152, %v10552, 0.0
      %v10684 = vadd.f32 %v10682, %v10683
      %v10685 = vsel %vm10152, %v10555, 0.0
      %v10686 = vadd.f32 %v10684, %v10685
      %v10687 = vsel %vm10152, %v10557, 0.0
      %v10688 = vadd.f32 %v10686, %v10687
      %v10689 = vsel %vm10152, %v10560, 0.0
      %v10690 = vadd.f32 %v10688, %v10689
      %v10691 = vsel %vm10152, %v10562, 0.0
      %v10692 = vadd.f32 %v10690, %v10691
      %v10693 = vsel %vm10152, %v10565, 0.0
      %v10694 = vadd.f32 %v10692, %v10693
      %v10695 = vsel %vm10152, %v10567, 0.0
      %v10696 = vadd.f32 %v10694, %v10695
      %v10697 = vsel %vm10152, %v10570, 0.0
      %v10698 = vadd.f32 %v10696, %v10697
      %v10699 = vsel %vm10152, %v10572, 0.0
      %v10700 = vadd.f32 %v10698, %v10699
      %v10701 = vrot.slane %v10700, 4
      %v10702 = vadd.f32 %v10700, %v10701
      %v10703 = vrot.slane %v10702, 2
      %v10704 = vadd.f32 %v10702, %v10703
      %v10705 = vrot.slane %v10704, 1
      %v10706 = vadd.f32 %v10704, %v10705
      %v10707 = vmul.f32 %v10415, %v10415
      %v10708 = vmul.f32 %v10417, %v10417
      %v10709 = vmul.f32 %v10420, %v10420
      %v10710 = vmul.f32 %v10422, %v10422
      %v10711 = vmul.f32 %v10425, %v10425
      %v10712 = vmul.f32 %v10427, %v10427
      %v10713 = vmul.f32 %v10430, %v10430
      %v10714 = vmul.f32 %v10432, %v10432
      %v10715 = vmul.f32 %v10435, %v10435
      %v10716 = vmul.f32 %v10437, %v10437
      %v10717 = vmul.f32 %v10440, %v10440
      %v10718 = vmul.f32 %v10442, %v10442
      %v10719 = vmul.f32 %v10445, %v10445
      %v10720 = vmul.f32 %v10447, %v10447
      %v10721 = vmul.f32 %v10450, %v10450
      %v10722 = vmul.f32 %v10452, %v10452
      %v10723 = vmul.f32 %v10455, %v10455
      %v10724 = vmul.f32 %v10457, %v10457
      %v10725 = vmul.f32 %v10460, %v10460
      %v10726 = vmul.f32 %v10462, %v10462
      %v10727 = vmul.f32 %v10465, %v10465
      %v10728 = vmul.f32 %v10467, %v10467
      %v10729 = vmul.f32 %v10470, %v10470
      %v10730 = vmul.f32 %v10472, %v10472
      %v10731 = vmul.f32 %v10475, %v10475
      %v10732 = vmul.f32 %v10477, %v10477
      %v10733 = vmul.f32 %v10480, %v10480
      %v10734 = vmul.f32 %v10482, %v10482
      %v10735 = vmul.f32 %v10485, %v10485
      %v10736 = vmul.f32 %v10487, %v10487
      %v10737 = vmul.f32 %v10490, %v10490
      %v10738 = vmul.f32 %v10492, %v10492
      %v10739 = vmul.f32 %v10495, %v10495
      %v10740 = vmul.f32 %v10497, %v10497
      %v10741 = vmul.f32 %v10500, %v10500
      %v10742 = vmul.f32 %v10502, %v10502
      %v10743 = vmul.f32 %v10505, %v10505
      %v10744 = vmul.f32 %v10507, %v10507
      %v10745 = vmul.f32 %v10510, %v10510
      %v10746 = vmul.f32 %v10512, %v10512
      %v10747 = vmul.f32 %v10515, %v10515
      %v10748 = vmul.f32 %v10517, %v10517
      %v10749 = vmul.f32 %v10520, %v10520
      %v10750 = vmul.f32 %v10522, %v10522
      %v10751 = vmul.f32 %v10525, %v10525
      %v10752 = vmul.f32 %v10527, %v10527
      %v10753 = vmul.f32 %v10530, %v10530
      %v10754 = vmul.f32 %v10532, %v10532
      %v10755 = vmul.f32 %v10535, %v10535
      %v10756 = vmul.f32 %v10537, %v10537
      %v10757 = vmul.f32 %v10540, %v10540
      %v10758 = vmul.f32 %v10542, %v10542
      %v10759 = vmul.f32 %v10545, %v10545
      %v10760 = vmul.f32 %v10547, %v10547
      %v10761 = vmul.f32 %v10550, %v10550
      %v10762 = vmul.f32 %v10552, %v10552
      %v10763 = vmul.f32 %v10555, %v10555
      %v10764 = vmul.f32 %v10557, %v10557
      %v10765 = vmul.f32 %v10560, %v10560
      %v10766 = vmul.f32 %v10562, %v10562
      %v10767 = vmul.f32 %v10565, %v10565
      %v10768 = vmul.f32 %v10567, %v10567
      %v10769 = vmul.f32 %v10570, %v10570
      %v10770 = vmul.f32 %v10572, %v10572
      %v10771 = vsel %vm10152, %v10707, 0.0
      %v10772 = vsel %vm10152, %v10708, 0.0
      %v10773 = vadd.f32 %v10771, %v10772
      %v10774 = vsel %vm10152, %v10709, 0.0
      %v10775 = vadd.f32 %v10773, %v10774
      %v10776 = vsel %vm10152, %v10710, 0.0
      %v10777 = vadd.f32 %v10775, %v10776
      %v10778 = vsel %vm10152, %v10711, 0.0
      %v10779 = vadd.f32 %v10777, %v10778
      %v10780 = vsel %vm10152, %v10712, 0.0
      %v10781 = vadd.f32 %v10779, %v10780
      %v10782 = vsel %vm10152, %v10713, 0.0
      %v10783 = vadd.f32 %v10781, %v10782
      %v10784 = vsel %vm10152, %v10714, 0.0
      %v10785 = vadd.f32 %v10783, %v10784
      %v10786 = vsel %vm10152, %v10715, 0.0
      %v10787 = vadd.f32 %v10785, %v10786
      %v10788 = vsel %vm10152, %v10716, 0.0
      %v10789 = vadd.f32 %v10787, %v10788
      %v10790 = vsel %vm10152, %v10717, 0.0
      %v10791 = vadd.f32 %v10789, %v10790
      %v10792 = vsel %vm10152, %v10718, 0.0
      %v10793 = vadd.f32 %v10791, %v10792
      %v10794 = vsel %vm10152, %v10719, 0.0
      %v10795 = vadd.f32 %v10793, %v10794
      %v10796 = vsel %vm10152, %v10720, 0.0
      %v10797 = vadd.f32 %v10795, %v10796
      %v10798 = vsel %vm10152, %v10721, 0.0
      %v10799 = vadd.f32 %v10797, %v10798
      %v10800 = vsel %vm10152, %v10722, 0.0
      %v10801 = vadd.f32 %v10799, %v10800
      %v10802 = vsel %vm10152, %v10723, 0.0
      %v10803 = vadd.f32 %v10801, %v10802
      %v10804 = vsel %vm10152, %v10724, 0.0
      %v10805 = vadd.f32 %v10803, %v10804
      %v10806 = vsel %vm10152, %v10725, 0.0
      %v10807 = vadd.f32 %v10805, %v10806
      %v10808 = vsel %vm10152, %v10726, 0.0
      %v10809 = vadd.f32 %v10807, %v10808
      %v10810 = vsel %vm10152, %v10727, 0.0
      %v10811 = vadd.f32 %v10809, %v10810
      %v10812 = vsel %vm10152, %v10728, 0.0
      %v10813 = vadd.f32 %v10811, %v10812
      %v10814 = vsel %vm10152, %v10729, 0.0
      %v10815 = vadd.f32 %v10813, %v10814
      %v10816 = vsel %vm10152, %v10730, 0.0
      %v10817 = vadd.f32 %v10815, %v10816
      %v10818 = vsel %vm10152, %v10731, 0.0
      %v10819 = vadd.f32 %v10817, %v10818
      %v10820 = vsel %vm10152, %v10732, 0.0
      %v10821 = vadd.f32 %v10819, %v10820
      %v10822 = vsel %vm10152, %v10733, 0.0
      %v10823 = vadd.f32 %v10821, %v10822
      %v10824 = vsel %vm10152, %v10734, 0.0
      %v10825 = vadd.f32 %v10823, %v10824
      %v10826 = vsel %vm10152, %v10735, 0.0
      %v10827 = vadd.f32 %v10825, %v10826
      %v10828 = vsel %vm10152, %v10736, 0.0
      %v10829 = vadd.f32 %v10827, %v10828
      %v10830 = vsel %vm10152, %v10737, 0.0
      %v10831 = vadd.f32 %v10829, %v10830
      %v10832 = vsel %vm10152, %v10738, 0.0
      %v10833 = vadd.f32 %v10831, %v10832
      %v10834 = vsel %vm10152, %v10739, 0.0
      %v10835 = vadd.f32 %v10833, %v10834
      %v10836 = vsel %vm10152, %v10740, 0.0
      %v10837 = vadd.f32 %v10835, %v10836
      %v10838 = vsel %vm10152, %v10741, 0.0
      %v10839 = vadd.f32 %v10837, %v10838
      %v10840 = vsel %vm10152, %v10742, 0.0
      %v10841 = vadd.f32 %v10839, %v10840
      %v10842 = vsel %vm10152, %v10743, 0.0
      %v10843 = vadd.f32 %v10841, %v10842
      %v10844 = vsel %vm10152, %v10744, 0.0
      %v10845 = vadd.f32 %v10843, %v10844
      %v10846 = vsel %vm10152, %v10745, 0.0
      %v10847 = vadd.f32 %v10845, %v10846
      %v10848 = vsel %vm10152, %v10746, 0.0
      %v10849 = vadd.f32 %v10847, %v10848
      %v10850 = vsel %vm10152, %v10747, 0.0
      %v10851 = vadd.f32 %v10849, %v10850
      %v10852 = vsel %vm10152, %v10748, 0.0
      %v10853 = vadd.f32 %v10851, %v10852
      %v10854 = vsel %vm10152, %v10749, 0.0
      %v10855 = vadd.f32 %v10853, %v10854
      %v10856 = vsel %vm10152, %v10750, 0.0
      %v10857 = vadd.f32 %v10855, %v10856
      %v10858 = vsel %vm10152, %v10751, 0.0
      %v10859 = vadd.f32 %v10857, %v10858
      %v10860 = vsel %vm10152, %v10752, 0.0
      %v10861 = vadd.f32 %v10859, %v10860
      %v10862 = vsel %vm10152, %v10753, 0.0
      %v10863 = vadd.f32 %v10861, %v10862
      %v10864 = vsel %vm10152, %v10754, 0.0
      %v10865 = vadd.f32 %v10863, %v10864
      %v10866 = vsel %vm10152, %v10755, 0.0
      %v10867 = vadd.f32 %v10865, %v10866
      %v10868 = vsel %vm10152, %v10756, 0.0
      %v10869 = vadd.f32 %v10867, %v10868
      %v10870 = vsel %vm10152, %v10757, 0.0
      %v10871 = vadd.f32 %v10869, %v10870
      %v10872 = vsel %vm10152, %v10758, 0.0
      %v10873 = vadd.f32 %v10871, %v10872
      %v10874 = vsel %vm10152, %v10759, 0.0
      %v10875 = vadd.f32 %v10873, %v10874
      %v10876 = vsel %vm10152, %v10760, 0.0
      %v10877 = vadd.f32 %v10875, %v10876
      %v10878 = vsel %vm10152, %v10761, 0.0
      %v10879 = vadd.f32 %v10877, %v10878
      %v10880 = vsel %vm10152, %v10762, 0.0
      %v10881 = vadd.f32 %v10879, %v10880
      %v10882 = vsel %vm10152, %v10763, 0.0
      %v10883 = vadd.f32 %v10881, %v10882
      %v10884 = vsel %vm10152, %v10764, 0.0
      %v10885 = vadd.f32 %v10883, %v10884
      %v10886 = vsel %vm10152, %v10765, 0.0
      %v10887 = vadd.f32 %v10885, %v10886
      %v10888 = vsel %vm10152, %v10766, 0.0
      %v10889 = vadd.f32 %v10887, %v10888
      %v10890 = vsel %vm10152, %v10767, 0.0
      %v10891 = vadd.f32 %v10889, %v10890
      %v10892 = vsel %vm10152, %v10768, 0.0
      %v10893 = vadd.f32 %v10891, %v10892
      %v10894 = vsel %vm10152, %v10769, 0.0
      %v10895 = vadd.f32 %v10893, %v10894
      %v10896 = vsel %vm10152, %v10770, 0.0
      %v10897 = vadd.f32 %v10895, %v10896
      %v10898 = vrot.slane %v10897, 4
      %v10899 = vadd.f32 %v10897, %v10898
      %v10900 = vrot.slane %v10899, 2
      %v10901 = vadd.f32 %v10899, %v10900
      %v10902 = vrot.slane %v10901, 1
      %v10903 = vadd.f32 %v10901, %v10902
      %10905 = vrot.lane.b32.xlu0 %v10706, 120
      %v10906 = vpop.permute.xlu0 %10905
      %v10908 = vadd.f32 %v10706, %v10906
      %10910 = vrot.lane.b32.xlu0 %v10903, 120
      %v10911 = vpop.permute.xlu0 %10910
      %v10913 = vadd.f32 %v10903, %v10911
      %10914 = vrot.lane.b32.xlu0 %v10706, 112
      %v10915 = vpop.permute.xlu0 %10914
      %v10917 = vadd.f32 %v10908, %v10915
      %10918 = vrot.lane.b32.xlu0 %v10903, 112
      %v10919 = vpop.permute.xlu0 %10918
      %v10921 = vadd.f32 %v10913, %v10919
      %10922 = vrot.lane.b32.xlu0 %v10706, 104
      %v10923 = vpop.permute.xlu0 %10922
      %v10925 = vadd.f32 %v10917, %v10923
      %10926 = vrot.lane.b32.xlu0 %v10903, 104
      %v10927 = vpop.permute.xlu0 %10926
      %v10929 = vadd.f32 %v10921, %v10927
      %10930 = vrot.lane.b32.xlu0 %v10706, 96
      %v10931 = vpop.permute.xlu0 %10930
      %v10933 = vadd.f32 %v10925, %v10931
      %10934 = vrot.lane.b32.xlu0 %v10903, 96
      %v10935 = vpop.permute.xlu0 %10934
      %v10937 = vadd.f32 %v10929, %v10935
      %10938 = vrot.lane.b32.xlu0 %v10706, 88
      %v10939 = vpop.permute.xlu0 %10938
      %v10941 = vadd.f32 %v10933, %v10939
      %10942 = vrot.lane.b32.xlu0 %v10903, 88
      %v10943 = vpop.permute.xlu0 %10942
      %v10945 = vadd.f32 %v10937, %v10943
      %10946 = vrot.lane.b32.xlu0 %v10706, 80
      %v10947 = vpop.permute.xlu0 %10946
      %v10949 = vadd.f32 %v10941, %v10947
      %10950 = vrot.lane.b32.xlu0 %v10903, 80
      %v10951 = vpop.permute.xlu0 %10950
      %v10953 = vadd.f32 %v10945, %v10951
      %10954 = vrot.lane.b32.xlu0 %v10706, 72
      %v10955 = vpop.permute.xlu0 %10954
      %v10957 = vadd.f32 %v10949, %v10955
      %10958 = vrot.lane.b32.xlu0 %v10903, 72
      %v10959 = vpop.permute.xlu0 %10958
      %v10961 = vadd.f32 %v10953, %v10959
      %v10962 = vmul.f32 %v10957, 0.00024414063
      %v10963 = vmul.f32 %v10961, 0.00024414063
      %v10964 = vmul.f32 %v10962, %v10962
      %v10965 = vsub.f32 %v10963, %v10964
      %v10966 = vadd.f32 %v10965, 1e-05
      %v10967 = vrsqrt.pop %v10966
      %v10968 = vmul.f32 %v10967, %v10966
      %v10969 = vmul.f32 %v10968, %v10967
      %v10970 = vmul.f32 0.5, %v10969
      %v10971 = vsub.f32 1.5, %v10970
      %v10972 = vmul.f32 %v10967, %v10971
      %vm10973 = vweird.f32 %v10966
      %vm10974 = vweird.f32 %v10967
      %vm10975 = vmor %vm10973, %vm10974
      %v10976 = vsel %vm10975, %v10967, %v10972
      %10978 = vrot.lane.b32.xlu0 %v10962, 8
      %v10979 = vpop.permute.xlu0 %10978
      %10981 = vrot.lane.b32.xlu0 %v10962, 16
      %v10982 = vpop.permute.xlu0 %10981
      %10984 = vrot.lane.b32.xlu0 %v10962, 24
      %v10985 = vpop.permute.xlu0 %10984
      %10987 = vrot.lane.b32.xlu0 %v10962, 32
      %v10988 = vpop.permute.xlu0 %10987
      %10990 = vrot.lane.b32.xlu0 %v10962, 40
      %v10991 = vpop.permute.xlu0 %10990
      %10993 = vrot.lane.b32.xlu0 %v10962, 48
      %v10994 = vpop.permute.xlu0 %10993
      %10996 = vrot.lane.b32.xlu0 %v10962, 56
      %v10997 = vpop.permute.xlu0 %10996
      %v10999 = vsel %vm5786, %v10962, %v10979
      %v11000 = vsel %vm5916, %v10999, %v10982
      %v11001 = vsel %vm6046, %v11000, %v10985
      %v11002 = vsel %vm6176, %v11001, %v10988
      %v11003 = vsel %vm6306, %v11002, %v10991
      %v11004 = vsel %vm6436, %v11003, %v10994
      %v11005 = vsel %vm6566, %v11004, %v10997
      %11007 = vrot.lane.b32.xlu0 %v10976, 8
      %v11008 = vpop.permute.xlu0 %11007
      %11010 = vrot.lane.b32.xlu0 %v10976, 16
      %v11011 = vpop.permute.xlu0 %11010
      %11013 = vrot.lane.b32.xlu0 %v10976, 24
      %v11014 = vpop.permute.xlu0 %11013
      %11016 = vrot.lane.b32.xlu0 %v10976, 32
      %v11017 = vpop.permute.xlu0 %11016
      %11019 = vrot.lane.b32.xlu0 %v10976, 40
      %v11020 = vpop.permute.xlu0 %11019
      %11022 = vrot.lane.b32.xlu0 %v10976, 48
      %v11023 = vpop.permute.xlu0 %11022
      %11025 = vrot.lane.b32.xlu0 %v10976, 56
      %v11026 = vpop.permute.xlu0 %11025
      %v11028 = vsel %vm5786, %v10976, %v11008
      %v11029 = vsel %vm5916, %v11028, %v11011
      %v11030 = vsel %vm6046, %v11029, %v11014
      %v11031 = vsel %vm6176, %v11030, %v11017
      %v11032 = vsel %vm6306, %v11031, %v11020
      %v11033 = vsel %vm6436, %v11032, %v11023
      %v11034 = vsel %vm6566, %v11033, %v11026
      %v11035 = vperm.slane %v11005, 0
      %v11036 = vsub.f32 %v10415, %v11035
      %v11037 = vsub.f32 %v10417, %v11035
      %v11038 = vsub.f32 %v10420, %v11035
      %v11039 = vsub.f32 %v10422, %v11035
      %v11040 = vsub.f32 %v10425, %v11035
      %v11041 = vsub.f32 %v10427, %v11035
      %v11042 = vsub.f32 %v10430, %v11035
      %v11043 = vsub.f32 %v10432, %v11035
      %v11044 = vsub.f32 %v10435, %v11035
      %v11045 = vsub.f32 %v10437, %v11035
      %v11046 = vsub.f32 %v10440, %v11035
      %v11047 = vsub.f32 %v10442, %v11035
      %v11048 = vsub.f32 %v10445, %v11035
      %v11049 = vsub.f32 %v10447, %v11035
      %v11050 = vsub.f32 %v10450, %v11035
      %v11051 = vsub.f32 %v10452, %v11035
      %v11052 = vsub.f32 %v10455, %v11035
      %v11053 = vsub.f32 %v10457, %v11035
      %v11054 = vsub.f32 %v10460, %v11035
      %v11055 = vsub.f32 %v10462, %v11035
      %v11056 = vsub.f32 %v10465, %v11035
      %v11057 = vsub.f32 %v10467, %v11035
      %v11058 = vsub.f32 %v10470, %v11035
      %v11059 = vsub.f32 %v10472, %v11035
      %v11060 = vsub.f32 %v10475, %v11035
      %v11061 = vsub.f32 %v10477, %v11035
      %v11062 = vsub.f32 %v10480, %v11035
      %v11063 = vsub.f32 %v10482, %v11035
      %v11064 = vsub.f32 %v10485, %v11035
      %v11065 = vsub.f32 %v10487, %v11035
      %v11066 = vsub.f32 %v10490, %v11035
      %v11067 = vsub.f32 %v10492, %v11035
      %v11068 = vsub.f32 %v10495, %v11035
      %v11069 = vsub.f32 %v10497, %v11035
      %v11070 = vsub.f32 %v10500, %v11035
      %v11071 = vsub.f32 %v10502, %v11035
      %v11072 = vsub.f32 %v10505, %v11035
      %v11073 = vsub.f32 %v10507, %v11035
      %v11074 = vsub.f32 %v10510, %v11035
      %v11075 = vsub.f32 %v10512, %v11035
      %v11076 = vsub.f32 %v10515, %v11035
      %v11077 = vsub.f32 %v10517, %v11035
      %v11078 = vsub.f32 %v10520, %v11035
      %v11079 = vsub.f32 %v10522, %v11035
      %v11080 = vsub.f32 %v10525, %v11035
      %v11081 = vsub.f32 %v10527, %v11035
      %v11082 = vsub.f32 %v10530, %v11035
      %v11083 = vsub.f32 %v10532, %v11035
      %v11084 = vsub.f32 %v10535, %v11035
      %v11085 = vsub.f32 %v10537, %v11035
      %v11086 = vsub.f32 %v10540, %v11035
      %v11087 = vsub.f32 %v10542, %v11035
      %v11088 = vsub.f32 %v10545, %v11035
      %v11089 = vsub.f32 %v10547, %v11035
      %v11090 = vsub.f32 %v10550, %v11035
      %v11091 = vsub.f32 %v10552, %v11035
      %v11092 = vsub.f32 %v10555, %v11035
      %v11093 = vsub.f32 %v10557, %v11035
      %v11094 = vsub.f32 %v10560, %v11035
      %v11095 = vsub.f32 %v10562, %v11035
      %v11096 = vsub.f32 %v10565, %v11035
      %v11097 = vsub.f32 %v10567, %v11035
      %v11098 = vsub.f32 %v10570, %v11035
      %v11099 = vsub.f32 %v10572, %v11035
      %v11100 = vperm.slane %v11034, 0
      %v11101 = vmul.f32 %v11036, %v11100
      %v11102 = vmul.f32 %v11037, %v11100
      %v11103 = vmul.f32 %v11038, %v11100
      %v11104 = vmul.f32 %v11039, %v11100
      %v11105 = vmul.f32 %v11040, %v11100
      %v11106 = vmul.f32 %v11041, %v11100
      %v11107 = vmul.f32 %v11042, %v11100
      %v11108 = vmul.f32 %v11043, %v11100
      %v11109 = vmul.f32 %v11044, %v11100
      %v11110 = vmul.f32 %v11045, %v11100
      %v11111 = vmul.f32 %v11046, %v11100
      %v11112 = vmul.f32 %v11047, %v11100
      %v11113 = vmul.f32 %v11048, %v11100
      %v11114 = vmul.f32 %v11049, %v11100
      %v11115 = vmul.f32 %v11050, %v11100
      %v11116 = vmul.f32 %v11051, %v11100
      %v11117 = vmul.f32 %v11052, %v11100
      %v11118 = vmul.f32 %v11053, %v11100
      %v11119 = vmul.f32 %v11054, %v11100
      %v11120 = vmul.f32 %v11055, %v11100
      %v11121 = vmul.f32 %v11056, %v11100
      %v11122 = vmul.f32 %v11057, %v11100
      %v11123 = vmul.f32 %v11058, %v11100
      %v11124 = vmul.f32 %v11059, %v11100
      %v11125 = vmul.f32 %v11060, %v11100
      %v11126 = vmul.f32 %v11061, %v11100
      %v11127 = vmul.f32 %v11062, %v11100
      %v11128 = vmul.f32 %v11063, %v11100
      %v11129 = vmul.f32 %v11064, %v11100
      %v11130 = vmul.f32 %v11065, %v11100
      %v11131 = vmul.f32 %v11066, %v11100
      %v11132 = vmul.f32 %v11067, %v11100
      %v11133 = vmul.f32 %v11068, %v11100
      %v11134 = vmul.f32 %v11069, %v11100
      %v11135 = vmul.f32 %v11070, %v11100
      %v11136 = vmul.f32 %v11071, %v11100
      %v11137 = vmul.f32 %v11072, %v11100
      %v11138 = vmul.f32 %v11073, %v11100
      %v11139 = vmul.f32 %v11074, %v11100
      %v11140 = vmul.f32 %v11075, %v11100
      %v11141 = vmul.f32 %v11076, %v11100
      %v11142 = vmul.f32 %v11077, %v11100
      %v11143 = vmul.f32 %v11078, %v11100
      %v11144 = vmul.f32 %v11079, %v11100
      %v11145 = vmul.f32 %v11080, %v11100
      %v11146 = vmul.f32 %v11081, %v11100
      %v11147 = vmul.f32 %v11082, %v11100
      %v11148 = vmul.f32 %v11083, %v11100
      %v11149 = vmul.f32 %v11084, %v11100
      %v11150 = vmul.f32 %v11085, %v11100
      %v11151 = vmul.f32 %v11086, %v11100
      %v11152 = vmul.f32 %v11087, %v11100
      %v11153 = vmul.f32 %v11088, %v11100
      %v11154 = vmul.f32 %v11089, %v11100
      %v11155 = vmul.f32 %v11090, %v11100
      %v11156 = vmul.f32 %v11091, %v11100
      %v11157 = vmul.f32 %v11092, %v11100
      %v11158 = vmul.f32 %v11093, %v11100
      %v11159 = vmul.f32 %v11094, %v11100
      %v11160 = vmul.f32 %v11095, %v11100
      %v11161 = vmul.f32 %v11096, %v11100
      %v11162 = vmul.f32 %v11097, %v11100
      %v11163 = vmul.f32 %v11098, %v11100
      %v11164 = vmul.f32 %v11099, %v11100
      %v11165 = vmax.f32 %v11101, 0.0
      %v11166 = vmax.f32 %v11102, 0.0
      %v11167 = vmax.f32 %v11103, 0.0
      %v11168 = vmax.f32 %v11104, 0.0
      %v11169 = vmax.f32 %v11105, 0.0
      %v11170 = vmax.f32 %v11106, 0.0
      %v11171 = vmax.f32 %v11107, 0.0
      %v11172 = vmax.f32 %v11108, 0.0
      %v11173 = vmax.f32 %v11109, 0.0
      %v11174 = vmax.f32 %v11110, 0.0
      %v11175 = vmax.f32 %v11111, 0.0
      %v11176 = vmax.f32 %v11112, 0.0
      %v11177 = vmax.f32 %v11113, 0.0
      %v11178 = vmax.f32 %v11114, 0.0
      %v11179 = vmax.f32 %v11115, 0.0
      %v11180 = vmax.f32 %v11116, 0.0
      %v11181 = vmax.f32 %v11117, 0.0
      %v11182 = vmax.f32 %v11118, 0.0
      %v11183 = vmax.f32 %v11119, 0.0
      %v11184 = vmax.f32 %v11120, 0.0
      %v11185 = vmax.f32 %v11121, 0.0
      %v11186 = vmax.f32 %v11122, 0.0
      %v11187 = vmax.f32 %v11123, 0.0
      %v11188 = vmax.f32 %v11124, 0.0
      %v11189 = vmax.f32 %v11125, 0.0
      %v11190 = vmax.f32 %v11126, 0.0
      %v11191 = vmax.f32 %v11127, 0.0
      %v11192 = vmax.f32 %v11128, 0.0
      %v11193 = vmax.f32 %v11129, 0.0
      %v11194 = vmax.f32 %v11130, 0.0
      %v11195 = vmax.f32 %v11131, 0.0
      %v11196 = vmax.f32 %v11132, 0.0
      %v11197 = vmax.f32 %v11133, 0.0
      %v11198 = vmax.f32 %v11134, 0.0
      %v11199 = vmax.f32 %v11135, 0.0
      %v11200 = vmax.f32 %v11136, 0.0
      %v11201 = vmax.f32 %v11137, 0.0
      %v11202 = vmax.f32 %v11138, 0.0
      %v11203 = vmax.f32 %v11139, 0.0
      %v11204 = vmax.f32 %v11140, 0.0
      %v11205 = vmax.f32 %v11141, 0.0
      %v11206 = vmax.f32 %v11142, 0.0
      %v11207 = vmax.f32 %v11143, 0.0
      %v11208 = vmax.f32 %v11144, 0.0
      %v11209 = vmax.f32 %v11145, 0.0
      %v11210 = vmax.f32 %v11146, 0.0
      %v11211 = vmax.f32 %v11147, 0.0
      %v11212 = vmax.f32 %v11148, 0.0
      %v11213 = vmax.f32 %v11149, 0.0
      %v11214 = vmax.f32 %v11150, 0.0
      %v11215 = vmax.f32 %v11151, 0.0
      %v11216 = vmax.f32 %v11152, 0.0
      %v11217 = vmax.f32 %v11153, 0.0
      %v11218 = vmax.f32 %v11154, 0.0
      %v11219 = vmax.f32 %v11155, 0.0
      %v11220 = vmax.f32 %v11156, 0.0
      %v11221 = vmax.f32 %v11157, 0.0
      %v11222 = vmax.f32 %v11158, 0.0
      %v11223 = vmax.f32 %v11159, 0.0
      %v11224 = vmax.f32 %v11160, 0.0
      %v11225 = vmax.f32 %v11161, 0.0
      %v11226 = vmax.f32 %v11162, 0.0
      %v11227 = vmax.f32 %v11163, 0.0
      %v11228 = vmax.f32 %v11164, 0.0
      %11229 = vst.msk [vmem:[%s143] sm:$0xff] %vm10152, %v11165
      %11230 = vst.msk [vmem:[%s143 + $0x8] sm:$0xff] %vm10152, %v11166
      %11231 = vst.msk [vmem:[%s143 + $0x10] sm:$0xff] %vm10152, %v11167
      %11232 = vst.msk [vmem:[%s143 + $0x18] sm:$0xff] %vm10152, %v11168
      %11233 = vst.msk [vmem:[%s143 + $0x20] sm:$0xff] %vm10152, %v11169
      %11234 = vst.msk [vmem:[%s143 + $0x28] sm:$0xff] %vm10152, %v11170
      %11235 = vst.msk [vmem:[%s143 + $0x30] sm:$0xff] %vm10152, %v11171
      %11236 = vst.msk [vmem:[%s143 + $0x38] sm:$0xff] %vm10152, %v11172
      %11237 = vst.msk [vmem:[%s143 + $0x40] sm:$0xff] %vm10152, %v11173
      %11238 = vst.msk [vmem:[%s143 + $0x48] sm:$0xff] %vm10152, %v11174
      %11239 = vst.msk [vmem:[%s143 + $0x50] sm:$0xff] %vm10152, %v11175
      %11240 = vst.msk [vmem:[%s143 + $0x58] sm:$0xff] %vm10152, %v11176
      %11241 = vst.msk [vmem:[%s143 + $0x60] sm:$0xff] %vm10152, %v11177
      %11242 = vst.msk [vmem:[%s143 + $0x68] sm:$0xff] %vm10152, %v11178
      %11243 = vst.msk [vmem:[%s143 + $0x70] sm:$0xff] %vm10152, %v11179
      %11244 = vst.msk [vmem:[%s143 + $0x78] sm:$0xff] %vm10152, %v11180
      %11245 = vst.msk [vmem:[%s143 + $0x80] sm:$0xff] %vm10152, %v11181
      %11246 = vst.msk [vmem:[%s143 + $0x88] sm:$0xff] %vm10152, %v11182
      %11247 = vst.msk [vmem:[%s143 + $0x90] sm:$0xff] %vm10152, %v11183
      %11248 = vst.msk [vmem:[%s143 + $0x98] sm:$0xff] %vm10152, %v11184
      %11249 = vst.msk [vmem:[%s143 + $0xa0] sm:$0xff] %vm10152, %v11185
      %11250 = vst.msk [vmem:[%s143 + $0xa8] sm:$0xff] %vm10152, %v11186
      %11251 = vst.msk [vmem:[%s143 + $0xb0] sm:$0xff] %vm10152, %v11187
      %11252 = vst.msk [vmem:[%s143 + $0xb8] sm:$0xff] %vm10152, %v11188
      %11253 = vst.msk [vmem:[%s143 + $0xc0] sm:$0xff] %vm10152, %v11189
      %11254 = vst.msk [vmem:[%s143 + $0xc8] sm:$0xff] %vm10152, %v11190
      %11255 = vst.msk [vmem:[%s143 + $0xd0] sm:$0xff] %vm10152, %v11191
      %11256 = vst.msk [vmem:[%s143 + $0xd8] sm:$0xff] %vm10152, %v11192
      %11257 = vst.msk [vmem:[%s143 + $0xe0] sm:$0xff] %vm10152, %v11193
      %11258 = vst.msk [vmem:[%s143 + $0xe8] sm:$0xff] %vm10152, %v11194
      %11259 = vst.msk [vmem:[%s143 + $0xf0] sm:$0xff] %vm10152, %v11195
      %11260 = vst.msk [vmem:[%s143 + $0xf8] sm:$0xff] %vm10152, %v11196
      %11261 = vst.msk [vmem:[%s143 + $0x100] sm:$0xff] %vm10152, %v11197
      %11262 = vst.msk [vmem:[%s143 + $0x108] sm:$0xff] %vm10152, %v11198
      %11263 = vst.msk [vmem:[%s143 + $0x110] sm:$0xff] %vm10152, %v11199
      %11264 = vst.msk [vmem:[%s143 + $0x118] sm:$0xff] %vm10152, %v11200
      %11265 = vst.msk [vmem:[%s143 + $0x120] sm:$0xff] %vm10152, %v11201
      %11266 = vst.msk [vmem:[%s143 + $0x128] sm:$0xff] %vm10152, %v11202
      %11267 = vst.msk [vmem:[%s143 + $0x130] sm:$0xff] %vm10152, %v11203
      %11268 = vst.msk [vmem:[%s143 + $0x138] sm:$0xff] %vm10152, %v11204
      %11269 = vst.msk [vmem:[%s143 + $0x140] sm:$0xff] %vm10152, %v11205
      %11270 = vst.msk [vmem:[%s143 + $0x148] sm:$0xff] %vm10152, %v11206
      %11271 = vst.msk [vmem:[%s143 + $0x150] sm:$0xff] %vm10152, %v11207
      %11272 = vst.msk [vmem:[%s143 + $0x158] sm:$0xff] %vm10152, %v11208
      %11273 = vst.msk [vmem:[%s143 + $0x160] sm:$0xff] %vm10152, %v11209
      %11274 = vst.msk [vmem:[%s143 + $0x168] sm:$0xff] %vm10152, %v11210
      %11275 = vst.msk [vmem:[%s143 + $0x170] sm:$0xff] %vm10152, %v11211
      %11276 = vst.msk [vmem:[%s143 + $0x178] sm:$0xff] %vm10152, %v11212
      %11277 = vst.msk [vmem:[%s143 + $0x180] sm:$0xff] %vm10152, %v11213
      %11278 = vst.msk [vmem:[%s143 + $0x188] sm:$0xff] %vm10152, %v11214
      %11279 = vst.msk [vmem:[%s143 + $0x190] sm:$0xff] %vm10152, %v11215
      %11280 = vst.msk [vmem:[%s143 + $0x198] sm:$0xff] %vm10152, %v11216
      %11281 = vst.msk [vmem:[%s143 + $0x1a0] sm:$0xff] %vm10152, %v11217
      %11282 = vst.msk [vmem:[%s143 + $0x1a8] sm:$0xff] %vm10152, %v11218
      %11283 = vst.msk [vmem:[%s143 + $0x1b0] sm:$0xff] %vm10152, %v11219
      %11284 = vst.msk [vmem:[%s143 + $0x1b8] sm:$0xff] %vm10152, %v11220
      %11285 = vst.msk [vmem:[%s143 + $0x1c0] sm:$0xff] %vm10152, %v11221
      %11286 = vst.msk [vmem:[%s143 + $0x1c8] sm:$0xff] %vm10152, %v11222
      %11287 = vst.msk [vmem:[%s143 + $0x1d0] sm:$0xff] %vm10152, %v11223
      %11288 = vst.msk [vmem:[%s143 + $0x1d8] sm:$0xff] %vm10152, %v11224
      %11289 = vst.msk [vmem:[%s143 + $0x1e0] sm:$0xff] %vm10152, %v11225
      %11290 = vst.msk [vmem:[%s143 + $0x1e8] sm:$0xff] %vm10152, %v11226
      %11291 = vst.msk [vmem:[%s143 + $0x1f0] sm:$0xff] %vm10152, %v11227
      %11292 = vst.msk [vmem:[%s143 + $0x1f8] sm:$0xff] %vm10152, %v11228
      %p11293 = scmp.lt.s32.totalorder %s13, 1
      %s11294 = scalar_select %p11293, %s13, 1
      %s11295 = smul.addr %s11294, 64
      %s11296 = smul.addr %s11295, 8
      %s11297 = scalar_lea.vmem %s2, %s11296
      // Predicated region
      $region29: #{unet_up_block.1} parent=27 // pred_check
        %p11298 = pneg %p78
      $region30: #{unet_up_block.1} parent=27 // pred_check_branch
        %11300 = sbr.rel (%p11298) target = $region32
      $region31: #{unet_up_block.1} parent=27 // pred_region
        _
      $region32: #{unet_up_block.1} parent=27 // pred_fallthru
        _
    $region28: #{unet_up_block.1} parent=5 // pred_fallthru
      _
    %p11301 = scmp.le.s32.totalorder 2, %s8
    // Predicated region
    $region33: #{unet_up_block.1} parent=5 // pred_check
      %p11302 = pneg %p11301
    $region34: #{unet_up_block.1} parent=5 // pred_check_branch
      %11304 = sbr.rel (%p11302) target = $region36
    $region35: #{unet_up_block.1} parent=5 // pred_region
      %s11305 = ssub.s32 %s8, 2
      // Predicated region
      $region37: #{unet_up_block.1} parent=35 // pred_check
        %p11306 = pneg %p84
      $region38: #{unet_up_block.1} parent=35 // pred_check_branch
        %11308 = sbr.rel (%p11306) target = $region40
      $region39: #{unet_up_block.1} parent=35 // pred_region
        %p11309 = scmp.lt.s32.totalorder %s14, 1
        %s11310 = scalar_select %p11309, %s14, 1
        %s11311 = smul.addr %s11310, 64
        %s11312 = smul.addr %s11311, 8
        %s11313 = scalar_lea.vmem %s2, %s11312
      $region40: #{unet_up_block.1} parent=35 // pred_fallthru
        _
    $region36: #{unet_up_block.1} parent=5 // pred_fallthru
      _
  $region6: #{unet_up_block.1} parent=0 // loop_footer
    %s12 = sadd.s32 1, %s8
  $region7: #{unet_up_block.1} parent=0 // loop_footer_branch
    %7 = sbr.rel target = $region3
  $region8: #{unet_up_block.1} parent=0 // loop_exit
    _

</llo_original>
